<compile_context>
chip_gen: v7x
topology: tpu7x:2x2x1
jax: 0.10.0
libtpu: 0.0.40
codegen_flags: <defaults>
</compile_context>

<pallas_src>
import numpy as np
import jax
import jax.numpy as jnp
from jax.experimental import pallas as pl
from jax.experimental.pallas import tpu as pltpu


CPAD = 128        # lane padding for every channel / feature axis
ROW_PAD = 8       # sublane padding for batch rows (conv2 groups, conv3, heads)
CONV3_CH = 64     # conv3 output channels == flattened feature size
N_CLUB = 14       # club head outputs


# ----------------------------- fused Pallas kernel -------------------------- #

def _fused_actor_kernel(p1_ref, w1_ref, b1_ref,
                        s2_ref, w2_ref, b2_ref,
                        w3_ref, b3_ref,
                        poslie_ref, w1h_ref, b1h_ref, w2h_ref, b2h_ref,
                        out_ref):
    f32 = jnp.float32

    # ---- conv1: im2col patches (M1,256) @ (256,128) + bias, ReLU --------- #
    a1 = jnp.dot(p1_ref[...], w1_ref[...], preferred_element_type=f32)
    a1 = jnp.maximum(a1 + b1_ref[...], 0.0)              # (M1, 128), cols>=32 are 0

    # ---- conv2: per-tap 0/1 gather matmul + tap weight matmul ------------ #
    n_tap2, rows2, _ = s2_ref.shape                       # (16, 72, 128)
    acc2 = jnp.zeros((rows2, w2_ref.shape[2]), f32)
    for t in range(n_tap2):
        g = jnp.dot(s2_ref[t], a1, preferred_element_type=f32)          # (72, 128)
        acc2 = acc2 + jnp.dot(g, w2_ref[t], preferred_element_type=f32)  # (72, 128)
    a2 = jnp.maximum(acc2 + b2_ref[...], 0.0)             # rows = (pos, batch_pad)

    # ---- conv3 (1x1 spatial output): sum over the 9 input positions ------ #
    n_tap3 = w3_ref.shape[0]                              # 9
    hm = out_ref.shape[0]                                 # 8 padded batch rows
    acc3 = jnp.zeros((hm, w3_ref.shape[2]), f32)
    for p in range(n_tap3):
        acc3 = acc3 + jnp.dot(a2[p * hm:(p + 1) * hm, :], w3_ref[p],
                              preferred_element_type=f32)
    feat = jnp.maximum(acc3 + b3_ref[...], 0.0)           # (8, 128); cols>=64 exactly 0

    # ---- fused theta / club heads ---------------------------------------- #
    z = feat + poslie_ref[...]                            # pos/lie live in cols 64..68
    h = jnp.dot(z, w1h_ref[...], preferred_element_type=f32) + b1h_ref[...]
    h = jnp.maximum(h, 0.0)                               # (8, 1024)
    o2 = jnp.dot(h, w2h_ref[...], preferred_element_type=f32) + b2h_ref[...]  # (8, 128)

    col = jax.lax.broadcasted_iota(jnp.int32, o2.shape, 1)
    theta_full = 360.0 / (1.0 + jnp.exp(-o2))             # sigmoid(x) * 360
    club_logits = jnp.where((col >= 1) & (col < 1 + N_CLUB), o2, -1e30)
    m = jnp.max(club_logits, axis=1, keepdims=True)
    e = jnp.exp(club_logits - m)
    probs = e * pl.reciprocal(jnp.sum(e, axis=1, keepdims=True))
    out_ref[...] = jnp.where(col == 0, theta_full, probs)


# ------------------------------- JAX glue ----------------------------------- #

def _full_spec(shape):
    nd = len(shape)
    return pl.BlockSpec(shape, lambda *_: (0,) * nd)


def _conv_out(size, k, s):
    return (size - k) // s + 1


def im2col_nhwc(x, kh, kw, stride):
    """x: (B, H, W, C) -> (B*OH*OW, KH*KW*C); columns ordered (kh, kw, c)."""
    B, H, W, C = x.shape
    oh = _conv_out(H, kh, stride)
    ow = _conv_out(W, kw, stride)
    taps = [x[:, i:i + stride * (oh - 1) + 1:stride,
              j:j + stride * (ow - 1) + 1:stride, :]
            for i in range(kh) for j in range(kw)]
    p = jnp.stack(taps, axis=3)                            # (B, OH, OW, KH*KW, C)
    return p.reshape(B * oh * ow, kh * kw * C)


def pack_params(params, batch, img_hw):
    """One-time repack of ActorCnn parameters into MXU/lane-aligned tensors."""
    assert batch <= ROW_PAD
    H, W = img_hw
    oh1, ow1 = _conv_out(H, 8, 4), _conv_out(W, 8, 4)      # 8, 8
    oh2, ow2 = _conv_out(oh1, 4, 2), _conv_out(ow1, 4, 2)  # 3, 3

    def pad_to(x, shape):
        return jnp.pad(x, [(0, s - d) for s, d in zip(shape, x.shape)])

    c1_w, c2_w, c3_w = params["c1_w"], params["c2_w"], params["c3_w"]
    co1, ci1, k1, _ = c1_w.shape
    co2, ci2, k2, _ = c2_w.shape
    co3, ci3, k3, _ = c3_w.shape

    packed = {}
    # conv1 as a single im2col matmul, N padded to 128 lanes.
    packed["w1"] = pad_to(c1_w.transpose(2, 3, 1, 0).reshape(k1 * k1 * ci1, co1),
                          (k1 * k1 * ci1, CPAD))
    packed["b1"] = pad_to(params["c1_b"].reshape(1, co1), (1, CPAD))

    # conv2: one 0/1 gather matrix per kernel tap (selects conv1 rows into the
    # 8-padded (pos, batch) row layout) + per-tap weight matrices.
    st2 = 2
    rows2 = oh2 * ow2 * ROW_PAD
    m1 = batch * oh1 * ow1
    s2 = np.zeros((k2 * k2, rows2, m1), np.float32)
    for i in range(k2):
        for j in range(k2):
            t = i * k2 + j
            for y in range(oh2):
                for x in range(ow2):
                    p = y * ow2 + x
                    for b in range(batch):
                        src = b * oh1 * ow1 + (st2 * y + i) * ow1 + (st2 * x + j)
                        s2[t, p * ROW_PAD + b, src] = 1.0
    packed["s2"] = jnp.asarray(s2)
    packed["w2"] = pad_to(c2_w.transpose(2, 3, 1, 0).reshape(k2 * k2, ci2, co2),
                          (k2 * k2, CPAD, CPAD))
    packed["b2"] = pad_to(params["c2_b"].reshape(1, co2), (1, CPAD))

    # conv3 (1x1 output): per-spatial-position weight matrices.
    packed["w3"] = pad_to(c3_w.transpose(2, 3, 1, 0).reshape(k3 * k3, ci3, co3),
                          (k3 * k3, CPAD, CPAD))
    packed["b3"] = pad_to(params["c3_b"].reshape(1, co3), (1, CPAD))

    # fused heads: layer-1 weights side by side, layer-2 block-diagonal.
    hid = params["t1_w"].shape[1]                          # 512
    packed["w1h"] = pad_to(jnp.concatenate([params["t1_w"], params["k1_w"]], axis=1),
                           (CPAD, 2 * hid))                # (128, 1024)
    packed["b1h"] = jnp.concatenate([params["t1_b"], params["k1_b"]], axis=1)
    w2h = jnp.zeros((2 * hid, CPAD), jnp.float32)
    w2h = w2h.at[:hid, 0:1].set(params["t2_w"])
    w2h = w2h.at[hid:, 1:1 + N_CLUB].set(params["k2_w"])
    packed["w2h"] = w2h
    b2h = jnp.zeros((1, CPAD), jnp.float32)
    b2h = b2h.at[:, 0:1].set(params["t2_b"])
    b2h = b2h.at[:, 1:1 + N_CLUB].set(params["k2_b"])
    packed["b2h"] = b2h
    return packed


def actor_cnn_forward(packed, img, pos, lie):
    batch = img.shape[0]
    x = jnp.transpose(img, (0, 2, 3, 1))                   # NHWC, channels on lanes
    patches1 = im2col_nhwc(x, 8, 8, 4)                     # (B*64, 256)

    poslie = jnp.concatenate([jnp.squeeze(pos, axis=1), lie], axis=1)      # (B, 5)
    poslie = jnp.pad(poslie, ((0, ROW_PAD - batch),
                              (CONV3_CH, CPAD - CONV3_CH - poslie.shape[1])))

    args = (patches1, packed["w1"], packed["b1"],
            packed["s2"], packed["w2"], packed["b2"],
            packed["w3"], packed["b3"],
            poslie, packed["w1h"], packed["b1h"], packed["w2h"], packed["b2h"])

    # TODO(synk): if batch grows beyond toy scale, add a ("parallel",) grid over
    # batch rows so v7x's second TensorCore is used.
    out = pl.pallas_call(
        _fused_actor_kernel,
        out_shape=jax.ShapeDtypeStruct((ROW_PAD, CPAD), jnp.float32),
        in_specs=[_full_spec(a.shape) for a in args],
        out_specs=_full_spec((ROW_PAD, CPAD)),
        compiler_params=pltpu.CompilerParams(vmem_limit_bytes=32 * 1024 * 1024),
    )(*args)

    theta = out[:batch, 0:1]
    club_probs = out[:batch, 1:1 + N_CLUB]
    # TODO(synk): torch.distributions.Categorical has no Pallas equivalent;
    # we return the club probability matrix instead of a distribution object.
    return theta, club_probs


# ----------------------- deterministic parameter init ----------------------- #

def _uniform(key, shape, fan_in):
    bound = 1.0 / jnp.sqrt(jnp.asarray(fan_in, jnp.float32))
    return jax.random.uniform(key, shape, jnp.float32, -bound, bound)


def init_params(key, in_ch, pos_dim, lie_dim, feat_size):
    ks = jax.random.split(key, 16)
    concat = feat_size + pos_dim + lie_dim
    p = {}
    p["c1_w"] = _uniform(ks[0], (32, in_ch, 8, 8), in_ch * 8 * 8)
    p["c1_b"] = _uniform(ks[1], (32,), in_ch * 8 * 8)
    p["c2_w"] = _uniform(ks[2], (64, 32, 4, 4), 32 * 4 * 4)
    p["c2_b"] = _uniform(ks[3], (64,), 32 * 4 * 4)
    p["c3_w"] = _uniform(ks[4], (64, 64, 3, 3), 64 * 3 * 3)
    p["c3_b"] = _uniform(ks[5], (64,), 64 * 3 * 3)
    p["t1_w"] = _uniform(ks[6], (concat, 512), concat)
    p["t1_b"] = _uniform(ks[7], (1, 512), concat)
    p["t2_w"] = _uniform(ks[8], (512, 1), 512)
    p["t2_b"] = _uniform(ks[9], (1, 1), 512)
    p["k1_w"] = _uniform(ks[10], (concat, 512), concat)
    p["k1_b"] = _uniform(ks[11], (1, 512), concat)
    p["k2_w"] = _uniform(ks[12], (512, 14), 512)
    p["k2_b"] = _uniform(ks[13], (1, 14), 512)
    return p


# ----------------------------- pure-JAX reference ---------------------------- #

def reference_forward(params, img, pos, lie):
    def conv(x, w, b, s):
        y = jax.lax.conv_general_dilated(
            x, w, (s, s), "VALID", dimension_numbers=("NCHW", "OIHW", "NCHW"))
        return jnp.maximum(y + b.reshape(1, -1, 1, 1), 0.0)

    x = conv(img, params["c1_w"], params["c1_b"], 4)
    x = conv(x, params["c2_w"], params["c2_b"], 2)
    x = conv(x, params["c3_w"], params["c3_b"], 1)
    B = img.shape[0]
    z = jnp.concatenate([x.reshape(B, -1), jnp.squeeze(pos, axis=1), lie], axis=1)

    ht = jnp.maximum(z @ params["t1_w"] + params["t1_b"], 0.0)
    theta = jax.nn.sigmoid(ht @ params["t2_w"] + params["t2_b"]) * 360.0
    hc = jnp.maximum(z @ params["k1_w"] + params["k1_b"], 0.0)
    club = jax.nn.softmax(hc @ params["k2_w"] + params["k2_b"], axis=1)
    return theta, club


# ----------------------------------- main ------------------------------------ #

if __name__ == "__main__":
    key = jax.random.PRNGKey(0)
    k_img, k_pos, k_lie, k_par = jax.random.split(key, 4)

    # Shapes consistent with the module:
    #   input_shape = (4, 36, 36) -> conv stack gives 8x8 -> 3x3 -> 1x1, 64 ch
    #   pos_shape   = (1, 2)      -> pos tensor (B, 1, 2);  lie_shape = 3
    B, C, H, W = 2, 4, 36, 36
    pos_dim, lie_dim = 2, 3
    feat_size = 64 * 1 * 1

    img = jax.random.normal(k_img, (B, C, H, W), jnp.float32)
    pos = jax.random.normal(k_pos, (B, 1, pos_dim), jnp.float32)
    lie = jax.random.normal(k_lie, (B, lie_dim), jnp.float32)

    params = init_params(k_par, C, pos_dim, lie_dim, feat_size)
    packed = pack_params(params, B, (H, W))          # one-time weight repacking

    fwd = jax.jit(actor_cnn_forward)
    theta, club_probs = fwd(packed, img, pos, lie)
    theta, club_probs = jax.block_until_ready((theta, club_probs))

    theta_ref, club_ref = reference_forward(params, img, pos, lie)
    assert theta.shape == (B, 1) and club_probs.shape == (B, 14)
    assert jnp.allclose(theta, theta_ref, rtol=2e-3, atol=2e-2), "theta mismatch"
    assert jnp.allclose(club_probs, club_ref, rtol=2e-3, atol=2e-3), "club mismatch"

    print("KERNEL_OK")
</pallas_src>

<mosaic_0001>
module attributes {stable_mosaic.version = 11 : i64} {
  func.func @_fused_actor_kernel(%arg0: memref<128x256xf32, #tpu.memory_space<vmem>>, %arg1: memref<256x128xf32, #tpu.memory_space<vmem>>, %arg2: memref<1x128xf32, #tpu.memory_space<vmem>>, %arg3: memref<16x72x128xf32, #tpu.memory_space<vmem>>, %arg4: memref<16x128x128xf32, #tpu.memory_space<vmem>>, %arg5: memref<1x128xf32, #tpu.memory_space<vmem>>, %arg6: memref<9x128x128xf32, #tpu.memory_space<vmem>>, %arg7: memref<1x128xf32, #tpu.memory_space<vmem>>, %arg8: memref<8x128xf32, #tpu.memory_space<vmem>>, %arg9: memref<128x1024xf32, #tpu.memory_space<vmem>>, %arg10: memref<1x1024xf32, #tpu.memory_space<vmem>>, %arg11: memref<1024x128xf32, #tpu.memory_space<vmem>>, %arg12: memref<1x128xf32, #tpu.memory_space<vmem>>, %arg13: memref<8x128xf32, #tpu.memory_space<vmem>>) attributes {dimension_semantics = [], scalar_prefetch = 0 : i64, scratch_operands = 0 : i64, tpu.core_type = #tpu.core_type<tc>} {
    %c0 = arith.constant 0 : index
    %c0_0 = arith.constant 0 : index
    %0 = vector.load %arg0[%c0, %c0_0] : memref<128x256xf32, #tpu.memory_space<vmem>>, vector<128x256xf32>
    %c0_1 = arith.constant 0 : index
    %c0_2 = arith.constant 0 : index
    %1 = vector.load %arg1[%c0_1, %c0_2] : memref<256x128xf32, #tpu.memory_space<vmem>>, vector<256x128xf32>
    %cst = arith.constant dense<0.000000e+00> : vector<128x128xf32>
    %2 = tpu.matmul %0, %1, %cst {dimension_numbers = #tpu.dot_dimension_numbers<[1], [0], [0], [1], [0, 0, 1, 1], [], []>} : vector<128x256xf32>, vector<256x128xf32>, vector<128x128xf32> -> vector<128x128xf32>
    %c0_3 = arith.constant 0 : index
    %c0_4 = arith.constant 0 : index
    %3 = vector.load %arg2[%c0_3, %c0_4] : memref<1x128xf32, #tpu.memory_space<vmem>>, vector<1x128xf32>
    %4 = vector.broadcast %3 : vector<1x128xf32> to vector<128x128xf32>
    %5 = arith.addf %2, %4 : vector<128x128xf32>
    %cst_5 = arith.constant 0.000000e+00 : f32
    %6 = vector.broadcast %cst_5 : f32 to vector<128x128xf32>
    %7 = arith.maximumf %5, %6 : vector<128x128xf32>
    %cst_6 = arith.constant 0.000000e+00 : f32
    %8 = vector.broadcast %cst_6 : f32 to vector<72x128xf32>
    %c0_7 = arith.constant 0 : index
    %c0_8 = arith.constant 0 : index
    %c0_9 = arith.constant 0 : index
    %9 = vector.load %arg3[%c0_7, %c0_8, %c0_9] : memref<16x72x128xf32, #tpu.memory_space<vmem>>, vector<1x72x128xf32>
    %10 = vector.shape_cast %9 : vector<1x72x128xf32> to vector<72x128xf32>
    %cst_10 = arith.constant dense<0.000000e+00> : vector<72x128xf32>
    %11 = tpu.matmul %10, %7, %cst_10 {dimension_numbers = #tpu.dot_dimension_numbers<[1], [0], [0], [1], [0, 0, 1, 1], [], []>} : vector<72x128xf32>, vector<128x128xf32>, vector<72x128xf32> -> vector<72x128xf32>
    %c0_11 = arith.constant 0 : index
    %c0_12 = arith.constant 0 : index
    %c0_13 = arith.constant 0 : index
    %12 = vector.load %arg4[%c0_11, %c0_12, %c0_13] : memref<16x128x128xf32, #tpu.memory_space<vmem>>, vector<1x128x128xf32>
    %13 = vector.shape_cast %12 : vector<1x128x128xf32> to vector<128x128xf32>
    %cst_14 = arith.constant dense<0.000000e+00> : vector<72x128xf32>
    %14 = tpu.matmul %11, %13, %cst_14 {dimension_numbers = #tpu.dot_dimension_numbers<[1], [0], [0], [1], [0, 0, 1, 1], [], []>} : vector<72x128xf32>, vector<128x128xf32>, vector<72x128xf32> -> vector<72x128xf32>
    %15 = arith.addf %8, %14 : vector<72x128xf32>
    %c1 = arith.constant 1 : index
    %c0_15 = arith.constant 0 : index
    %c0_16 = arith.constant 0 : index
    %16 = vector.load %arg3[%c1, %c0_15, %c0_16] : memref<16x72x128xf32, #tpu.memory_space<vmem>>, vector<1x72x128xf32>
    %17 = vector.shape_cast %16 : vector<1x72x128xf32> to vector<72x128xf32>
    %cst_17 = arith.constant dense<0.000000e+00> : vector<72x128xf32>
    %18 = tpu.matmul %17, %7, %cst_17 {dimension_numbers = #tpu.dot_dimension_numbers<[1], [0], [0], [1], [0, 0, 1, 1], [], []>} : vector<72x128xf32>, vector<128x128xf32>, vector<72x128xf32> -> vector<72x128xf32>
    %c1_18 = arith.constant 1 : index
    %c0_19 = arith.constant 0 : index
    %c0_20 = arith.constant 0 : index
    %19 = vector.load %arg4[%c1_18, %c0_19, %c0_20] : memref<16x128x128xf32, #tpu.memory_space<vmem>>, vector<1x128x128xf32>
    %20 = vector.shape_cast %19 : vector<1x128x128xf32> to vector<128x128xf32>
    %cst_21 = arith.constant dense<0.000000e+00> : vector<72x128xf32>
    %21 = tpu.matmul %18, %20, %cst_21 {dimension_numbers = #tpu.dot_dimension_numbers<[1], [0], [0], [1], [0, 0, 1, 1], [], []>} : vector<72x128xf32>, vector<128x128xf32>, vector<72x128xf32> -> vector<72x128xf32>
    %22 = arith.addf %15, %21 : vector<72x128xf32>
    %c2 = arith.constant 2 : index
    %c0_22 = arith.constant 0 : index
    %c0_23 = arith.constant 0 : index
    %23 = vector.load %arg3[%c2, %c0_22, %c0_23] : memref<16x72x128xf32, #tpu.memory_space<vmem>>, vector<1x72x128xf32>
    %24 = vector.shape_cast %23 : vector<1x72x128xf32> to vector<72x128xf32>
    %cst_24 = arith.constant dense<0.000000e+00> : vector<72x128xf32>
    %25 = tpu.matmul %24, %7, %cst_24 {dimension_numbers = #tpu.dot_dimension_numbers<[1], [0], [0], [1], [0, 0, 1, 1], [], []>} : vector<72x128xf32>, vector<128x128xf32>, vector<72x128xf32> -> vector<72x128xf32>
    %c2_25 = arith.constant 2 : index
    %c0_26 = arith.constant 0 : index
    %c0_27 = arith.constant 0 : index
    %26 = vector.load %arg4[%c2_25, %c0_26, %c0_27] : memref<16x128x128xf32, #tpu.memory_space<vmem>>, vector<1x128x128xf32>
    %27 = vector.shape_cast %26 : vector<1x128x128xf32> to vector<128x128xf32>
    %cst_28 = arith.constant dense<0.000000e+00> : vector<72x128xf32>
    %28 = tpu.matmul %25, %27, %cst_28 {dimension_numbers = #tpu.dot_dimension_numbers<[1], [0], [0], [1], [0, 0, 1, 1], [], []>} : vector<72x128xf32>, vector<128x128xf32>, vector<72x128xf32> -> vector<72x128xf32>
    %29 = arith.addf %22, %28 : vector<72x128xf32>
    %c3 = arith.constant 3 : index
    %c0_29 = arith.constant 0 : index
    %c0_30 = arith.constant 0 : index
    %30 = vector.load %arg3[%c3, %c0_29, %c0_30] : memref<16x72x128xf32, #tpu.memory_space<vmem>>, vector<1x72x128xf32>
    %31 = vector.shape_cast %30 : vector<1x72x128xf32> to vector<72x128xf32>
    %cst_31 = arith.constant dense<0.000000e+00> : vector<72x128xf32>
    %32 = tpu.matmul %31, %7, %cst_31 {dimension_numbers = #tpu.dot_dimension_numbers<[1], [0], [0], [1], [0, 0, 1, 1], [], []>} : vector<72x128xf32>, vector<128x128xf32>, vector<72x128xf32> -> vector<72x128xf32>
    %c3_32 = arith.constant 3 : index
    %c0_33 = arith.constant 0 : index
    %c0_34 = arith.constant 0 : index
    %33 = vector.load %arg4[%c3_32, %c0_33, %c0_34] : memref<16x128x128xf32, #tpu.memory_space<vmem>>, vector<1x128x128xf32>
    %34 = vector.shape_cast %33 : vector<1x128x128xf32> to vector<128x128xf32>
    %cst_35 = arith.constant dense<0.000000e+00> : vector<72x128xf32>
    %35 = tpu.matmul %32, %34, %cst_35 {dimension_numbers = #tpu.dot_dimension_numbers<[1], [0], [0], [1], [0, 0, 1, 1], [], []>} : vector<72x128xf32>, vector<128x128xf32>, vector<72x128xf32> -> vector<72x128xf32>
    %36 = arith.addf %29, %35 : vector<72x128xf32>
    %c4 = arith.constant 4 : index
    %c0_36 = arith.constant 0 : index
    %c0_37 = arith.constant 0 : index
    %37 = vector.load %arg3[%c4, %c0_36, %c0_37] : memref<16x72x128xf32, #tpu.memory_space<vmem>>, vector<1x72x128xf32>
    %38 = vector.shape_cast %37 : vector<1x72x128xf32> to vector<72x128xf32>
    %cst_38 = arith.constant dense<0.000000e+00> : vector<72x128xf32>
    %39 = tpu.matmul %38, %7, %cst_38 {dimension_numbers = #tpu.dot_dimension_numbers<[1], [0], [0], [1], [0, 0, 1, 1], [], []>} : vector<72x128xf32>, vector<128x128xf32>, vector<72x128xf32> -> vector<72x128xf32>
    %c4_39 = arith.constant 4 : index
    %c0_40 = arith.constant 0 : index
    %c0_41 = arith.constant 0 : index
    %40 = vector.load %arg4[%c4_39, %c0_40, %c0_41] : memref<16x128x128xf32, #tpu.memory_space<vmem>>, vector<1x128x128xf32>
    %41 = vector.shape_cast %40 : vector<1x128x128xf32> to vector<128x128xf32>
    %cst_42 = arith.constant dense<0.000000e+00> : vector<72x128xf32>
    %42 = tpu.matmul %39, %41, %cst_42 {dimension_numbers = #tpu.dot_dimension_numbers<[1], [0], [0], [1], [0, 0, 1, 1], [], []>} : vector<72x128xf32>, vector<128x128xf32>, vector<72x128xf32> -> vector<72x128xf32>
    %43 = arith.addf %36, %42 : vector<72x128xf32>
    %c5 = arith.constant 5 : index
    %c0_43 = arith.constant 0 : index
    %c0_44 = arith.constant 0 : index
    %44 = vector.load %arg3[%c5, %c0_43, %c0_44] : memref<16x72x128xf32, #tpu.memory_space<vmem>>, vector<1x72x128xf32>
    %45 = vector.shape_cast %44 : vector<1x72x128xf32> to vector<72x128xf32>
    %cst_45 = arith.constant dense<0.000000e+00> : vector<72x128xf32>
    %46 = tpu.matmul %45, %7, %cst_45 {dimension_numbers = #tpu.dot_dimension_numbers<[1], [0], [0], [1], [0, 0, 1, 1], [], []>} : vector<72x128xf32>, vector<128x128xf32>, vector<72x128xf32> -> vector<72x128xf32>
    %c5_46 = arith.constant 5 : index
    %c0_47 = arith.constant 0 : index
    %c0_48 = arith.constant 0 : index
    %47 = vector.load %arg4[%c5_46, %c0_47, %c0_48] : memref<16x128x128xf32, #tpu.memory_space<vmem>>, vector<1x128x128xf32>
    %48 = vector.shape_cast %47 : vector<1x128x128xf32> to vector<128x128xf32>
    %cst_49 = arith.constant dense<0.000000e+00> : vector<72x128xf32>
    %49 = tpu.matmul %46, %48, %cst_49 {dimension_numbers = #tpu.dot_dimension_numbers<[1], [0], [0], [1], [0, 0, 1, 1], [], []>} : vector<72x128xf32>, vector<128x128xf32>, vector<72x128xf32> -> vector<72x128xf32>
    %50 = arith.addf %43, %49 : vector<72x128xf32>
    %c6 = arith.constant 6 : index
    %c0_50 = arith.constant 0 : index
    %c0_51 = arith.constant 0 : index
    %51 = vector.load %arg3[%c6, %c0_50, %c0_51] : memref<16x72x128xf32, #tpu.memory_space<vmem>>, vector<1x72x128xf32>
    %52 = vector.shape_cast %51 : vector<1x72x128xf32> to vector<72x128xf32>
    %cst_52 = arith.constant dense<0.000000e+00> : vector<72x128xf32>
    %53 = tpu.matmul %52, %7, %cst_52 {dimension_numbers = #tpu.dot_dimension_numbers<[1], [0], [0], [1], [0, 0, 1, 1], [], []>} : vector<72x128xf32>, vector<128x128xf32>, vector<72x128xf32> -> vector<72x128xf32>
    %c6_53 = arith.constant 6 : index
    %c0_54 = arith.constant 0 : index
    %c0_55 = arith.constant 0 : index
    %54 = vector.load %arg4[%c6_53, %c0_54, %c0_55] : memref<16x128x128xf32, #tpu.memory_space<vmem>>, vector<1x128x128xf32>
    %55 = vector.shape_cast %54 : vector<1x128x128xf32> to vector<128x128xf32>
    %cst_56 = arith.constant dense<0.000000e+00> : vector<72x128xf32>
    %56 = tpu.matmul %53, %55, %cst_56 {dimension_numbers = #tpu.dot_dimension_numbers<[1], [0], [0], [1], [0, 0, 1, 1], [], []>} : vector<72x128xf32>, vector<128x128xf32>, vector<72x128xf32> -> vector<72x128xf32>
    %57 = arith.addf %50, %56 : vector<72x128xf32>
    %c7 = arith.constant 7 : index
    %c0_57 = arith.constant 0 : index
    %c0_58 = arith.constant 0 : index
    %58 = vector.load %arg3[%c7, %c0_57, %c0_58] : memref<16x72x128xf32, #tpu.memory_space<vmem>>, vector<1x72x128xf32>
    %59 = vector.shape_cast %58 : vector<1x72x128xf32> to vector<72x128xf32>
    %cst_59 = arith.constant dense<0.000000e+00> : vector<72x128xf32>
    %60 = tpu.matmul %59, %7, %cst_59 {dimension_numbers = #tpu.dot_dimension_numbers<[1], [0], [0], [1], [0, 0, 1, 1], [], []>} : vector<72x128xf32>, vector<128x128xf32>, vector<72x128xf32> -> vector<72x128xf32>
    %c7_60 = arith.constant 7 : index
    %c0_61 = arith.constant 0 : index
    %c0_62 = arith.constant 0 : index
    %61 = vector.load %arg4[%c7_60, %c0_61, %c0_62] : memref<16x128x128xf32, #tpu.memory_space<vmem>>, vector<1x128x128xf32>
    %62 = vector.shape_cast %61 : vector<1x128x128xf32> to vector<128x128xf32>
    %cst_63 = arith.constant dense<0.000000e+00> : vector<72x128xf32>
    %63 = tpu.matmul %60, %62, %cst_63 {dimension_numbers = #tpu.dot_dimension_numbers<[1], [0], [0], [1], [0, 0, 1, 1], [], []>} : vector<72x128xf32>, vector<128x128xf32>, vector<72x128xf32> -> vector<72x128xf32>
    %64 = arith.addf %57, %63 : vector<72x128xf32>
    %c8 = arith.constant 8 : index
    %c0_64 = arith.constant 0 : index
    %c0_65 = arith.constant 0 : index
    %65 = vector.load %arg3[%c8, %c0_64, %c0_65] : memref<16x72x128xf32, #tpu.memory_space<vmem>>, vector<1x72x128xf32>
    %66 = vector.shape_cast %65 : vector<1x72x128xf32> to vector<72x128xf32>
    %cst_66 = arith.constant dense<0.000000e+00> : vector<72x128xf32>
    %67 = tpu.matmul %66, %7, %cst_66 {dimension_numbers = #tpu.dot_dimension_numbers<[1], [0], [0], [1], [0, 0, 1, 1], [], []>} : vector<72x128xf32>, vector<128x128xf32>, vector<72x128xf32> -> vector<72x128xf32>
    %c8_67 = arith.constant 8 : index
    %c0_68 = arith.constant 0 : index
    %c0_69 = arith.constant 0 : index
    %68 = vector.load %arg4[%c8_67, %c0_68, %c0_69] : memref<16x128x128xf32, #tpu.memory_space<vmem>>, vector<1x128x128xf32>
    %69 = vector.shape_cast %68 : vector<1x128x128xf32> to vector<128x128xf32>
    %cst_70 = arith.constant dense<0.000000e+00> : vector<72x128xf32>
    %70 = tpu.matmul %67, %69, %cst_70 {dimension_numbers = #tpu.dot_dimension_numbers<[1], [0], [0], [1], [0, 0, 1, 1], [], []>} : vector<72x128xf32>, vector<128x128xf32>, vector<72x128xf32> -> vector<72x128xf32>
    %71 = arith.addf %64, %70 : vector<72x128xf32>
    %c9 = arith.constant 9 : index
    %c0_71 = arith.constant 0 : index
    %c0_72 = arith.constant 0 : index
    %72 = vector.load %arg3[%c9, %c0_71, %c0_72] : memref<16x72x128xf32, #tpu.memory_space<vmem>>, vector<1x72x128xf32>
    %73 = vector.shape_cast %72 : vector<1x72x128xf32> to vector<72x128xf32>
    %cst_73 = arith.constant dense<0.000000e+00> : vector<72x128xf32>
    %74 = tpu.matmul %73, %7, %cst_73 {dimension_numbers = #tpu.dot_dimension_numbers<[1], [0], [0], [1], [0, 0, 1, 1], [], []>} : vector<72x128xf32>, vector<128x128xf32>, vector<72x128xf32> -> vector<72x128xf32>
    %c9_74 = arith.constant 9 : index
    %c0_75 = arith.constant 0 : index
    %c0_76 = arith.constant 0 : index
    %75 = vector.load %arg4[%c9_74, %c0_75, %c0_76] : memref<16x128x128xf32, #tpu.memory_space<vmem>>, vector<1x128x128xf32>
    %76 = vector.shape_cast %75 : vector<1x128x128xf32> to vector<128x128xf32>
    %cst_77 = arith.constant dense<0.000000e+00> : vector<72x128xf32>
    %77 = tpu.matmul %74, %76, %cst_77 {dimension_numbers = #tpu.dot_dimension_numbers<[1], [0], [0], [1], [0, 0, 1, 1], [], []>} : vector<72x128xf32>, vector<128x128xf32>, vector<72x128xf32> -> vector<72x128xf32>
    %78 = arith.addf %71, %77 : vector<72x128xf32>
    %c10 = arith.constant 10 : index
    %c0_78 = arith.constant 0 : index
    %c0_79 = arith.constant 0 : index
    %79 = vector.load %arg3[%c10, %c0_78, %c0_79] : memref<16x72x128xf32, #tpu.memory_space<vmem>>, vector<1x72x128xf32>
    %80 = vector.shape_cast %79 : vector<1x72x128xf32> to vector<72x128xf32>
    %cst_80 = arith.constant dense<0.000000e+00> : vector<72x128xf32>
    %81 = tpu.matmul %80, %7, %cst_80 {dimension_numbers = #tpu.dot_dimension_numbers<[1], [0], [0], [1], [0, 0, 1, 1], [], []>} : vector<72x128xf32>, vector<128x128xf32>, vector<72x128xf32> -> vector<72x128xf32>
    %c10_81 = arith.constant 10 : index
    %c0_82 = arith.constant 0 : index
    %c0_83 = arith.constant 0 : index
    %82 = vector.load %arg4[%c10_81, %c0_82, %c0_83] : memref<16x128x128xf32, #tpu.memory_space<vmem>>, vector<1x128x128xf32>
    %83 = vector.shape_cast %82 : vector<1x128x128xf32> to vector<128x128xf32>
    %cst_84 = arith.constant dense<0.000000e+00> : vector<72x128xf32>
    %84 = tpu.matmul %81, %83, %cst_84 {dimension_numbers = #tpu.dot_dimension_numbers<[1], [0], [0], [1], [0, 0, 1, 1], [], []>} : vector<72x128xf32>, vector<128x128xf32>, vector<72x128xf32> -> vector<72x128xf32>
    %85 = arith.addf %78, %84 : vector<72x128xf32>
    %c11 = arith.constant 11 : index
    %c0_85 = arith.constant 0 : index
    %c0_86 = arith.constant 0 : index
    %86 = vector.load %arg3[%c11, %c0_85, %c0_86] : memref<16x72x128xf32, #tpu.memory_space<vmem>>, vector<1x72x128xf32>
    %87 = vector.shape_cast %86 : vector<1x72x128xf32> to vector<72x128xf32>
    %cst_87 = arith.constant dense<0.000000e+00> : vector<72x128xf32>
    %88 = tpu.matmul %87, %7, %cst_87 {dimension_numbers = #tpu.dot_dimension_numbers<[1], [0], [0], [1], [0, 0, 1, 1], [], []>} : vector<72x128xf32>, vector<128x128xf32>, vector<72x128xf32> -> vector<72x128xf32>
    %c11_88 = arith.constant 11 : index
    %c0_89 = arith.constant 0 : index
    %c0_90 = arith.constant 0 : index
    %89 = vector.load %arg4[%c11_88, %c0_89, %c0_90] : memref<16x128x128xf32, #tpu.memory_space<vmem>>, vector<1x128x128xf32>
    %90 = vector.shape_cast %89 : vector<1x128x128xf32> to vector<128x128xf32>
    %cst_91 = arith.constant dense<0.000000e+00> : vector<72x128xf32>
    %91 = tpu.matmul %88, %90, %cst_91 {dimension_numbers = #tpu.dot_dimension_numbers<[1], [0], [0], [1], [0, 0, 1, 1], [], []>} : vector<72x128xf32>, vector<128x128xf32>, vector<72x128xf32> -> vector<72x128xf32>
    %92 = arith.addf %85, %91 : vector<72x128xf32>
    %c12 = arith.constant 12 : index
    %c0_92 = arith.constant 0 : index
    %c0_93 = arith.constant 0 : index
    %93 = vector.load %arg3[%c12, %c0_92, %c0_93] : memref<16x72x128xf32, #tpu.memory_space<vmem>>, vector<1x72x128xf32>
    %94 = vector.shape_cast %93 : vector<1x72x128xf32> to vector<72x128xf32>
    %cst_94 = arith.constant dense<0.000000e+00> : vector<72x128xf32>
    %95 = tpu.matmul %94, %7, %cst_94 {dimension_numbers = #tpu.dot_dimension_numbers<[1], [0], [0], [1], [0, 0, 1, 1], [], []>} : vector<72x128xf32>, vector<128x128xf32>, vector<72x128xf32> -> vector<72x128xf32>
    %c12_95 = arith.constant 12 : index
    %c0_96 = arith.constant 0 : index
    %c0_97 = arith.constant 0 : index
    %96 = vector.load %arg4[%c12_95, %c0_96, %c0_97] : memref<16x128x128xf32, #tpu.memory_space<vmem>>, vector<1x128x128xf32>
    %97 = vector.shape_cast %96 : vector<1x128x128xf32> to vector<128x128xf32>
    %cst_98 = arith.constant dense<0.000000e+00> : vector<72x128xf32>
    %98 = tpu.matmul %95, %97, %cst_98 {dimension_numbers = #tpu.dot_dimension_numbers<[1], [0], [0], [1], [0, 0, 1, 1], [], []>} : vector<72x128xf32>, vector<128x128xf32>, vector<72x128xf32> -> vector<72x128xf32>
    %99 = arith.addf %92, %98 : vector<72x128xf32>
    %c13 = arith.constant 13 : index
    %c0_99 = arith.constant 0 : index
    %c0_100 = arith.constant 0 : index
    %100 = vector.load %arg3[%c13, %c0_99, %c0_100] : memref<16x72x128xf32, #tpu.memory_space<vmem>>, vector<1x72x128xf32>
    %101 = vector.shape_cast %100 : vector<1x72x128xf32> to vector<72x128xf32>
    %cst_101 = arith.constant dense<0.000000e+00> : vector<72x128xf32>
    %102 = tpu.matmul %101, %7, %cst_101 {dimension_numbers = #tpu.dot_dimension_numbers<[1], [0], [0], [1], [0, 0, 1, 1], [], []>} : vector<72x128xf32>, vector<128x128xf32>, vector<72x128xf32> -> vector<72x128xf32>
    %c13_102 = arith.constant 13 : index
    %c0_103 = arith.constant 0 : index
    %c0_104 = arith.constant 0 : index
    %103 = vector.load %arg4[%c13_102, %c0_103, %c0_104] : memref<16x128x128xf32, #tpu.memory_space<vmem>>, vector<1x128x128xf32>
    %104 = vector.shape_cast %103 : vector<1x128x128xf32> to vector<128x128xf32>
    %cst_105 = arith.constant dense<0.000000e+00> : vector<72x128xf32>
    %105 = tpu.matmul %102, %104, %cst_105 {dimension_numbers = #tpu.dot_dimension_numbers<[1], [0], [0], [1], [0, 0, 1, 1], [], []>} : vector<72x128xf32>, vector<128x128xf32>, vector<72x128xf32> -> vector<72x128xf32>
    %106 = arith.addf %99, %105 : vector<72x128xf32>
    %c14 = arith.constant 14 : index
    %c0_106 = arith.constant 0 : index
    %c0_107 = arith.constant 0 : index
    %107 = vector.load %arg3[%c14, %c0_106, %c0_107] : memref<16x72x128xf32, #tpu.memory_space<vmem>>, vector<1x72x128xf32>
    %108 = vector.shape_cast %107 : vector<1x72x128xf32> to vector<72x128xf32>
    %cst_108 = arith.constant dense<0.000000e+00> : vector<72x128xf32>
    %109 = tpu.matmul %108, %7, %cst_108 {dimension_numbers = #tpu.dot_dimension_numbers<[1], [0], [0], [1], [0, 0, 1, 1], [], []>} : vector<72x128xf32>, vector<128x128xf32>, vector<72x128xf32> -> vector<72x128xf32>
    %c14_109 = arith.constant 14 : index
    %c0_110 = arith.constant 0 : index
    %c0_111 = arith.constant 0 : index
    %110 = vector.load %arg4[%c14_109, %c0_110, %c0_111] : memref<16x128x128xf32, #tpu.memory_space<vmem>>, vector<1x128x128xf32>
    %111 = vector.shape_cast %110 : vector<1x128x128xf32> to vector<128x128xf32>
    %cst_112 = arith.constant dense<0.000000e+00> : vector<72x128xf32>
    %112 = tpu.matmul %109, %111, %cst_112 {dimension_numbers = #tpu.dot_dimension_numbers<[1], [0], [0], [1], [0, 0, 1, 1], [], []>} : vector<72x128xf32>, vector<128x128xf32>, vector<72x128xf32> -> vector<72x128xf32>
    %113 = arith.addf %106, %112 : vector<72x128xf32>
    %c15 = arith.constant 15 : index
    %c0_113 = arith.constant 0 : index
    %c0_114 = arith.constant 0 : index
    %114 = vector.load %arg3[%c15, %c0_113, %c0_114] : memref<16x72x128xf32, #tpu.memory_space<vmem>>, vector<1x72x128xf32>
    %115 = vector.shape_cast %114 : vector<1x72x128xf32> to vector<72x128xf32>
    %cst_115 = arith.constant dense<0.000000e+00> : vector<72x128xf32>
    %116 = tpu.matmul %115, %7, %cst_115 {dimension_numbers = #tpu.dot_dimension_numbers<[1], [0], [0], [1], [0, 0, 1, 1], [], []>} : vector<72x128xf32>, vector<128x128xf32>, vector<72x128xf32> -> vector<72x128xf32>
    %c15_116 = arith.constant 15 : index
    %c0_117 = arith.constant 0 : index
    %c0_118 = arith.constant 0 : index
    %117 = vector.load %arg4[%c15_116, %c0_117, %c0_118] : memref<16x128x128xf32, #tpu.memory_space<vmem>>, vector<1x128x128xf32>
    %118 = vector.shape_cast %117 : vector<1x128x128xf32> to vector<128x128xf32>
    %cst_119 = arith.constant dense<0.000000e+00> : vector<72x128xf32>
    %119 = tpu.matmul %116, %118, %cst_119 {dimension_numbers = #tpu.dot_dimension_numbers<[1], [0], [0], [1], [0, 0, 1, 1], [], []>} : vector<72x128xf32>, vector<128x128xf32>, vector<72x128xf32> -> vector<72x128xf32>
    %120 = arith.addf %113, %119 : vector<72x128xf32>
    %c0_120 = arith.constant 0 : index
    %c0_121 = arith.constant 0 : index
    %121 = vector.load %arg5[%c0_120, %c0_121] : memref<1x128xf32, #tpu.memory_space<vmem>>, vector<1x128xf32>
    %122 = vector.broadcast %121 : vector<1x128xf32> to vector<72x128xf32>
    %123 = arith.addf %120, %122 : vector<72x128xf32>
    %cst_122 = arith.constant 0.000000e+00 : f32
    %124 = vector.broadcast %cst_122 : f32 to vector<72x128xf32>
    %125 = arith.maximumf %123, %124 : vector<72x128xf32>
    %cst_123 = arith.constant 0.000000e+00 : f32
    %126 = vector.broadcast %cst_123 : f32 to vector<8x128xf32>
    %127 = vector.extract_strided_slice %125 {offsets = [0, 0], sizes = [8, 128], strides = [1, 1]} : vector<72x128xf32> to vector<8x128xf32>
    %c0_124 = arith.constant 0 : index
    %c0_125 = arith.constant 0 : index
    %c0_126 = arith.constant 0 : index
    %128 = vector.load %arg6[%c0_124, %c0_125, %c0_126] : memref<9x128x128xf32, #tpu.memory_space<vmem>>, vector<1x128x128xf32>
    %129 = vector.shape_cast %128 : vector<1x128x128xf32> to vector<128x128xf32>
    %cst_127 = arith.constant dense<0.000000e+00> : vector<8x128xf32>
    %130 = tpu.matmul %127, %129, %cst_127 {dimension_numbers = #tpu.dot_dimension_numbers<[1], [0], [0], [1], [0, 0, 1, 1], [], []>} : vector<8x128xf32>, vector<128x128xf32>, vector<8x128xf32> -> vector<8x128xf32>
    %131 = arith.addf %126, %130 : vector<8x128xf32>
    %132 = vector.extract_strided_slice %125 {offsets = [8, 0], sizes = [8, 128], strides = [1, 1]} : vector<72x128xf32> to vector<8x128xf32>
    %c1_128 = arith.constant 1 : index
    %c0_129 = arith.constant 0 : index
    %c0_130 = arith.constant 0 : index
    %133 = vector.load %arg6[%c1_128, %c0_129, %c0_130] : memref<9x128x128xf32, #tpu.memory_space<vmem>>, vector<1x128x128xf32>
    %134 = vector.shape_cast %133 : vector<1x128x128xf32> to vector<128x128xf32>
    %cst_131 = arith.constant dense<0.000000e+00> : vector<8x128xf32>
    %135 = tpu.matmul %132, %134, %cst_131 {dimension_numbers = #tpu.dot_dimension_numbers<[1], [0], [0], [1], [0, 0, 1, 1], [], []>} : vector<8x128xf32>, vector<128x128xf32>, vector<8x128xf32> -> vector<8x128xf32>
    %136 = arith.addf %131, %135 : vector<8x128xf32>
    %137 = vector.extract_strided_slice %125 {offsets = [16, 0], sizes = [8, 128], strides = [1, 1]} : vector<72x128xf32> to vector<8x128xf32>
    %c2_132 = arith.constant 2 : index
    %c0_133 = arith.constant 0 : index
    %c0_134 = arith.constant 0 : index
    %138 = vector.load %arg6[%c2_132, %c0_133, %c0_134] : memref<9x128x128xf32, #tpu.memory_space<vmem>>, vector<1x128x128xf32>
    %139 = vector.shape_cast %138 : vector<1x128x128xf32> to vector<128x128xf32>
    %cst_135 = arith.constant dense<0.000000e+00> : vector<8x128xf32>
    %140 = tpu.matmul %137, %139, %cst_135 {dimension_numbers = #tpu.dot_dimension_numbers<[1], [0], [0], [1], [0, 0, 1, 1], [], []>} : vector<8x128xf32>, vector<128x128xf32>, vector<8x128xf32> -> vector<8x128xf32>
    %141 = arith.addf %136, %140 : vector<8x128xf32>
    %142 = vector.extract_strided_slice %125 {offsets = [24, 0], sizes = [8, 128], strides = [1, 1]} : vector<72x128xf32> to vector<8x128xf32>
    %c3_136 = arith.constant 3 : index
    %c0_137 = arith.constant 0 : index
    %c0_138 = arith.constant 0 : index
    %143 = vector.load %arg6[%c3_136, %c0_137, %c0_138] : memref<9x128x128xf32, #tpu.memory_space<vmem>>, vector<1x128x128xf32>
    %144 = vector.shape_cast %143 : vector<1x128x128xf32> to vector<128x128xf32>
    %cst_139 = arith.constant dense<0.000000e+00> : vector<8x128xf32>
    %145 = tpu.matmul %142, %144, %cst_139 {dimension_numbers = #tpu.dot_dimension_numbers<[1], [0], [0], [1], [0, 0, 1, 1], [], []>} : vector<8x128xf32>, vector<128x128xf32>, vector<8x128xf32> -> vector<8x128xf32>
    %146 = arith.addf %141, %145 : vector<8x128xf32>
    %147 = vector.extract_strided_slice %125 {offsets = [32, 0], sizes = [8, 128], strides = [1, 1]} : vector<72x128xf32> to vector<8x128xf32>
    %c4_140 = arith.constant 4 : index
    %c0_141 = arith.constant 0 : index
    %c0_142 = arith.constant 0 : index
    %148 = vector.load %arg6[%c4_140, %c0_141, %c0_142] : memref<9x128x128xf32, #tpu.memory_space<vmem>>, vector<1x128x128xf32>
    %149 = vector.shape_cast %148 : vector<1x128x128xf32> to vector<128x128xf32>
    %cst_143 = arith.constant dense<0.000000e+00> : vector<8x128xf32>
    %150 = tpu.matmul %147, %149, %cst_143 {dimension_numbers = #tpu.dot_dimension_numbers<[1], [0], [0], [1], [0, 0, 1, 1], [], []>} : vector<8x128xf32>, vector<128x128xf32>, vector<8x128xf32> -> vector<8x128xf32>
    %151 = arith.addf %146, %150 : vector<8x128xf32>
    %152 = vector.extract_strided_slice %125 {offsets = [40, 0], sizes = [8, 128], strides = [1, 1]} : vector<72x128xf32> to vector<8x128xf32>
    %c5_144 = arith.constant 5 : index
    %c0_145 = arith.constant 0 : index
    %c0_146 = arith.constant 0 : index
    %153 = vector.load %arg6[%c5_144, %c0_145, %c0_146] : memref<9x128x128xf32, #tpu.memory_space<vmem>>, vector<1x128x128xf32>
    %154 = vector.shape_cast %153 : vector<1x128x128xf32> to vector<128x128xf32>
    %cst_147 = arith.constant dense<0.000000e+00> : vector<8x128xf32>
    %155 = tpu.matmul %152, %154, %cst_147 {dimension_numbers = #tpu.dot_dimension_numbers<[1], [0], [0], [1], [0, 0, 1, 1], [], []>} : vector<8x128xf32>, vector<128x128xf32>, vector<8x128xf32> -> vector<8x128xf32>
    %156 = arith.addf %151, %155 : vector<8x128xf32>
    %157 = vector.extract_strided_slice %125 {offsets = [48, 0], sizes = [8, 128], strides = [1, 1]} : vector<72x128xf32> to vector<8x128xf32>
    %c6_148 = arith.constant 6 : index
    %c0_149 = arith.constant 0 : index
    %c0_150 = arith.constant 0 : index
    %158 = vector.load %arg6[%c6_148, %c0_149, %c0_150] : memref<9x128x128xf32, #tpu.memory_space<vmem>>, vector<1x128x128xf32>
    %159 = vector.shape_cast %158 : vector<1x128x128xf32> to vector<128x128xf32>
    %cst_151 = arith.constant dense<0.000000e+00> : vector<8x128xf32>
    %160 = tpu.matmul %157, %159, %cst_151 {dimension_numbers = #tpu.dot_dimension_numbers<[1], [0], [0], [1], [0, 0, 1, 1], [], []>} : vector<8x128xf32>, vector<128x128xf32>, vector<8x128xf32> -> vector<8x128xf32>
    %161 = arith.addf %156, %160 : vector<8x128xf32>
    %162 = vector.extract_strided_slice %125 {offsets = [56, 0], sizes = [8, 128], strides = [1, 1]} : vector<72x128xf32> to vector<8x128xf32>
    %c7_152 = arith.constant 7 : index
    %c0_153 = arith.constant 0 : index
    %c0_154 = arith.constant 0 : index
    %163 = vector.load %arg6[%c7_152, %c0_153, %c0_154] : memref<9x128x128xf32, #tpu.memory_space<vmem>>, vector<1x128x128xf32>
    %164 = vector.shape_cast %163 : vector<1x128x128xf32> to vector<128x128xf32>
    %cst_155 = arith.constant dense<0.000000e+00> : vector<8x128xf32>
    %165 = tpu.matmul %162, %164, %cst_155 {dimension_numbers = #tpu.dot_dimension_numbers<[1], [0], [0], [1], [0, 0, 1, 1], [], []>} : vector<8x128xf32>, vector<128x128xf32>, vector<8x128xf32> -> vector<8x128xf32>
    %166 = arith.addf %161, %165 : vector<8x128xf32>
    %167 = vector.extract_strided_slice %125 {offsets = [64, 0], sizes = [8, 128], strides = [1, 1]} : vector<72x128xf32> to vector<8x128xf32>
    %c8_156 = arith.constant 8 : index
    %c0_157 = arith.constant 0 : index
    %c0_158 = arith.constant 0 : index
    %168 = vector.load %arg6[%c8_156, %c0_157, %c0_158] : memref<9x128x128xf32, #tpu.memory_space<vmem>>, vector<1x128x128xf32>
    %169 = vector.shape_cast %168 : vector<1x128x128xf32> to vector<128x128xf32>
    %cst_159 = arith.constant dense<0.000000e+00> : vector<8x128xf32>
    %170 = tpu.matmul %167, %169, %cst_159 {dimension_numbers = #tpu.dot_dimension_numbers<[1], [0], [0], [1], [0, 0, 1, 1], [], []>} : vector<8x128xf32>, vector<128x128xf32>, vector<8x128xf32> -> vector<8x128xf32>
    %171 = arith.addf %166, %170 : vector<8x128xf32>
    %c0_160 = arith.constant 0 : index
    %c0_161 = arith.constant 0 : index
    %172 = vector.load %arg7[%c0_160, %c0_161] : memref<1x128xf32, #tpu.memory_space<vmem>>, vector<1x128xf32>
    %173 = vector.broadcast %172 : vector<1x128xf32> to vector<8x128xf32>
    %174 = arith.addf %171, %173 : vector<8x128xf32>
    %cst_162 = arith.constant 0.000000e+00 : f32
    %175 = vector.broadcast %cst_162 : f32 to vector<8x128xf32>
    %176 = arith.maximumf %174, %175 : vector<8x128xf32>
    %c0_163 = arith.constant 0 : index
    %c0_164 = arith.constant 0 : index
    %177 = vector.load %arg8[%c0_163, %c0_164] : memref<8x128xf32, #tpu.memory_space<vmem>>, vector<8x128xf32>
    %178 = arith.addf %176, %177 : vector<8x128xf32>
    %c0_165 = arith.constant 0 : index
    %c0_166 = arith.constant 0 : index
    %179 = vector.load %arg9[%c0_165, %c0_166] : memref<128x1024xf32, #tpu.memory_space<vmem>>, vector<128x1024xf32>
    %cst_167 = arith.constant dense<0.000000e+00> : vector<8x1024xf32>
    %180 = tpu.matmul %178, %179, %cst_167 {dimension_numbers = #tpu.dot_dimension_numbers<[1], [0], [0], [1], [0, 0, 1, 1], [], []>} : vector<8x128xf32>, vector<128x1024xf32>, vector<8x1024xf32> -> vector<8x1024xf32>
    %c0_168 = arith.constant 0 : index
    %c0_169 = arith.constant 0 : index
    %181 = vector.load %arg10[%c0_168, %c0_169] : memref<1x1024xf32, #tpu.memory_space<vmem>>, vector<1x1024xf32>
    %182 = vector.broadcast %181 : vector<1x1024xf32> to vector<8x1024xf32>
    %183 = arith.addf %180, %182 : vector<8x1024xf32>
    %cst_170 = arith.constant 0.000000e+00 : f32
    %184 = vector.broadcast %cst_170 : f32 to vector<8x1024xf32>
    %185 = arith.maximumf %183, %184 : vector<8x1024xf32>
    %c0_171 = arith.constant 0 : index
    %c0_172 = arith.constant 0 : index
    %186 = vector.load %arg11[%c0_171, %c0_172] : memref<1024x128xf32, #tpu.memory_space<vmem>>, vector<1024x128xf32>
    %cst_173 = arith.constant dense<0.000000e+00> : vector<8x128xf32>
    %187 = tpu.matmul %185, %186, %cst_173 {dimension_numbers = #tpu.dot_dimension_numbers<[1], [0], [0], [1], [0, 0, 1, 1], [], []>} : vector<8x1024xf32>, vector<1024x128xf32>, vector<8x128xf32> -> vector<8x128xf32>
    %c0_174 = arith.constant 0 : index
    %c0_175 = arith.constant 0 : index
    %188 = vector.load %arg12[%c0_174, %c0_175] : memref<1x128xf32, #tpu.memory_space<vmem>>, vector<1x128xf32>
    %189 = vector.broadcast %188 : vector<1x128xf32> to vector<8x128xf32>
    %190 = arith.addf %187, %189 : vector<8x128xf32>
    %191 = tpu.iota {dimensions = array<i32: 1>} : vector<8x128xi32>
    %cst_176 = arith.constant 0.000000e+00 : f32
    %192 = vector.broadcast %cst_176 : f32 to vector<8x128xf32>
    %193 = arith.subf %192, %190 : vector<8x128xf32>
    %194 = math.exp %193 : vector<8x128xf32>
    %cst_177 = arith.constant 1.000000e+00 : f32
    %195 = vector.broadcast %cst_177 : f32 to vector<8x128xf32>
    %196 = arith.addf %195, %194 : vector<8x128xf32>
    %cst_178 = arith.constant 3.600000e+02 : f32
    %197 = vector.broadcast %cst_178 : f32 to vector<8x128xf32>
    %198 = arith.divf %197, %196 : vector<8x128xf32>
    %c1_i32 = arith.constant 1 : i32
    %199 = vector.broadcast %c1_i32 : i32 to vector<8x128xi32>
    %200 = arith.cmpi sge, %191, %199 : vector<8x128xi32>
    %c15_i32 = arith.constant 15 : i32
    %201 = vector.broadcast %c15_i32 : i32 to vector<8x128xi32>
    %202 = arith.cmpi slt, %191, %201 : vector<8x128xi32>
    %203 = arith.andi %200, %202 : vector<8x128xi1>
    %cst_179 = arith.constant -1.000000e+30 : f32
    %204 = vector.broadcast %cst_179 : f32 to vector<8x128xf32>
    %205 = arith.select %203, %190, %204 : vector<8x128xi1>, vector<8x128xf32>
    %cst_180 = arith.constant dense<0xFF800000> : vector<8xf32>
    %206 = vector.multi_reduction <maximumf>, %205, %cst_180 [1] : vector<8x128xf32> to vector<8xf32>
    %207 = vector.shape_cast %206 : vector<8xf32> to vector<8x1xf32>
    %208 = vector.broadcast %207 : vector<8x1xf32> to vector<8x128xf32>
    %209 = arith.subf %205, %208 : vector<8x128xf32>
    %210 = math.exp %209 : vector<8x128xf32>
    %cst_181 = arith.constant dense<0.000000e+00> : vector<8xf32>
    %211 = vector.multi_reduction <add>, %210, %cst_181 [1] : vector<8x128xf32> to vector<8xf32>
    %212 = vector.shape_cast %211 : vector<8xf32> to vector<8x1xf32>
    %213 = tpu.reciprocal %212 : vector<8x1xf32> -> vector<8x1xf32>
    %214 = vector.broadcast %213 : vector<8x1xf32> to vector<8x128xf32>
    %215 = arith.mulf %210, %214 : vector<8x128xf32>
    %c0_i32 = arith.constant 0 : i32
    %216 = vector.broadcast %c0_i32 : i32 to vector<8x128xi32>
    %217 = arith.cmpi eq, %191, %216 : vector<8x128xi32>
    %218 = arith.select %217, %198, %215 : vector<8x128xi1>, vector<8x128xf32>
    %c0_182 = arith.constant 0 : index
    %c0_183 = arith.constant 0 : index
    %219 = vector.load %arg13[%c0_182, %c0_183] : memref<8x128xf32, #tpu.memory_space<vmem>>, vector<8x128xf32>
    tpu.vector_store %arg13[%c0_182, %c0_183], %218 {strides = array<i32>} : memref<8x128xf32, #tpu.memory_space<vmem>>, vector<8x128xf32>,
    return
  }
}

</mosaic_0001>

<llo_original>
// kernel: actor_cnn_forward.1
$region0: #{actor_cnn_forward.1}
  #allocation0 [shape = 'u32[]', space=smem, size = 0x4, offset = 0x4, fixed_abs, tag = 'smem constant byte address 0x4 - core index']
  #allocation1 [shape = 'u32[144,128]{1,0:T(1,128)}', space=vmem, size = 0x12000, scoped, tag = 'internal scratch']
  %s0 = inlined_call_operand.vmem [shape: f32[128,256], index: 0, kind: input, shape index: {}]
  %s1 = inlined_call_operand.vmem [shape: f32[256,128], index: 1, kind: input, shape index: {}]
  %s2 = inlined_call_operand.vmem [shape: f32[1,128], index: 2, kind: input, shape index: {}]
  %s3 = inlined_call_operand.vmem [shape: f32[16,72,128], index: 3, kind: input, shape index: {}]
  %s4 = inlined_call_operand.vmem [shape: f32[16,128,128], index: 4, kind: input, shape index: {}]
  %s5 = inlined_call_operand.vmem [shape: f32[1,128], index: 5, kind: input, shape index: {}]
  %s6 = inlined_call_operand.vmem [shape: f32[9,128,128], index: 6, kind: input, shape index: {}]
  %s7 = inlined_call_operand.vmem [shape: f32[1,128], index: 7, kind: input, shape index: {}]
  %s8 = inlined_call_operand.vmem [shape: f32[8,128], index: 8, kind: input, shape index: {}]
  %s9 = inlined_call_operand.vmem [shape: f32[128,1024], index: 9, kind: input, shape index: {}]
  %s10 = inlined_call_operand.vmem [shape: f32[1,1024], index: 10, kind: input, shape index: {}]
  %s11 = inlined_call_operand.vmem [shape: f32[1024,128], index: 11, kind: input, shape index: {}]
  %s12 = inlined_call_operand.vmem [shape: f32[1,128], index: 12, kind: input, shape index: {}]
  %s13 = inlined_call_operand.vmem [shape: f32[8,128], index: 13, kind: output, shape index: {}]
  %s14 = sld [smem:[#allocation0]]
  $region62: #{actor_cnn_forward.1} parent=0
    _
  %s16 = ssub.s32 1, %s14
  %s17 = scalar_select 0, %s16, %s14
  // Predicated region
  $region2: #{actor_cnn_forward.1} parent=0 // pred_check
    _
  $region3: #{actor_cnn_forward.1} parent=0 // pred_check_branch
    %19 = sbr.rel (0) target = $region5
  $region4: #{actor_cnn_forward.1} parent=0 // pred_region
    _
  $region5: #{actor_cnn_forward.1} parent=0 // pred_fallthru
    _
  // Predicated region
  $region6: #{actor_cnn_forward.1} parent=0 // pred_check
    _
  $region7: #{actor_cnn_forward.1} parent=0 // pred_check_branch
    %21 = sbr.rel (0) target = $region9
  $region8: #{actor_cnn_forward.1} parent=0 // pred_region
    _
  $region9: #{actor_cnn_forward.1} parent=0 // pred_fallthru
    _
  // Predicated region
  $region10: #{actor_cnn_forward.1} parent=0 // pred_check
    _
  $region11: #{actor_cnn_forward.1} parent=0 // pred_check_branch
    %23 = sbr.rel (0) target = $region13
  $region12: #{actor_cnn_forward.1} parent=0 // pred_region
    _
  $region13: #{actor_cnn_forward.1} parent=0 // pred_fallthru
    _
  // Predicated region
  $region14: #{actor_cnn_forward.1} parent=0 // pred_check
    _
  $region15: #{actor_cnn_forward.1} parent=0 // pred_check_branch
    %25 = sbr.rel (0) target = $region17
  $region16: #{actor_cnn_forward.1} parent=0 // pred_region
    _
  $region17: #{actor_cnn_forward.1} parent=0 // pred_fallthru
    _
  // Predicated region
  $region18: #{actor_cnn_forward.1} parent=0 // pred_check
    _
  $region19: #{actor_cnn_forward.1} parent=0 // pred_check_branch
    %27 = sbr.rel (0) target = $region21
  $region20: #{actor_cnn_forward.1} parent=0 // pred_region
    _
  $region21: #{actor_cnn_forward.1} parent=0 // pred_fallthru
    _
  // Predicated region
  $region22: #{actor_cnn_forward.1} parent=0 // pred_check
    _
  $region23: #{actor_cnn_forward.1} parent=0 // pred_check_branch
    %29 = sbr.rel (0) target = $region25
  $region24: #{actor_cnn_forward.1} parent=0 // pred_region
    _
  $region25: #{actor_cnn_forward.1} parent=0 // pred_fallthru
    _
  // Predicated region
  $region26: #{actor_cnn_forward.1} parent=0 // pred_check
    _
  $region27: #{actor_cnn_forward.1} parent=0 // pred_check_branch
    %31 = sbr.rel (0) target = $region29
  $region28: #{actor_cnn_forward.1} parent=0 // pred_region
    _
  $region29: #{actor_cnn_forward.1} parent=0 // pred_fallthru
    _
  // Predicated region
  $region30: #{actor_cnn_forward.1} parent=0 // pred_check
    _
  $region31: #{actor_cnn_forward.1} parent=0 // pred_check_branch
    %33 = sbr.rel (0) target = $region33
  $region32: #{actor_cnn_forward.1} parent=0 // pred_region
    _
  $region33: #{actor_cnn_forward.1} parent=0 // pred_fallthru
    _
  // Predicated region
  $region34: #{actor_cnn_forward.1} parent=0 // pred_check
    _
  $region35: #{actor_cnn_forward.1} parent=0 // pred_check_branch
    %35 = sbr.rel (0) target = $region37
  $region36: #{actor_cnn_forward.1} parent=0 // pred_region
    _
  $region37: #{actor_cnn_forward.1} parent=0 // pred_fallthru
    _
  // Predicated region
  $region38: #{actor_cnn_forward.1} parent=0 // pred_check
    _
  $region39: #{actor_cnn_forward.1} parent=0 // pred_check_branch
    %37 = sbr.rel (0) target = $region41
  $region40: #{actor_cnn_forward.1} parent=0 // pred_region
    _
  $region41: #{actor_cnn_forward.1} parent=0 // pred_fallthru
    _
  // Predicated region
  $region42: #{actor_cnn_forward.1} parent=0 // pred_check
    _
  $region43: #{actor_cnn_forward.1} parent=0 // pred_check_branch
    %39 = sbr.rel (0) target = $region45
  $region44: #{actor_cnn_forward.1} parent=0 // pred_region
    _
  $region45: #{actor_cnn_forward.1} parent=0 // pred_fallthru
    _
  // Predicated region
  $region46: #{actor_cnn_forward.1} parent=0 // pred_check
    _
  $region47: #{actor_cnn_forward.1} parent=0 // pred_check_branch
    %41 = sbr.rel (0) target = $region49
  $region48: #{actor_cnn_forward.1} parent=0 // pred_region
    _
  $region49: #{actor_cnn_forward.1} parent=0 // pred_fallthru
    _
  // Predicated region
  $region50: #{actor_cnn_forward.1} parent=0 // pred_check
    _
  $region51: #{actor_cnn_forward.1} parent=0 // pred_check_branch
    %43 = sbr.rel (0) target = $region53
  $region52: #{actor_cnn_forward.1} parent=0 // pred_region
    _
  $region53: #{actor_cnn_forward.1} parent=0 // pred_fallthru
    _
  %v44 = vld [vmem:[%s0] sm:$0xff]
  %v45 = vld [vmem:[%s0 + $0x8] sm:$0xff]
  %v46 = vld [vmem:[%s0 + $0x10] sm:$0xff]
  %v47 = vld [vmem:[%s0 + $0x18] sm:$0xff]
  %v48 = vld [vmem:[%s0 + $0x20] sm:$0xff]
  %v49 = vld [vmem:[%s0 + $0x28] sm:$0xff]
  %v50 = vld [vmem:[%s0 + $0x30] sm:$0xff]
  %v51 = vld [vmem:[%s0 + $0x38] sm:$0xff]
  %v52 = vld [vmem:[%s0 + $0x40] sm:$0xff]
  %v53 = vld [vmem:[%s0 + $0x48] sm:$0xff]
  %v54 = vld [vmem:[%s0 + $0x50] sm:$0xff]
  %v55 = vld [vmem:[%s0 + $0x58] sm:$0xff]
  %v56 = vld [vmem:[%s0 + $0x60] sm:$0xff]
  %v57 = vld [vmem:[%s0 + $0x68] sm:$0xff]
  %v58 = vld [vmem:[%s0 + $0x70] sm:$0xff]
  %v59 = vld [vmem:[%s0 + $0x78] sm:$0xff]
  %v60 = vld [vmem:[%s0 + $0x80] sm:$0xff]
  %v61 = vld [vmem:[%s0 + $0x88] sm:$0xff]
  %v62 = vld [vmem:[%s0 + $0x90] sm:$0xff]
  %v63 = vld [vmem:[%s0 + $0x98] sm:$0xff]
  %v64 = vld [vmem:[%s0 + $0xa0] sm:$0xff]
  %v65 = vld [vmem:[%s0 + $0xa8] sm:$0xff]
  %v66 = vld [vmem:[%s0 + $0xb0] sm:$0xff]
  %v67 = vld [vmem:[%s0 + $0xb8] sm:$0xff]
  %v68 = vld [vmem:[%s0 + $0xc0] sm:$0xff]
  %v69 = vld [vmem:[%s0 + $0xc8] sm:$0xff]
  %v70 = vld [vmem:[%s0 + $0xd0] sm:$0xff]
  %v71 = vld [vmem:[%s0 + $0xd8] sm:$0xff]
  %v72 = vld [vmem:[%s0 + $0xe0] sm:$0xff]
  %v73 = vld [vmem:[%s0 + $0xe8] sm:$0xff]
  %v74 = vld [vmem:[%s0 + $0xf0] sm:$0xff]
  %v75 = vld [vmem:[%s0 + $0xf8] sm:$0xff]
  %v76 = vld [vmem:[%s1] sm:$0xff]
  %v77 = vld [vmem:[%s1 + $0x8] sm:$0xff]
  %v78 = vld [vmem:[%s1 + $0x10] sm:$0xff]
  %v79 = vld [vmem:[%s1 + $0x18] sm:$0xff]
  %v80 = vld [vmem:[%s1 + $0x20] sm:$0xff]
  %v81 = vld [vmem:[%s1 + $0x28] sm:$0xff]
  %v82 = vld [vmem:[%s1 + $0x30] sm:$0xff]
  %v83 = vld [vmem:[%s1 + $0x38] sm:$0xff]
  %v84 = vld [vmem:[%s1 + $0x40] sm:$0xff]
  %v85 = vld [vmem:[%s1 + $0x48] sm:$0xff]
  %v86 = vld [vmem:[%s1 + $0x50] sm:$0xff]
  %v87 = vld [vmem:[%s1 + $0x58] sm:$0xff]
  %v88 = vld [vmem:[%s1 + $0x60] sm:$0xff]
  %v89 = vld [vmem:[%s1 + $0x68] sm:$0xff]
  %v90 = vld [vmem:[%s1 + $0x70] sm:$0xff]
  %v91 = vld [vmem:[%s1 + $0x78] sm:$0xff]
  %v92 = vld [vmem:[%s1 + $0x80] sm:$0xff]
  %v93 = vld [vmem:[%s1 + $0x88] sm:$0xff]
  %v94 = vld [vmem:[%s1 + $0x90] sm:$0xff]
  %v95 = vld [vmem:[%s1 + $0x98] sm:$0xff]
  %v96 = vld [vmem:[%s1 + $0xa0] sm:$0xff]
  %v97 = vld [vmem:[%s1 + $0xa8] sm:$0xff]
  %v98 = vld [vmem:[%s1 + $0xb0] sm:$0xff]
  %v99 = vld [vmem:[%s1 + $0xb8] sm:$0xff]
  %v100 = vld [vmem:[%s1 + $0xc0] sm:$0xff]
  %v101 = vld [vmem:[%s1 + $0xc8] sm:$0xff]
  %v102 = vld [vmem:[%s1 + $0xd0] sm:$0xff]
  %v103 = vld [vmem:[%s1 + $0xd8] sm:$0xff]
  %v104 = vld [vmem:[%s1 + $0xe0] sm:$0xff]
  %v105 = vld [vmem:[%s1 + $0xe8] sm:$0xff]
  %v106 = vld [vmem:[%s1 + $0xf0] sm:$0xff]
  %v107 = vld [vmem:[%s1 + $0xf8] sm:$0xff]
  %v108 = vld [vmem:[%s2] sm:$0x1]
  %v110 = vlaneseq
  %v111 = vshrl.u32 %v110, 7
  %v112 = vsub.s32 0, %v111
  %v113 = vrot.slane %v108, %v112
  %115 = vmatprep.subr.mxu0 0.0
  %116 = vmatpush1.msra.mxu0 %v76
  %117 = vmatprep.subr.mxu0 0.0
  %118 = vmatpush1.msra.mxu0 %v77
  %119 = vmatprep.subr.mxu0 0.0
  %120 = vmatpush1.msra.mxu0 %v78
  %121 = vmatprep.subr.mxu0 0.0
  %122 = vmatpush1.msra.mxu0 %v79
  %123 = vmatprep.subr.mxu0 0.0
  %124 = vmatpush1.msra.mxu0 %v80
  %125 = vmatprep.subr.mxu0 0.0
  %126 = vmatpush1.msra.mxu0 %v81
  %127 = vmatprep.subr.mxu0 0.0
  %128 = vmatpush1.msra.mxu0 %v82
  %129 = vmatprep.subr.mxu0 0.0
  %130 = vmatpush1.msra.mxu0 %v83
  %131 = vmatprep.subr.mxu0 0.0
  %132 = vmatpush1.msra.mxu0 %v84
  %133 = vmatprep.subr.mxu0 0.0
  %134 = vmatpush1.msra.mxu0 %v85
  %135 = vmatprep.subr.mxu0 0.0
  %136 = vmatpush1.msra.mxu0 %v86
  %137 = vmatprep.subr.mxu0 0.0
  %138 = vmatpush1.msra.mxu0 %v87
  %139 = vmatprep.subr.mxu0 0.0
  %140 = vmatpush1.msra.mxu0 %v88
  %141 = vmatprep.subr.mxu0 0.0
  %142 = vmatpush1.msra.mxu0 %v89
  %143 = vmatprep.subr.mxu0 0.0
  %144 = vmatpush1.msra.mxu0 %v90
  %145 = vmatprep.subr.mxu0 0.0
  %146 = vmatpush1.msra.mxu0 %v91
  %147 = vmatprep.subr.mxu0 0.0
  %148 = vmatpush1.msra.mxu0 %v92
  %149 = vmatprep.subr.mxu0 0.0
  %150 = vmatpush1.msra.mxu0 %v93
  %151 = vmatprep.subr.mxu0 0.0
  %152 = vmatpush1.msra.mxu0 %v94
  %153 = vmatprep.subr.mxu0 0.0
  %154 = vmatpush1.msra.mxu0 %v95
  %155 = vmatprep.subr.mxu0 0.0
  %156 = vmatpush1.msra.mxu0 %v96
  %157 = vmatprep.subr.mxu0 0.0
  %158 = vmatpush1.msra.mxu0 %v97
  %159 = vmatprep.subr.mxu0 0.0
  %160 = vmatpush1.msra.mxu0 %v98
  %161 = vmatprep.subr.mxu0 0.0
  %162 = vmatpush1.msra.mxu0 %v99
  %163 = vmatprep.subr.mxu0 0.0
  %164 = vmatpush1.msra.mxu0 %v100
  %165 = vmatprep.subr.mxu0 0.0
  %166 = vmatpush1.msra.mxu0 %v101
  %167 = vmatprep.subr.mxu0 0.0
  %168 = vmatpush1.msra.mxu0 %v102
  %169 = vmatprep.subr.mxu0 0.0
  %170 = vmatpush1.msra.mxu0 %v103
  %171 = vmatprep.subr.mxu0 0.0
  %172 = vmatpush1.msra.mxu0 %v104
  %173 = vmatprep.subr.mxu0 0.0
  %174 = vmatpush1.msra.mxu0 %v105
  %175 = vmatprep.subr.mxu0 0.0
  %176 = vmatpush1.msra.mxu0 %v106
  %177 = vmatprep.subr.mxu0 0.0
  %178 = vmatpush1.msra.mxu0 %v107
  %179 = vmatprep.mubr.f32.mxu0 %v45
  %180 = vmatmul.mubr.f32.gmra.mrb[0].mxu0 %v44
  %v181 = vpop.f32.mrb[0].mxu0
  %v182 = vadd.f32 %v113, %v181
  %v183 = vpop.f32.mrb[0].mxu0
  %184 = vmatprep.mubr.f32.mxu0 %v47
  %185 = vmatmul.mubr.f32.gmra.mrb[0].mxu0 %v46
  %v186 = vpop.f32.mrb[0].mxu0
  %v187 = vadd.f32 %v113, %v186
  %v188 = vpop.f32.mrb[0].mxu0
  %189 = vmatprep.mubr.f32.mxu0 %v49
  %190 = vmatmul.mubr.f32.gmra.mrb[0].mxu0 %v48
  %v191 = vpop.f32.mrb[0].mxu0
  %v192 = vadd.f32 %v113, %v191
  %v193 = vpop.f32.mrb[0].mxu0
  %194 = vmatprep.mubr.f32.mxu0 %v51
  %195 = vmatmul.mubr.f32.gmra.mrb[0].mxu0 %v50
  %v196 = vpop.f32.mrb[0].mxu0
  %v197 = vadd.f32 %v113, %v196
  %v198 = vpop.f32.mrb[0].mxu0
  %199 = vmatprep.mubr.f32.mxu0 %v53
  %200 = vmatmul.mubr.f32.gmra.mrb[0].mxu0 %v52
  %v201 = vpop.f32.mrb[0].mxu0
  %v202 = vadd.f32 %v113, %v201
  %v203 = vpop.f32.mrb[0].mxu0
  %204 = vmatprep.mubr.f32.mxu0 %v55
  %205 = vmatmul.mubr.f32.gmra.mrb[0].mxu0 %v54
  %v206 = vpop.f32.mrb[0].mxu0
  %v207 = vadd.f32 %v113, %v206
  %v208 = vpop.f32.mrb[0].mxu0
  %209 = vmatprep.mubr.f32.mxu0 %v57
  %210 = vmatmul.mubr.f32.gmra.mrb[0].mxu0 %v56
  %v211 = vpop.f32.mrb[0].mxu0
  %v212 = vadd.f32 %v113, %v211
  %v213 = vpop.f32.mrb[0].mxu0
  %214 = vmatprep.mubr.f32.mxu0 %v59
  %215 = vmatmul.mubr.f32.gmra.mrb[0].mxu0 %v58
  %v216 = vpop.f32.mrb[0].mxu0
  %v217 = vadd.f32 %v113, %v216
  %v218 = vpop.f32.mrb[0].mxu0
  %219 = vmatprep.mubr.f32.mxu0 %v61
  %220 = vmatmul.mubr.f32.gmra.mrb[0].mxu0 %v60
  %v221 = vpop.f32.mrb[0].mxu0
  %v222 = vadd.f32 %v113, %v221
  %v223 = vpop.f32.mrb[0].mxu0
  %224 = vmatprep.mubr.f32.mxu0 %v63
  %225 = vmatmul.mubr.f32.gmra.mrb[0].mxu0 %v62
  %v226 = vpop.f32.mrb[0].mxu0
  %v227 = vadd.f32 %v113, %v226
  %v228 = vpop.f32.mrb[0].mxu0
  %229 = vmatprep.mubr.f32.mxu0 %v65
  %230 = vmatmul.mubr.f32.gmra.mrb[0].mxu0 %v64
  %v231 = vpop.f32.mrb[0].mxu0
  %v232 = vadd.f32 %v113, %v231
  %v233 = vpop.f32.mrb[0].mxu0
  %234 = vmatprep.mubr.f32.mxu0 %v67
  %235 = vmatmul.mubr.f32.gmra.mrb[0].mxu0 %v66
  %v236 = vpop.f32.mrb[0].mxu0
  %v237 = vadd.f32 %v113, %v236
  %v238 = vpop.f32.mrb[0].mxu0
  %239 = vmatprep.mubr.f32.mxu0 %v69
  %240 = vmatmul.mubr.f32.gmra.mrb[0].mxu0 %v68
  %v241 = vpop.f32.mrb[0].mxu0
  %v242 = vadd.f32 %v113, %v241
  %v243 = vpop.f32.mrb[0].mxu0
  %244 = vmatprep.mubr.f32.mxu0 %v71
  %245 = vmatmul.mubr.f32.gmra.mrb[0].mxu0 %v70
  %v246 = vpop.f32.mrb[0].mxu0
  %v247 = vadd.f32 %v113, %v246
  %v248 = vpop.f32.mrb[0].mxu0
  %249 = vmatprep.mubr.f32.mxu0 %v73
  %250 = vmatmul.mubr.f32.gmra.mrb[0].mxu0 %v72
  %v251 = vpop.f32.mrb[0].mxu0
  %v252 = vadd.f32 %v113, %v251
  %v253 = vpop.f32.mrb[0].mxu0
  %254 = vmatprep.mubr.f32.mxu0 %v75
  %255 = vmatmul.mubr.f32.gmra.mrb[0].mxu0 %v74
  %v256 = vpop.f32.mrb[0].mxu0
  %v257 = vadd.f32 %v113, %v256
  %v258 = vpop.f32.mrb[0].mxu0
  %259 = vdwg.mxu0
  %v260 = vmax.f32 %v182, 0.0
  %v261 = vmax.f32 %v187, 0.0
  %v262 = vmax.f32 %v192, 0.0
  %v263 = vmax.f32 %v197, 0.0
  %v264 = vmax.f32 %v202, 0.0
  %v265 = vmax.f32 %v207, 0.0
  %v266 = vmax.f32 %v212, 0.0
  %v267 = vmax.f32 %v217, 0.0
  %v268 = vmax.f32 %v222, 0.0
  %v269 = vmax.f32 %v227, 0.0
  %v270 = vmax.f32 %v232, 0.0
  %v271 = vmax.f32 %v237, 0.0
  %v272 = vmax.f32 %v242, 0.0
  %v273 = vmax.f32 %v247, 0.0
  %v274 = vmax.f32 %v252, 0.0
  %v275 = vmax.f32 %v257, 0.0
  %v276 = vld [vmem:[%s3] sm:$0xff]
  %v277 = vld [vmem:[%s3 + $0x8] sm:$0xff]
  %v278 = vld [vmem:[%s3 + $0x10] sm:$0xff]
  %v279 = vld [vmem:[%s3 + $0x18] sm:$0xff]
  %v280 = vld [vmem:[%s3 + $0x20] sm:$0xff]
  %v281 = vld [vmem:[%s3 + $0x28] sm:$0xff]
  %v282 = vld [vmem:[%s3 + $0x30] sm:$0xff]
  %v283 = vld [vmem:[%s3 + $0x38] sm:$0xff]
  %v284 = vld [vmem:[%s3 + $0x40] sm:$0xff]
  %285 = vmatprep.subr.mxu0 0.0
  %286 = vmatpush1.msra.mxu0 %v260
  %287 = vmatprep.subr.mxu0 0.0
  %288 = vmatpush1.msra.mxu0 %v261
  %289 = vmatprep.subr.mxu0 0.0
  %290 = vmatpush1.msra.mxu0 %v262
  %291 = vmatprep.subr.mxu0 0.0
  %292 = vmatpush1.msra.mxu0 %v263
  %293 = vmatprep.subr.mxu0 0.0
  %294 = vmatpush1.msra.mxu0 %v264
  %295 = vmatprep.subr.mxu0 0.0
  %296 = vmatpush1.msra.mxu0 %v265
  %297 = vmatprep.subr.mxu0 0.0
  %298 = vmatpush1.msra.mxu0 %v266
  %299 = vmatprep.subr.mxu0 0.0
  %300 = vmatpush1.msra.mxu0 %v267
  %301 = vmatprep.subr.mxu0 0.0
  %302 = vmatpush1.msra.mxu0 %v268
  %303 = vmatprep.subr.mxu0 0.0
  %304 = vmatpush1.msra.mxu0 %v269
  %305 = vmatprep.subr.mxu0 0.0
  %306 = vmatpush1.msra.mxu0 %v270
  %307 = vmatprep.subr.mxu0 0.0
  %308 = vmatpush1.msra.mxu0 %v271
  %309 = vmatprep.subr.mxu0 0.0
  %310 = vmatpush1.msra.mxu0 %v272
  %311 = vmatprep.subr.mxu0 0.0
  %312 = vmatpush1.msra.mxu0 %v273
  %313 = vmatprep.subr.mxu0 0.0
  %314 = vmatpush1.msra.mxu0 %v274
  %315 = vmatprep.subr.mxu0 0.0
  %316 = vmatpush1.msra.mxu0 %v275
  %317 = vmatprep.subr.mxu0 0.0
  %318 = vmatpush1.msra.mxu0 0.0
  %319 = vmatprep.subr.mxu0 0.0
  %320 = vmatpush1.msra.mxu0 0.0
  %321 = vmatprep.subr.mxu0 0.0
  %322 = vmatpush1.msra.mxu0 0.0
  %323 = vmatprep.subr.mxu0 0.0
  %324 = vmatpush1.msra.mxu0 0.0
  %325 = vmatprep.subr.mxu0 0.0
  %326 = vmatpush1.msra.mxu0 0.0
  %327 = vmatprep.subr.mxu0 0.0
  %328 = vmatpush1.msra.mxu0 0.0
  %329 = vmatprep.subr.mxu0 0.0
  %330 = vmatpush1.msra.mxu0 0.0
  %331 = vmatprep.subr.mxu0 0.0
  %332 = vmatpush1.msra.mxu0 0.0
  %333 = vmatprep.subr.mxu0 0.0
  %334 = vmatpush1.msra.mxu0 0.0
  %335 = vmatprep.subr.mxu0 0.0
  %336 = vmatpush1.msra.mxu0 0.0
  %337 = vmatprep.subr.mxu0 0.0
  %338 = vmatpush1.msra.mxu0 0.0
  %339 = vmatprep.subr.mxu0 0.0
  %340 = vmatpush1.msra.mxu0 0.0
  %341 = vmatprep.subr.mxu0 0.0
  %342 = vmatpush1.msra.mxu0 0.0
  %343 = vmatprep.subr.mxu0 0.0
  %344 = vmatpush1.msra.mxu0 0.0
  %345 = vmatprep.subr.mxu0 0.0
  %346 = vmatpush1.msra.mxu0 0.0
  %347 = vmatprep.subr.mxu0 0.0
  %348 = vmatpush1.msra.mxu0 0.0
  %349 = vmatprep.mubr.f32.mxu0 0.0
  %350 = vmatmul.mubr.f32.gmra.mrb[0].mxu0 %v276
  %v351 = vpop.f32.mrb[0].mxu0
  %v352 = vadd.f32 0.0, %v351
  %v353 = vpop.f32.mrb[0].mxu0
  %354 = vmatprep.mubr.f32.mxu0 0.0
  %355 = vmatmul.mubr.f32.gmra.mrb[0].mxu0 %v277
  %v356 = vpop.f32.mrb[0].mxu0
  %v357 = vadd.f32 0.0, %v356
  %v358 = vpop.f32.mrb[0].mxu0
  %359 = vmatprep.mubr.f32.mxu0 0.0
  %360 = vmatmul.mubr.f32.gmra.mrb[0].mxu0 %v278
  %v361 = vpop.f32.mrb[0].mxu0
  %v362 = vadd.f32 0.0, %v361
  %v363 = vpop.f32.mrb[0].mxu0
  %364 = vmatprep.mubr.f32.mxu0 0.0
  %365 = vmatmul.mubr.f32.gmra.mrb[0].mxu0 %v279
  %v366 = vpop.f32.mrb[0].mxu0
  %v367 = vadd.f32 0.0, %v366
  %v368 = vpop.f32.mrb[0].mxu0
  %369 = vmatprep.mubr.f32.mxu0 0.0
  %370 = vmatmul.mubr.f32.gmra.mrb[0].mxu0 %v280
  %v371 = vpop.f32.mrb[0].mxu0
  %v372 = vadd.f32 0.0, %v371
  %v373 = vpop.f32.mrb[0].mxu0
  %374 = vmatprep.mubr.f32.mxu0 0.0
  %375 = vmatmul.mubr.f32.gmra.mrb[0].mxu0 %v281
  %v376 = vpop.f32.mrb[0].mxu0
  %v377 = vadd.f32 0.0, %v376
  %v378 = vpop.f32.mrb[0].mxu0
  %379 = vmatprep.mubr.f32.mxu0 0.0
  %380 = vmatmul.mubr.f32.gmra.mrb[0].mxu0 %v282
  %v381 = vpop.f32.mrb[0].mxu0
  %v382 = vadd.f32 0.0, %v381
  %v383 = vpop.f32.mrb[0].mxu0
  %384 = vmatprep.mubr.f32.mxu0 0.0
  %385 = vmatmul.mubr.f32.gmra.mrb[0].mxu0 %v283
  %v386 = vpop.f32.mrb[0].mxu0
  %v387 = vadd.f32 0.0, %v386
  %v388 = vpop.f32.mrb[0].mxu0
  %389 = vmatprep.mubr.f32.mxu0 0.0
  %390 = vmatmul.mubr.f32.gmra.mrb[0].mxu0 %v284
  %v391 = vpop.f32.mrb[0].mxu0
  %v392 = vadd.f32 0.0, %v391
  %v393 = vpop.f32.mrb[0].mxu0
  %394 = vdwg.mxu0
  %v395 = vld [vmem:[%s4] sm:$0xff]
  %v396 = vld [vmem:[%s4 + $0x8] sm:$0xff]
  %v397 = vld [vmem:[%s4 + $0x10] sm:$0xff]
  %v398 = vld [vmem:[%s4 + $0x18] sm:$0xff]
  %v399 = vld [vmem:[%s4 + $0x20] sm:$0xff]
  %v400 = vld [vmem:[%s4 + $0x28] sm:$0xff]
  %v401 = vld [vmem:[%s4 + $0x30] sm:$0xff]
  %v402 = vld [vmem:[%s4 + $0x38] sm:$0xff]
  %v403 = vld [vmem:[%s4 + $0x40] sm:$0xff]
  %v404 = vld [vmem:[%s4 + $0x48] sm:$0xff]
  %v405 = vld [vmem:[%s4 + $0x50] sm:$0xff]
  %v406 = vld [vmem:[%s4 + $0x58] sm:$0xff]
  %v407 = vld [vmem:[%s4 + $0x60] sm:$0xff]
  %v408 = vld [vmem:[%s4 + $0x68] sm:$0xff]
  %v409 = vld [vmem:[%s4 + $0x70] sm:$0xff]
  %v410 = vld [vmem:[%s4 + $0x78] sm:$0xff]
  %s411 = scalar_lea.vmem %s3, 72
  %v412 = vld [vmem:[%s411] sm:$0xff]
  %v413 = vld [vmem:[%s411 + $0x8] sm:$0xff]
  %v414 = vld [vmem:[%s411 + $0x10] sm:$0xff]
  %v415 = vld [vmem:[%s411 + $0x18] sm:$0xff]
  %v416 = vld [vmem:[%s411 + $0x20] sm:$0xff]
  %v417 = vld [vmem:[%s411 + $0x28] sm:$0xff]
  %v418 = vld [vmem:[%s411 + $0x30] sm:$0xff]
  %v419 = vld [vmem:[%s411 + $0x38] sm:$0xff]
  %v420 = vld [vmem:[%s411 + $0x40] sm:$0xff]
  %421 = vmatprep.subr.mxu0 0.0
  %422 = vmatpush1.msra.mxu0 %v260
  %423 = vmatprep.subr.mxu0 0.0
  %424 = vmatpush1.msra.mxu0 %v261
  %425 = vmatprep.subr.mxu0 0.0
  %426 = vmatpush1.msra.mxu0 %v262
  %427 = vmatprep.subr.mxu0 0.0
  %428 = vmatpush1.msra.mxu0 %v263
  %429 = vmatprep.subr.mxu0 0.0
  %430 = vmatpush1.msra.mxu0 %v264
  %431 = vmatprep.subr.mxu0 0.0
  %432 = vmatpush1.msra.mxu0 %v265
  %433 = vmatprep.subr.mxu0 0.0
  %434 = vmatpush1.msra.mxu0 %v266
  %435 = vmatprep.subr.mxu0 0.0
  %436 = vmatpush1.msra.mxu0 %v267
  %437 = vmatprep.subr.mxu0 0.0
  %438 = vmatpush1.msra.mxu0 %v268
  %439 = vmatprep.subr.mxu0 0.0
  %440 = vmatpush1.msra.mxu0 %v269
  %441 = vmatprep.subr.mxu0 0.0
  %442 = vmatpush1.msra.mxu0 %v270
  %443 = vmatprep.subr.mxu0 0.0
  %444 = vmatpush1.msra.mxu0 %v271
  %445 = vmatprep.subr.mxu0 0.0
  %446 = vmatpush1.msra.mxu0 %v272
  %447 = vmatprep.subr.mxu0 0.0
  %448 = vmatpush1.msra.mxu0 %v273
  %449 = vmatprep.subr.mxu0 0.0
  %450 = vmatpush1.msra.mxu0 %v274
  %451 = vmatprep.subr.mxu0 0.0
  %452 = vmatpush1.msra.mxu0 %v275
  %453 = vmatprep.subr.mxu0 0.0
  %454 = vmatpush1.msra.mxu0 0.0
  %455 = vmatprep.subr.mxu0 0.0
  %456 = vmatpush1.msra.mxu0 0.0
  %457 = vmatprep.subr.mxu0 0.0
  %458 = vmatpush1.msra.mxu0 0.0
  %459 = vmatprep.subr.mxu0 0.0
  %460 = vmatpush1.msra.mxu0 0.0
  %461 = vmatprep.subr.mxu0 0.0
  %462 = vmatpush1.msra.mxu0 0.0
  %463 = vmatprep.subr.mxu0 0.0
  %464 = vmatpush1.msra.mxu0 0.0
  %465 = vmatprep.subr.mxu0 0.0
  %466 = vmatpush1.msra.mxu0 0.0
  %467 = vmatprep.subr.mxu0 0.0
  %468 = vmatpush1.msra.mxu0 0.0
  %469 = vmatprep.subr.mxu0 0.0
  %470 = vmatpush1.msra.mxu0 0.0
  %471 = vmatprep.subr.mxu0 0.0
  %472 = vmatpush1.msra.mxu0 0.0
  %473 = vmatprep.subr.mxu0 0.0
  %474 = vmatpush1.msra.mxu0 0.0
  %475 = vmatprep.subr.mxu0 0.0
  %476 = vmatpush1.msra.mxu0 0.0
  %477 = vmatprep.subr.mxu0 0.0
  %478 = vmatpush1.msra.mxu0 0.0
  %479 = vmatprep.subr.mxu0 0.0
  %480 = vmatpush1.msra.mxu0 0.0
  %481 = vmatprep.subr.mxu0 0.0
  %482 = vmatpush1.msra.mxu0 0.0
  %483 = vmatprep.subr.mxu0 0.0
  %484 = vmatpush1.msra.mxu0 0.0
  %485 = vmatprep.mubr.f32.mxu0 0.0
  %486 = vmatmul.mubr.f32.gmra.mrb[0].mxu0 %v412
  %v487 = vpop.f32.mrb[0].mxu0
  %v488 = vadd.f32 0.0, %v487
  %v489 = vpop.f32.mrb[0].mxu0
  %490 = vmatprep.mubr.f32.mxu0 0.0
  %491 = vmatmul.mubr.f32.gmra.mrb[0].mxu0 %v413
  %v492 = vpop.f32.mrb[0].mxu0
  %v493 = vadd.f32 0.0, %v492
  %v494 = vpop.f32.mrb[0].mxu0
  %495 = vmatprep.mubr.f32.mxu0 0.0
  %496 = vmatmul.mubr.f32.gmra.mrb[0].mxu0 %v414
  %v497 = vpop.f32.mrb[0].mxu0
  %v498 = vadd.f32 0.0, %v497
  %v499 = vpop.f32.mrb[0].mxu0
  %500 = vmatprep.mubr.f32.mxu0 0.0
  %501 = vmatmul.mubr.f32.gmra.mrb[0].mxu0 %v415
  %v502 = vpop.f32.mrb[0].mxu0
  %v503 = vadd.f32 0.0, %v502
  %v504 = vpop.f32.mrb[0].mxu0
  %505 = vmatprep.mubr.f32.mxu0 0.0
  %506 = vmatmul.mubr.f32.gmra.mrb[0].mxu0 %v416
  %v507 = vpop.f32.mrb[0].mxu0
  %v508 = vadd.f32 0.0, %v507
  %v509 = vpop.f32.mrb[0].mxu0
  %510 = vmatprep.mubr.f32.mxu0 0.0
  %511 = vmatmul.mubr.f32.gmra.mrb[0].mxu0 %v417
  %v512 = vpop.f32.mrb[0].mxu0
  %v513 = vadd.f32 0.0, %v512
  %v514 = vpop.f32.mrb[0].mxu0
  %515 = vmatprep.mubr.f32.mxu0 0.0
  %516 = vmatmul.mubr.f32.gmra.mrb[0].mxu0 %v418
  %v517 = vpop.f32.mrb[0].mxu0
  %v518 = vadd.f32 0.0, %v517
  %v519 = vpop.f32.mrb[0].mxu0
  %520 = vmatprep.mubr.f32.mxu0 0.0
  %521 = vmatmul.mubr.f32.gmra.mrb[0].mxu0 %v419
  %v522 = vpop.f32.mrb[0].mxu0
  %v523 = vadd.f32 0.0, %v522
  %v524 = vpop.f32.mrb[0].mxu0
  %525 = vmatprep.mubr.f32.mxu0 0.0
  %526 = vmatmul.mubr.f32.gmra.mrb[0].mxu0 %v420
  %v527 = vpop.f32.mrb[0].mxu0
  %v528 = vadd.f32 0.0, %v527
  %v529 = vpop.f32.mrb[0].mxu0
  %530 = vdwg.mxu0
  %s531 = scalar_lea.vmem %s4, 128
  %v532 = vld [vmem:[%s531] sm:$0xff]
  %v533 = vld [vmem:[%s531 + $0x8] sm:$0xff]
  %v534 = vld [vmem:[%s531 + $0x10] sm:$0xff]
  %v535 = vld [vmem:[%s531 + $0x18] sm:$0xff]
  %v536 = vld [vmem:[%s531 + $0x20] sm:$0xff]
  %v537 = vld [vmem:[%s531 + $0x28] sm:$0xff]
  %v538 = vld [vmem:[%s531 + $0x30] sm:$0xff]
  %v539 = vld [vmem:[%s531 + $0x38] sm:$0xff]
  %v540 = vld [vmem:[%s531 + $0x40] sm:$0xff]
  %v541 = vld [vmem:[%s531 + $0x48] sm:$0xff]
  %v542 = vld [vmem:[%s531 + $0x50] sm:$0xff]
  %v543 = vld [vmem:[%s531 + $0x58] sm:$0xff]
  %v544 = vld [vmem:[%s531 + $0x60] sm:$0xff]
  %v545 = vld [vmem:[%s531 + $0x68] sm:$0xff]
  %v546 = vld [vmem:[%s531 + $0x70] sm:$0xff]
  %v547 = vld [vmem:[%s531 + $0x78] sm:$0xff]
  %548 = vmatprep.subr.mxu0 0.0
  %549 = vmatpush1.msra.mxu0 %v532
  %550 = vmatprep.subr.mxu0 0.0
  %551 = vmatpush1.msra.mxu0 %v533
  %552 = vmatprep.subr.mxu0 0.0
  %553 = vmatpush1.msra.mxu0 %v534
  %554 = vmatprep.subr.mxu0 0.0
  %555 = vmatpush1.msra.mxu0 %v535
  %556 = vmatprep.subr.mxu0 0.0
  %557 = vmatpush1.msra.mxu0 %v536
  %558 = vmatprep.subr.mxu0 0.0
  %559 = vmatpush1.msra.mxu0 %v537
  %560 = vmatprep.subr.mxu0 0.0
  %561 = vmatpush1.msra.mxu0 %v538
  %562 = vmatprep.subr.mxu0 0.0
  %563 = vmatpush1.msra.mxu0 %v539
  %564 = vmatprep.subr.mxu0 0.0
  %565 = vmatpush1.msra.mxu0 %v540
  %566 = vmatprep.subr.mxu0 0.0
  %567 = vmatpush1.msra.mxu0 %v541
  %568 = vmatprep.subr.mxu0 0.0
  %569 = vmatpush1.msra.mxu0 %v542
  %570 = vmatprep.subr.mxu0 0.0
  %571 = vmatpush1.msra.mxu0 %v543
  %572 = vmatprep.subr.mxu0 0.0
  %573 = vmatpush1.msra.mxu0 %v544
  %574 = vmatprep.subr.mxu0 0.0
  %575 = vmatpush1.msra.mxu0 %v545
  %576 = vmatprep.subr.mxu0 0.0
  %577 = vmatpush1.msra.mxu0 %v546
  %578 = vmatprep.subr.mxu0 0.0
  %579 = vmatpush1.msra.mxu0 %v547
  %580 = vmatprep.subr.mxu0 0.0
  %581 = vmatpush1.msra.mxu0 0.0
  %582 = vmatprep.subr.mxu0 0.0
  %583 = vmatpush1.msra.mxu0 0.0
  %584 = vmatprep.subr.mxu0 0.0
  %585 = vmatpush1.msra.mxu0 0.0
  %586 = vmatprep.subr.mxu0 0.0
  %587 = vmatpush1.msra.mxu0 0.0
  %588 = vmatprep.subr.mxu0 0.0
  %589 = vmatpush1.msra.mxu0 0.0
  %590 = vmatprep.subr.mxu0 0.0
  %591 = vmatpush1.msra.mxu0 0.0
  %592 = vmatprep.subr.mxu0 0.0
  %593 = vmatpush1.msra.mxu0 0.0
  %594 = vmatprep.subr.mxu0 0.0
  %595 = vmatpush1.msra.mxu0 0.0
  %596 = vmatprep.subr.mxu0 0.0
  %597 = vmatpush1.msra.mxu0 0.0
  %598 = vmatprep.subr.mxu0 0.0
  %599 = vmatpush1.msra.mxu0 0.0
  %600 = vmatprep.subr.mxu0 0.0
  %601 = vmatpush1.msra.mxu0 0.0
  %602 = vmatprep.subr.mxu0 0.0
  %603 = vmatpush1.msra.mxu0 0.0
  %604 = vmatprep.subr.mxu0 0.0
  %605 = vmatpush1.msra.mxu0 0.0
  %606 = vmatprep.subr.mxu0 0.0
  %607 = vmatpush1.msra.mxu0 0.0
  %608 = vmatprep.subr.mxu0 0.0
  %609 = vmatpush1.msra.mxu0 0.0
  %610 = vmatprep.subr.mxu0 0.0
  %611 = vmatpush1.msra.mxu0 0.0
  %612 = vmatprep.mubr.f32.mxu0 0.0
  %613 = vmatmul.mubr.f32.gmra.mrb[0].mxu0 %v488
  %v614 = vpop.f32.mrb[0].mxu0
  %v615 = vadd.f32 0.0, %v614
  %v616 = vpop.f32.mrb[0].mxu0
  %617 = vmatprep.mubr.f32.mxu0 0.0
  %618 = vmatmul.mubr.f32.gmra.mrb[0].mxu0 %v493
  %v619 = vpop.f32.mrb[0].mxu0
  %v620 = vadd.f32 0.0, %v619
  %v621 = vpop.f32.mrb[0].mxu0
  %622 = vmatprep.mubr.f32.mxu0 0.0
  %623 = vmatmul.mubr.f32.gmra.mrb[0].mxu0 %v498
  %v624 = vpop.f32.mrb[0].mxu0
  %v625 = vadd.f32 0.0, %v624
  %v626 = vpop.f32.mrb[0].mxu0
  %627 = vmatprep.mubr.f32.mxu0 0.0
  %628 = vmatmul.mubr.f32.gmra.mrb[0].mxu0 %v503
  %v629 = vpop.f32.mrb[0].mxu0
  %v630 = vadd.f32 0.0, %v629
  %v631 = vpop.f32.mrb[0].mxu0
  %632 = vmatprep.mubr.f32.mxu0 0.0
  %633 = vmatmul.mubr.f32.gmra.mrb[0].mxu0 %v508
  %v634 = vpop.f32.mrb[0].mxu0
  %v635 = vadd.f32 0.0, %v634
  %v636 = vpop.f32.mrb[0].mxu0
  %637 = vmatprep.mubr.f32.mxu0 0.0
  %638 = vmatmul.mubr.f32.gmra.mrb[0].mxu0 %v513
  %v639 = vpop.f32.mrb[0].mxu0
  %v640 = vadd.f32 0.0, %v639
  %v641 = vpop.f32.mrb[0].mxu0
  %642 = vmatprep.mubr.f32.mxu0 0.0
  %643 = vmatmul.mubr.f32.gmra.mrb[0].mxu0 %v518
  %v644 = vpop.f32.mrb[0].mxu0
  %v645 = vadd.f32 0.0, %v644
  %v646 = vpop.f32.mrb[0].mxu0
  %647 = vmatprep.mubr.f32.mxu0 0.0
  %648 = vmatmul.mubr.f32.gmra.mrb[0].mxu0 %v523
  %v649 = vpop.f32.mrb[0].mxu0
  %v650 = vadd.f32 0.0, %v649
  %v651 = vpop.f32.mrb[0].mxu0
  %652 = vmatprep.mubr.f32.mxu0 0.0
  %653 = vmatmul.mubr.f32.gmra.mrb[0].mxu0 %v528
  %v654 = vpop.f32.mrb[0].mxu0
  %v655 = vadd.f32 0.0, %v654
  %v656 = vpop.f32.mrb[0].mxu0
  %657 = vdwg.mxu0
  %658 = vmatprep.subr.mxu0 0.0
  %659 = vmatpush1.msra.mxu0 %v395
  %660 = vmatprep.subr.mxu0 0.0
  %661 = vmatpush1.msra.mxu0 %v396
  %662 = vmatprep.subr.mxu0 0.0
  %663 = vmatpush1.msra.mxu0 %v397
  %664 = vmatprep.subr.mxu0 0.0
  %665 = vmatpush1.msra.mxu0 %v398
  %666 = vmatprep.subr.mxu0 0.0
  %667 = vmatpush1.msra.mxu0 %v399
  %668 = vmatprep.subr.mxu0 0.0
  %669 = vmatpush1.msra.mxu0 %v400
  %670 = vmatprep.subr.mxu0 0.0
  %671 = vmatpush1.msra.mxu0 %v401
  %672 = vmatprep.subr.mxu0 0.0
  %673 = vmatpush1.msra.mxu0 %v402
  %674 = vmatprep.subr.mxu0 0.0
  %675 = vmatpush1.msra.mxu0 %v403
  %676 = vmatprep.subr.mxu0 0.0
  %677 = vmatpush1.msra.mxu0 %v404
  %678 = vmatprep.subr.mxu0 0.0
  %679 = vmatpush1.msra.mxu0 %v405
  %680 = vmatprep.subr.mxu0 0.0
  %681 = vmatpush1.msra.mxu0 %v406
  %682 = vmatprep.subr.mxu0 0.0
  %683 = vmatpush1.msra.mxu0 %v407
  %684 = vmatprep.subr.mxu0 0.0
  %685 = vmatpush1.msra.mxu0 %v408
  %686 = vmatprep.subr.mxu0 0.0
  %687 = vmatpush1.msra.mxu0 %v409
  %688 = vmatprep.subr.mxu0 0.0
  %689 = vmatpush1.msra.mxu0 %v410
  %690 = vmatprep.subr.mxu0 0.0
  %691 = vmatpush1.msra.mxu0 0.0
  %692 = vmatprep.subr.mxu0 0.0
  %693 = vmatpush1.msra.mxu0 0.0
  %694 = vmatprep.subr.mxu0 0.0
  %695 = vmatpush1.msra.mxu0 0.0
  %696 = vmatprep.subr.mxu0 0.0
  %697 = vmatpush1.msra.mxu0 0.0
  %698 = vmatprep.subr.mxu0 0.0
  %699 = vmatpush1.msra.mxu0 0.0
  %700 = vmatprep.subr.mxu0 0.0
  %701 = vmatpush1.msra.mxu0 0.0
  %702 = vmatprep.subr.mxu0 0.0
  %703 = vmatpush1.msra.mxu0 0.0
  %704 = vmatprep.subr.mxu0 0.0
  %705 = vmatpush1.msra.mxu0 0.0
  %706 = vmatprep.subr.mxu0 0.0
  %707 = vmatpush1.msra.mxu0 0.0
  %708 = vmatprep.subr.mxu0 0.0
  %709 = vmatpush1.msra.mxu0 0.0
  %710 = vmatprep.subr.mxu0 0.0
  %711 = vmatpush1.msra.mxu0 0.0
  %712 = vmatprep.subr.mxu0 0.0
  %713 = vmatpush1.msra.mxu0 0.0
  %714 = vmatprep.subr.mxu0 0.0
  %715 = vmatpush1.msra.mxu0 0.0
  %716 = vmatprep.subr.mxu0 0.0
  %717 = vmatpush1.msra.mxu0 0.0
  %718 = vmatprep.subr.mxu0 0.0
  %719 = vmatpush1.msra.mxu0 0.0
  %720 = vmatprep.subr.mxu0 0.0
  %721 = vmatpush1.msra.mxu0 0.0
  %722 = vmatprep.mubr.f32.mxu0 0.0
  %723 = vmatmul.mubr.f32.gmra.mrb[0].mxu0 %v352
  %v724 = vpop.f32.mrb[0].mxu0
  %v725 = vadd.f32 %v615, %v724
  %v726 = vpop.f32.mrb[0].mxu0
  %727 = vmatprep.mubr.f32.mxu0 0.0
  %728 = vmatmul.mubr.f32.gmra.mrb[0].mxu0 %v357
  %v729 = vpop.f32.mrb[0].mxu0
  %v730 = vadd.f32 %v620, %v729
  %v731 = vpop.f32.mrb[0].mxu0
  %732 = vmatprep.mubr.f32.mxu0 0.0
  %733 = vmatmul.mubr.f32.gmra.mrb[0].mxu0 %v362
  %v734 = vpop.f32.mrb[0].mxu0
  %v735 = vadd.f32 %v625, %v734
  %v736 = vpop.f32.mrb[0].mxu0
  %737 = vmatprep.mubr.f32.mxu0 0.0
  %738 = vmatmul.mubr.f32.gmra.mrb[0].mxu0 %v367
  %v739 = vpop.f32.mrb[0].mxu0
  %v740 = vadd.f32 %v630, %v739
  %v741 = vpop.f32.mrb[0].mxu0
  %742 = vmatprep.mubr.f32.mxu0 0.0
  %743 = vmatmul.mubr.f32.gmra.mrb[0].mxu0 %v372
  %v744 = vpop.f32.mrb[0].mxu0
  %v745 = vadd.f32 %v635, %v744
  %v746 = vpop.f32.mrb[0].mxu0
  %747 = vmatprep.mubr.f32.mxu0 0.0
  %748 = vmatmul.mubr.f32.gmra.mrb[0].mxu0 %v377
  %v749 = vpop.f32.mrb[0].mxu0
  %v750 = vadd.f32 %v640, %v749
  %v751 = vpop.f32.mrb[0].mxu0
  %752 = vmatprep.mubr.f32.mxu0 0.0
  %753 = vmatmul.mubr.f32.gmra.mrb[0].mxu0 %v382
  %v754 = vpop.f32.mrb[0].mxu0
  %v755 = vadd.f32 %v645, %v754
  %v756 = vpop.f32.mrb[0].mxu0
  %757 = vmatprep.mubr.f32.mxu0 0.0
  %758 = vmatmul.mubr.f32.gmra.mrb[0].mxu0 %v387
  %v759 = vpop.f32.mrb[0].mxu0
  %v760 = vadd.f32 %v650, %v759
  %v761 = vpop.f32.mrb[0].mxu0
  %762 = vmatprep.mubr.f32.mxu0 0.0
  %763 = vmatmul.mubr.f32.gmra.mrb[0].mxu0 %v392
  %v764 = vpop.f32.mrb[0].mxu0
  %v765 = vadd.f32 %v655, %v764
  %v766 = vpop.f32.mrb[0].mxu0
  %767 = vdwg.mxu0
  %s768 = scalar_lea.vmem %s3, 144
  %v769 = vld [vmem:[%s768] sm:$0xff]
  %v770 = vld [vmem:[%s768 + $0x8] sm:$0xff]
  %v771 = vld [vmem:[%s768 + $0x10] sm:$0xff]
  %v772 = vld [vmem:[%s768 + $0x18] sm:$0xff]
  %v773 = vld [vmem:[%s768 + $0x20] sm:$0xff]
  %v774 = vld [vmem:[%s768 + $0x28] sm:$0xff]
  %v775 = vld [vmem:[%s768 + $0x30] sm:$0xff]
  %v776 = vld [vmem:[%s768 + $0x38] sm:$0xff]
  %v777 = vld [vmem:[%s768 + $0x40] sm:$0xff]
  %778 = vmatprep.subr.mxu0 0.0
  %779 = vmatpush1.msra.mxu0 %v260
  %780 = vmatprep.subr.mxu0 0.0
  %781 = vmatpush1.msra.mxu0 %v261
  %782 = vmatprep.subr.mxu0 0.0
  %783 = vmatpush1.msra.mxu0 %v262
  %784 = vmatprep.subr.mxu0 0.0
  %785 = vmatpush1.msra.mxu0 %v263
  %786 = vmatprep.subr.mxu0 0.0
  %787 = vmatpush1.msra.mxu0 %v264
  %788 = vmatprep.subr.mxu0 0.0
  %789 = vmatpush1.msra.mxu0 %v265
  %790 = vmatprep.subr.mxu0 0.0
  %791 = vmatpush1.msra.mxu0 %v266
  %792 = vmatprep.subr.mxu0 0.0
  %793 = vmatpush1.msra.mxu0 %v267
  %794 = vmatprep.subr.mxu0 0.0
  %795 = vmatpush1.msra.mxu0 %v268
  %796 = vmatprep.subr.mxu0 0.0
  %797 = vmatpush1.msra.mxu0 %v269
  %798 = vmatprep.subr.mxu0 0.0
  %799 = vmatpush1.msra.mxu0 %v270
  %800 = vmatprep.subr.mxu0 0.0
  %801 = vmatpush1.msra.mxu0 %v271
  %802 = vmatprep.subr.mxu0 0.0
  %803 = vmatpush1.msra.mxu0 %v272
  %804 = vmatprep.subr.mxu0 0.0
  %805 = vmatpush1.msra.mxu0 %v273
  %806 = vmatprep.subr.mxu0 0.0
  %807 = vmatpush1.msra.mxu0 %v274
  %808 = vmatprep.subr.mxu0 0.0
  %809 = vmatpush1.msra.mxu0 %v275
  %810 = vmatprep.subr.mxu0 0.0
  %811 = vmatpush1.msra.mxu0 0.0
  %812 = vmatprep.subr.mxu0 0.0
  %813 = vmatpush1.msra.mxu0 0.0
  %814 = vmatprep.subr.mxu0 0.0
  %815 = vmatpush1.msra.mxu0 0.0
  %816 = vmatprep.subr.mxu0 0.0
  %817 = vmatpush1.msra.mxu0 0.0
  %818 = vmatprep.subr.mxu0 0.0
  %819 = vmatpush1.msra.mxu0 0.0
  %820 = vmatprep.subr.mxu0 0.0
  %821 = vmatpush1.msra.mxu0 0.0
  %822 = vmatprep.subr.mxu0 0.0
  %823 = vmatpush1.msra.mxu0 0.0
  %824 = vmatprep.subr.mxu0 0.0
  %825 = vmatpush1.msra.mxu0 0.0
  %826 = vmatprep.subr.mxu0 0.0
  %827 = vmatpush1.msra.mxu0 0.0
  %828 = vmatprep.subr.mxu0 0.0
  %829 = vmatpush1.msra.mxu0 0.0
  %830 = vmatprep.subr.mxu0 0.0
  %831 = vmatpush1.msra.mxu0 0.0
  %832 = vmatprep.subr.mxu0 0.0
  %833 = vmatpush1.msra.mxu0 0.0
  %834 = vmatprep.subr.mxu0 0.0
  %835 = vmatpush1.msra.mxu0 0.0
  %836 = vmatprep.subr.mxu0 0.0
  %837 = vmatpush1.msra.mxu0 0.0
  %838 = vmatprep.subr.mxu0 0.0
  %839 = vmatpush1.msra.mxu0 0.0
  %840 = vmatprep.subr.mxu0 0.0
  %841 = vmatpush1.msra.mxu0 0.0
  %842 = vmatprep.mubr.f32.mxu0 0.0
  %843 = vmatmul.mubr.f32.gmra.mrb[0].mxu0 %v769
  %v844 = vpop.f32.mrb[0].mxu0
  %v845 = vadd.f32 0.0, %v844
  %v846 = vpop.f32.mrb[0].mxu0
  %847 = vmatprep.mubr.f32.mxu0 0.0
  %848 = vmatmul.mubr.f32.gmra.mrb[0].mxu0 %v770
  %v849 = vpop.f32.mrb[0].mxu0
  %v850 = vadd.f32 0.0, %v849
  %v851 = vpop.f32.mrb[0].mxu0
  %852 = vmatprep.mubr.f32.mxu0 0.0
  %853 = vmatmul.mubr.f32.gmra.mrb[0].mxu0 %v771
  %v854 = vpop.f32.mrb[0].mxu0
  %v855 = vadd.f32 0.0, %v854
  %v856 = vpop.f32.mrb[0].mxu0
  %857 = vmatprep.mubr.f32.mxu0 0.0
  %858 = vmatmul.mubr.f32.gmra.mrb[0].mxu0 %v772
  %v859 = vpop.f32.mrb[0].mxu0
  %v860 = vadd.f32 0.0, %v859
  %v861 = vpop.f32.mrb[0].mxu0
  %862 = vmatprep.mubr.f32.mxu0 0.0
  %863 = vmatmul.mubr.f32.gmra.mrb[0].mxu0 %v773
  %v864 = vpop.f32.mrb[0].mxu0
  %v865 = vadd.f32 0.0, %v864
  %v866 = vpop.f32.mrb[0].mxu0
  %867 = vmatprep.mubr.f32.mxu0 0.0
  %868 = vmatmul.mubr.f32.gmra.mrb[0].mxu0 %v774
  %v869 = vpop.f32.mrb[0].mxu0
  %v870 = vadd.f32 0.0, %v869
  %v871 = vpop.f32.mrb[0].mxu0
  %872 = vmatprep.mubr.f32.mxu0 0.0
  %873 = vmatmul.mubr.f32.gmra.mrb[0].mxu0 %v775
  %v874 = vpop.f32.mrb[0].mxu0
  %v875 = vadd.f32 0.0, %v874
  %v876 = vpop.f32.mrb[0].mxu0
  %877 = vmatprep.mubr.f32.mxu0 0.0
  %878 = vmatmul.mubr.f32.gmra.mrb[0].mxu0 %v776
  %v879 = vpop.f32.mrb[0].mxu0
  %v880 = vadd.f32 0.0, %v879
  %v881 = vpop.f32.mrb[0].mxu0
  %882 = vmatprep.mubr.f32.mxu0 0.0
  %883 = vmatmul.mubr.f32.gmra.mrb[0].mxu0 %v777
  %v884 = vpop.f32.mrb[0].mxu0
  %v885 = vadd.f32 0.0, %v884
  %v886 = vpop.f32.mrb[0].mxu0
  %887 = vdwg.mxu0
  %s888 = scalar_lea.vmem %s4, 256
  %v889 = vld [vmem:[%s888] sm:$0xff]
  %v890 = vld [vmem:[%s888 + $0x8] sm:$0xff]
  %v891 = vld [vmem:[%s888 + $0x10] sm:$0xff]
  %v892 = vld [vmem:[%s888 + $0x18] sm:$0xff]
  %v893 = vld [vmem:[%s888 + $0x20] sm:$0xff]
  %v894 = vld [vmem:[%s888 + $0x28] sm:$0xff]
  %v895 = vld [vmem:[%s888 + $0x30] sm:$0xff]
  %v896 = vld [vmem:[%s888 + $0x38] sm:$0xff]
  %v897 = vld [vmem:[%s888 + $0x40] sm:$0xff]
  %v898 = vld [vmem:[%s888 + $0x48] sm:$0xff]
  %v899 = vld [vmem:[%s888 + $0x50] sm:$0xff]
  %v900 = vld [vmem:[%s888 + $0x58] sm:$0xff]
  %v901 = vld [vmem:[%s888 + $0x60] sm:$0xff]
  %v902 = vld [vmem:[%s888 + $0x68] sm:$0xff]
  %v903 = vld [vmem:[%s888 + $0x70] sm:$0xff]
  %v904 = vld [vmem:[%s888 + $0x78] sm:$0xff]
  %905 = vmatprep.subr.mxu0 0.0
  %906 = vmatpush1.msra.mxu0 %v889
  %907 = vmatprep.subr.mxu0 0.0
  %908 = vmatpush1.msra.mxu0 %v890
  %909 = vmatprep.subr.mxu0 0.0
  %910 = vmatpush1.msra.mxu0 %v891
  %911 = vmatprep.subr.mxu0 0.0
  %912 = vmatpush1.msra.mxu0 %v892
  %913 = vmatprep.subr.mxu0 0.0
  %914 = vmatpush1.msra.mxu0 %v893
  %915 = vmatprep.subr.mxu0 0.0
  %916 = vmatpush1.msra.mxu0 %v894
  %917 = vmatprep.subr.mxu0 0.0
  %918 = vmatpush1.msra.mxu0 %v895
  %919 = vmatprep.subr.mxu0 0.0
  %920 = vmatpush1.msra.mxu0 %v896
  %921 = vmatprep.subr.mxu0 0.0
  %922 = vmatpush1.msra.mxu0 %v897
  %923 = vmatprep.subr.mxu0 0.0
  %924 = vmatpush1.msra.mxu0 %v898
  %925 = vmatprep.subr.mxu0 0.0
  %926 = vmatpush1.msra.mxu0 %v899
  %927 = vmatprep.subr.mxu0 0.0
  %928 = vmatpush1.msra.mxu0 %v900
  %929 = vmatprep.subr.mxu0 0.0
  %930 = vmatpush1.msra.mxu0 %v901
  %931 = vmatprep.subr.mxu0 0.0
  %932 = vmatpush1.msra.mxu0 %v902
  %933 = vmatprep.subr.mxu0 0.0
  %934 = vmatpush1.msra.mxu0 %v903
  %935 = vmatprep.subr.mxu0 0.0
  %936 = vmatpush1.msra.mxu0 %v904
  %937 = vmatprep.subr.mxu0 0.0
  %938 = vmatpush1.msra.mxu0 0.0
  %939 = vmatprep.subr.mxu0 0.0
  %940 = vmatpush1.msra.mxu0 0.0
  %941 = vmatprep.subr.mxu0 0.0
  %942 = vmatpush1.msra.mxu0 0.0
  %943 = vmatprep.subr.mxu0 0.0
  %944 = vmatpush1.msra.mxu0 0.0
  %945 = vmatprep.subr.mxu0 0.0
  %946 = vmatpush1.msra.mxu0 0.0
  %947 = vmatprep.subr.mxu0 0.0
  %948 = vmatpush1.msra.mxu0 0.0
  %949 = vmatprep.subr.mxu0 0.0
  %950 = vmatpush1.msra.mxu0 0.0
  %951 = vmatprep.subr.mxu0 0.0
  %952 = vmatpush1.msra.mxu0 0.0
  %953 = vmatprep.subr.mxu0 0.0
  %954 = vmatpush1.msra.mxu0 0.0
  %955 = vmatprep.subr.mxu0 0.0
  %956 = vmatpush1.msra.mxu0 0.0
  %957 = vmatprep.subr.mxu0 0.0
  %958 = vmatpush1.msra.mxu0 0.0
  %959 = vmatprep.subr.mxu0 0.0
  %960 = vmatpush1.msra.mxu0 0.0
  %961 = vmatprep.subr.mxu0 0.0
  %962 = vmatpush1.msra.mxu0 0.0
  %963 = vmatprep.subr.mxu0 0.0
  %964 = vmatpush1.msra.mxu0 0.0
  %965 = vmatprep.subr.mxu0 0.0
  %966 = vmatpush1.msra.mxu0 0.0
  %967 = vmatprep.subr.mxu0 0.0
  %968 = vmatpush1.msra.mxu0 0.0
  %969 = vmatprep.mubr.f32.mxu0 0.0
  %970 = vmatmul.mubr.f32.gmra.mrb[0].mxu0 %v845
  %v971 = vpop.f32.mrb[0].mxu0
  %v972 = vadd.f32 0.0, %v971
  %v973 = vpop.f32.mrb[0].mxu0
  %974 = vmatprep.mubr.f32.mxu0 0.0
  %975 = vmatmul.mubr.f32.gmra.mrb[0].mxu0 %v850
  %v976 = vpop.f32.mrb[0].mxu0
  %v977 = vadd.f32 0.0, %v976
  %v978 = vpop.f32.mrb[0].mxu0
  %979 = vmatprep.mubr.f32.mxu0 0.0
  %980 = vmatmul.mubr.f32.gmra.mrb[0].mxu0 %v855
  %v981 = vpop.f32.mrb[0].mxu0
  %v982 = vadd.f32 0.0, %v981
  %v983 = vpop.f32.mrb[0].mxu0
  %984 = vmatprep.mubr.f32.mxu0 0.0
  %985 = vmatmul.mubr.f32.gmra.mrb[0].mxu0 %v860
  %v986 = vpop.f32.mrb[0].mxu0
  %v987 = vadd.f32 0.0, %v986
  %v988 = vpop.f32.mrb[0].mxu0
  %989 = vmatprep.mubr.f32.mxu0 0.0
  %990 = vmatmul.mubr.f32.gmra.mrb[0].mxu0 %v865
  %v991 = vpop.f32.mrb[0].mxu0
  %v992 = vadd.f32 0.0, %v991
  %v993 = vpop.f32.mrb[0].mxu0
  %994 = vmatprep.mubr.f32.mxu0 0.0
  %995 = vmatmul.mubr.f32.gmra.mrb[0].mxu0 %v870
  %v996 = vpop.f32.mrb[0].mxu0
  %v997 = vadd.f32 0.0, %v996
  %v998 = vpop.f32.mrb[0].mxu0
  %999 = vmatprep.mubr.f32.mxu0 0.0
  %1000 = vmatmul.mubr.f32.gmra.mrb[0].mxu0 %v875
  %v1001 = vpop.f32.mrb[0].mxu0
  %v1002 = vadd.f32 0.0, %v1001
  %v1003 = vpop.f32.mrb[0].mxu0
  %1004 = vmatprep.mubr.f32.mxu0 0.0
  %1005 = vmatmul.mubr.f32.gmra.mrb[0].mxu0 %v880
  %v1006 = vpop.f32.mrb[0].mxu0
  %v1007 = vadd.f32 0.0, %v1006
  %v1008 = vpop.f32.mrb[0].mxu0
  %1009 = vmatprep.mubr.f32.mxu0 0.0
  %1010 = vmatmul.mubr.f32.gmra.mrb[0].mxu0 %v885
  %v1011 = vpop.f32.mrb[0].mxu0
  %v1012 = vadd.f32 0.0, %v1011
  %v1013 = vpop.f32.mrb[0].mxu0
  %1014 = vdwg.mxu0
  %v1015 = vadd.f32 %v725, %v972
  %v1016 = vadd.f32 %v730, %v977
  %v1017 = vadd.f32 %v735, %v982
  %v1018 = vadd.f32 %v740, %v987
  %v1019 = vadd.f32 %v745, %v992
  %v1020 = vadd.f32 %v750, %v997
  %v1021 = vadd.f32 %v755, %v1002
  %v1022 = vadd.f32 %v760, %v1007
  %v1023 = vadd.f32 %v765, %v1012
  %s1024 = scalar_lea.vmem %s3, 216
  %v1025 = vld [vmem:[%s1024] sm:$0xff]
  %v1026 = vld [vmem:[%s1024 + $0x8] sm:$0xff]
  %v1027 = vld [vmem:[%s1024 + $0x10] sm:$0xff]
  %v1028 = vld [vmem:[%s1024 + $0x18] sm:$0xff]
  %v1029 = vld [vmem:[%s1024 + $0x20] sm:$0xff]
  %v1030 = vld [vmem:[%s1024 + $0x28] sm:$0xff]
  %v1031 = vld [vmem:[%s1024 + $0x30] sm:$0xff]
  %v1032 = vld [vmem:[%s1024 + $0x38] sm:$0xff]
  %v1033 = vld [vmem:[%s1024 + $0x40] sm:$0xff]
  %1034 = vmatprep.subr.mxu0 0.0
  %1035 = vmatpush1.msra.mxu0 %v260
  %1036 = vmatprep.subr.mxu0 0.0
  %1037 = vmatpush1.msra.mxu0 %v261
  %1038 = vmatprep.subr.mxu0 0.0
  %1039 = vmatpush1.msra.mxu0 %v262
  %1040 = vmatprep.subr.mxu0 0.0
  %1041 = vmatpush1.msra.mxu0 %v263
  %1042 = vmatprep.subr.mxu0 0.0
  %1043 = vmatpush1.msra.mxu0 %v264
  %1044 = vmatprep.subr.mxu0 0.0
  %1045 = vmatpush1.msra.mxu0 %v265
  %1046 = vmatprep.subr.mxu0 0.0
  %1047 = vmatpush1.msra.mxu0 %v266
  %1048 = vmatprep.subr.mxu0 0.0
  %1049 = vmatpush1.msra.mxu0 %v267
  %1050 = vmatprep.subr.mxu0 0.0
  %1051 = vmatpush1.msra.mxu0 %v268
  %1052 = vmatprep.subr.mxu0 0.0
  %1053 = vmatpush1.msra.mxu0 %v269
  %1054 = vmatprep.subr.mxu0 0.0
  %1055 = vmatpush1.msra.mxu0 %v270
  %1056 = vmatprep.subr.mxu0 0.0
  %1057 = vmatpush1.msra.mxu0 %v271
  %1058 = vmatprep.subr.mxu0 0.0
  %1059 = vmatpush1.msra.mxu0 %v272
  %1060 = vmatprep.subr.mxu0 0.0
  %1061 = vmatpush1.msra.mxu0 %v273
  %1062 = vmatprep.subr.mxu0 0.0
  %1063 = vmatpush1.msra.mxu0 %v274
  %1064 = vmatprep.subr.mxu0 0.0
  %1065 = vmatpush1.msra.mxu0 %v275
  %1066 = vmatprep.subr.mxu0 0.0
  %1067 = vmatpush1.msra.mxu0 0.0
  %1068 = vmatprep.subr.mxu0 0.0
  %1069 = vmatpush1.msra.mxu0 0.0
  %1070 = vmatprep.subr.mxu0 0.0
  %1071 = vmatpush1.msra.mxu0 0.0
  %1072 = vmatprep.subr.mxu0 0.0
  %1073 = vmatpush1.msra.mxu0 0.0
  %1074 = vmatprep.subr.mxu0 0.0
  %1075 = vmatpush1.msra.mxu0 0.0
  %1076 = vmatprep.subr.mxu0 0.0
  %1077 = vmatpush1.msra.mxu0 0.0
  %1078 = vmatprep.subr.mxu0 0.0
  %1079 = vmatpush1.msra.mxu0 0.0
  %1080 = vmatprep.subr.mxu0 0.0
  %1081 = vmatpush1.msra.mxu0 0.0
  %1082 = vmatprep.subr.mxu0 0.0
  %1083 = vmatpush1.msra.mxu0 0.0
  %1084 = vmatprep.subr.mxu0 0.0
  %1085 = vmatpush1.msra.mxu0 0.0
  %1086 = vmatprep.subr.mxu0 0.0
  %1087 = vmatpush1.msra.mxu0 0.0
  %1088 = vmatprep.subr.mxu0 0.0
  %1089 = vmatpush1.msra.mxu0 0.0
  %1090 = vmatprep.subr.mxu0 0.0
  %1091 = vmatpush1.msra.mxu0 0.0
  %1092 = vmatprep.subr.mxu0 0.0
  %1093 = vmatpush1.msra.mxu0 0.0
  %1094 = vmatprep.subr.mxu0 0.0
  %1095 = vmatpush1.msra.mxu0 0.0
  %1096 = vmatprep.subr.mxu0 0.0
  %1097 = vmatpush1.msra.mxu0 0.0
  %1098 = vmatprep.mubr.f32.mxu0 0.0
  %1099 = vmatmul.mubr.f32.gmra.mrb[0].mxu0 %v1025
  %v1100 = vpop.f32.mrb[0].mxu0
  %v1101 = vadd.f32 0.0, %v1100
  %v1102 = vpop.f32.mrb[0].mxu0
  %1103 = vmatprep.mubr.f32.mxu0 0.0
  %1104 = vmatmul.mubr.f32.gmra.mrb[0].mxu0 %v1026
  %v1105 = vpop.f32.mrb[0].mxu0
  %v1106 = vadd.f32 0.0, %v1105
  %v1107 = vpop.f32.mrb[0].mxu0
  %1108 = vmatprep.mubr.f32.mxu0 0.0
  %1109 = vmatmul.mubr.f32.gmra.mrb[0].mxu0 %v1027
  %v1110 = vpop.f32.mrb[0].mxu0
  %v1111 = vadd.f32 0.0, %v1110
  %v1112 = vpop.f32.mrb[0].mxu0
  %1113 = vmatprep.mubr.f32.mxu0 0.0
  %1114 = vmatmul.mubr.f32.gmra.mrb[0].mxu0 %v1028
  %v1115 = vpop.f32.mrb[0].mxu0
  %v1116 = vadd.f32 0.0, %v1115
  %v1117 = vpop.f32.mrb[0].mxu0
  %1118 = vmatprep.mubr.f32.mxu0 0.0
  %1119 = vmatmul.mubr.f32.gmra.mrb[0].mxu0 %v1029
  %v1120 = vpop.f32.mrb[0].mxu0
  %v1121 = vadd.f32 0.0, %v1120
  %v1122 = vpop.f32.mrb[0].mxu0
  %1123 = vmatprep.mubr.f32.mxu0 0.0
  %1124 = vmatmul.mubr.f32.gmra.mrb[0].mxu0 %v1030
  %v1125 = vpop.f32.mrb[0].mxu0
  %v1126 = vadd.f32 0.0, %v1125
  %v1127 = vpop.f32.mrb[0].mxu0
  %1128 = vmatprep.mubr.f32.mxu0 0.0
  %1129 = vmatmul.mubr.f32.gmra.mrb[0].mxu0 %v1031
  %v1130 = vpop.f32.mrb[0].mxu0
  %v1131 = vadd.f32 0.0, %v1130
  %v1132 = vpop.f32.mrb[0].mxu0
  %1133 = vmatprep.mubr.f32.mxu0 0.0
  %1134 = vmatmul.mubr.f32.gmra.mrb[0].mxu0 %v1032
  %v1135 = vpop.f32.mrb[0].mxu0
  %v1136 = vadd.f32 0.0, %v1135
  %v1137 = vpop.f32.mrb[0].mxu0
  %1138 = vmatprep.mubr.f32.mxu0 0.0
  %1139 = vmatmul.mubr.f32.gmra.mrb[0].mxu0 %v1033
  %v1140 = vpop.f32.mrb[0].mxu0
  %v1141 = vadd.f32 0.0, %v1140
  %v1142 = vpop.f32.mrb[0].mxu0
  %1143 = vdwg.mxu0
  %s1144 = scalar_lea.vmem %s4, 384
  %v1145 = vld [vmem:[%s1144] sm:$0xff]
  %v1146 = vld [vmem:[%s1144 + $0x8] sm:$0xff]
  %v1147 = vld [vmem:[%s1144 + $0x10] sm:$0xff]
  %v1148 = vld [vmem:[%s1144 + $0x18] sm:$0xff]
  %v1149 = vld [vmem:[%s1144 + $0x20] sm:$0xff]
  %v1150 = vld [vmem:[%s1144 + $0x28] sm:$0xff]
  %v1151 = vld [vmem:[%s1144 + $0x30] sm:$0xff]
  %v1152 = vld [vmem:[%s1144 + $0x38] sm:$0xff]
  %v1153 = vld [vmem:[%s1144 + $0x40] sm:$0xff]
  %v1154 = vld [vmem:[%s1144 + $0x48] sm:$0xff]
  %v1155 = vld [vmem:[%s1144 + $0x50] sm:$0xff]
  %v1156 = vld [vmem:[%s1144 + $0x58] sm:$0xff]
  %v1157 = vld [vmem:[%s1144 + $0x60] sm:$0xff]
  %v1158 = vld [vmem:[%s1144 + $0x68] sm:$0xff]
  %v1159 = vld [vmem:[%s1144 + $0x70] sm:$0xff]
  %v1160 = vld [vmem:[%s1144 + $0x78] sm:$0xff]
  %1161 = vmatprep.subr.mxu0 0.0
  %1162 = vmatpush1.msra.mxu0 %v1145
  %1163 = vmatprep.subr.mxu0 0.0
  %1164 = vmatpush1.msra.mxu0 %v1146
  %1165 = vmatprep.subr.mxu0 0.0
  %1166 = vmatpush1.msra.mxu0 %v1147
  %1167 = vmatprep.subr.mxu0 0.0
  %1168 = vmatpush1.msra.mxu0 %v1148
  %1169 = vmatprep.subr.mxu0 0.0
  %1170 = vmatpush1.msra.mxu0 %v1149
  %1171 = vmatprep.subr.mxu0 0.0
  %1172 = vmatpush1.msra.mxu0 %v1150
  %1173 = vmatprep.subr.mxu0 0.0
  %1174 = vmatpush1.msra.mxu0 %v1151
  %1175 = vmatprep.subr.mxu0 0.0
  %1176 = vmatpush1.msra.mxu0 %v1152
  %1177 = vmatprep.subr.mxu0 0.0
  %1178 = vmatpush1.msra.mxu0 %v1153
  %1179 = vmatprep.subr.mxu0 0.0
  %1180 = vmatpush1.msra.mxu0 %v1154
  %1181 = vmatprep.subr.mxu0 0.0
  %1182 = vmatpush1.msra.mxu0 %v1155
  %1183 = vmatprep.subr.mxu0 0.0
  %1184 = vmatpush1.msra.mxu0 %v1156
  %1185 = vmatprep.subr.mxu0 0.0
  %1186 = vmatpush1.msra.mxu0 %v1157
  %1187 = vmatprep.subr.mxu0 0.0
  %1188 = vmatpush1.msra.mxu0 %v1158
  %1189 = vmatprep.subr.mxu0 0.0
  %1190 = vmatpush1.msra.mxu0 %v1159
  %1191 = vmatprep.subr.mxu0 0.0
  %1192 = vmatpush1.msra.mxu0 %v1160
  %1193 = vmatprep.subr.mxu0 0.0
  %1194 = vmatpush1.msra.mxu0 0.0
  %1195 = vmatprep.subr.mxu0 0.0
  %1196 = vmatpush1.msra.mxu0 0.0
  %1197 = vmatprep.subr.mxu0 0.0
  %1198 = vmatpush1.msra.mxu0 0.0
  %1199 = vmatprep.subr.mxu0 0.0
  %1200 = vmatpush1.msra.mxu0 0.0
  %1201 = vmatprep.subr.mxu0 0.0
  %1202 = vmatpush1.msra.mxu0 0.0
  %1203 = vmatprep.subr.mxu0 0.0
  %1204 = vmatpush1.msra.mxu0 0.0
  %1205 = vmatprep.subr.mxu0 0.0
  %1206 = vmatpush1.msra.mxu0 0.0
  %1207 = vmatprep.subr.mxu0 0.0
  %1208 = vmatpush1.msra.mxu0 0.0
  %1209 = vmatprep.subr.mxu0 0.0
  %1210 = vmatpush1.msra.mxu0 0.0
  %1211 = vmatprep.subr.mxu0 0.0
  %1212 = vmatpush1.msra.mxu0 0.0
  %1213 = vmatprep.subr.mxu0 0.0
  %1214 = vmatpush1.msra.mxu0 0.0
  %1215 = vmatprep.subr.mxu0 0.0
  %1216 = vmatpush1.msra.mxu0 0.0
  %1217 = vmatprep.subr.mxu0 0.0
  %1218 = vmatpush1.msra.mxu0 0.0
  %1219 = vmatprep.subr.mxu0 0.0
  %1220 = vmatpush1.msra.mxu0 0.0
  %1221 = vmatprep.subr.mxu0 0.0
  %1222 = vmatpush1.msra.mxu0 0.0
  %1223 = vmatprep.subr.mxu0 0.0
  %1224 = vmatpush1.msra.mxu0 0.0
  %1225 = vmatprep.mubr.f32.mxu0 0.0
  %1226 = vmatmul.mubr.f32.gmra.mrb[0].mxu0 %v1101
  %v1227 = vpop.f32.mrb[0].mxu0
  %v1228 = vadd.f32 0.0, %v1227
  %v1229 = vpop.f32.mrb[0].mxu0
  %1230 = vmatprep.mubr.f32.mxu0 0.0
  %1231 = vmatmul.mubr.f32.gmra.mrb[0].mxu0 %v1106
  %v1232 = vpop.f32.mrb[0].mxu0
  %v1233 = vadd.f32 0.0, %v1232
  %v1234 = vpop.f32.mrb[0].mxu0
  %1235 = vmatprep.mubr.f32.mxu0 0.0
  %1236 = vmatmul.mubr.f32.gmra.mrb[0].mxu0 %v1111
  %v1237 = vpop.f32.mrb[0].mxu0
  %v1238 = vadd.f32 0.0, %v1237
  %v1239 = vpop.f32.mrb[0].mxu0
  %1240 = vmatprep.mubr.f32.mxu0 0.0
  %1241 = vmatmul.mubr.f32.gmra.mrb[0].mxu0 %v1116
  %v1242 = vpop.f32.mrb[0].mxu0
  %v1243 = vadd.f32 0.0, %v1242
  %v1244 = vpop.f32.mrb[0].mxu0
  %1245 = vmatprep.mubr.f32.mxu0 0.0
  %1246 = vmatmul.mubr.f32.gmra.mrb[0].mxu0 %v1121
  %v1247 = vpop.f32.mrb[0].mxu0
  %v1248 = vadd.f32 0.0, %v1247
  %v1249 = vpop.f32.mrb[0].mxu0
  %1250 = vmatprep.mubr.f32.mxu0 0.0
  %1251 = vmatmul.mubr.f32.gmra.mrb[0].mxu0 %v1126
  %v1252 = vpop.f32.mrb[0].mxu0
  %v1253 = vadd.f32 0.0, %v1252
  %v1254 = vpop.f32.mrb[0].mxu0
  %1255 = vmatprep.mubr.f32.mxu0 0.0
  %1256 = vmatmul.mubr.f32.gmra.mrb[0].mxu0 %v1131
  %v1257 = vpop.f32.mrb[0].mxu0
  %v1258 = vadd.f32 0.0, %v1257
  %v1259 = vpop.f32.mrb[0].mxu0
  %1260 = vmatprep.mubr.f32.mxu0 0.0
  %1261 = vmatmul.mubr.f32.gmra.mrb[0].mxu0 %v1136
  %v1262 = vpop.f32.mrb[0].mxu0
  %v1263 = vadd.f32 0.0, %v1262
  %v1264 = vpop.f32.mrb[0].mxu0
  %1265 = vmatprep.mubr.f32.mxu0 0.0
  %1266 = vmatmul.mubr.f32.gmra.mrb[0].mxu0 %v1141
  %v1267 = vpop.f32.mrb[0].mxu0
  %v1268 = vadd.f32 0.0, %v1267
  %v1269 = vpop.f32.mrb[0].mxu0
  %1270 = vdwg.mxu0
  %v1271 = vadd.f32 %v1015, %v1228
  %v1272 = vadd.f32 %v1016, %v1233
  %v1273 = vadd.f32 %v1017, %v1238
  %v1274 = vadd.f32 %v1018, %v1243
  %v1275 = vadd.f32 %v1019, %v1248
  %v1276 = vadd.f32 %v1020, %v1253
  %v1277 = vadd.f32 %v1021, %v1258
  %v1278 = vadd.f32 %v1022, %v1263
  %v1279 = vadd.f32 %v1023, %v1268
  %s1280 = scalar_lea.vmem %s3, 288
  %v1281 = vld [vmem:[%s1280] sm:$0xff]
  %v1282 = vld [vmem:[%s1280 + $0x8] sm:$0xff]
  %v1283 = vld [vmem:[%s1280 + $0x10] sm:$0xff]
  %v1284 = vld [vmem:[%s1280 + $0x18] sm:$0xff]
  %v1285 = vld [vmem:[%s1280 + $0x20] sm:$0xff]
  %v1286 = vld [vmem:[%s1280 + $0x28] sm:$0xff]
  %v1287 = vld [vmem:[%s1280 + $0x30] sm:$0xff]
  %v1288 = vld [vmem:[%s1280 + $0x38] sm:$0xff]
  %v1289 = vld [vmem:[%s1280 + $0x40] sm:$0xff]
  %1290 = vmatprep.subr.mxu0 0.0
  %1291 = vmatpush1.msra.mxu0 %v260
  %1292 = vmatprep.subr.mxu0 0.0
  %1293 = vmatpush1.msra.mxu0 %v261
  %1294 = vmatprep.subr.mxu0 0.0
  %1295 = vmatpush1.msra.mxu0 %v262
  %1296 = vmatprep.subr.mxu0 0.0
  %1297 = vmatpush1.msra.mxu0 %v263
  %1298 = vmatprep.subr.mxu0 0.0
  %1299 = vmatpush1.msra.mxu0 %v264
  %1300 = vmatprep.subr.mxu0 0.0
  %1301 = vmatpush1.msra.mxu0 %v265
  %1302 = vmatprep.subr.mxu0 0.0
  %1303 = vmatpush1.msra.mxu0 %v266
  %1304 = vmatprep.subr.mxu0 0.0
  %1305 = vmatpush1.msra.mxu0 %v267
  %1306 = vmatprep.subr.mxu0 0.0
  %1307 = vmatpush1.msra.mxu0 %v268
  %1308 = vmatprep.subr.mxu0 0.0
  %1309 = vmatpush1.msra.mxu0 %v269
  %1310 = vmatprep.subr.mxu0 0.0
  %1311 = vmatpush1.msra.mxu0 %v270
  %1312 = vmatprep.subr.mxu0 0.0
  %1313 = vmatpush1.msra.mxu0 %v271
  %1314 = vmatprep.subr.mxu0 0.0
  %1315 = vmatpush1.msra.mxu0 %v272
  %1316 = vmatprep.subr.mxu0 0.0
  %1317 = vmatpush1.msra.mxu0 %v273
  %1318 = vmatprep.subr.mxu0 0.0
  %1319 = vmatpush1.msra.mxu0 %v274
  %1320 = vmatprep.subr.mxu0 0.0
  %1321 = vmatpush1.msra.mxu0 %v275
  %1322 = vmatprep.subr.mxu0 0.0
  %1323 = vmatpush1.msra.mxu0 0.0
  %1324 = vmatprep.subr.mxu0 0.0
  %1325 = vmatpush1.msra.mxu0 0.0
  %1326 = vmatprep.subr.mxu0 0.0
  %1327 = vmatpush1.msra.mxu0 0.0
  %1328 = vmatprep.subr.mxu0 0.0
  %1329 = vmatpush1.msra.mxu0 0.0
  %1330 = vmatprep.subr.mxu0 0.0
  %1331 = vmatpush1.msra.mxu0 0.0
  %1332 = vmatprep.subr.mxu0 0.0
  %1333 = vmatpush1.msra.mxu0 0.0
  %1334 = vmatprep.subr.mxu0 0.0
  %1335 = vmatpush1.msra.mxu0 0.0
  %1336 = vmatprep.subr.mxu0 0.0
  %1337 = vmatpush1.msra.mxu0 0.0
  %1338 = vmatprep.subr.mxu0 0.0
  %1339 = vmatpush1.msra.mxu0 0.0
  %1340 = vmatprep.subr.mxu0 0.0
  %1341 = vmatpush1.msra.mxu0 0.0
  %1342 = vmatprep.subr.mxu0 0.0
  %1343 = vmatpush1.msra.mxu0 0.0
  %1344 = vmatprep.subr.mxu0 0.0
  %1345 = vmatpush1.msra.mxu0 0.0
  %1346 = vmatprep.subr.mxu0 0.0
  %1347 = vmatpush1.msra.mxu0 0.0
  %1348 = vmatprep.subr.mxu0 0.0
  %1349 = vmatpush1.msra.mxu0 0.0
  %1350 = vmatprep.subr.mxu0 0.0
  %1351 = vmatpush1.msra.mxu0 0.0
  %1352 = vmatprep.subr.mxu0 0.0
  %1353 = vmatpush1.msra.mxu0 0.0
  %1354 = vmatprep.mubr.f32.mxu0 0.0
  %1355 = vmatmul.mubr.f32.gmra.mrb[0].mxu0 %v1281
  %v1356 = vpop.f32.mrb[0].mxu0
  %v1357 = vadd.f32 0.0, %v1356
  %v1358 = vpop.f32.mrb[0].mxu0
  %1359 = vmatprep.mubr.f32.mxu0 0.0
  %1360 = vmatmul.mubr.f32.gmra.mrb[0].mxu0 %v1282
  %v1361 = vpop.f32.mrb[0].mxu0
  %v1362 = vadd.f32 0.0, %v1361
  %v1363 = vpop.f32.mrb[0].mxu0
  %1364 = vmatprep.mubr.f32.mxu0 0.0
  %1365 = vmatmul.mubr.f32.gmra.mrb[0].mxu0 %v1283
  %v1366 = vpop.f32.mrb[0].mxu0
  %v1367 = vadd.f32 0.0, %v1366
  %v1368 = vpop.f32.mrb[0].mxu0
  %1369 = vmatprep.mubr.f32.mxu0 0.0
  %1370 = vmatmul.mubr.f32.gmra.mrb[0].mxu0 %v1284
  %v1371 = vpop.f32.mrb[0].mxu0
  %v1372 = vadd.f32 0.0, %v1371
  %v1373 = vpop.f32.mrb[0].mxu0
  %1374 = vmatprep.mubr.f32.mxu0 0.0
  %1375 = vmatmul.mubr.f32.gmra.mrb[0].mxu0 %v1285
  %v1376 = vpop.f32.mrb[0].mxu0
  %v1377 = vadd.f32 0.0, %v1376
  %v1378 = vpop.f32.mrb[0].mxu0
  %1379 = vmatprep.mubr.f32.mxu0 0.0
  %1380 = vmatmul.mubr.f32.gmra.mrb[0].mxu0 %v1286
  %v1381 = vpop.f32.mrb[0].mxu0
  %v1382 = vadd.f32 0.0, %v1381
  %v1383 = vpop.f32.mrb[0].mxu0
  %1384 = vmatprep.mubr.f32.mxu0 0.0
  %1385 = vmatmul.mubr.f32.gmra.mrb[0].mxu0 %v1287
  %v1386 = vpop.f32.mrb[0].mxu0
  %v1387 = vadd.f32 0.0, %v1386
  %v1388 = vpop.f32.mrb[0].mxu0
  %1389 = vmatprep.mubr.f32.mxu0 0.0
  %1390 = vmatmul.mubr.f32.gmra.mrb[0].mxu0 %v1288
  %v1391 = vpop.f32.mrb[0].mxu0
  %v1392 = vadd.f32 0.0, %v1391
  %v1393 = vpop.f32.mrb[0].mxu0
  %1394 = vmatprep.mubr.f32.mxu0 0.0
  %1395 = vmatmul.mubr.f32.gmra.mrb[0].mxu0 %v1289
  %v1396 = vpop.f32.mrb[0].mxu0
  %v1397 = vadd.f32 0.0, %v1396
  %v1398 = vpop.f32.mrb[0].mxu0
  %1399 = vdwg.mxu0
  %s1400 = scalar_lea.vmem %s4, 512
  %v1401 = vld [vmem:[%s1400] sm:$0xff]
  %v1402 = vld [vmem:[%s1400 + $0x8] sm:$0xff]
  %v1403 = vld [vmem:[%s1400 + $0x10] sm:$0xff]
  %v1404 = vld [vmem:[%s1400 + $0x18] sm:$0xff]
  %v1405 = vld [vmem:[%s1400 + $0x20] sm:$0xff]
  %v1406 = vld [vmem:[%s1400 + $0x28] sm:$0xff]
  %v1407 = vld [vmem:[%s1400 + $0x30] sm:$0xff]
  %v1408 = vld [vmem:[%s1400 + $0x38] sm:$0xff]
  %v1409 = vld [vmem:[%s1400 + $0x40] sm:$0xff]
  %v1410 = vld [vmem:[%s1400 + $0x48] sm:$0xff]
  %v1411 = vld [vmem:[%s1400 + $0x50] sm:$0xff]
  %v1412 = vld [vmem:[%s1400 + $0x58] sm:$0xff]
  %v1413 = vld [vmem:[%s1400 + $0x60] sm:$0xff]
  %v1414 = vld [vmem:[%s1400 + $0x68] sm:$0xff]
  %v1415 = vld [vmem:[%s1400 + $0x70] sm:$0xff]
  %v1416 = vld [vmem:[%s1400 + $0x78] sm:$0xff]
  %1417 = vmatprep.subr.mxu0 0.0
  %1418 = vmatpush1.msra.mxu0 %v1401
  %1419 = vmatprep.subr.mxu0 0.0
  %1420 = vmatpush1.msra.mxu0 %v1402
  %1421 = vmatprep.subr.mxu0 0.0
  %1422 = vmatpush1.msra.mxu0 %v1403
  %1423 = vmatprep.subr.mxu0 0.0
  %1424 = vmatpush1.msra.mxu0 %v1404
  %1425 = vmatprep.subr.mxu0 0.0
  %1426 = vmatpush1.msra.mxu0 %v1405
  %1427 = vmatprep.subr.mxu0 0.0
  %1428 = vmatpush1.msra.mxu0 %v1406
  %1429 = vmatprep.subr.mxu0 0.0
  %1430 = vmatpush1.msra.mxu0 %v1407
  %1431 = vmatprep.subr.mxu0 0.0
  %1432 = vmatpush1.msra.mxu0 %v1408
  %1433 = vmatprep.subr.mxu0 0.0
  %1434 = vmatpush1.msra.mxu0 %v1409
  %1435 = vmatprep.subr.mxu0 0.0
  %1436 = vmatpush1.msra.mxu0 %v1410
  %1437 = vmatprep.subr.mxu0 0.0
  %1438 = vmatpush1.msra.mxu0 %v1411
  %1439 = vmatprep.subr.mxu0 0.0
  %1440 = vmatpush1.msra.mxu0 %v1412
  %1441 = vmatprep.subr.mxu0 0.0
  %1442 = vmatpush1.msra.mxu0 %v1413
  %1443 = vmatprep.subr.mxu0 0.0
  %1444 = vmatpush1.msra.mxu0 %v1414
  %1445 = vmatprep.subr.mxu0 0.0
  %1446 = vmatpush1.msra.mxu0 %v1415
  %1447 = vmatprep.subr.mxu0 0.0
  %1448 = vmatpush1.msra.mxu0 %v1416
  %1449 = vmatprep.subr.mxu0 0.0
  %1450 = vmatpush1.msra.mxu0 0.0
  %1451 = vmatprep.subr.mxu0 0.0
  %1452 = vmatpush1.msra.mxu0 0.0
  %1453 = vmatprep.subr.mxu0 0.0
  %1454 = vmatpush1.msra.mxu0 0.0
  %1455 = vmatprep.subr.mxu0 0.0
  %1456 = vmatpush1.msra.mxu0 0.0
  %1457 = vmatprep.subr.mxu0 0.0
  %1458 = vmatpush1.msra.mxu0 0.0
  %1459 = vmatprep.subr.mxu0 0.0
  %1460 = vmatpush1.msra.mxu0 0.0
  %1461 = vmatprep.subr.mxu0 0.0
  %1462 = vmatpush1.msra.mxu0 0.0
  %1463 = vmatprep.subr.mxu0 0.0
  %1464 = vmatpush1.msra.mxu0 0.0
  %1465 = vmatprep.subr.mxu0 0.0
  %1466 = vmatpush1.msra.mxu0 0.0
  %1467 = vmatprep.subr.mxu0 0.0
  %1468 = vmatpush1.msra.mxu0 0.0
  %1469 = vmatprep.subr.mxu0 0.0
  %1470 = vmatpush1.msra.mxu0 0.0
  %1471 = vmatprep.subr.mxu0 0.0
  %1472 = vmatpush1.msra.mxu0 0.0
  %1473 = vmatprep.subr.mxu0 0.0
  %1474 = vmatpush1.msra.mxu0 0.0
  %1475 = vmatprep.subr.mxu0 0.0
  %1476 = vmatpush1.msra.mxu0 0.0
  %1477 = vmatprep.subr.mxu0 0.0
  %1478 = vmatpush1.msra.mxu0 0.0
  %1479 = vmatprep.subr.mxu0 0.0
  %1480 = vmatpush1.msra.mxu0 0.0
  %1481 = vmatprep.mubr.f32.mxu0 0.0
  %1482 = vmatmul.mubr.f32.gmra.mrb[0].mxu0 %v1357
  %v1483 = vpop.f32.mrb[0].mxu0
  %v1484 = vadd.f32 0.0, %v1483
  %v1485 = vpop.f32.mrb[0].mxu0
  %1486 = vmatprep.mubr.f32.mxu0 0.0
  %1487 = vmatmul.mubr.f32.gmra.mrb[0].mxu0 %v1362
  %v1488 = vpop.f32.mrb[0].mxu0
  %v1489 = vadd.f32 0.0, %v1488
  %v1490 = vpop.f32.mrb[0].mxu0
  %1491 = vmatprep.mubr.f32.mxu0 0.0
  %1492 = vmatmul.mubr.f32.gmra.mrb[0].mxu0 %v1367
  %v1493 = vpop.f32.mrb[0].mxu0
  %v1494 = vadd.f32 0.0, %v1493
  %v1495 = vpop.f32.mrb[0].mxu0
  %1496 = vmatprep.mubr.f32.mxu0 0.0
  %1497 = vmatmul.mubr.f32.gmra.mrb[0].mxu0 %v1372
  %v1498 = vpop.f32.mrb[0].mxu0
  %v1499 = vadd.f32 0.0, %v1498
  %v1500 = vpop.f32.mrb[0].mxu0
  %1501 = vmatprep.mubr.f32.mxu0 0.0
  %1502 = vmatmul.mubr.f32.gmra.mrb[0].mxu0 %v1377
  %v1503 = vpop.f32.mrb[0].mxu0
  %v1504 = vadd.f32 0.0, %v1503
  %v1505 = vpop.f32.mrb[0].mxu0
  %1506 = vmatprep.mubr.f32.mxu0 0.0
  %1507 = vmatmul.mubr.f32.gmra.mrb[0].mxu0 %v1382
  %v1508 = vpop.f32.mrb[0].mxu0
  %v1509 = vadd.f32 0.0, %v1508
  %v1510 = vpop.f32.mrb[0].mxu0
  %1511 = vmatprep.mubr.f32.mxu0 0.0
  %1512 = vmatmul.mubr.f32.gmra.mrb[0].mxu0 %v1387
  %v1513 = vpop.f32.mrb[0].mxu0
  %v1514 = vadd.f32 0.0, %v1513
  %v1515 = vpop.f32.mrb[0].mxu0
  %1516 = vmatprep.mubr.f32.mxu0 0.0
  %1517 = vmatmul.mubr.f32.gmra.mrb[0].mxu0 %v1392
  %v1518 = vpop.f32.mrb[0].mxu0
  %v1519 = vadd.f32 0.0, %v1518
  %v1520 = vpop.f32.mrb[0].mxu0
  %1521 = vmatprep.mubr.f32.mxu0 0.0
  %1522 = vmatmul.mubr.f32.gmra.mrb[0].mxu0 %v1397
  %v1523 = vpop.f32.mrb[0].mxu0
  %v1524 = vadd.f32 0.0, %v1523
  %v1525 = vpop.f32.mrb[0].mxu0
  %1526 = vdwg.mxu0
  %v1527 = vadd.f32 %v1271, %v1484
  %v1528 = vadd.f32 %v1272, %v1489
  %v1529 = vadd.f32 %v1273, %v1494
  %v1530 = vadd.f32 %v1274, %v1499
  %v1531 = vadd.f32 %v1275, %v1504
  %v1532 = vadd.f32 %v1276, %v1509
  %v1533 = vadd.f32 %v1277, %v1514
  %v1534 = vadd.f32 %v1278, %v1519
  %v1535 = vadd.f32 %v1279, %v1524
  %s1536 = scalar_lea.vmem %s3, 360
  %v1537 = vld [vmem:[%s1536] sm:$0xff]
  %v1538 = vld [vmem:[%s1536 + $0x8] sm:$0xff]
  %v1539 = vld [vmem:[%s1536 + $0x10] sm:$0xff]
  %v1540 = vld [vmem:[%s1536 + $0x18] sm:$0xff]
  %v1541 = vld [vmem:[%s1536 + $0x20] sm:$0xff]
  %v1542 = vld [vmem:[%s1536 + $0x28] sm:$0xff]
  %v1543 = vld [vmem:[%s1536 + $0x30] sm:$0xff]
  %v1544 = vld [vmem:[%s1536 + $0x38] sm:$0xff]
  %v1545 = vld [vmem:[%s1536 + $0x40] sm:$0xff]
  %1546 = vmatprep.subr.mxu0 0.0
  %1547 = vmatpush1.msra.mxu0 %v260
  %1548 = vmatprep.subr.mxu0 0.0
  %1549 = vmatpush1.msra.mxu0 %v261
  %1550 = vmatprep.subr.mxu0 0.0
  %1551 = vmatpush1.msra.mxu0 %v262
  %1552 = vmatprep.subr.mxu0 0.0
  %1553 = vmatpush1.msra.mxu0 %v263
  %1554 = vmatprep.subr.mxu0 0.0
  %1555 = vmatpush1.msra.mxu0 %v264
  %1556 = vmatprep.subr.mxu0 0.0
  %1557 = vmatpush1.msra.mxu0 %v265
  %1558 = vmatprep.subr.mxu0 0.0
  %1559 = vmatpush1.msra.mxu0 %v266
  %1560 = vmatprep.subr.mxu0 0.0
  %1561 = vmatpush1.msra.mxu0 %v267
  %1562 = vmatprep.subr.mxu0 0.0
  %1563 = vmatpush1.msra.mxu0 %v268
  %1564 = vmatprep.subr.mxu0 0.0
  %1565 = vmatpush1.msra.mxu0 %v269
  %1566 = vmatprep.subr.mxu0 0.0
  %1567 = vmatpush1.msra.mxu0 %v270
  %1568 = vmatprep.subr.mxu0 0.0
  %1569 = vmatpush1.msra.mxu0 %v271
  %1570 = vmatprep.subr.mxu0 0.0
  %1571 = vmatpush1.msra.mxu0 %v272
  %1572 = vmatprep.subr.mxu0 0.0
  %1573 = vmatpush1.msra.mxu0 %v273
  %1574 = vmatprep.subr.mxu0 0.0
  %1575 = vmatpush1.msra.mxu0 %v274
  %1576 = vmatprep.subr.mxu0 0.0
  %1577 = vmatpush1.msra.mxu0 %v275
  %1578 = vmatprep.subr.mxu0 0.0
  %1579 = vmatpush1.msra.mxu0 0.0
  %1580 = vmatprep.subr.mxu0 0.0
  %1581 = vmatpush1.msra.mxu0 0.0
  %1582 = vmatprep.subr.mxu0 0.0
  %1583 = vmatpush1.msra.mxu0 0.0
  %1584 = vmatprep.subr.mxu0 0.0
  %1585 = vmatpush1.msra.mxu0 0.0
  %1586 = vmatprep.subr.mxu0 0.0
  %1587 = vmatpush1.msra.mxu0 0.0
  %1588 = vmatprep.subr.mxu0 0.0
  %1589 = vmatpush1.msra.mxu0 0.0
  %1590 = vmatprep.subr.mxu0 0.0
  %1591 = vmatpush1.msra.mxu0 0.0
  %1592 = vmatprep.subr.mxu0 0.0
  %1593 = vmatpush1.msra.mxu0 0.0
  %1594 = vmatprep.subr.mxu0 0.0
  %1595 = vmatpush1.msra.mxu0 0.0
  %1596 = vmatprep.subr.mxu0 0.0
  %1597 = vmatpush1.msra.mxu0 0.0
  %1598 = vmatprep.subr.mxu0 0.0
  %1599 = vmatpush1.msra.mxu0 0.0
  %1600 = vmatprep.subr.mxu0 0.0
  %1601 = vmatpush1.msra.mxu0 0.0
  %1602 = vmatprep.subr.mxu0 0.0
  %1603 = vmatpush1.msra.mxu0 0.0
  %1604 = vmatprep.subr.mxu0 0.0
  %1605 = vmatpush1.msra.mxu0 0.0
  %1606 = vmatprep.subr.mxu0 0.0
  %1607 = vmatpush1.msra.mxu0 0.0
  %1608 = vmatprep.subr.mxu0 0.0
  %1609 = vmatpush1.msra.mxu0 0.0
  %1610 = vmatprep.mubr.f32.mxu0 0.0
  %1611 = vmatmul.mubr.f32.gmra.mrb[0].mxu0 %v1537
  %v1612 = vpop.f32.mrb[0].mxu0
  %v1613 = vadd.f32 0.0, %v1612
  %v1614 = vpop.f32.mrb[0].mxu0
  %1615 = vmatprep.mubr.f32.mxu0 0.0
  %1616 = vmatmul.mubr.f32.gmra.mrb[0].mxu0 %v1538
  %v1617 = vpop.f32.mrb[0].mxu0
  %v1618 = vadd.f32 0.0, %v1617
  %v1619 = vpop.f32.mrb[0].mxu0
  %1620 = vmatprep.mubr.f32.mxu0 0.0
  %1621 = vmatmul.mubr.f32.gmra.mrb[0].mxu0 %v1539
  %v1622 = vpop.f32.mrb[0].mxu0
  %v1623 = vadd.f32 0.0, %v1622
  %v1624 = vpop.f32.mrb[0].mxu0
  %1625 = vmatprep.mubr.f32.mxu0 0.0
  %1626 = vmatmul.mubr.f32.gmra.mrb[0].mxu0 %v1540
  %v1627 = vpop.f32.mrb[0].mxu0
  %v1628 = vadd.f32 0.0, %v1627
  %v1629 = vpop.f32.mrb[0].mxu0
  %1630 = vmatprep.mubr.f32.mxu0 0.0
  %1631 = vmatmul.mubr.f32.gmra.mrb[0].mxu0 %v1541
  %v1632 = vpop.f32.mrb[0].mxu0
  %v1633 = vadd.f32 0.0, %v1632
  %v1634 = vpop.f32.mrb[0].mxu0
  %1635 = vmatprep.mubr.f32.mxu0 0.0
  %1636 = vmatmul.mubr.f32.gmra.mrb[0].mxu0 %v1542
  %v1637 = vpop.f32.mrb[0].mxu0
  %v1638 = vadd.f32 0.0, %v1637
  %v1639 = vpop.f32.mrb[0].mxu0
  %1640 = vmatprep.mubr.f32.mxu0 0.0
  %1641 = vmatmul.mubr.f32.gmra.mrb[0].mxu0 %v1543
  %v1642 = vpop.f32.mrb[0].mxu0
  %v1643 = vadd.f32 0.0, %v1642
  %v1644 = vpop.f32.mrb[0].mxu0
  %1645 = vmatprep.mubr.f32.mxu0 0.0
  %1646 = vmatmul.mubr.f32.gmra.mrb[0].mxu0 %v1544
  %v1647 = vpop.f32.mrb[0].mxu0
  %v1648 = vadd.f32 0.0, %v1647
  %v1649 = vpop.f32.mrb[0].mxu0
  %1650 = vmatprep.mubr.f32.mxu0 0.0
  %1651 = vmatmul.mubr.f32.gmra.mrb[0].mxu0 %v1545
  %v1652 = vpop.f32.mrb[0].mxu0
  %v1653 = vadd.f32 0.0, %v1652
  %v1654 = vpop.f32.mrb[0].mxu0
  %1655 = vdwg.mxu0
  %s1656 = scalar_lea.vmem %s4, 640
  %v1657 = vld [vmem:[%s1656] sm:$0xff]
  %v1658 = vld [vmem:[%s1656 + $0x8] sm:$0xff]
  %v1659 = vld [vmem:[%s1656 + $0x10] sm:$0xff]
  %v1660 = vld [vmem:[%s1656 + $0x18] sm:$0xff]
  %v1661 = vld [vmem:[%s1656 + $0x20] sm:$0xff]
  %v1662 = vld [vmem:[%s1656 + $0x28] sm:$0xff]
  %v1663 = vld [vmem:[%s1656 + $0x30] sm:$0xff]
  %v1664 = vld [vmem:[%s1656 + $0x38] sm:$0xff]
  %v1665 = vld [vmem:[%s1656 + $0x40] sm:$0xff]
  %v1666 = vld [vmem:[%s1656 + $0x48] sm:$0xff]
  %v1667 = vld [vmem:[%s1656 + $0x50] sm:$0xff]
  %v1668 = vld [vmem:[%s1656 + $0x58] sm:$0xff]
  %v1669 = vld [vmem:[%s1656 + $0x60] sm:$0xff]
  %v1670 = vld [vmem:[%s1656 + $0x68] sm:$0xff]
  %v1671 = vld [vmem:[%s1656 + $0x70] sm:$0xff]
  %v1672 = vld [vmem:[%s1656 + $0x78] sm:$0xff]
  %1673 = vmatprep.subr.mxu0 0.0
  %1674 = vmatpush1.msra.mxu0 %v1657
  %1675 = vmatprep.subr.mxu0 0.0
  %1676 = vmatpush1.msra.mxu0 %v1658
  %1677 = vmatprep.subr.mxu0 0.0
  %1678 = vmatpush1.msra.mxu0 %v1659
  %1679 = vmatprep.subr.mxu0 0.0
  %1680 = vmatpush1.msra.mxu0 %v1660
  %1681 = vmatprep.subr.mxu0 0.0
  %1682 = vmatpush1.msra.mxu0 %v1661
  %1683 = vmatprep.subr.mxu0 0.0
  %1684 = vmatpush1.msra.mxu0 %v1662
  %1685 = vmatprep.subr.mxu0 0.0
  %1686 = vmatpush1.msra.mxu0 %v1663
  %1687 = vmatprep.subr.mxu0 0.0
  %1688 = vmatpush1.msra.mxu0 %v1664
  %1689 = vmatprep.subr.mxu0 0.0
  %1690 = vmatpush1.msra.mxu0 %v1665
  %1691 = vmatprep.subr.mxu0 0.0
  %1692 = vmatpush1.msra.mxu0 %v1666
  %1693 = vmatprep.subr.mxu0 0.0
  %1694 = vmatpush1.msra.mxu0 %v1667
  %1695 = vmatprep.subr.mxu0 0.0
  %1696 = vmatpush1.msra.mxu0 %v1668
  %1697 = vmatprep.subr.mxu0 0.0
  %1698 = vmatpush1.msra.mxu0 %v1669
  %1699 = vmatprep.subr.mxu0 0.0
  %1700 = vmatpush1.msra.mxu0 %v1670
  %1701 = vmatprep.subr.mxu0 0.0
  %1702 = vmatpush1.msra.mxu0 %v1671
  %1703 = vmatprep.subr.mxu0 0.0
  %1704 = vmatpush1.msra.mxu0 %v1672
  %1705 = vmatprep.subr.mxu0 0.0
  %1706 = vmatpush1.msra.mxu0 0.0
  %1707 = vmatprep.subr.mxu0 0.0
  %1708 = vmatpush1.msra.mxu0 0.0
  %1709 = vmatprep.subr.mxu0 0.0
  %1710 = vmatpush1.msra.mxu0 0.0
  %1711 = vmatprep.subr.mxu0 0.0
  %1712 = vmatpush1.msra.mxu0 0.0
  %1713 = vmatprep.subr.mxu0 0.0
  %1714 = vmatpush1.msra.mxu0 0.0
  %1715 = vmatprep.subr.mxu0 0.0
  %1716 = vmatpush1.msra.mxu0 0.0
  %1717 = vmatprep.subr.mxu0 0.0
  %1718 = vmatpush1.msra.mxu0 0.0
  %1719 = vmatprep.subr.mxu0 0.0
  %1720 = vmatpush1.msra.mxu0 0.0
  %1721 = vmatprep.subr.mxu0 0.0
  %1722 = vmatpush1.msra.mxu0 0.0
  %1723 = vmatprep.subr.mxu0 0.0
  %1724 = vmatpush1.msra.mxu0 0.0
  %1725 = vmatprep.subr.mxu0 0.0
  %1726 = vmatpush1.msra.mxu0 0.0
  %1727 = vmatprep.subr.mxu0 0.0
  %1728 = vmatpush1.msra.mxu0 0.0
  %1729 = vmatprep.subr.mxu0 0.0
  %1730 = vmatpush1.msra.mxu0 0.0
  %1731 = vmatprep.subr.mxu0 0.0
  %1732 = vmatpush1.msra.mxu0 0.0
  %1733 = vmatprep.subr.mxu0 0.0
  %1734 = vmatpush1.msra.mxu0 0.0
  %1735 = vmatprep.subr.mxu0 0.0
  %1736 = vmatpush1.msra.mxu0 0.0
  %1737 = vmatprep.mubr.f32.mxu0 0.0
  %1738 = vmatmul.mubr.f32.gmra.mrb[0].mxu0 %v1613
  %v1739 = vpop.f32.mrb[0].mxu0
  %v1740 = vadd.f32 0.0, %v1739
  %v1741 = vpop.f32.mrb[0].mxu0
  %1742 = vmatprep.mubr.f32.mxu0 0.0
  %1743 = vmatmul.mubr.f32.gmra.mrb[0].mxu0 %v1618
  %v1744 = vpop.f32.mrb[0].mxu0
  %v1745 = vadd.f32 0.0, %v1744
  %v1746 = vpop.f32.mrb[0].mxu0
  %1747 = vmatprep.mubr.f32.mxu0 0.0
  %1748 = vmatmul.mubr.f32.gmra.mrb[0].mxu0 %v1623
  %v1749 = vpop.f32.mrb[0].mxu0
  %v1750 = vadd.f32 0.0, %v1749
  %v1751 = vpop.f32.mrb[0].mxu0
  %1752 = vmatprep.mubr.f32.mxu0 0.0
  %1753 = vmatmul.mubr.f32.gmra.mrb[0].mxu0 %v1628
  %v1754 = vpop.f32.mrb[0].mxu0
  %v1755 = vadd.f32 0.0, %v1754
  %v1756 = vpop.f32.mrb[0].mxu0
  %1757 = vmatprep.mubr.f32.mxu0 0.0
  %1758 = vmatmul.mubr.f32.gmra.mrb[0].mxu0 %v1633
  %v1759 = vpop.f32.mrb[0].mxu0
  %v1760 = vadd.f32 0.0, %v1759
  %v1761 = vpop.f32.mrb[0].mxu0
  %1762 = vmatprep.mubr.f32.mxu0 0.0
  %1763 = vmatmul.mubr.f32.gmra.mrb[0].mxu0 %v1638
  %v1764 = vpop.f32.mrb[0].mxu0
  %v1765 = vadd.f32 0.0, %v1764
  %v1766 = vpop.f32.mrb[0].mxu0
  %1767 = vmatprep.mubr.f32.mxu0 0.0
  %1768 = vmatmul.mubr.f32.gmra.mrb[0].mxu0 %v1643
  %v1769 = vpop.f32.mrb[0].mxu0
  %v1770 = vadd.f32 0.0, %v1769
  %v1771 = vpop.f32.mrb[0].mxu0
  %1772 = vmatprep.mubr.f32.mxu0 0.0
  %1773 = vmatmul.mubr.f32.gmra.mrb[0].mxu0 %v1648
  %v1774 = vpop.f32.mrb[0].mxu0
  %v1775 = vadd.f32 0.0, %v1774
  %v1776 = vpop.f32.mrb[0].mxu0
  %1777 = vmatprep.mubr.f32.mxu0 0.0
  %1778 = vmatmul.mubr.f32.gmra.mrb[0].mxu0 %v1653
  %v1779 = vpop.f32.mrb[0].mxu0
  %v1780 = vadd.f32 0.0, %v1779
  %v1781 = vpop.f32.mrb[0].mxu0
  %1782 = vdwg.mxu0
  %v1783 = vadd.f32 %v1527, %v1740
  %v1784 = vadd.f32 %v1528, %v1745
  %v1785 = vadd.f32 %v1529, %v1750
  %v1786 = vadd.f32 %v1530, %v1755
  %v1787 = vadd.f32 %v1531, %v1760
  %v1788 = vadd.f32 %v1532, %v1765
  %v1789 = vadd.f32 %v1533, %v1770
  %v1790 = vadd.f32 %v1534, %v1775
  %v1791 = vadd.f32 %v1535, %v1780
  %s1792 = scalar_lea.vmem %s3, 432
  %v1793 = vld [vmem:[%s1792] sm:$0xff]
  %v1794 = vld [vmem:[%s1792 + $0x8] sm:$0xff]
  %v1795 = vld [vmem:[%s1792 + $0x10] sm:$0xff]
  %v1796 = vld [vmem:[%s1792 + $0x18] sm:$0xff]
  %v1797 = vld [vmem:[%s1792 + $0x20] sm:$0xff]
  %v1798 = vld [vmem:[%s1792 + $0x28] sm:$0xff]
  %v1799 = vld [vmem:[%s1792 + $0x30] sm:$0xff]
  %v1800 = vld [vmem:[%s1792 + $0x38] sm:$0xff]
  %v1801 = vld [vmem:[%s1792 + $0x40] sm:$0xff]
  %1802 = vmatprep.subr.mxu0 0.0
  %1803 = vmatpush1.msra.mxu0 %v260
  %1804 = vmatprep.subr.mxu0 0.0
  %1805 = vmatpush1.msra.mxu0 %v261
  %1806 = vmatprep.subr.mxu0 0.0
  %1807 = vmatpush1.msra.mxu0 %v262
  %1808 = vmatprep.subr.mxu0 0.0
  %1809 = vmatpush1.msra.mxu0 %v263
  %1810 = vmatprep.subr.mxu0 0.0
  %1811 = vmatpush1.msra.mxu0 %v264
  %1812 = vmatprep.subr.mxu0 0.0
  %1813 = vmatpush1.msra.mxu0 %v265
  %1814 = vmatprep.subr.mxu0 0.0
  %1815 = vmatpush1.msra.mxu0 %v266
  %1816 = vmatprep.subr.mxu0 0.0
  %1817 = vmatpush1.msra.mxu0 %v267
  %1818 = vmatprep.subr.mxu0 0.0
  %1819 = vmatpush1.msra.mxu0 %v268
  %1820 = vmatprep.subr.mxu0 0.0
  %1821 = vmatpush1.msra.mxu0 %v269
  %1822 = vmatprep.subr.mxu0 0.0
  %1823 = vmatpush1.msra.mxu0 %v270
  %1824 = vmatprep.subr.mxu0 0.0
  %1825 = vmatpush1.msra.mxu0 %v271
  %1826 = vmatprep.subr.mxu0 0.0
  %1827 = vmatpush1.msra.mxu0 %v272
  %1828 = vmatprep.subr.mxu0 0.0
  %1829 = vmatpush1.msra.mxu0 %v273
  %1830 = vmatprep.subr.mxu0 0.0
  %1831 = vmatpush1.msra.mxu0 %v274
  %1832 = vmatprep.subr.mxu0 0.0
  %1833 = vmatpush1.msra.mxu0 %v275
  %1834 = vmatprep.subr.mxu0 0.0
  %1835 = vmatpush1.msra.mxu0 0.0
  %1836 = vmatprep.subr.mxu0 0.0
  %1837 = vmatpush1.msra.mxu0 0.0
  %1838 = vmatprep.subr.mxu0 0.0
  %1839 = vmatpush1.msra.mxu0 0.0
  %1840 = vmatprep.subr.mxu0 0.0
  %1841 = vmatpush1.msra.mxu0 0.0
  %1842 = vmatprep.subr.mxu0 0.0
  %1843 = vmatpush1.msra.mxu0 0.0
  %1844 = vmatprep.subr.mxu0 0.0
  %1845 = vmatpush1.msra.mxu0 0.0
  %1846 = vmatprep.subr.mxu0 0.0
  %1847 = vmatpush1.msra.mxu0 0.0
  %1848 = vmatprep.subr.mxu0 0.0
  %1849 = vmatpush1.msra.mxu0 0.0
  %1850 = vmatprep.subr.mxu0 0.0
  %1851 = vmatpush1.msra.mxu0 0.0
  %1852 = vmatprep.subr.mxu0 0.0
  %1853 = vmatpush1.msra.mxu0 0.0
  %1854 = vmatprep.subr.mxu0 0.0
  %1855 = vmatpush1.msra.mxu0 0.0
  %1856 = vmatprep.subr.mxu0 0.0
  %1857 = vmatpush1.msra.mxu0 0.0
  %1858 = vmatprep.subr.mxu0 0.0
  %1859 = vmatpush1.msra.mxu0 0.0
  %1860 = vmatprep.subr.mxu0 0.0
  %1861 = vmatpush1.msra.mxu0 0.0
  %1862 = vmatprep.subr.mxu0 0.0
  %1863 = vmatpush1.msra.mxu0 0.0
  %1864 = vmatprep.subr.mxu0 0.0
  %1865 = vmatpush1.msra.mxu0 0.0
  %1866 = vmatprep.mubr.f32.mxu0 0.0
  %1867 = vmatmul.mubr.f32.gmra.mrb[0].mxu0 %v1793
  %v1868 = vpop.f32.mrb[0].mxu0
  %v1869 = vadd.f32 0.0, %v1868
  %v1870 = vpop.f32.mrb[0].mxu0
  %1871 = vmatprep.mubr.f32.mxu0 0.0
  %1872 = vmatmul.mubr.f32.gmra.mrb[0].mxu0 %v1794
  %v1873 = vpop.f32.mrb[0].mxu0
  %v1874 = vadd.f32 0.0, %v1873
  %v1875 = vpop.f32.mrb[0].mxu0
  %1876 = vmatprep.mubr.f32.mxu0 0.0
  %1877 = vmatmul.mubr.f32.gmra.mrb[0].mxu0 %v1795
  %v1878 = vpop.f32.mrb[0].mxu0
  %v1879 = vadd.f32 0.0, %v1878
  %v1880 = vpop.f32.mrb[0].mxu0
  %1881 = vmatprep.mubr.f32.mxu0 0.0
  %1882 = vmatmul.mubr.f32.gmra.mrb[0].mxu0 %v1796
  %v1883 = vpop.f32.mrb[0].mxu0
  %v1884 = vadd.f32 0.0, %v1883
  %v1885 = vpop.f32.mrb[0].mxu0
  %1886 = vmatprep.mubr.f32.mxu0 0.0
  %1887 = vmatmul.mubr.f32.gmra.mrb[0].mxu0 %v1797
  %v1888 = vpop.f32.mrb[0].mxu0
  %v1889 = vadd.f32 0.0, %v1888
  %v1890 = vpop.f32.mrb[0].mxu0
  %1891 = vmatprep.mubr.f32.mxu0 0.0
  %1892 = vmatmul.mubr.f32.gmra.mrb[0].mxu0 %v1798
  %v1893 = vpop.f32.mrb[0].mxu0
  %v1894 = vadd.f32 0.0, %v1893
  %v1895 = vpop.f32.mrb[0].mxu0
  %1896 = vmatprep.mubr.f32.mxu0 0.0
  %1897 = vmatmul.mubr.f32.gmra.mrb[0].mxu0 %v1799
  %v1898 = vpop.f32.mrb[0].mxu0
  %v1899 = vadd.f32 0.0, %v1898
  %v1900 = vpop.f32.mrb[0].mxu0
  %1901 = vmatprep.mubr.f32.mxu0 0.0
  %1902 = vmatmul.mubr.f32.gmra.mrb[0].mxu0 %v1800
  %v1903 = vpop.f32.mrb[0].mxu0
  %v1904 = vadd.f32 0.0, %v1903
  %v1905 = vpop.f32.mrb[0].mxu0
  %1906 = vmatprep.mubr.f32.mxu0 0.0
  %1907 = vmatmul.mubr.f32.gmra.mrb[0].mxu0 %v1801
  %v1908 = vpop.f32.mrb[0].mxu0
  %v1909 = vadd.f32 0.0, %v1908
  %v1910 = vpop.f32.mrb[0].mxu0
  %1911 = vdwg.mxu0
  %s1912 = scalar_lea.vmem %s4, 768
  %v1913 = vld [vmem:[%s1912] sm:$0xff]
  %v1914 = vld [vmem:[%s1912 + $0x8] sm:$0xff]
  %v1915 = vld [vmem:[%s1912 + $0x10] sm:$0xff]
  %v1916 = vld [vmem:[%s1912 + $0x18] sm:$0xff]
  %v1917 = vld [vmem:[%s1912 + $0x20] sm:$0xff]
  %v1918 = vld [vmem:[%s1912 + $0x28] sm:$0xff]
  %v1919 = vld [vmem:[%s1912 + $0x30] sm:$0xff]
  %v1920 = vld [vmem:[%s1912 + $0x38] sm:$0xff]
  %v1921 = vld [vmem:[%s1912 + $0x40] sm:$0xff]
  %v1922 = vld [vmem:[%s1912 + $0x48] sm:$0xff]
  %v1923 = vld [vmem:[%s1912 + $0x50] sm:$0xff]
  %v1924 = vld [vmem:[%s1912 + $0x58] sm:$0xff]
  %v1925 = vld [vmem:[%s1912 + $0x60] sm:$0xff]
  %v1926 = vld [vmem:[%s1912 + $0x68] sm:$0xff]
  %v1927 = vld [vmem:[%s1912 + $0x70] sm:$0xff]
  %v1928 = vld [vmem:[%s1912 + $0x78] sm:$0xff]
  %1929 = vmatprep.subr.mxu0 0.0
  %1930 = vmatpush1.msra.mxu0 %v1913
  %1931 = vmatprep.subr.mxu0 0.0
  %1932 = vmatpush1.msra.mxu0 %v1914
  %1933 = vmatprep.subr.mxu0 0.0
  %1934 = vmatpush1.msra.mxu0 %v1915
  %1935 = vmatprep.subr.mxu0 0.0
  %1936 = vmatpush1.msra.mxu0 %v1916
  %1937 = vmatprep.subr.mxu0 0.0
  %1938 = vmatpush1.msra.mxu0 %v1917
  %1939 = vmatprep.subr.mxu0 0.0
  %1940 = vmatpush1.msra.mxu0 %v1918
  %1941 = vmatprep.subr.mxu0 0.0
  %1942 = vmatpush1.msra.mxu0 %v1919
  %1943 = vmatprep.subr.mxu0 0.0
  %1944 = vmatpush1.msra.mxu0 %v1920
  %1945 = vmatprep.subr.mxu0 0.0
  %1946 = vmatpush1.msra.mxu0 %v1921
  %1947 = vmatprep.subr.mxu0 0.0
  %1948 = vmatpush1.msra.mxu0 %v1922
  %1949 = vmatprep.subr.mxu0 0.0
  %1950 = vmatpush1.msra.mxu0 %v1923
  %1951 = vmatprep.subr.mxu0 0.0
  %1952 = vmatpush1.msra.mxu0 %v1924
  %1953 = vmatprep.subr.mxu0 0.0
  %1954 = vmatpush1.msra.mxu0 %v1925
  %1955 = vmatprep.subr.mxu0 0.0
  %1956 = vmatpush1.msra.mxu0 %v1926
  %1957 = vmatprep.subr.mxu0 0.0
  %1958 = vmatpush1.msra.mxu0 %v1927
  %1959 = vmatprep.subr.mxu0 0.0
  %1960 = vmatpush1.msra.mxu0 %v1928
  %1961 = vmatprep.subr.mxu0 0.0
  %1962 = vmatpush1.msra.mxu0 0.0
  %1963 = vmatprep.subr.mxu0 0.0
  %1964 = vmatpush1.msra.mxu0 0.0
  %1965 = vmatprep.subr.mxu0 0.0
  %1966 = vmatpush1.msra.mxu0 0.0
  %1967 = vmatprep.subr.mxu0 0.0
  %1968 = vmatpush1.msra.mxu0 0.0
  %1969 = vmatprep.subr.mxu0 0.0
  %1970 = vmatpush1.msra.mxu0 0.0
  %1971 = vmatprep.subr.mxu0 0.0
  %1972 = vmatpush1.msra.mxu0 0.0
  %1973 = vmatprep.subr.mxu0 0.0
  %1974 = vmatpush1.msra.mxu0 0.0
  %1975 = vmatprep.subr.mxu0 0.0
  %1976 = vmatpush1.msra.mxu0 0.0
  %1977 = vmatprep.subr.mxu0 0.0
  %1978 = vmatpush1.msra.mxu0 0.0
  %1979 = vmatprep.subr.mxu0 0.0
  %1980 = vmatpush1.msra.mxu0 0.0
  %1981 = vmatprep.subr.mxu0 0.0
  %1982 = vmatpush1.msra.mxu0 0.0
  %1983 = vmatprep.subr.mxu0 0.0
  %1984 = vmatpush1.msra.mxu0 0.0
  %1985 = vmatprep.subr.mxu0 0.0
  %1986 = vmatpush1.msra.mxu0 0.0
  %1987 = vmatprep.subr.mxu0 0.0
  %1988 = vmatpush1.msra.mxu0 0.0
  %1989 = vmatprep.subr.mxu0 0.0
  %1990 = vmatpush1.msra.mxu0 0.0
  %1991 = vmatprep.subr.mxu0 0.0
  %1992 = vmatpush1.msra.mxu0 0.0
  %1993 = vmatprep.mubr.f32.mxu0 0.0
  %1994 = vmatmul.mubr.f32.gmra.mrb[0].mxu0 %v1869
  %v1995 = vpop.f32.mrb[0].mxu0
  %v1996 = vadd.f32 0.0, %v1995
  %v1997 = vpop.f32.mrb[0].mxu0
  %1998 = vmatprep.mubr.f32.mxu0 0.0
  %1999 = vmatmul.mubr.f32.gmra.mrb[0].mxu0 %v1874
  %v2000 = vpop.f32.mrb[0].mxu0
  %v2001 = vadd.f32 0.0, %v2000
  %v2002 = vpop.f32.mrb[0].mxu0
  %2003 = vmatprep.mubr.f32.mxu0 0.0
  %2004 = vmatmul.mubr.f32.gmra.mrb[0].mxu0 %v1879
  %v2005 = vpop.f32.mrb[0].mxu0
  %v2006 = vadd.f32 0.0, %v2005
  %v2007 = vpop.f32.mrb[0].mxu0
  %2008 = vmatprep.mubr.f32.mxu0 0.0
  %2009 = vmatmul.mubr.f32.gmra.mrb[0].mxu0 %v1884
  %v2010 = vpop.f32.mrb[0].mxu0
  %v2011 = vadd.f32 0.0, %v2010
  %v2012 = vpop.f32.mrb[0].mxu0
  %2013 = vmatprep.mubr.f32.mxu0 0.0
  %2014 = vmatmul.mubr.f32.gmra.mrb[0].mxu0 %v1889
  %v2015 = vpop.f32.mrb[0].mxu0
  %v2016 = vadd.f32 0.0, %v2015
  %v2017 = vpop.f32.mrb[0].mxu0
  %2018 = vmatprep.mubr.f32.mxu0 0.0
  %2019 = vmatmul.mubr.f32.gmra.mrb[0].mxu0 %v1894
  %v2020 = vpop.f32.mrb[0].mxu0
  %v2021 = vadd.f32 0.0, %v2020
  %v2022 = vpop.f32.mrb[0].mxu0
  %2023 = vmatprep.mubr.f32.mxu0 0.0
  %2024 = vmatmul.mubr.f32.gmra.mrb[0].mxu0 %v1899
  %v2025 = vpop.f32.mrb[0].mxu0
  %v2026 = vadd.f32 0.0, %v2025
  %v2027 = vpop.f32.mrb[0].mxu0
  %2028 = vmatprep.mubr.f32.mxu0 0.0
  %2029 = vmatmul.mubr.f32.gmra.mrb[0].mxu0 %v1904
  %v2030 = vpop.f32.mrb[0].mxu0
  %v2031 = vadd.f32 0.0, %v2030
  %v2032 = vpop.f32.mrb[0].mxu0
  %2033 = vmatprep.mubr.f32.mxu0 0.0
  %2034 = vmatmul.mubr.f32.gmra.mrb[0].mxu0 %v1909
  %v2035 = vpop.f32.mrb[0].mxu0
  %v2036 = vadd.f32 0.0, %v2035
  %v2037 = vpop.f32.mrb[0].mxu0
  %2038 = vdwg.mxu0
  %v2039 = vadd.f32 %v1783, %v1996
  %v2040 = vadd.f32 %v1784, %v2001
  %v2041 = vadd.f32 %v1785, %v2006
  %v2042 = vadd.f32 %v1786, %v2011
  %v2043 = vadd.f32 %v1787, %v2016
  %v2044 = vadd.f32 %v1788, %v2021
  %v2045 = vadd.f32 %v1789, %v2026
  %v2046 = vadd.f32 %v1790, %v2031
  %v2047 = vadd.f32 %v1791, %v2036
  %s2048 = scalar_lea.vmem %s3, 504
  %v2049 = vld [vmem:[%s2048] sm:$0xff]
  %v2050 = vld [vmem:[%s2048 + $0x8] sm:$0xff]
  %v2051 = vld [vmem:[%s2048 + $0x10] sm:$0xff]
  %v2052 = vld [vmem:[%s2048 + $0x18] sm:$0xff]
  %v2053 = vld [vmem:[%s2048 + $0x20] sm:$0xff]
  %v2054 = vld [vmem:[%s2048 + $0x28] sm:$0xff]
  %v2055 = vld [vmem:[%s2048 + $0x30] sm:$0xff]
  %v2056 = vld [vmem:[%s2048 + $0x38] sm:$0xff]
  %v2057 = vld [vmem:[%s2048 + $0x40] sm:$0xff]
  %2058 = vmatprep.subr.mxu0 0.0
  %2059 = vmatpush1.msra.mxu0 %v260
  %2060 = vmatprep.subr.mxu0 0.0
  %2061 = vmatpush1.msra.mxu0 %v261
  %2062 = vmatprep.subr.mxu0 0.0
  %2063 = vmatpush1.msra.mxu0 %v262
  %2064 = vmatprep.subr.mxu0 0.0
  %2065 = vmatpush1.msra.mxu0 %v263
  %2066 = vmatprep.subr.mxu0 0.0
  %2067 = vmatpush1.msra.mxu0 %v264
  %2068 = vmatprep.subr.mxu0 0.0
  %2069 = vmatpush1.msra.mxu0 %v265
  %2070 = vmatprep.subr.mxu0 0.0
  %2071 = vmatpush1.msra.mxu0 %v266
  %2072 = vmatprep.subr.mxu0 0.0
  %2073 = vmatpush1.msra.mxu0 %v267
  %2074 = vmatprep.subr.mxu0 0.0
  %2075 = vmatpush1.msra.mxu0 %v268
  %2076 = vmatprep.subr.mxu0 0.0
  %2077 = vmatpush1.msra.mxu0 %v269
  %2078 = vmatprep.subr.mxu0 0.0
  %2079 = vmatpush1.msra.mxu0 %v270
  %2080 = vmatprep.subr.mxu0 0.0
  %2081 = vmatpush1.msra.mxu0 %v271
  %2082 = vmatprep.subr.mxu0 0.0
  %2083 = vmatpush1.msra.mxu0 %v272
  %2084 = vmatprep.subr.mxu0 0.0
  %2085 = vmatpush1.msra.mxu0 %v273
  %2086 = vmatprep.subr.mxu0 0.0
  %2087 = vmatpush1.msra.mxu0 %v274
  %2088 = vmatprep.subr.mxu0 0.0
  %2089 = vmatpush1.msra.mxu0 %v275
  %2090 = vmatprep.subr.mxu0 0.0
  %2091 = vmatpush1.msra.mxu0 0.0
  %2092 = vmatprep.subr.mxu0 0.0
  %2093 = vmatpush1.msra.mxu0 0.0
  %2094 = vmatprep.subr.mxu0 0.0
  %2095 = vmatpush1.msra.mxu0 0.0
  %2096 = vmatprep.subr.mxu0 0.0
  %2097 = vmatpush1.msra.mxu0 0.0
  %2098 = vmatprep.subr.mxu0 0.0
  %2099 = vmatpush1.msra.mxu0 0.0
  %2100 = vmatprep.subr.mxu0 0.0
  %2101 = vmatpush1.msra.mxu0 0.0
  %2102 = vmatprep.subr.mxu0 0.0
  %2103 = vmatpush1.msra.mxu0 0.0
  %2104 = vmatprep.subr.mxu0 0.0
  %2105 = vmatpush1.msra.mxu0 0.0
  %2106 = vmatprep.subr.mxu0 0.0
  %2107 = vmatpush1.msra.mxu0 0.0
  %2108 = vmatprep.subr.mxu0 0.0
  %2109 = vmatpush1.msra.mxu0 0.0
  %2110 = vmatprep.subr.mxu0 0.0
  %2111 = vmatpush1.msra.mxu0 0.0
  %2112 = vmatprep.subr.mxu0 0.0
  %2113 = vmatpush1.msra.mxu0 0.0
  %2114 = vmatprep.subr.mxu0 0.0
  %2115 = vmatpush1.msra.mxu0 0.0
  %2116 = vmatprep.subr.mxu0 0.0
  %2117 = vmatpush1.msra.mxu0 0.0
  %2118 = vmatprep.subr.mxu0 0.0
  %2119 = vmatpush1.msra.mxu0 0.0
  %2120 = vmatprep.subr.mxu0 0.0
  %2121 = vmatpush1.msra.mxu0 0.0
  %2122 = vmatprep.mubr.f32.mxu0 0.0
  %2123 = vmatmul.mubr.f32.gmra.mrb[0].mxu0 %v2049
  %v2124 = vpop.f32.mrb[0].mxu0
  %v2125 = vadd.f32 0.0, %v2124
  %v2126 = vpop.f32.mrb[0].mxu0
  %2127 = vmatprep.mubr.f32.mxu0 0.0
  %2128 = vmatmul.mubr.f32.gmra.mrb[0].mxu0 %v2050
  %v2129 = vpop.f32.mrb[0].mxu0
  %v2130 = vadd.f32 0.0, %v2129
  %v2131 = vpop.f32.mrb[0].mxu0
  %2132 = vmatprep.mubr.f32.mxu0 0.0
  %2133 = vmatmul.mubr.f32.gmra.mrb[0].mxu0 %v2051
  %v2134 = vpop.f32.mrb[0].mxu0
  %v2135 = vadd.f32 0.0, %v2134
  %v2136 = vpop.f32.mrb[0].mxu0
  %2137 = vmatprep.mubr.f32.mxu0 0.0
  %2138 = vmatmul.mubr.f32.gmra.mrb[0].mxu0 %v2052
  %v2139 = vpop.f32.mrb[0].mxu0
  %v2140 = vadd.f32 0.0, %v2139
  %v2141 = vpop.f32.mrb[0].mxu0
  %2142 = vmatprep.mubr.f32.mxu0 0.0
  %2143 = vmatmul.mubr.f32.gmra.mrb[0].mxu0 %v2053
  %v2144 = vpop.f32.mrb[0].mxu0
  %v2145 = vadd.f32 0.0, %v2144
  %v2146 = vpop.f32.mrb[0].mxu0
  %2147 = vmatprep.mubr.f32.mxu0 0.0
  %2148 = vmatmul.mubr.f32.gmra.mrb[0].mxu0 %v2054
  %v2149 = vpop.f32.mrb[0].mxu0
  %v2150 = vadd.f32 0.0, %v2149
  %v2151 = vpop.f32.mrb[0].mxu0
  %2152 = vmatprep.mubr.f32.mxu0 0.0
  %2153 = vmatmul.mubr.f32.gmra.mrb[0].mxu0 %v2055
  %v2154 = vpop.f32.mrb[0].mxu0
  %v2155 = vadd.f32 0.0, %v2154
  %v2156 = vpop.f32.mrb[0].mxu0
  %2157 = vmatprep.mubr.f32.mxu0 0.0
  %2158 = vmatmul.mubr.f32.gmra.mrb[0].mxu0 %v2056
  %v2159 = vpop.f32.mrb[0].mxu0
  %v2160 = vadd.f32 0.0, %v2159
  %v2161 = vpop.f32.mrb[0].mxu0
  %2162 = vmatprep.mubr.f32.mxu0 0.0
  %2163 = vmatmul.mubr.f32.gmra.mrb[0].mxu0 %v2057
  %v2164 = vpop.f32.mrb[0].mxu0
  %v2165 = vadd.f32 0.0, %v2164
  %v2166 = vpop.f32.mrb[0].mxu0
  %2167 = vdwg.mxu0
  %s2168 = scalar_lea.vmem %s4, 896
  %v2169 = vld [vmem:[%s2168] sm:$0xff]
  %v2170 = vld [vmem:[%s2168 + $0x8] sm:$0xff]
  %v2171 = vld [vmem:[%s2168 + $0x10] sm:$0xff]
  %v2172 = vld [vmem:[%s2168 + $0x18] sm:$0xff]
  %v2173 = vld [vmem:[%s2168 + $0x20] sm:$0xff]
  %v2174 = vld [vmem:[%s2168 + $0x28] sm:$0xff]
  %v2175 = vld [vmem:[%s2168 + $0x30] sm:$0xff]
  %v2176 = vld [vmem:[%s2168 + $0x38] sm:$0xff]
  %v2177 = vld [vmem:[%s2168 + $0x40] sm:$0xff]
  %v2178 = vld [vmem:[%s2168 + $0x48] sm:$0xff]
  %v2179 = vld [vmem:[%s2168 + $0x50] sm:$0xff]
  %v2180 = vld [vmem:[%s2168 + $0x58] sm:$0xff]
  %v2181 = vld [vmem:[%s2168 + $0x60] sm:$0xff]
  %v2182 = vld [vmem:[%s2168 + $0x68] sm:$0xff]
  %v2183 = vld [vmem:[%s2168 + $0x70] sm:$0xff]
  %v2184 = vld [vmem:[%s2168 + $0x78] sm:$0xff]
  %2185 = vmatprep.subr.mxu0 0.0
  %2186 = vmatpush1.msra.mxu0 %v2169
  %2187 = vmatprep.subr.mxu0 0.0
  %2188 = vmatpush1.msra.mxu0 %v2170
  %2189 = vmatprep.subr.mxu0 0.0
  %2190 = vmatpush1.msra.mxu0 %v2171
  %2191 = vmatprep.subr.mxu0 0.0
  %2192 = vmatpush1.msra.mxu0 %v2172
  %2193 = vmatprep.subr.mxu0 0.0
  %2194 = vmatpush1.msra.mxu0 %v2173
  %2195 = vmatprep.subr.mxu0 0.0
  %2196 = vmatpush1.msra.mxu0 %v2174
  %2197 = vmatprep.subr.mxu0 0.0
  %2198 = vmatpush1.msra.mxu0 %v2175
  %2199 = vmatprep.subr.mxu0 0.0
  %2200 = vmatpush1.msra.mxu0 %v2176
  %2201 = vmatprep.subr.mxu0 0.0
  %2202 = vmatpush1.msra.mxu0 %v2177
  %2203 = vmatprep.subr.mxu0 0.0
  %2204 = vmatpush1.msra.mxu0 %v2178
  %2205 = vmatprep.subr.mxu0 0.0
  %2206 = vmatpush1.msra.mxu0 %v2179
  %2207 = vmatprep.subr.mxu0 0.0
  %2208 = vmatpush1.msra.mxu0 %v2180
  %2209 = vmatprep.subr.mxu0 0.0
  %2210 = vmatpush1.msra.mxu0 %v2181
  %2211 = vmatprep.subr.mxu0 0.0
  %2212 = vmatpush1.msra.mxu0 %v2182
  %2213 = vmatprep.subr.mxu0 0.0
  %2214 = vmatpush1.msra.mxu0 %v2183
  %2215 = vmatprep.subr.mxu0 0.0
  %2216 = vmatpush1.msra.mxu0 %v2184
  %2217 = vmatprep.subr.mxu0 0.0
  %2218 = vmatpush1.msra.mxu0 0.0
  %2219 = vmatprep.subr.mxu0 0.0
  %2220 = vmatpush1.msra.mxu0 0.0
  %2221 = vmatprep.subr.mxu0 0.0
  %2222 = vmatpush1.msra.mxu0 0.0
  %2223 = vmatprep.subr.mxu0 0.0
  %2224 = vmatpush1.msra.mxu0 0.0
  %2225 = vmatprep.subr.mxu0 0.0
  %2226 = vmatpush1.msra.mxu0 0.0
  %2227 = vmatprep.subr.mxu0 0.0
  %2228 = vmatpush1.msra.mxu0 0.0
  %2229 = vmatprep.subr.mxu0 0.0
  %2230 = vmatpush1.msra.mxu0 0.0
  %2231 = vmatprep.subr.mxu0 0.0
  %2232 = vmatpush1.msra.mxu0 0.0
  %2233 = vmatprep.subr.mxu0 0.0
  %2234 = vmatpush1.msra.mxu0 0.0
  %2235 = vmatprep.subr.mxu0 0.0
  %2236 = vmatpush1.msra.mxu0 0.0
  %2237 = vmatprep.subr.mxu0 0.0
  %2238 = vmatpush1.msra.mxu0 0.0
  %2239 = vmatprep.subr.mxu0 0.0
  %2240 = vmatpush1.msra.mxu0 0.0
  %2241 = vmatprep.subr.mxu0 0.0
  %2242 = vmatpush1.msra.mxu0 0.0
  %2243 = vmatprep.subr.mxu0 0.0
  %2244 = vmatpush1.msra.mxu0 0.0
  %2245 = vmatprep.subr.mxu0 0.0
  %2246 = vmatpush1.msra.mxu0 0.0
  %2247 = vmatprep.subr.mxu0 0.0
  %2248 = vmatpush1.msra.mxu0 0.0
  %2249 = vmatprep.mubr.f32.mxu0 0.0
  %2250 = vmatmul.mubr.f32.gmra.mrb[0].mxu0 %v2125
  %v2251 = vpop.f32.mrb[0].mxu0
  %v2252 = vadd.f32 0.0, %v2251
  %v2253 = vpop.f32.mrb[0].mxu0
  %2254 = vmatprep.mubr.f32.mxu0 0.0
  %2255 = vmatmul.mubr.f32.gmra.mrb[0].mxu0 %v2130
  %v2256 = vpop.f32.mrb[0].mxu0
  %v2257 = vadd.f32 0.0, %v2256
  %v2258 = vpop.f32.mrb[0].mxu0
  %2259 = vmatprep.mubr.f32.mxu0 0.0
  %2260 = vmatmul.mubr.f32.gmra.mrb[0].mxu0 %v2135
  %v2261 = vpop.f32.mrb[0].mxu0
  %v2262 = vadd.f32 0.0, %v2261
  %v2263 = vpop.f32.mrb[0].mxu0
  %2264 = vmatprep.mubr.f32.mxu0 0.0
  %2265 = vmatmul.mubr.f32.gmra.mrb[0].mxu0 %v2140
  %v2266 = vpop.f32.mrb[0].mxu0
  %v2267 = vadd.f32 0.0, %v2266
  %v2268 = vpop.f32.mrb[0].mxu0
  %2269 = vmatprep.mubr.f32.mxu0 0.0
  %2270 = vmatmul.mubr.f32.gmra.mrb[0].mxu0 %v2145
  %v2271 = vpop.f32.mrb[0].mxu0
  %v2272 = vadd.f32 0.0, %v2271
  %v2273 = vpop.f32.mrb[0].mxu0
  %2274 = vmatprep.mubr.f32.mxu0 0.0
  %2275 = vmatmul.mubr.f32.gmra.mrb[0].mxu0 %v2150
  %v2276 = vpop.f32.mrb[0].mxu0
  %v2277 = vadd.f32 0.0, %v2276
  %v2278 = vpop.f32.mrb[0].mxu0
  %2279 = vmatprep.mubr.f32.mxu0 0.0
  %2280 = vmatmul.mubr.f32.gmra.mrb[0].mxu0 %v2155
  %v2281 = vpop.f32.mrb[0].mxu0
  %v2282 = vadd.f32 0.0, %v2281
  %v2283 = vpop.f32.mrb[0].mxu0
  %2284 = vmatprep.mubr.f32.mxu0 0.0
  %2285 = vmatmul.mubr.f32.gmra.mrb[0].mxu0 %v2160
  %v2286 = vpop.f32.mrb[0].mxu0
  %v2287 = vadd.f32 0.0, %v2286
  %v2288 = vpop.f32.mrb[0].mxu0
  %2289 = vmatprep.mubr.f32.mxu0 0.0
  %2290 = vmatmul.mubr.f32.gmra.mrb[0].mxu0 %v2165
  %v2291 = vpop.f32.mrb[0].mxu0
  %v2292 = vadd.f32 0.0, %v2291
  %v2293 = vpop.f32.mrb[0].mxu0
  %2294 = vdwg.mxu0
  %v2295 = vadd.f32 %v2039, %v2252
  %v2296 = vadd.f32 %v2040, %v2257
  %v2297 = vadd.f32 %v2041, %v2262
  %v2298 = vadd.f32 %v2042, %v2267
  %v2299 = vadd.f32 %v2043, %v2272
  %v2300 = vadd.f32 %v2044, %v2277
  %v2301 = vadd.f32 %v2045, %v2282
  %v2302 = vadd.f32 %v2046, %v2287
  %v2303 = vadd.f32 %v2047, %v2292
  %s2304 = scalar_lea.vmem %s3, 576
  %v2305 = vld [vmem:[%s2304] sm:$0xff]
  %v2306 = vld [vmem:[%s2304 + $0x8] sm:$0xff]
  %v2307 = vld [vmem:[%s2304 + $0x10] sm:$0xff]
  %v2308 = vld [vmem:[%s2304 + $0x18] sm:$0xff]
  %v2309 = vld [vmem:[%s2304 + $0x20] sm:$0xff]
  %v2310 = vld [vmem:[%s2304 + $0x28] sm:$0xff]
  %v2311 = vld [vmem:[%s2304 + $0x30] sm:$0xff]
  %v2312 = vld [vmem:[%s2304 + $0x38] sm:$0xff]
  %v2313 = vld [vmem:[%s2304 + $0x40] sm:$0xff]
  %2314 = vmatprep.subr.mxu0 0.0
  %2315 = vmatpush1.msra.mxu0 %v260
  %2316 = vmatprep.subr.mxu0 0.0
  %2317 = vmatpush1.msra.mxu0 %v261
  %2318 = vmatprep.subr.mxu0 0.0
  %2319 = vmatpush1.msra.mxu0 %v262
  %2320 = vmatprep.subr.mxu0 0.0
  %2321 = vmatpush1.msra.mxu0 %v263
  %2322 = vmatprep.subr.mxu0 0.0
  %2323 = vmatpush1.msra.mxu0 %v264
  %2324 = vmatprep.subr.mxu0 0.0
  %2325 = vmatpush1.msra.mxu0 %v265
  %2326 = vmatprep.subr.mxu0 0.0
  %2327 = vmatpush1.msra.mxu0 %v266
  %2328 = vmatprep.subr.mxu0 0.0
  %2329 = vmatpush1.msra.mxu0 %v267
  %2330 = vmatprep.subr.mxu0 0.0
  %2331 = vmatpush1.msra.mxu0 %v268
  %2332 = vmatprep.subr.mxu0 0.0
  %2333 = vmatpush1.msra.mxu0 %v269
  %2334 = vmatprep.subr.mxu0 0.0
  %2335 = vmatpush1.msra.mxu0 %v270
  %2336 = vmatprep.subr.mxu0 0.0
  %2337 = vmatpush1.msra.mxu0 %v271
  %2338 = vmatprep.subr.mxu0 0.0
  %2339 = vmatpush1.msra.mxu0 %v272
  %2340 = vmatprep.subr.mxu0 0.0
  %2341 = vmatpush1.msra.mxu0 %v273
  %2342 = vmatprep.subr.mxu0 0.0
  %2343 = vmatpush1.msra.mxu0 %v274
  %2344 = vmatprep.subr.mxu0 0.0
  %2345 = vmatpush1.msra.mxu0 %v275
  %2346 = vmatprep.subr.mxu0 0.0
  %2347 = vmatpush1.msra.mxu0 0.0
  %2348 = vmatprep.subr.mxu0 0.0
  %2349 = vmatpush1.msra.mxu0 0.0
  %2350 = vmatprep.subr.mxu0 0.0
  %2351 = vmatpush1.msra.mxu0 0.0
  %2352 = vmatprep.subr.mxu0 0.0
  %2353 = vmatpush1.msra.mxu0 0.0
  %2354 = vmatprep.subr.mxu0 0.0
  %2355 = vmatpush1.msra.mxu0 0.0
  %2356 = vmatprep.subr.mxu0 0.0
  %2357 = vmatpush1.msra.mxu0 0.0
  %2358 = vmatprep.subr.mxu0 0.0
  %2359 = vmatpush1.msra.mxu0 0.0
  %2360 = vmatprep.subr.mxu0 0.0
  %2361 = vmatpush1.msra.mxu0 0.0
  %2362 = vmatprep.subr.mxu0 0.0
  %2363 = vmatpush1.msra.mxu0 0.0
  %2364 = vmatprep.subr.mxu0 0.0
  %2365 = vmatpush1.msra.mxu0 0.0
  %2366 = vmatprep.subr.mxu0 0.0
  %2367 = vmatpush1.msra.mxu0 0.0
  %2368 = vmatprep.subr.mxu0 0.0
  %2369 = vmatpush1.msra.mxu0 0.0
  %2370 = vmatprep.subr.mxu0 0.0
  %2371 = vmatpush1.msra.mxu0 0.0
  %2372 = vmatprep.subr.mxu0 0.0
  %2373 = vmatpush1.msra.mxu0 0.0
  %2374 = vmatprep.subr.mxu0 0.0
  %2375 = vmatpush1.msra.mxu0 0.0
  %2376 = vmatprep.subr.mxu0 0.0
  %2377 = vmatpush1.msra.mxu0 0.0
  %2378 = vmatprep.mubr.f32.mxu0 0.0
  %2379 = vmatmul.mubr.f32.gmra.mrb[0].mxu0 %v2305
  %v2380 = vpop.f32.mrb[0].mxu0
  %v2381 = vadd.f32 0.0, %v2380
  %v2382 = vpop.f32.mrb[0].mxu0
  %2383 = vmatprep.mubr.f32.mxu0 0.0
  %2384 = vmatmul.mubr.f32.gmra.mrb[0].mxu0 %v2306
  %v2385 = vpop.f32.mrb[0].mxu0
  %v2386 = vadd.f32 0.0, %v2385
  %v2387 = vpop.f32.mrb[0].mxu0
  %2388 = vmatprep.mubr.f32.mxu0 0.0
  %2389 = vmatmul.mubr.f32.gmra.mrb[0].mxu0 %v2307
  %v2390 = vpop.f32.mrb[0].mxu0
  %v2391 = vadd.f32 0.0, %v2390
  %v2392 = vpop.f32.mrb[0].mxu0
  %2393 = vmatprep.mubr.f32.mxu0 0.0
  %2394 = vmatmul.mubr.f32.gmra.mrb[0].mxu0 %v2308
  %v2395 = vpop.f32.mrb[0].mxu0
  %v2396 = vadd.f32 0.0, %v2395
  %v2397 = vpop.f32.mrb[0].mxu0
  %2398 = vmatprep.mubr.f32.mxu0 0.0
  %2399 = vmatmul.mubr.f32.gmra.mrb[0].mxu0 %v2309
  %v2400 = vpop.f32.mrb[0].mxu0
  %v2401 = vadd.f32 0.0, %v2400
  %v2402 = vpop.f32.mrb[0].mxu0
  %2403 = vmatprep.mubr.f32.mxu0 0.0
  %2404 = vmatmul.mubr.f32.gmra.mrb[0].mxu0 %v2310
  %v2405 = vpop.f32.mrb[0].mxu0
  %v2406 = vadd.f32 0.0, %v2405
  %v2407 = vpop.f32.mrb[0].mxu0
  %2408 = vmatprep.mubr.f32.mxu0 0.0
  %2409 = vmatmul.mubr.f32.gmra.mrb[0].mxu0 %v2311
  %v2410 = vpop.f32.mrb[0].mxu0
  %v2411 = vadd.f32 0.0, %v2410
  %v2412 = vpop.f32.mrb[0].mxu0
  %2413 = vmatprep.mubr.f32.mxu0 0.0
  %2414 = vmatmul.mubr.f32.gmra.mrb[0].mxu0 %v2312
  %v2415 = vpop.f32.mrb[0].mxu0
  %v2416 = vadd.f32 0.0, %v2415
  %v2417 = vpop.f32.mrb[0].mxu0
  %2418 = vmatprep.mubr.f32.mxu0 0.0
  %2419 = vmatmul.mubr.f32.gmra.mrb[0].mxu0 %v2313
  %v2420 = vpop.f32.mrb[0].mxu0
  %v2421 = vadd.f32 0.0, %v2420
  %v2422 = vpop.f32.mrb[0].mxu0
  %2423 = vdwg.mxu0
  %s2424 = scalar_lea.vmem %s4, 1024
  %v2425 = vld [vmem:[%s2424] sm:$0xff]
  %v2426 = vld [vmem:[%s2424 + $0x8] sm:$0xff]
  %v2427 = vld [vmem:[%s2424 + $0x10] sm:$0xff]
  %v2428 = vld [vmem:[%s2424 + $0x18] sm:$0xff]
  %v2429 = vld [vmem:[%s2424 + $0x20] sm:$0xff]
  %v2430 = vld [vmem:[%s2424 + $0x28] sm:$0xff]
  %v2431 = vld [vmem:[%s2424 + $0x30] sm:$0xff]
  %v2432 = vld [vmem:[%s2424 + $0x38] sm:$0xff]
  %v2433 = vld [vmem:[%s2424 + $0x40] sm:$0xff]
  %v2434 = vld [vmem:[%s2424 + $0x48] sm:$0xff]
  %v2435 = vld [vmem:[%s2424 + $0x50] sm:$0xff]
  %v2436 = vld [vmem:[%s2424 + $0x58] sm:$0xff]
  %v2437 = vld [vmem:[%s2424 + $0x60] sm:$0xff]
  %v2438 = vld [vmem:[%s2424 + $0x68] sm:$0xff]
  %v2439 = vld [vmem:[%s2424 + $0x70] sm:$0xff]
  %v2440 = vld [vmem:[%s2424 + $0x78] sm:$0xff]
  %2441 = vmatprep.subr.mxu0 0.0
  %2442 = vmatpush1.msra.mxu0 %v2425
  %2443 = vmatprep.subr.mxu0 0.0
  %2444 = vmatpush1.msra.mxu0 %v2426
  %2445 = vmatprep.subr.mxu0 0.0
  %2446 = vmatpush1.msra.mxu0 %v2427
  %2447 = vmatprep.subr.mxu0 0.0
  %2448 = vmatpush1.msra.mxu0 %v2428
  %2449 = vmatprep.subr.mxu0 0.0
  %2450 = vmatpush1.msra.mxu0 %v2429
  %2451 = vmatprep.subr.mxu0 0.0
  %2452 = vmatpush1.msra.mxu0 %v2430
  %2453 = vmatprep.subr.mxu0 0.0
  %2454 = vmatpush1.msra.mxu0 %v2431
  %2455 = vmatprep.subr.mxu0 0.0
  %2456 = vmatpush1.msra.mxu0 %v2432
  %2457 = vmatprep.subr.mxu0 0.0
  %2458 = vmatpush1.msra.mxu0 %v2433
  %2459 = vmatprep.subr.mxu0 0.0
  %2460 = vmatpush1.msra.mxu0 %v2434
  %2461 = vmatprep.subr.mxu0 0.0
  %2462 = vmatpush1.msra.mxu0 %v2435
  %2463 = vmatprep.subr.mxu0 0.0
  %2464 = vmatpush1.msra.mxu0 %v2436
  %2465 = vmatprep.subr.mxu0 0.0
  %2466 = vmatpush1.msra.mxu0 %v2437
  %2467 = vmatprep.subr.mxu0 0.0
  %2468 = vmatpush1.msra.mxu0 %v2438
  %2469 = vmatprep.subr.mxu0 0.0
  %2470 = vmatpush1.msra.mxu0 %v2439
  %2471 = vmatprep.subr.mxu0 0.0
  %2472 = vmatpush1.msra.mxu0 %v2440
  %2473 = vmatprep.subr.mxu0 0.0
  %2474 = vmatpush1.msra.mxu0 0.0
  %2475 = vmatprep.subr.mxu0 0.0
  %2476 = vmatpush1.msra.mxu0 0.0
  %2477 = vmatprep.subr.mxu0 0.0
  %2478 = vmatpush1.msra.mxu0 0.0
  %2479 = vmatprep.subr.mxu0 0.0
  %2480 = vmatpush1.msra.mxu0 0.0
  %2481 = vmatprep.subr.mxu0 0.0
  %2482 = vmatpush1.msra.mxu0 0.0
  %2483 = vmatprep.subr.mxu0 0.0
  %2484 = vmatpush1.msra.mxu0 0.0
  %2485 = vmatprep.subr.mxu0 0.0
  %2486 = vmatpush1.msra.mxu0 0.0
  %2487 = vmatprep.subr.mxu0 0.0
  %2488 = vmatpush1.msra.mxu0 0.0
  %2489 = vmatprep.subr.mxu0 0.0
  %2490 = vmatpush1.msra.mxu0 0.0
  %2491 = vmatprep.subr.mxu0 0.0
  %2492 = vmatpush1.msra.mxu0 0.0
  %2493 = vmatprep.subr.mxu0 0.0
  %2494 = vmatpush1.msra.mxu0 0.0
  %2495 = vmatprep.subr.mxu0 0.0
  %2496 = vmatpush1.msra.mxu0 0.0
  %2497 = vmatprep.subr.mxu0 0.0
  %2498 = vmatpush1.msra.mxu0 0.0
  %2499 = vmatprep.subr.mxu0 0.0
  %2500 = vmatpush1.msra.mxu0 0.0
  %2501 = vmatprep.subr.mxu0 0.0
  %2502 = vmatpush1.msra.mxu0 0.0
  %2503 = vmatprep.subr.mxu0 0.0
  %2504 = vmatpush1.msra.mxu0 0.0
  %2505 = vmatprep.mubr.f32.mxu0 0.0
  %2506 = vmatmul.mubr.f32.gmra.mrb[0].mxu0 %v2381
  %v2507 = vpop.f32.mrb[0].mxu0
  %v2508 = vadd.f32 0.0, %v2507
  %v2509 = vpop.f32.mrb[0].mxu0
  %2510 = vmatprep.mubr.f32.mxu0 0.0
  %2511 = vmatmul.mubr.f32.gmra.mrb[0].mxu0 %v2386
  %v2512 = vpop.f32.mrb[0].mxu0
  %v2513 = vadd.f32 0.0, %v2512
  %v2514 = vpop.f32.mrb[0].mxu0
  %2515 = vmatprep.mubr.f32.mxu0 0.0
  %2516 = vmatmul.mubr.f32.gmra.mrb[0].mxu0 %v2391
  %v2517 = vpop.f32.mrb[0].mxu0
  %v2518 = vadd.f32 0.0, %v2517
  %v2519 = vpop.f32.mrb[0].mxu0
  %2520 = vmatprep.mubr.f32.mxu0 0.0
  %2521 = vmatmul.mubr.f32.gmra.mrb[0].mxu0 %v2396
  %v2522 = vpop.f32.mrb[0].mxu0
  %v2523 = vadd.f32 0.0, %v2522
  %v2524 = vpop.f32.mrb[0].mxu0
  %2525 = vmatprep.mubr.f32.mxu0 0.0
  %2526 = vmatmul.mubr.f32.gmra.mrb[0].mxu0 %v2401
  %v2527 = vpop.f32.mrb[0].mxu0
  %v2528 = vadd.f32 0.0, %v2527
  %v2529 = vpop.f32.mrb[0].mxu0
  %2530 = vmatprep.mubr.f32.mxu0 0.0
  %2531 = vmatmul.mubr.f32.gmra.mrb[0].mxu0 %v2406
  %v2532 = vpop.f32.mrb[0].mxu0
  %v2533 = vadd.f32 0.0, %v2532
  %v2534 = vpop.f32.mrb[0].mxu0
  %2535 = vmatprep.mubr.f32.mxu0 0.0
  %2536 = vmatmul.mubr.f32.gmra.mrb[0].mxu0 %v2411
  %v2537 = vpop.f32.mrb[0].mxu0
  %v2538 = vadd.f32 0.0, %v2537
  %v2539 = vpop.f32.mrb[0].mxu0
  %2540 = vmatprep.mubr.f32.mxu0 0.0
  %2541 = vmatmul.mubr.f32.gmra.mrb[0].mxu0 %v2416
  %v2542 = vpop.f32.mrb[0].mxu0
  %v2543 = vadd.f32 0.0, %v2542
  %v2544 = vpop.f32.mrb[0].mxu0
  %2545 = vmatprep.mubr.f32.mxu0 0.0
  %2546 = vmatmul.mubr.f32.gmra.mrb[0].mxu0 %v2421
  %v2547 = vpop.f32.mrb[0].mxu0
  %v2548 = vadd.f32 0.0, %v2547
  %v2549 = vpop.f32.mrb[0].mxu0
  %2550 = vdwg.mxu0
  %v2551 = vadd.f32 %v2295, %v2508
  %v2552 = vadd.f32 %v2296, %v2513
  %v2553 = vadd.f32 %v2297, %v2518
  %v2554 = vadd.f32 %v2298, %v2523
  %v2555 = vadd.f32 %v2299, %v2528
  %v2556 = vadd.f32 %v2300, %v2533
  %v2557 = vadd.f32 %v2301, %v2538
  %v2558 = vadd.f32 %v2302, %v2543
  %v2559 = vadd.f32 %v2303, %v2548
  %s2560 = scalar_lea.vmem %s3, 648
  %v2561 = vld [vmem:[%s2560] sm:$0xff]
  %v2562 = vld [vmem:[%s2560 + $0x8] sm:$0xff]
  %v2563 = vld [vmem:[%s2560 + $0x10] sm:$0xff]
  %v2564 = vld [vmem:[%s2560 + $0x18] sm:$0xff]
  %v2565 = vld [vmem:[%s2560 + $0x20] sm:$0xff]
  %v2566 = vld [vmem:[%s2560 + $0x28] sm:$0xff]
  %v2567 = vld [vmem:[%s2560 + $0x30] sm:$0xff]
  %v2568 = vld [vmem:[%s2560 + $0x38] sm:$0xff]
  %v2569 = vld [vmem:[%s2560 + $0x40] sm:$0xff]
  %2570 = vmatprep.subr.mxu0 0.0
  %2571 = vmatpush1.msra.mxu0 %v260
  %2572 = vmatprep.subr.mxu0 0.0
  %2573 = vmatpush1.msra.mxu0 %v261
  %2574 = vmatprep.subr.mxu0 0.0
  %2575 = vmatpush1.msra.mxu0 %v262
  %2576 = vmatprep.subr.mxu0 0.0
  %2577 = vmatpush1.msra.mxu0 %v263
  %2578 = vmatprep.subr.mxu0 0.0
  %2579 = vmatpush1.msra.mxu0 %v264
  %2580 = vmatprep.subr.mxu0 0.0
  %2581 = vmatpush1.msra.mxu0 %v265
  %2582 = vmatprep.subr.mxu0 0.0
  %2583 = vmatpush1.msra.mxu0 %v266
  %2584 = vmatprep.subr.mxu0 0.0
  %2585 = vmatpush1.msra.mxu0 %v267
  %2586 = vmatprep.subr.mxu0 0.0
  %2587 = vmatpush1.msra.mxu0 %v268
  %2588 = vmatprep.subr.mxu0 0.0
  %2589 = vmatpush1.msra.mxu0 %v269
  %2590 = vmatprep.subr.mxu0 0.0
  %2591 = vmatpush1.msra.mxu0 %v270
  %2592 = vmatprep.subr.mxu0 0.0
  %2593 = vmatpush1.msra.mxu0 %v271
  %2594 = vmatprep.subr.mxu0 0.0
  %2595 = vmatpush1.msra.mxu0 %v272
  %2596 = vmatprep.subr.mxu0 0.0
  %2597 = vmatpush1.msra.mxu0 %v273
  %2598 = vmatprep.subr.mxu0 0.0
  %2599 = vmatpush1.msra.mxu0 %v274
  %2600 = vmatprep.subr.mxu0 0.0
  %2601 = vmatpush1.msra.mxu0 %v275
  %2602 = vmatprep.subr.mxu0 0.0
  %2603 = vmatpush1.msra.mxu0 0.0
  %2604 = vmatprep.subr.mxu0 0.0
  %2605 = vmatpush1.msra.mxu0 0.0
  %2606 = vmatprep.subr.mxu0 0.0
  %2607 = vmatpush1.msra.mxu0 0.0
  %2608 = vmatprep.subr.mxu0 0.0
  %2609 = vmatpush1.msra.mxu0 0.0
  %2610 = vmatprep.subr.mxu0 0.0
  %2611 = vmatpush1.msra.mxu0 0.0
  %2612 = vmatprep.subr.mxu0 0.0
  %2613 = vmatpush1.msra.mxu0 0.0
  %2614 = vmatprep.subr.mxu0 0.0
  %2615 = vmatpush1.msra.mxu0 0.0
  %2616 = vmatprep.subr.mxu0 0.0
  %2617 = vmatpush1.msra.mxu0 0.0
  %2618 = vmatprep.subr.mxu0 0.0
  %2619 = vmatpush1.msra.mxu0 0.0
  %2620 = vmatprep.subr.mxu0 0.0
  %2621 = vmatpush1.msra.mxu0 0.0
  %2622 = vmatprep.subr.mxu0 0.0
  %2623 = vmatpush1.msra.mxu0 0.0
  %2624 = vmatprep.subr.mxu0 0.0
  %2625 = vmatpush1.msra.mxu0 0.0
  %2626 = vmatprep.subr.mxu0 0.0
  %2627 = vmatpush1.msra.mxu0 0.0
  %2628 = vmatprep.subr.mxu0 0.0
  %2629 = vmatpush1.msra.mxu0 0.0
  %2630 = vmatprep.subr.mxu0 0.0
  %2631 = vmatpush1.msra.mxu0 0.0
  %2632 = vmatprep.subr.mxu0 0.0
  %2633 = vmatpush1.msra.mxu0 0.0
  %2634 = vmatprep.mubr.f32.mxu0 0.0
  %2635 = vmatmul.mubr.f32.gmra.mrb[0].mxu0 %v2561
  %v2636 = vpop.f32.mrb[0].mxu0
  %v2637 = vadd.f32 0.0, %v2636
  %v2638 = vpop.f32.mrb[0].mxu0
  %2639 = vmatprep.mubr.f32.mxu0 0.0
  %2640 = vmatmul.mubr.f32.gmra.mrb[0].mxu0 %v2562
  %v2641 = vpop.f32.mrb[0].mxu0
  %v2642 = vadd.f32 0.0, %v2641
  %v2643 = vpop.f32.mrb[0].mxu0
  %2644 = vmatprep.mubr.f32.mxu0 0.0
  %2645 = vmatmul.mubr.f32.gmra.mrb[0].mxu0 %v2563
  %v2646 = vpop.f32.mrb[0].mxu0
  %v2647 = vadd.f32 0.0, %v2646
  %v2648 = vpop.f32.mrb[0].mxu0
  %2649 = vmatprep.mubr.f32.mxu0 0.0
  %2650 = vmatmul.mubr.f32.gmra.mrb[0].mxu0 %v2564
  %v2651 = vpop.f32.mrb[0].mxu0
  %v2652 = vadd.f32 0.0, %v2651
  %v2653 = vpop.f32.mrb[0].mxu0
  %2654 = vmatprep.mubr.f32.mxu0 0.0
  %2655 = vmatmul.mubr.f32.gmra.mrb[0].mxu0 %v2565
  %v2656 = vpop.f32.mrb[0].mxu0
  %v2657 = vadd.f32 0.0, %v2656
  %v2658 = vpop.f32.mrb[0].mxu0
  %2659 = vmatprep.mubr.f32.mxu0 0.0
  %2660 = vmatmul.mubr.f32.gmra.mrb[0].mxu0 %v2566
  %v2661 = vpop.f32.mrb[0].mxu0
  %v2662 = vadd.f32 0.0, %v2661
  %v2663 = vpop.f32.mrb[0].mxu0
  %2664 = vmatprep.mubr.f32.mxu0 0.0
  %2665 = vmatmul.mubr.f32.gmra.mrb[0].mxu0 %v2567
  %v2666 = vpop.f32.mrb[0].mxu0
  %v2667 = vadd.f32 0.0, %v2666
  %v2668 = vpop.f32.mrb[0].mxu0
  %2669 = vmatprep.mubr.f32.mxu0 0.0
  %2670 = vmatmul.mubr.f32.gmra.mrb[0].mxu0 %v2568
  %v2671 = vpop.f32.mrb[0].mxu0
  %v2672 = vadd.f32 0.0, %v2671
  %v2673 = vpop.f32.mrb[0].mxu0
  %2674 = vmatprep.mubr.f32.mxu0 0.0
  %2675 = vmatmul.mubr.f32.gmra.mrb[0].mxu0 %v2569
  %v2676 = vpop.f32.mrb[0].mxu0
  %v2677 = vadd.f32 0.0, %v2676
  %v2678 = vpop.f32.mrb[0].mxu0
  %2679 = vdwg.mxu0
  %s2680 = scalar_lea.vmem %s4, 1152
  %v2681 = vld [vmem:[%s2680] sm:$0xff]
  %v2682 = vld [vmem:[%s2680 + $0x8] sm:$0xff]
  %v2683 = vld [vmem:[%s2680 + $0x10] sm:$0xff]
  %v2684 = vld [vmem:[%s2680 + $0x18] sm:$0xff]
  %v2685 = vld [vmem:[%s2680 + $0x20] sm:$0xff]
  %v2686 = vld [vmem:[%s2680 + $0x28] sm:$0xff]
  %v2687 = vld [vmem:[%s2680 + $0x30] sm:$0xff]
  %v2688 = vld [vmem:[%s2680 + $0x38] sm:$0xff]
  %v2689 = vld [vmem:[%s2680 + $0x40] sm:$0xff]
  %v2690 = vld [vmem:[%s2680 + $0x48] sm:$0xff]
  %v2691 = vld [vmem:[%s2680 + $0x50] sm:$0xff]
  %v2692 = vld [vmem:[%s2680 + $0x58] sm:$0xff]
  %v2693 = vld [vmem:[%s2680 + $0x60] sm:$0xff]
  %v2694 = vld [vmem:[%s2680 + $0x68] sm:$0xff]
  %v2695 = vld [vmem:[%s2680 + $0x70] sm:$0xff]
  %v2696 = vld [vmem:[%s2680 + $0x78] sm:$0xff]
  %2697 = vmatprep.subr.mxu0 0.0
  %2698 = vmatpush1.msra.mxu0 %v2681
  %2699 = vmatprep.subr.mxu0 0.0
  %2700 = vmatpush1.msra.mxu0 %v2682
  %2701 = vmatprep.subr.mxu0 0.0
  %2702 = vmatpush1.msra.mxu0 %v2683
  %2703 = vmatprep.subr.mxu0 0.0
  %2704 = vmatpush1.msra.mxu0 %v2684
  %2705 = vmatprep.subr.mxu0 0.0
  %2706 = vmatpush1.msra.mxu0 %v2685
  %2707 = vmatprep.subr.mxu0 0.0
  %2708 = vmatpush1.msra.mxu0 %v2686
  %2709 = vmatprep.subr.mxu0 0.0
  %2710 = vmatpush1.msra.mxu0 %v2687
  %2711 = vmatprep.subr.mxu0 0.0
  %2712 = vmatpush1.msra.mxu0 %v2688
  %2713 = vmatprep.subr.mxu0 0.0
  %2714 = vmatpush1.msra.mxu0 %v2689
  %2715 = vmatprep.subr.mxu0 0.0
  %2716 = vmatpush1.msra.mxu0 %v2690
  %2717 = vmatprep.subr.mxu0 0.0
  %2718 = vmatpush1.msra.mxu0 %v2691
  %2719 = vmatprep.subr.mxu0 0.0
  %2720 = vmatpush1.msra.mxu0 %v2692
  %2721 = vmatprep.subr.mxu0 0.0
  %2722 = vmatpush1.msra.mxu0 %v2693
  %2723 = vmatprep.subr.mxu0 0.0
  %2724 = vmatpush1.msra.mxu0 %v2694
  %2725 = vmatprep.subr.mxu0 0.0
  %2726 = vmatpush1.msra.mxu0 %v2695
  %2727 = vmatprep.subr.mxu0 0.0
  %2728 = vmatpush1.msra.mxu0 %v2696
  %2729 = vmatprep.subr.mxu0 0.0
  %2730 = vmatpush1.msra.mxu0 0.0
  %2731 = vmatprep.subr.mxu0 0.0
  %2732 = vmatpush1.msra.mxu0 0.0
  %2733 = vmatprep.subr.mxu0 0.0
  %2734 = vmatpush1.msra.mxu0 0.0
  %2735 = vmatprep.subr.mxu0 0.0
  %2736 = vmatpush1.msra.mxu0 0.0
  %2737 = vmatprep.subr.mxu0 0.0
  %2738 = vmatpush1.msra.mxu0 0.0
  %2739 = vmatprep.subr.mxu0 0.0
  %2740 = vmatpush1.msra.mxu0 0.0
  %2741 = vmatprep.subr.mxu0 0.0
  %2742 = vmatpush1.msra.mxu0 0.0
  %2743 = vmatprep.subr.mxu0 0.0
  %2744 = vmatpush1.msra.mxu0 0.0
  %2745 = vmatprep.subr.mxu0 0.0
  %2746 = vmatpush1.msra.mxu0 0.0
  %2747 = vmatprep.subr.mxu0 0.0
  %2748 = vmatpush1.msra.mxu0 0.0
  %2749 = vmatprep.subr.mxu0 0.0
  %2750 = vmatpush1.msra.mxu0 0.0
  %2751 = vmatprep.subr.mxu0 0.0
  %2752 = vmatpush1.msra.mxu0 0.0
  %2753 = vmatprep.subr.mxu0 0.0
  %2754 = vmatpush1.msra.mxu0 0.0
  %2755 = vmatprep.subr.mxu0 0.0
  %2756 = vmatpush1.msra.mxu0 0.0
  %2757 = vmatprep.subr.mxu0 0.0
  %2758 = vmatpush1.msra.mxu0 0.0
  %2759 = vmatprep.subr.mxu0 0.0
  %2760 = vmatpush1.msra.mxu0 0.0
  %2761 = vmatprep.mubr.f32.mxu0 0.0
  %2762 = vmatmul.mubr.f32.gmra.mrb[0].mxu0 %v2637
  %v2763 = vpop.f32.mrb[0].mxu0
  %v2764 = vadd.f32 0.0, %v2763
  %v2765 = vpop.f32.mrb[0].mxu0
  %2766 = vmatprep.mubr.f32.mxu0 0.0
  %2767 = vmatmul.mubr.f32.gmra.mrb[0].mxu0 %v2642
  %v2768 = vpop.f32.mrb[0].mxu0
  %v2769 = vadd.f32 0.0, %v2768
  %v2770 = vpop.f32.mrb[0].mxu0
  %2771 = vmatprep.mubr.f32.mxu0 0.0
  %2772 = vmatmul.mubr.f32.gmra.mrb[0].mxu0 %v2647
  %v2773 = vpop.f32.mrb[0].mxu0
  %v2774 = vadd.f32 0.0, %v2773
  %v2775 = vpop.f32.mrb[0].mxu0
  %2776 = vmatprep.mubr.f32.mxu0 0.0
  %2777 = vmatmul.mubr.f32.gmra.mrb[0].mxu0 %v2652
  %v2778 = vpop.f32.mrb[0].mxu0
  %v2779 = vadd.f32 0.0, %v2778
  %v2780 = vpop.f32.mrb[0].mxu0
  %2781 = vmatprep.mubr.f32.mxu0 0.0
  %2782 = vmatmul.mubr.f32.gmra.mrb[0].mxu0 %v2657
  %v2783 = vpop.f32.mrb[0].mxu0
  %v2784 = vadd.f32 0.0, %v2783
  %v2785 = vpop.f32.mrb[0].mxu0
  %2786 = vmatprep.mubr.f32.mxu0 0.0
  %2787 = vmatmul.mubr.f32.gmra.mrb[0].mxu0 %v2662
  %v2788 = vpop.f32.mrb[0].mxu0
  %v2789 = vadd.f32 0.0, %v2788
  %v2790 = vpop.f32.mrb[0].mxu0
  %2791 = vmatprep.mubr.f32.mxu0 0.0
  %2792 = vmatmul.mubr.f32.gmra.mrb[0].mxu0 %v2667
  %v2793 = vpop.f32.mrb[0].mxu0
  %v2794 = vadd.f32 0.0, %v2793
  %v2795 = vpop.f32.mrb[0].mxu0
  %2796 = vmatprep.mubr.f32.mxu0 0.0
  %2797 = vmatmul.mubr.f32.gmra.mrb[0].mxu0 %v2672
  %v2798 = vpop.f32.mrb[0].mxu0
  %v2799 = vadd.f32 0.0, %v2798
  %v2800 = vpop.f32.mrb[0].mxu0
  %2801 = vmatprep.mubr.f32.mxu0 0.0
  %2802 = vmatmul.mubr.f32.gmra.mrb[0].mxu0 %v2677
  %v2803 = vpop.f32.mrb[0].mxu0
  %v2804 = vadd.f32 0.0, %v2803
  %v2805 = vpop.f32.mrb[0].mxu0
  %2806 = vdwg.mxu0
  %v2807 = vadd.f32 %v2551, %v2764
  %v2808 = vadd.f32 %v2552, %v2769
  %v2809 = vadd.f32 %v2553, %v2774
  %v2810 = vadd.f32 %v2554, %v2779
  %v2811 = vadd.f32 %v2555, %v2784
  %v2812 = vadd.f32 %v2556, %v2789
  %v2813 = vadd.f32 %v2557, %v2794
  %v2814 = vadd.f32 %v2558, %v2799
  %v2815 = vadd.f32 %v2559, %v2804
  %s2816 = scalar_lea.vmem %s3, 720
  %v2817 = vld [vmem:[%s2816] sm:$0xff]
  %v2818 = vld [vmem:[%s2816 + $0x8] sm:$0xff]
  %v2819 = vld [vmem:[%s2816 + $0x10] sm:$0xff]
  %v2820 = vld [vmem:[%s2816 + $0x18] sm:$0xff]
  %v2821 = vld [vmem:[%s2816 + $0x20] sm:$0xff]
  %v2822 = vld [vmem:[%s2816 + $0x28] sm:$0xff]
  %v2823 = vld [vmem:[%s2816 + $0x30] sm:$0xff]
  %v2824 = vld [vmem:[%s2816 + $0x38] sm:$0xff]
  %v2825 = vld [vmem:[%s2816 + $0x40] sm:$0xff]
  %2826 = vmatprep.subr.mxu0 0.0
  %2827 = vmatpush1.msra.mxu0 %v260
  %2828 = vmatprep.subr.mxu0 0.0
  %2829 = vmatpush1.msra.mxu0 %v261
  %2830 = vmatprep.subr.mxu0 0.0
  %2831 = vmatpush1.msra.mxu0 %v262
  %2832 = vmatprep.subr.mxu0 0.0
  %2833 = vmatpush1.msra.mxu0 %v263
  %2834 = vmatprep.subr.mxu0 0.0
  %2835 = vmatpush1.msra.mxu0 %v264
  %2836 = vmatprep.subr.mxu0 0.0
  %2837 = vmatpush1.msra.mxu0 %v265
  %2838 = vmatprep.subr.mxu0 0.0
  %2839 = vmatpush1.msra.mxu0 %v266
  %2840 = vmatprep.subr.mxu0 0.0
  %2841 = vmatpush1.msra.mxu0 %v267
  %2842 = vmatprep.subr.mxu0 0.0
  %2843 = vmatpush1.msra.mxu0 %v268
  %2844 = vmatprep.subr.mxu0 0.0
  %2845 = vmatpush1.msra.mxu0 %v269
  %2846 = vmatprep.subr.mxu0 0.0
  %2847 = vmatpush1.msra.mxu0 %v270
  %2848 = vmatprep.subr.mxu0 0.0
  %2849 = vmatpush1.msra.mxu0 %v271
  %2850 = vmatprep.subr.mxu0 0.0
  %2851 = vmatpush1.msra.mxu0 %v272
  %2852 = vmatprep.subr.mxu0 0.0
  %2853 = vmatpush1.msra.mxu0 %v273
  %2854 = vmatprep.subr.mxu0 0.0
  %2855 = vmatpush1.msra.mxu0 %v274
  %2856 = vmatprep.subr.mxu0 0.0
  %2857 = vmatpush1.msra.mxu0 %v275
  %2858 = vmatprep.subr.mxu0 0.0
  %2859 = vmatpush1.msra.mxu0 0.0
  %2860 = vmatprep.subr.mxu0 0.0
  %2861 = vmatpush1.msra.mxu0 0.0
  %2862 = vmatprep.subr.mxu0 0.0
  %2863 = vmatpush1.msra.mxu0 0.0
  %2864 = vmatprep.subr.mxu0 0.0
  %2865 = vmatpush1.msra.mxu0 0.0
  %2866 = vmatprep.subr.mxu0 0.0
  %2867 = vmatpush1.msra.mxu0 0.0
  %2868 = vmatprep.subr.mxu0 0.0
  %2869 = vmatpush1.msra.mxu0 0.0
  %2870 = vmatprep.subr.mxu0 0.0
  %2871 = vmatpush1.msra.mxu0 0.0
  %2872 = vmatprep.subr.mxu0 0.0
  %2873 = vmatpush1.msra.mxu0 0.0
  %2874 = vmatprep.subr.mxu0 0.0
  %2875 = vmatpush1.msra.mxu0 0.0
  %2876 = vmatprep.subr.mxu0 0.0
  %2877 = vmatpush1.msra.mxu0 0.0
  %2878 = vmatprep.subr.mxu0 0.0
  %2879 = vmatpush1.msra.mxu0 0.0
  %2880 = vmatprep.subr.mxu0 0.0
  %2881 = vmatpush1.msra.mxu0 0.0
  %2882 = vmatprep.subr.mxu0 0.0
  %2883 = vmatpush1.msra.mxu0 0.0
  %2884 = vmatprep.subr.mxu0 0.0
  %2885 = vmatpush1.msra.mxu0 0.0
  %2886 = vmatprep.subr.mxu0 0.0
  %2887 = vmatpush1.msra.mxu0 0.0
  %2888 = vmatprep.subr.mxu0 0.0
  %2889 = vmatpush1.msra.mxu0 0.0
  %2890 = vmatprep.mubr.f32.mxu0 0.0
  %2891 = vmatmul.mubr.f32.gmra.mrb[0].mxu0 %v2817
  %v2892 = vpop.f32.mrb[0].mxu0
  %v2893 = vadd.f32 0.0, %v2892
  %v2894 = vpop.f32.mrb[0].mxu0
  %2895 = vmatprep.mubr.f32.mxu0 0.0
  %2896 = vmatmul.mubr.f32.gmra.mrb[0].mxu0 %v2818
  %v2897 = vpop.f32.mrb[0].mxu0
  %v2898 = vadd.f32 0.0, %v2897
  %v2899 = vpop.f32.mrb[0].mxu0
  %2900 = vmatprep.mubr.f32.mxu0 0.0
  %2901 = vmatmul.mubr.f32.gmra.mrb[0].mxu0 %v2819
  %v2902 = vpop.f32.mrb[0].mxu0
  %v2903 = vadd.f32 0.0, %v2902
  %v2904 = vpop.f32.mrb[0].mxu0
  %2905 = vmatprep.mubr.f32.mxu0 0.0
  %2906 = vmatmul.mubr.f32.gmra.mrb[0].mxu0 %v2820
  %v2907 = vpop.f32.mrb[0].mxu0
  %v2908 = vadd.f32 0.0, %v2907
  %v2909 = vpop.f32.mrb[0].mxu0
  %2910 = vmatprep.mubr.f32.mxu0 0.0
  %2911 = vmatmul.mubr.f32.gmra.mrb[0].mxu0 %v2821
  %v2912 = vpop.f32.mrb[0].mxu0
  %v2913 = vadd.f32 0.0, %v2912
  %v2914 = vpop.f32.mrb[0].mxu0
  %2915 = vmatprep.mubr.f32.mxu0 0.0
  %2916 = vmatmul.mubr.f32.gmra.mrb[0].mxu0 %v2822
  %v2917 = vpop.f32.mrb[0].mxu0
  %v2918 = vadd.f32 0.0, %v2917
  %v2919 = vpop.f32.mrb[0].mxu0
  %2920 = vmatprep.mubr.f32.mxu0 0.0
  %2921 = vmatmul.mubr.f32.gmra.mrb[0].mxu0 %v2823
  %v2922 = vpop.f32.mrb[0].mxu0
  %v2923 = vadd.f32 0.0, %v2922
  %v2924 = vpop.f32.mrb[0].mxu0
  %2925 = vmatprep.mubr.f32.mxu0 0.0
  %2926 = vmatmul.mubr.f32.gmra.mrb[0].mxu0 %v2824
  %v2927 = vpop.f32.mrb[0].mxu0
  %v2928 = vadd.f32 0.0, %v2927
  %v2929 = vpop.f32.mrb[0].mxu0
  %2930 = vmatprep.mubr.f32.mxu0 0.0
  %2931 = vmatmul.mubr.f32.gmra.mrb[0].mxu0 %v2825
  %v2932 = vpop.f32.mrb[0].mxu0
  %v2933 = vadd.f32 0.0, %v2932
  %v2934 = vpop.f32.mrb[0].mxu0
  %2935 = vdwg.mxu0
  %s2936 = scalar_lea.vmem %s4, 1280
  %v2937 = vld [vmem:[%s2936] sm:$0xff]
  %v2938 = vld [vmem:[%s2936 + $0x8] sm:$0xff]
  %v2939 = vld [vmem:[%s2936 + $0x10] sm:$0xff]
  %v2940 = vld [vmem:[%s2936 + $0x18] sm:$0xff]
  %v2941 = vld [vmem:[%s2936 + $0x20] sm:$0xff]
  %v2942 = vld [vmem:[%s2936 + $0x28] sm:$0xff]
  %v2943 = vld [vmem:[%s2936 + $0x30] sm:$0xff]
  %v2944 = vld [vmem:[%s2936 + $0x38] sm:$0xff]
  %v2945 = vld [vmem:[%s2936 + $0x40] sm:$0xff]
  %v2946 = vld [vmem:[%s2936 + $0x48] sm:$0xff]
  %v2947 = vld [vmem:[%s2936 + $0x50] sm:$0xff]
  %v2948 = vld [vmem:[%s2936 + $0x58] sm:$0xff]
  %v2949 = vld [vmem:[%s2936 + $0x60] sm:$0xff]
  %v2950 = vld [vmem:[%s2936 + $0x68] sm:$0xff]
  %v2951 = vld [vmem:[%s2936 + $0x70] sm:$0xff]
  %v2952 = vld [vmem:[%s2936 + $0x78] sm:$0xff]
  %2953 = vmatprep.subr.mxu0 0.0
  %2954 = vmatpush1.msra.mxu0 %v2937
  %2955 = vmatprep.subr.mxu0 0.0
  %2956 = vmatpush1.msra.mxu0 %v2938
  %2957 = vmatprep.subr.mxu0 0.0
  %2958 = vmatpush1.msra.mxu0 %v2939
  %2959 = vmatprep.subr.mxu0 0.0
  %2960 = vmatpush1.msra.mxu0 %v2940
  %2961 = vmatprep.subr.mxu0 0.0
  %2962 = vmatpush1.msra.mxu0 %v2941
  %2963 = vmatprep.subr.mxu0 0.0
  %2964 = vmatpush1.msra.mxu0 %v2942
  %2965 = vmatprep.subr.mxu0 0.0
  %2966 = vmatpush1.msra.mxu0 %v2943
  %2967 = vmatprep.subr.mxu0 0.0
  %2968 = vmatpush1.msra.mxu0 %v2944
  %2969 = vmatprep.subr.mxu0 0.0
  %2970 = vmatpush1.msra.mxu0 %v2945
  %2971 = vmatprep.subr.mxu0 0.0
  %2972 = vmatpush1.msra.mxu0 %v2946
  %2973 = vmatprep.subr.mxu0 0.0
  %2974 = vmatpush1.msra.mxu0 %v2947
  %2975 = vmatprep.subr.mxu0 0.0
  %2976 = vmatpush1.msra.mxu0 %v2948
  %2977 = vmatprep.subr.mxu0 0.0
  %2978 = vmatpush1.msra.mxu0 %v2949
  %2979 = vmatprep.subr.mxu0 0.0
  %2980 = vmatpush1.msra.mxu0 %v2950
  %2981 = vmatprep.subr.mxu0 0.0
  %2982 = vmatpush1.msra.mxu0 %v2951
  %2983 = vmatprep.subr.mxu0 0.0
  %2984 = vmatpush1.msra.mxu0 %v2952
  %2985 = vmatprep.subr.mxu0 0.0
  %2986 = vmatpush1.msra.mxu0 0.0
  %2987 = vmatprep.subr.mxu0 0.0
  %2988 = vmatpush1.msra.mxu0 0.0
  %2989 = vmatprep.subr.mxu0 0.0
  %2990 = vmatpush1.msra.mxu0 0.0
  %2991 = vmatprep.subr.mxu0 0.0
  %2992 = vmatpush1.msra.mxu0 0.0
  %2993 = vmatprep.subr.mxu0 0.0
  %2994 = vmatpush1.msra.mxu0 0.0
  %2995 = vmatprep.subr.mxu0 0.0
  %2996 = vmatpush1.msra.mxu0 0.0
  %2997 = vmatprep.subr.mxu0 0.0
  %2998 = vmatpush1.msra.mxu0 0.0
  %2999 = vmatprep.subr.mxu0 0.0
  %3000 = vmatpush1.msra.mxu0 0.0
  %3001 = vmatprep.subr.mxu0 0.0
  %3002 = vmatpush1.msra.mxu0 0.0
  %3003 = vmatprep.subr.mxu0 0.0
  %3004 = vmatpush1.msra.mxu0 0.0
  %3005 = vmatprep.subr.mxu0 0.0
  %3006 = vmatpush1.msra.mxu0 0.0
  %3007 = vmatprep.subr.mxu0 0.0
  %3008 = vmatpush1.msra.mxu0 0.0
  %3009 = vmatprep.subr.mxu0 0.0
  %3010 = vmatpush1.msra.mxu0 0.0
  %3011 = vmatprep.subr.mxu0 0.0
  %3012 = vmatpush1.msra.mxu0 0.0
  %3013 = vmatprep.subr.mxu0 0.0
  %3014 = vmatpush1.msra.mxu0 0.0
  %3015 = vmatprep.subr.mxu0 0.0
  %3016 = vmatpush1.msra.mxu0 0.0
  %3017 = vmatprep.mubr.f32.mxu0 0.0
  %3018 = vmatmul.mubr.f32.gmra.mrb[0].mxu0 %v2893
  %v3019 = vpop.f32.mrb[0].mxu0
  %v3020 = vadd.f32 0.0, %v3019
  %v3021 = vpop.f32.mrb[0].mxu0
  %3022 = vmatprep.mubr.f32.mxu0 0.0
  %3023 = vmatmul.mubr.f32.gmra.mrb[0].mxu0 %v2898
  %v3024 = vpop.f32.mrb[0].mxu0
  %v3025 = vadd.f32 0.0, %v3024
  %v3026 = vpop.f32.mrb[0].mxu0
  %3027 = vmatprep.mubr.f32.mxu0 0.0
  %3028 = vmatmul.mubr.f32.gmra.mrb[0].mxu0 %v2903
  %v3029 = vpop.f32.mrb[0].mxu0
  %v3030 = vadd.f32 0.0, %v3029
  %v3031 = vpop.f32.mrb[0].mxu0
  %3032 = vmatprep.mubr.f32.mxu0 0.0
  %3033 = vmatmul.mubr.f32.gmra.mrb[0].mxu0 %v2908
  %v3034 = vpop.f32.mrb[0].mxu0
  %v3035 = vadd.f32 0.0, %v3034
  %v3036 = vpop.f32.mrb[0].mxu0
  %3037 = vmatprep.mubr.f32.mxu0 0.0
  %3038 = vmatmul.mubr.f32.gmra.mrb[0].mxu0 %v2913
  %v3039 = vpop.f32.mrb[0].mxu0
  %v3040 = vadd.f32 0.0, %v3039
  %v3041 = vpop.f32.mrb[0].mxu0
  %3042 = vmatprep.mubr.f32.mxu0 0.0
  %3043 = vmatmul.mubr.f32.gmra.mrb[0].mxu0 %v2918
  %v3044 = vpop.f32.mrb[0].mxu0
  %v3045 = vadd.f32 0.0, %v3044
  %v3046 = vpop.f32.mrb[0].mxu0
  %3047 = vmatprep.mubr.f32.mxu0 0.0
  %3048 = vmatmul.mubr.f32.gmra.mrb[0].mxu0 %v2923
  %v3049 = vpop.f32.mrb[0].mxu0
  %v3050 = vadd.f32 0.0, %v3049
  %v3051 = vpop.f32.mrb[0].mxu0
  %3052 = vmatprep.mubr.f32.mxu0 0.0
  %3053 = vmatmul.mubr.f32.gmra.mrb[0].mxu0 %v2928
  %v3054 = vpop.f32.mrb[0].mxu0
  %v3055 = vadd.f32 0.0, %v3054
  %v3056 = vpop.f32.mrb[0].mxu0
  %3057 = vmatprep.mubr.f32.mxu0 0.0
  %3058 = vmatmul.mubr.f32.gmra.mrb[0].mxu0 %v2933
  %v3059 = vpop.f32.mrb[0].mxu0
  %v3060 = vadd.f32 0.0, %v3059
  %v3061 = vpop.f32.mrb[0].mxu0
  %3062 = vdwg.mxu0
  %v3063 = vadd.f32 %v2807, %v3020
  %v3064 = vadd.f32 %v2808, %v3025
  %v3065 = vadd.f32 %v2809, %v3030
  %v3066 = vadd.f32 %v2810, %v3035
  %v3067 = vadd.f32 %v2811, %v3040
  %v3068 = vadd.f32 %v2812, %v3045
  %v3069 = vadd.f32 %v2813, %v3050
  %v3070 = vadd.f32 %v2814, %v3055
  %v3071 = vadd.f32 %v2815, %v3060
  %s3072 = scalar_lea.vmem %s3, 792
  %v3073 = vld [vmem:[%s3072] sm:$0xff]
  %v3074 = vld [vmem:[%s3072 + $0x8] sm:$0xff]
  %v3075 = vld [vmem:[%s3072 + $0x10] sm:$0xff]
  %v3076 = vld [vmem:[%s3072 + $0x18] sm:$0xff]
  %v3077 = vld [vmem:[%s3072 + $0x20] sm:$0xff]
  %v3078 = vld [vmem:[%s3072 + $0x28] sm:$0xff]
  %v3079 = vld [vmem:[%s3072 + $0x30] sm:$0xff]
  %v3080 = vld [vmem:[%s3072 + $0x38] sm:$0xff]
  %v3081 = vld [vmem:[%s3072 + $0x40] sm:$0xff]
  %3082 = vmatprep.subr.mxu0 0.0
  %3083 = vmatpush1.msra.mxu0 %v260
  %3084 = vmatprep.subr.mxu0 0.0
  %3085 = vmatpush1.msra.mxu0 %v261
  %3086 = vmatprep.subr.mxu0 0.0
  %3087 = vmatpush1.msra.mxu0 %v262
  %3088 = vmatprep.subr.mxu0 0.0
  %3089 = vmatpush1.msra.mxu0 %v263
  %3090 = vmatprep.subr.mxu0 0.0
  %3091 = vmatpush1.msra.mxu0 %v264
  %3092 = vmatprep.subr.mxu0 0.0
  %3093 = vmatpush1.msra.mxu0 %v265
  %3094 = vmatprep.subr.mxu0 0.0
  %3095 = vmatpush1.msra.mxu0 %v266
  %3096 = vmatprep.subr.mxu0 0.0
  %3097 = vmatpush1.msra.mxu0 %v267
  %3098 = vmatprep.subr.mxu0 0.0
  %3099 = vmatpush1.msra.mxu0 %v268
  %3100 = vmatprep.subr.mxu0 0.0
  %3101 = vmatpush1.msra.mxu0 %v269
  %3102 = vmatprep.subr.mxu0 0.0
  %3103 = vmatpush1.msra.mxu0 %v270
  %3104 = vmatprep.subr.mxu0 0.0
  %3105 = vmatpush1.msra.mxu0 %v271
  %3106 = vmatprep.subr.mxu0 0.0
  %3107 = vmatpush1.msra.mxu0 %v272
  %3108 = vmatprep.subr.mxu0 0.0
  %3109 = vmatpush1.msra.mxu0 %v273
  %3110 = vmatprep.subr.mxu0 0.0
  %3111 = vmatpush1.msra.mxu0 %v274
  %3112 = vmatprep.subr.mxu0 0.0
  %3113 = vmatpush1.msra.mxu0 %v275
  %3114 = vmatprep.subr.mxu0 0.0
  %3115 = vmatpush1.msra.mxu0 0.0
  %3116 = vmatprep.subr.mxu0 0.0
  %3117 = vmatpush1.msra.mxu0 0.0
  %3118 = vmatprep.subr.mxu0 0.0
  %3119 = vmatpush1.msra.mxu0 0.0
  %3120 = vmatprep.subr.mxu0 0.0
  %3121 = vmatpush1.msra.mxu0 0.0
  %3122 = vmatprep.subr.mxu0 0.0
  %3123 = vmatpush1.msra.mxu0 0.0
  %3124 = vmatprep.subr.mxu0 0.0
  %3125 = vmatpush1.msra.mxu0 0.0
  %3126 = vmatprep.subr.mxu0 0.0
  %3127 = vmatpush1.msra.mxu0 0.0
  %3128 = vmatprep.subr.mxu0 0.0
  %3129 = vmatpush1.msra.mxu0 0.0
  %3130 = vmatprep.subr.mxu0 0.0
  %3131 = vmatpush1.msra.mxu0 0.0
  %3132 = vmatprep.subr.mxu0 0.0
  %3133 = vmatpush1.msra.mxu0 0.0
  %3134 = vmatprep.subr.mxu0 0.0
  %3135 = vmatpush1.msra.mxu0 0.0
  %3136 = vmatprep.subr.mxu0 0.0
  %3137 = vmatpush1.msra.mxu0 0.0
  %3138 = vmatprep.subr.mxu0 0.0
  %3139 = vmatpush1.msra.mxu0 0.0
  %3140 = vmatprep.subr.mxu0 0.0
  %3141 = vmatpush1.msra.mxu0 0.0
  %3142 = vmatprep.subr.mxu0 0.0
  %3143 = vmatpush1.msra.mxu0 0.0
  %3144 = vmatprep.subr.mxu0 0.0
  %3145 = vmatpush1.msra.mxu0 0.0
  %3146 = vmatprep.mubr.f32.mxu0 0.0
  %3147 = vmatmul.mubr.f32.gmra.mrb[0].mxu0 %v3073
  %v3148 = vpop.f32.mrb[0].mxu0
  %v3149 = vadd.f32 0.0, %v3148
  %v3150 = vpop.f32.mrb[0].mxu0
  %3151 = vmatprep.mubr.f32.mxu0 0.0
  %3152 = vmatmul.mubr.f32.gmra.mrb[0].mxu0 %v3074
  %v3153 = vpop.f32.mrb[0].mxu0
  %v3154 = vadd.f32 0.0, %v3153
  %v3155 = vpop.f32.mrb[0].mxu0
  %3156 = vmatprep.mubr.f32.mxu0 0.0
  %3157 = vmatmul.mubr.f32.gmra.mrb[0].mxu0 %v3075
  %v3158 = vpop.f32.mrb[0].mxu0
  %v3159 = vadd.f32 0.0, %v3158
  %v3160 = vpop.f32.mrb[0].mxu0
  %3161 = vmatprep.mubr.f32.mxu0 0.0
  %3162 = vmatmul.mubr.f32.gmra.mrb[0].mxu0 %v3076
  %v3163 = vpop.f32.mrb[0].mxu0
  %v3164 = vadd.f32 0.0, %v3163
  %v3165 = vpop.f32.mrb[0].mxu0
  %3166 = vmatprep.mubr.f32.mxu0 0.0
  %3167 = vmatmul.mubr.f32.gmra.mrb[0].mxu0 %v3077
  %v3168 = vpop.f32.mrb[0].mxu0
  %v3169 = vadd.f32 0.0, %v3168
  %v3170 = vpop.f32.mrb[0].mxu0
  %3171 = vmatprep.mubr.f32.mxu0 0.0
  %3172 = vmatmul.mubr.f32.gmra.mrb[0].mxu0 %v3078
  %v3173 = vpop.f32.mrb[0].mxu0
  %v3174 = vadd.f32 0.0, %v3173
  %v3175 = vpop.f32.mrb[0].mxu0
  %3176 = vmatprep.mubr.f32.mxu0 0.0
  %3177 = vmatmul.mubr.f32.gmra.mrb[0].mxu0 %v3079
  %v3178 = vpop.f32.mrb[0].mxu0
  %v3179 = vadd.f32 0.0, %v3178
  %v3180 = vpop.f32.mrb[0].mxu0
  %3181 = vmatprep.mubr.f32.mxu0 0.0
  %3182 = vmatmul.mubr.f32.gmra.mrb[0].mxu0 %v3080
  %v3183 = vpop.f32.mrb[0].mxu0
  %v3184 = vadd.f32 0.0, %v3183
  %v3185 = vpop.f32.mrb[0].mxu0
  %3186 = vmatprep.mubr.f32.mxu0 0.0
  %3187 = vmatmul.mubr.f32.gmra.mrb[0].mxu0 %v3081
  %v3188 = vpop.f32.mrb[0].mxu0
  %v3189 = vadd.f32 0.0, %v3188
  %v3190 = vpop.f32.mrb[0].mxu0
  %3191 = vdwg.mxu0
  %s3192 = scalar_lea.vmem %s4, 1408
  %v3193 = vld [vmem:[%s3192] sm:$0xff]
  %v3194 = vld [vmem:[%s3192 + $0x8] sm:$0xff]
  %v3195 = vld [vmem:[%s3192 + $0x10] sm:$0xff]
  %v3196 = vld [vmem:[%s3192 + $0x18] sm:$0xff]
  %v3197 = vld [vmem:[%s3192 + $0x20] sm:$0xff]
  %v3198 = vld [vmem:[%s3192 + $0x28] sm:$0xff]
  %v3199 = vld [vmem:[%s3192 + $0x30] sm:$0xff]
  %v3200 = vld [vmem:[%s3192 + $0x38] sm:$0xff]
  %v3201 = vld [vmem:[%s3192 + $0x40] sm:$0xff]
  %v3202 = vld [vmem:[%s3192 + $0x48] sm:$0xff]
  %v3203 = vld [vmem:[%s3192 + $0x50] sm:$0xff]
  %v3204 = vld [vmem:[%s3192 + $0x58] sm:$0xff]
  %v3205 = vld [vmem:[%s3192 + $0x60] sm:$0xff]
  %v3206 = vld [vmem:[%s3192 + $0x68] sm:$0xff]
  %v3207 = vld [vmem:[%s3192 + $0x70] sm:$0xff]
  %v3208 = vld [vmem:[%s3192 + $0x78] sm:$0xff]
  %3209 = vmatprep.subr.mxu0 0.0
  %3210 = vmatpush1.msra.mxu0 %v3193
  %3211 = vmatprep.subr.mxu0 0.0
  %3212 = vmatpush1.msra.mxu0 %v3194
  %3213 = vmatprep.subr.mxu0 0.0
  %3214 = vmatpush1.msra.mxu0 %v3195
  %3215 = vmatprep.subr.mxu0 0.0
  %3216 = vmatpush1.msra.mxu0 %v3196
  %3217 = vmatprep.subr.mxu0 0.0
  %3218 = vmatpush1.msra.mxu0 %v3197
  %3219 = vmatprep.subr.mxu0 0.0
  %3220 = vmatpush1.msra.mxu0 %v3198
  %3221 = vmatprep.subr.mxu0 0.0
  %3222 = vmatpush1.msra.mxu0 %v3199
  %3223 = vmatprep.subr.mxu0 0.0
  %3224 = vmatpush1.msra.mxu0 %v3200
  %3225 = vmatprep.subr.mxu0 0.0
  %3226 = vmatpush1.msra.mxu0 %v3201
  %3227 = vmatprep.subr.mxu0 0.0
  %3228 = vmatpush1.msra.mxu0 %v3202
  %3229 = vmatprep.subr.mxu0 0.0
  %3230 = vmatpush1.msra.mxu0 %v3203
  %3231 = vmatprep.subr.mxu0 0.0
  %3232 = vmatpush1.msra.mxu0 %v3204
  %3233 = vmatprep.subr.mxu0 0.0
  %3234 = vmatpush1.msra.mxu0 %v3205
  %3235 = vmatprep.subr.mxu0 0.0
  %3236 = vmatpush1.msra.mxu0 %v3206
  %3237 = vmatprep.subr.mxu0 0.0
  %3238 = vmatpush1.msra.mxu0 %v3207
  %3239 = vmatprep.subr.mxu0 0.0
  %3240 = vmatpush1.msra.mxu0 %v3208
  %3241 = vmatprep.subr.mxu0 0.0
  %3242 = vmatpush1.msra.mxu0 0.0
  %3243 = vmatprep.subr.mxu0 0.0
  %3244 = vmatpush1.msra.mxu0 0.0
  %3245 = vmatprep.subr.mxu0 0.0
  %3246 = vmatpush1.msra.mxu0 0.0
  %3247 = vmatprep.subr.mxu0 0.0
  %3248 = vmatpush1.msra.mxu0 0.0
  %3249 = vmatprep.subr.mxu0 0.0
  %3250 = vmatpush1.msra.mxu0 0.0
  %3251 = vmatprep.subr.mxu0 0.0
  %3252 = vmatpush1.msra.mxu0 0.0
  %3253 = vmatprep.subr.mxu0 0.0
  %3254 = vmatpush1.msra.mxu0 0.0
  %3255 = vmatprep.subr.mxu0 0.0
  %3256 = vmatpush1.msra.mxu0 0.0
  %3257 = vmatprep.subr.mxu0 0.0
  %3258 = vmatpush1.msra.mxu0 0.0
  %3259 = vmatprep.subr.mxu0 0.0
  %3260 = vmatpush1.msra.mxu0 0.0
  %3261 = vmatprep.subr.mxu0 0.0
  %3262 = vmatpush1.msra.mxu0 0.0
  %3263 = vmatprep.subr.mxu0 0.0
  %3264 = vmatpush1.msra.mxu0 0.0
  %3265 = vmatprep.subr.mxu0 0.0
  %3266 = vmatpush1.msra.mxu0 0.0
  %3267 = vmatprep.subr.mxu0 0.0
  %3268 = vmatpush1.msra.mxu0 0.0
  %3269 = vmatprep.subr.mxu0 0.0
  %3270 = vmatpush1.msra.mxu0 0.0
  %3271 = vmatprep.subr.mxu0 0.0
  %3272 = vmatpush1.msra.mxu0 0.0
  %3273 = vmatprep.mubr.f32.mxu0 0.0
  %3274 = vmatmul.mubr.f32.gmra.mrb[0].mxu0 %v3149
  %v3275 = vpop.f32.mrb[0].mxu0
  %v3276 = vadd.f32 0.0, %v3275
  %v3277 = vpop.f32.mrb[0].mxu0
  %3278 = vmatprep.mubr.f32.mxu0 0.0
  %3279 = vmatmul.mubr.f32.gmra.mrb[0].mxu0 %v3154
  %v3280 = vpop.f32.mrb[0].mxu0
  %v3281 = vadd.f32 0.0, %v3280
  %v3282 = vpop.f32.mrb[0].mxu0
  %3283 = vmatprep.mubr.f32.mxu0 0.0
  %3284 = vmatmul.mubr.f32.gmra.mrb[0].mxu0 %v3159
  %v3285 = vpop.f32.mrb[0].mxu0
  %v3286 = vadd.f32 0.0, %v3285
  %v3287 = vpop.f32.mrb[0].mxu0
  %3288 = vmatprep.mubr.f32.mxu0 0.0
  %3289 = vmatmul.mubr.f32.gmra.mrb[0].mxu0 %v3164
  %v3290 = vpop.f32.mrb[0].mxu0
  %v3291 = vadd.f32 0.0, %v3290
  %v3292 = vpop.f32.mrb[0].mxu0
  %3293 = vmatprep.mubr.f32.mxu0 0.0
  %3294 = vmatmul.mubr.f32.gmra.mrb[0].mxu0 %v3169
  %v3295 = vpop.f32.mrb[0].mxu0
  %v3296 = vadd.f32 0.0, %v3295
  %v3297 = vpop.f32.mrb[0].mxu0
  %3298 = vmatprep.mubr.f32.mxu0 0.0
  %3299 = vmatmul.mubr.f32.gmra.mrb[0].mxu0 %v3174
  %v3300 = vpop.f32.mrb[0].mxu0
  %v3301 = vadd.f32 0.0, %v3300
  %v3302 = vpop.f32.mrb[0].mxu0
  %3303 = vmatprep.mubr.f32.mxu0 0.0
  %3304 = vmatmul.mubr.f32.gmra.mrb[0].mxu0 %v3179
  %v3305 = vpop.f32.mrb[0].mxu0
  %v3306 = vadd.f32 0.0, %v3305
  %v3307 = vpop.f32.mrb[0].mxu0
  %3308 = vmatprep.mubr.f32.mxu0 0.0
  %3309 = vmatmul.mubr.f32.gmra.mrb[0].mxu0 %v3184
  %v3310 = vpop.f32.mrb[0].mxu0
  %v3311 = vadd.f32 0.0, %v3310
  %v3312 = vpop.f32.mrb[0].mxu0
  %3313 = vmatprep.mubr.f32.mxu0 0.0
  %3314 = vmatmul.mubr.f32.gmra.mrb[0].mxu0 %v3189
  %v3315 = vpop.f32.mrb[0].mxu0
  %v3316 = vadd.f32 0.0, %v3315
  %v3317 = vpop.f32.mrb[0].mxu0
  %3318 = vdwg.mxu0
  %v3319 = vadd.f32 %v3063, %v3276
  %v3320 = vadd.f32 %v3064, %v3281
  %v3321 = vadd.f32 %v3065, %v3286
  %v3322 = vadd.f32 %v3066, %v3291
  %v3323 = vadd.f32 %v3067, %v3296
  %v3324 = vadd.f32 %v3068, %v3301
  %v3325 = vadd.f32 %v3069, %v3306
  %v3326 = vadd.f32 %v3070, %v3311
  %v3327 = vadd.f32 %v3071, %v3316
  %s3328 = scalar_lea.vmem %s3, 864
  %v3329 = vld [vmem:[%s3328] sm:$0xff]
  %v3330 = vld [vmem:[%s3328 + $0x8] sm:$0xff]
  %v3331 = vld [vmem:[%s3328 + $0x10] sm:$0xff]
  %v3332 = vld [vmem:[%s3328 + $0x18] sm:$0xff]
  %v3333 = vld [vmem:[%s3328 + $0x20] sm:$0xff]
  %v3334 = vld [vmem:[%s3328 + $0x28] sm:$0xff]
  %v3335 = vld [vmem:[%s3328 + $0x30] sm:$0xff]
  %v3336 = vld [vmem:[%s3328 + $0x38] sm:$0xff]
  %v3337 = vld [vmem:[%s3328 + $0x40] sm:$0xff]
  %3338 = vmatprep.subr.mxu0 0.0
  %3339 = vmatpush1.msra.mxu0 %v260
  %3340 = vmatprep.subr.mxu0 0.0
  %3341 = vmatpush1.msra.mxu0 %v261
  %3342 = vmatprep.subr.mxu0 0.0
  %3343 = vmatpush1.msra.mxu0 %v262
  %3344 = vmatprep.subr.mxu0 0.0
  %3345 = vmatpush1.msra.mxu0 %v263
  %3346 = vmatprep.subr.mxu0 0.0
  %3347 = vmatpush1.msra.mxu0 %v264
  %3348 = vmatprep.subr.mxu0 0.0
  %3349 = vmatpush1.msra.mxu0 %v265
  %3350 = vmatprep.subr.mxu0 0.0
  %3351 = vmatpush1.msra.mxu0 %v266
  %3352 = vmatprep.subr.mxu0 0.0
  %3353 = vmatpush1.msra.mxu0 %v267
  %3354 = vmatprep.subr.mxu0 0.0
  %3355 = vmatpush1.msra.mxu0 %v268
  %3356 = vmatprep.subr.mxu0 0.0
  %3357 = vmatpush1.msra.mxu0 %v269
  %3358 = vmatprep.subr.mxu0 0.0
  %3359 = vmatpush1.msra.mxu0 %v270
  %3360 = vmatprep.subr.mxu0 0.0
  %3361 = vmatpush1.msra.mxu0 %v271
  %3362 = vmatprep.subr.mxu0 0.0
  %3363 = vmatpush1.msra.mxu0 %v272
  %3364 = vmatprep.subr.mxu0 0.0
  %3365 = vmatpush1.msra.mxu0 %v273
  %3366 = vmatprep.subr.mxu0 0.0
  %3367 = vmatpush1.msra.mxu0 %v274
  %3368 = vmatprep.subr.mxu0 0.0
  %3369 = vmatpush1.msra.mxu0 %v275
  %3370 = vmatprep.subr.mxu0 0.0
  %3371 = vmatpush1.msra.mxu0 0.0
  %3372 = vmatprep.subr.mxu0 0.0
  %3373 = vmatpush1.msra.mxu0 0.0
  %3374 = vmatprep.subr.mxu0 0.0
  %3375 = vmatpush1.msra.mxu0 0.0
  %3376 = vmatprep.subr.mxu0 0.0
  %3377 = vmatpush1.msra.mxu0 0.0
  %3378 = vmatprep.subr.mxu0 0.0
  %3379 = vmatpush1.msra.mxu0 0.0
  %3380 = vmatprep.subr.mxu0 0.0
  %3381 = vmatpush1.msra.mxu0 0.0
  %3382 = vmatprep.subr.mxu0 0.0
  %3383 = vmatpush1.msra.mxu0 0.0
  %3384 = vmatprep.subr.mxu0 0.0
  %3385 = vmatpush1.msra.mxu0 0.0
  %3386 = vmatprep.subr.mxu0 0.0
  %3387 = vmatpush1.msra.mxu0 0.0
  %3388 = vmatprep.subr.mxu0 0.0
  %3389 = vmatpush1.msra.mxu0 0.0
  %3390 = vmatprep.subr.mxu0 0.0
  %3391 = vmatpush1.msra.mxu0 0.0
  %3392 = vmatprep.subr.mxu0 0.0
  %3393 = vmatpush1.msra.mxu0 0.0
  %3394 = vmatprep.subr.mxu0 0.0
  %3395 = vmatpush1.msra.mxu0 0.0
  %3396 = vmatprep.subr.mxu0 0.0
  %3397 = vmatpush1.msra.mxu0 0.0
  %3398 = vmatprep.subr.mxu0 0.0
  %3399 = vmatpush1.msra.mxu0 0.0
  %3400 = vmatprep.subr.mxu0 0.0
  %3401 = vmatpush1.msra.mxu0 0.0
  %3402 = vmatprep.mubr.f32.mxu0 0.0
  %3403 = vmatmul.mubr.f32.gmra.mrb[0].mxu0 %v3329
  %v3404 = vpop.f32.mrb[0].mxu0
  %v3405 = vadd.f32 0.0, %v3404
  %v3406 = vpop.f32.mrb[0].mxu0
  %3407 = vmatprep.mubr.f32.mxu0 0.0
  %3408 = vmatmul.mubr.f32.gmra.mrb[0].mxu0 %v3330
  %v3409 = vpop.f32.mrb[0].mxu0
  %v3410 = vadd.f32 0.0, %v3409
  %v3411 = vpop.f32.mrb[0].mxu0
  %3412 = vmatprep.mubr.f32.mxu0 0.0
  %3413 = vmatmul.mubr.f32.gmra.mrb[0].mxu0 %v3331
  %v3414 = vpop.f32.mrb[0].mxu0
  %v3415 = vadd.f32 0.0, %v3414
  %v3416 = vpop.f32.mrb[0].mxu0
  %3417 = vmatprep.mubr.f32.mxu0 0.0
  %3418 = vmatmul.mubr.f32.gmra.mrb[0].mxu0 %v3332
  %v3419 = vpop.f32.mrb[0].mxu0
  %v3420 = vadd.f32 0.0, %v3419
  %v3421 = vpop.f32.mrb[0].mxu0
  %3422 = vmatprep.mubr.f32.mxu0 0.0
  %3423 = vmatmul.mubr.f32.gmra.mrb[0].mxu0 %v3333
  %v3424 = vpop.f32.mrb[0].mxu0
  %v3425 = vadd.f32 0.0, %v3424
  %v3426 = vpop.f32.mrb[0].mxu0
  %3427 = vmatprep.mubr.f32.mxu0 0.0
  %3428 = vmatmul.mubr.f32.gmra.mrb[0].mxu0 %v3334
  %v3429 = vpop.f32.mrb[0].mxu0
  %v3430 = vadd.f32 0.0, %v3429
  %v3431 = vpop.f32.mrb[0].mxu0
  %3432 = vmatprep.mubr.f32.mxu0 0.0
  %3433 = vmatmul.mubr.f32.gmra.mrb[0].mxu0 %v3335
  %v3434 = vpop.f32.mrb[0].mxu0
  %v3435 = vadd.f32 0.0, %v3434
  %v3436 = vpop.f32.mrb[0].mxu0
  %3437 = vmatprep.mubr.f32.mxu0 0.0
  %3438 = vmatmul.mubr.f32.gmra.mrb[0].mxu0 %v3336
  %v3439 = vpop.f32.mrb[0].mxu0
  %v3440 = vadd.f32 0.0, %v3439
  %v3441 = vpop.f32.mrb[0].mxu0
  %3442 = vmatprep.mubr.f32.mxu0 0.0
  %3443 = vmatmul.mubr.f32.gmra.mrb[0].mxu0 %v3337
  %v3444 = vpop.f32.mrb[0].mxu0
  %v3445 = vadd.f32 0.0, %v3444
  %v3446 = vpop.f32.mrb[0].mxu0
  %3447 = vdwg.mxu0
  %s3448 = scalar_lea.vmem %s4, 1536
  %v3449 = vld [vmem:[%s3448] sm:$0xff]
  %v3450 = vld [vmem:[%s3448 + $0x8] sm:$0xff]
  %v3451 = vld [vmem:[%s3448 + $0x10] sm:$0xff]
  %v3452 = vld [vmem:[%s3448 + $0x18] sm:$0xff]
  %v3453 = vld [vmem:[%s3448 + $0x20] sm:$0xff]
  %v3454 = vld [vmem:[%s3448 + $0x28] sm:$0xff]
  %v3455 = vld [vmem:[%s3448 + $0x30] sm:$0xff]
  %v3456 = vld [vmem:[%s3448 + $0x38] sm:$0xff]
  %v3457 = vld [vmem:[%s3448 + $0x40] sm:$0xff]
  %v3458 = vld [vmem:[%s3448 + $0x48] sm:$0xff]
  %v3459 = vld [vmem:[%s3448 + $0x50] sm:$0xff]
  %v3460 = vld [vmem:[%s3448 + $0x58] sm:$0xff]
  %v3461 = vld [vmem:[%s3448 + $0x60] sm:$0xff]
  %v3462 = vld [vmem:[%s3448 + $0x68] sm:$0xff]
  %v3463 = vld [vmem:[%s3448 + $0x70] sm:$0xff]
  %v3464 = vld [vmem:[%s3448 + $0x78] sm:$0xff]
  %3465 = vmatprep.subr.mxu0 0.0
  %3466 = vmatpush1.msra.mxu0 %v3449
  %3467 = vmatprep.subr.mxu0 0.0
  %3468 = vmatpush1.msra.mxu0 %v3450
  %3469 = vmatprep.subr.mxu0 0.0
  %3470 = vmatpush1.msra.mxu0 %v3451
  %3471 = vmatprep.subr.mxu0 0.0
  %3472 = vmatpush1.msra.mxu0 %v3452
  %3473 = vmatprep.subr.mxu0 0.0
  %3474 = vmatpush1.msra.mxu0 %v3453
  %3475 = vmatprep.subr.mxu0 0.0
  %3476 = vmatpush1.msra.mxu0 %v3454
  %3477 = vmatprep.subr.mxu0 0.0
  %3478 = vmatpush1.msra.mxu0 %v3455
  %3479 = vmatprep.subr.mxu0 0.0
  %3480 = vmatpush1.msra.mxu0 %v3456
  %3481 = vmatprep.subr.mxu0 0.0
  %3482 = vmatpush1.msra.mxu0 %v3457
  %3483 = vmatprep.subr.mxu0 0.0
  %3484 = vmatpush1.msra.mxu0 %v3458
  %3485 = vmatprep.subr.mxu0 0.0
  %3486 = vmatpush1.msra.mxu0 %v3459
  %3487 = vmatprep.subr.mxu0 0.0
  %3488 = vmatpush1.msra.mxu0 %v3460
  %3489 = vmatprep.subr.mxu0 0.0
  %3490 = vmatpush1.msra.mxu0 %v3461
  %3491 = vmatprep.subr.mxu0 0.0
  %3492 = vmatpush1.msra.mxu0 %v3462
  %3493 = vmatprep.subr.mxu0 0.0
  %3494 = vmatpush1.msra.mxu0 %v3463
  %3495 = vmatprep.subr.mxu0 0.0
  %3496 = vmatpush1.msra.mxu0 %v3464
  %3497 = vmatprep.subr.mxu0 0.0
  %3498 = vmatpush1.msra.mxu0 0.0
  %3499 = vmatprep.subr.mxu0 0.0
  %3500 = vmatpush1.msra.mxu0 0.0
  %3501 = vmatprep.subr.mxu0 0.0
  %3502 = vmatpush1.msra.mxu0 0.0
  %3503 = vmatprep.subr.mxu0 0.0
  %3504 = vmatpush1.msra.mxu0 0.0
  %3505 = vmatprep.subr.mxu0 0.0
  %3506 = vmatpush1.msra.mxu0 0.0
  %3507 = vmatprep.subr.mxu0 0.0
  %3508 = vmatpush1.msra.mxu0 0.0
  %3509 = vmatprep.subr.mxu0 0.0
  %3510 = vmatpush1.msra.mxu0 0.0
  %3511 = vmatprep.subr.mxu0 0.0
  %3512 = vmatpush1.msra.mxu0 0.0
  %3513 = vmatprep.subr.mxu0 0.0
  %3514 = vmatpush1.msra.mxu0 0.0
  %3515 = vmatprep.subr.mxu0 0.0
  %3516 = vmatpush1.msra.mxu0 0.0
  %3517 = vmatprep.subr.mxu0 0.0
  %3518 = vmatpush1.msra.mxu0 0.0
  %3519 = vmatprep.subr.mxu0 0.0
  %3520 = vmatpush1.msra.mxu0 0.0
  %3521 = vmatprep.subr.mxu0 0.0
  %3522 = vmatpush1.msra.mxu0 0.0
  %3523 = vmatprep.subr.mxu0 0.0
  %3524 = vmatpush1.msra.mxu0 0.0
  %3525 = vmatprep.subr.mxu0 0.0
  %3526 = vmatpush1.msra.mxu0 0.0
  %3527 = vmatprep.subr.mxu0 0.0
  %3528 = vmatpush1.msra.mxu0 0.0
  %3529 = vmatprep.mubr.f32.mxu0 0.0
  %3530 = vmatmul.mubr.f32.gmra.mrb[0].mxu0 %v3405
  %v3531 = vpop.f32.mrb[0].mxu0
  %v3532 = vadd.f32 0.0, %v3531
  %v3533 = vpop.f32.mrb[0].mxu0
  %3534 = vmatprep.mubr.f32.mxu0 0.0
  %3535 = vmatmul.mubr.f32.gmra.mrb[0].mxu0 %v3410
  %v3536 = vpop.f32.mrb[0].mxu0
  %v3537 = vadd.f32 0.0, %v3536
  %v3538 = vpop.f32.mrb[0].mxu0
  %3539 = vmatprep.mubr.f32.mxu0 0.0
  %3540 = vmatmul.mubr.f32.gmra.mrb[0].mxu0 %v3415
  %v3541 = vpop.f32.mrb[0].mxu0
  %v3542 = vadd.f32 0.0, %v3541
  %v3543 = vpop.f32.mrb[0].mxu0
  %3544 = vmatprep.mubr.f32.mxu0 0.0
  %3545 = vmatmul.mubr.f32.gmra.mrb[0].mxu0 %v3420
  %v3546 = vpop.f32.mrb[0].mxu0
  %v3547 = vadd.f32 0.0, %v3546
  %v3548 = vpop.f32.mrb[0].mxu0
  %3549 = vmatprep.mubr.f32.mxu0 0.0
  %3550 = vmatmul.mubr.f32.gmra.mrb[0].mxu0 %v3425
  %v3551 = vpop.f32.mrb[0].mxu0
  %v3552 = vadd.f32 0.0, %v3551
  %v3553 = vpop.f32.mrb[0].mxu0
  %3554 = vmatprep.mubr.f32.mxu0 0.0
  %3555 = vmatmul.mubr.f32.gmra.mrb[0].mxu0 %v3430
  %v3556 = vpop.f32.mrb[0].mxu0
  %v3557 = vadd.f32 0.0, %v3556
  %v3558 = vpop.f32.mrb[0].mxu0
  %3559 = vmatprep.mubr.f32.mxu0 0.0
  %3560 = vmatmul.mubr.f32.gmra.mrb[0].mxu0 %v3435
  %v3561 = vpop.f32.mrb[0].mxu0
  %v3562 = vadd.f32 0.0, %v3561
  %v3563 = vpop.f32.mrb[0].mxu0
  %3564 = vmatprep.mubr.f32.mxu0 0.0
  %3565 = vmatmul.mubr.f32.gmra.mrb[0].mxu0 %v3440
  %v3566 = vpop.f32.mrb[0].mxu0
  %v3567 = vadd.f32 0.0, %v3566
  %v3568 = vpop.f32.mrb[0].mxu0
  %3569 = vmatprep.mubr.f32.mxu0 0.0
  %3570 = vmatmul.mubr.f32.gmra.mrb[0].mxu0 %v3445
  %v3571 = vpop.f32.mrb[0].mxu0
  %v3572 = vadd.f32 0.0, %v3571
  %v3573 = vpop.f32.mrb[0].mxu0
  %3574 = vdwg.mxu0
  %v3575 = vadd.f32 %v3319, %v3532
  %v3576 = vadd.f32 %v3320, %v3537
  %v3577 = vadd.f32 %v3321, %v3542
  %v3578 = vadd.f32 %v3322, %v3547
  %v3579 = vadd.f32 %v3323, %v3552
  %v3580 = vadd.f32 %v3324, %v3557
  %v3581 = vadd.f32 %v3325, %v3562
  %v3582 = vadd.f32 %v3326, %v3567
  %v3583 = vadd.f32 %v3327, %v3572
  %s3584 = scalar_lea.vmem %s3, 936
  %v3585 = vld [vmem:[%s3584] sm:$0xff]
  %v3586 = vld [vmem:[%s3584 + $0x8] sm:$0xff]
  %v3587 = vld [vmem:[%s3584 + $0x10] sm:$0xff]
  %v3588 = vld [vmem:[%s3584 + $0x18] sm:$0xff]
  %v3589 = vld [vmem:[%s3584 + $0x20] sm:$0xff]
  %v3590 = vld [vmem:[%s3584 + $0x28] sm:$0xff]
  %v3591 = vld [vmem:[%s3584 + $0x30] sm:$0xff]
  %v3592 = vld [vmem:[%s3584 + $0x38] sm:$0xff]
  %v3593 = vld [vmem:[%s3584 + $0x40] sm:$0xff]
  %3594 = vmatprep.subr.mxu0 0.0
  %3595 = vmatpush1.msra.mxu0 %v260
  %3596 = vmatprep.subr.mxu0 0.0
  %3597 = vmatpush1.msra.mxu0 %v261
  %3598 = vmatprep.subr.mxu0 0.0
  %3599 = vmatpush1.msra.mxu0 %v262
  %3600 = vmatprep.subr.mxu0 0.0
  %3601 = vmatpush1.msra.mxu0 %v263
  %3602 = vmatprep.subr.mxu0 0.0
  %3603 = vmatpush1.msra.mxu0 %v264
  %3604 = vmatprep.subr.mxu0 0.0
  %3605 = vmatpush1.msra.mxu0 %v265
  %3606 = vmatprep.subr.mxu0 0.0
  %3607 = vmatpush1.msra.mxu0 %v266
  %3608 = vmatprep.subr.mxu0 0.0
  %3609 = vmatpush1.msra.mxu0 %v267
  %3610 = vmatprep.subr.mxu0 0.0
  %3611 = vmatpush1.msra.mxu0 %v268
  %3612 = vmatprep.subr.mxu0 0.0
  %3613 = vmatpush1.msra.mxu0 %v269
  %3614 = vmatprep.subr.mxu0 0.0
  %3615 = vmatpush1.msra.mxu0 %v270
  %3616 = vmatprep.subr.mxu0 0.0
  %3617 = vmatpush1.msra.mxu0 %v271
  %3618 = vmatprep.subr.mxu0 0.0
  %3619 = vmatpush1.msra.mxu0 %v272
  %3620 = vmatprep.subr.mxu0 0.0
  %3621 = vmatpush1.msra.mxu0 %v273
  %3622 = vmatprep.subr.mxu0 0.0
  %3623 = vmatpush1.msra.mxu0 %v274
  %3624 = vmatprep.subr.mxu0 0.0
  %3625 = vmatpush1.msra.mxu0 %v275
  %3626 = vmatprep.subr.mxu0 0.0
  %3627 = vmatpush1.msra.mxu0 0.0
  %3628 = vmatprep.subr.mxu0 0.0
  %3629 = vmatpush1.msra.mxu0 0.0
  %3630 = vmatprep.subr.mxu0 0.0
  %3631 = vmatpush1.msra.mxu0 0.0
  %3632 = vmatprep.subr.mxu0 0.0
  %3633 = vmatpush1.msra.mxu0 0.0
  %3634 = vmatprep.subr.mxu0 0.0
  %3635 = vmatpush1.msra.mxu0 0.0
  %3636 = vmatprep.subr.mxu0 0.0
  %3637 = vmatpush1.msra.mxu0 0.0
  %3638 = vmatprep.subr.mxu0 0.0
  %3639 = vmatpush1.msra.mxu0 0.0
  %3640 = vmatprep.subr.mxu0 0.0
  %3641 = vmatpush1.msra.mxu0 0.0
  %3642 = vmatprep.subr.mxu0 0.0
  %3643 = vmatpush1.msra.mxu0 0.0
  %3644 = vmatprep.subr.mxu0 0.0
  %3645 = vmatpush1.msra.mxu0 0.0
  %3646 = vmatprep.subr.mxu0 0.0
  %3647 = vmatpush1.msra.mxu0 0.0
  %3648 = vmatprep.subr.mxu0 0.0
  %3649 = vmatpush1.msra.mxu0 0.0
  %3650 = vmatprep.subr.mxu0 0.0
  %3651 = vmatpush1.msra.mxu0 0.0
  %3652 = vmatprep.subr.mxu0 0.0
  %3653 = vmatpush1.msra.mxu0 0.0
  %3654 = vmatprep.subr.mxu0 0.0
  %3655 = vmatpush1.msra.mxu0 0.0
  %3656 = vmatprep.subr.mxu0 0.0
  %3657 = vmatpush1.msra.mxu0 0.0
  %3658 = vmatprep.mubr.f32.mxu0 0.0
  %3659 = vmatmul.mubr.f32.gmra.mrb[0].mxu0 %v3585
  %v3660 = vpop.f32.mrb[0].mxu0
  %v3661 = vadd.f32 0.0, %v3660
  %v3662 = vpop.f32.mrb[0].mxu0
  %3663 = vmatprep.mubr.f32.mxu0 0.0
  %3664 = vmatmul.mubr.f32.gmra.mrb[0].mxu0 %v3586
  %v3665 = vpop.f32.mrb[0].mxu0
  %v3666 = vadd.f32 0.0, %v3665
  %v3667 = vpop.f32.mrb[0].mxu0
  %3668 = vmatprep.mubr.f32.mxu0 0.0
  %3669 = vmatmul.mubr.f32.gmra.mrb[0].mxu0 %v3587
  %v3670 = vpop.f32.mrb[0].mxu0
  %v3671 = vadd.f32 0.0, %v3670
  %v3672 = vpop.f32.mrb[0].mxu0
  %3673 = vmatprep.mubr.f32.mxu0 0.0
  %3674 = vmatmul.mubr.f32.gmra.mrb[0].mxu0 %v3588
  %v3675 = vpop.f32.mrb[0].mxu0
  %v3676 = vadd.f32 0.0, %v3675
  %v3677 = vpop.f32.mrb[0].mxu0
  %3678 = vmatprep.mubr.f32.mxu0 0.0
  %3679 = vmatmul.mubr.f32.gmra.mrb[0].mxu0 %v3589
  %v3680 = vpop.f32.mrb[0].mxu0
  %v3681 = vadd.f32 0.0, %v3680
  %v3682 = vpop.f32.mrb[0].mxu0
  %3683 = vmatprep.mubr.f32.mxu0 0.0
  %3684 = vmatmul.mubr.f32.gmra.mrb[0].mxu0 %v3590
  %v3685 = vpop.f32.mrb[0].mxu0
  %v3686 = vadd.f32 0.0, %v3685
  %v3687 = vpop.f32.mrb[0].mxu0
  %3688 = vmatprep.mubr.f32.mxu0 0.0
  %3689 = vmatmul.mubr.f32.gmra.mrb[0].mxu0 %v3591
  %v3690 = vpop.f32.mrb[0].mxu0
  %v3691 = vadd.f32 0.0, %v3690
  %v3692 = vpop.f32.mrb[0].mxu0
  %3693 = vmatprep.mubr.f32.mxu0 0.0
  %3694 = vmatmul.mubr.f32.gmra.mrb[0].mxu0 %v3592
  %v3695 = vpop.f32.mrb[0].mxu0
  %v3696 = vadd.f32 0.0, %v3695
  %v3697 = vpop.f32.mrb[0].mxu0
  %3698 = vmatprep.mubr.f32.mxu0 0.0
  %3699 = vmatmul.mubr.f32.gmra.mrb[0].mxu0 %v3593
  %v3700 = vpop.f32.mrb[0].mxu0
  %v3701 = vadd.f32 0.0, %v3700
  %v3702 = vpop.f32.mrb[0].mxu0
  %3703 = vdwg.mxu0
  %s3704 = scalar_lea.vmem %s4, 1664
  %v3705 = vld [vmem:[%s3704] sm:$0xff]
  %v3706 = vld [vmem:[%s3704 + $0x8] sm:$0xff]
  %v3707 = vld [vmem:[%s3704 + $0x10] sm:$0xff]
  %v3708 = vld [vmem:[%s3704 + $0x18] sm:$0xff]
  %v3709 = vld [vmem:[%s3704 + $0x20] sm:$0xff]
  %v3710 = vld [vmem:[%s3704 + $0x28] sm:$0xff]
  %v3711 = vld [vmem:[%s3704 + $0x30] sm:$0xff]
  %v3712 = vld [vmem:[%s3704 + $0x38] sm:$0xff]
  %v3713 = vld [vmem:[%s3704 + $0x40] sm:$0xff]
  %v3714 = vld [vmem:[%s3704 + $0x48] sm:$0xff]
  %v3715 = vld [vmem:[%s3704 + $0x50] sm:$0xff]
  %v3716 = vld [vmem:[%s3704 + $0x58] sm:$0xff]
  %v3717 = vld [vmem:[%s3704 + $0x60] sm:$0xff]
  %v3718 = vld [vmem:[%s3704 + $0x68] sm:$0xff]
  %v3719 = vld [vmem:[%s3704 + $0x70] sm:$0xff]
  %v3720 = vld [vmem:[%s3704 + $0x78] sm:$0xff]
  %3721 = vmatprep.subr.mxu0 0.0
  %3722 = vmatpush1.msra.mxu0 %v3705
  %3723 = vmatprep.subr.mxu0 0.0
  %3724 = vmatpush1.msra.mxu0 %v3706
  %3725 = vmatprep.subr.mxu0 0.0
  %3726 = vmatpush1.msra.mxu0 %v3707
  %3727 = vmatprep.subr.mxu0 0.0
  %3728 = vmatpush1.msra.mxu0 %v3708
  %3729 = vmatprep.subr.mxu0 0.0
  %3730 = vmatpush1.msra.mxu0 %v3709
  %3731 = vmatprep.subr.mxu0 0.0
  %3732 = vmatpush1.msra.mxu0 %v3710
  %3733 = vmatprep.subr.mxu0 0.0
  %3734 = vmatpush1.msra.mxu0 %v3711
  %3735 = vmatprep.subr.mxu0 0.0
  %3736 = vmatpush1.msra.mxu0 %v3712
  %3737 = vmatprep.subr.mxu0 0.0
  %3738 = vmatpush1.msra.mxu0 %v3713
  %3739 = vmatprep.subr.mxu0 0.0
  %3740 = vmatpush1.msra.mxu0 %v3714
  %3741 = vmatprep.subr.mxu0 0.0
  %3742 = vmatpush1.msra.mxu0 %v3715
  %3743 = vmatprep.subr.mxu0 0.0
  %3744 = vmatpush1.msra.mxu0 %v3716
  %3745 = vmatprep.subr.mxu0 0.0
  %3746 = vmatpush1.msra.mxu0 %v3717
  %3747 = vmatprep.subr.mxu0 0.0
  %3748 = vmatpush1.msra.mxu0 %v3718
  %3749 = vmatprep.subr.mxu0 0.0
  %3750 = vmatpush1.msra.mxu0 %v3719
  %3751 = vmatprep.subr.mxu0 0.0
  %3752 = vmatpush1.msra.mxu0 %v3720
  %3753 = vmatprep.subr.mxu0 0.0
  %3754 = vmatpush1.msra.mxu0 0.0
  %3755 = vmatprep.subr.mxu0 0.0
  %3756 = vmatpush1.msra.mxu0 0.0
  %3757 = vmatprep.subr.mxu0 0.0
  %3758 = vmatpush1.msra.mxu0 0.0
  %3759 = vmatprep.subr.mxu0 0.0
  %3760 = vmatpush1.msra.mxu0 0.0
  %3761 = vmatprep.subr.mxu0 0.0
  %3762 = vmatpush1.msra.mxu0 0.0
  %3763 = vmatprep.subr.mxu0 0.0
  %3764 = vmatpush1.msra.mxu0 0.0
  %3765 = vmatprep.subr.mxu0 0.0
  %3766 = vmatpush1.msra.mxu0 0.0
  %3767 = vmatprep.subr.mxu0 0.0
  %3768 = vmatpush1.msra.mxu0 0.0
  %3769 = vmatprep.subr.mxu0 0.0
  %3770 = vmatpush1.msra.mxu0 0.0
  %3771 = vmatprep.subr.mxu0 0.0
  %3772 = vmatpush1.msra.mxu0 0.0
  %3773 = vmatprep.subr.mxu0 0.0
  %3774 = vmatpush1.msra.mxu0 0.0
  %3775 = vmatprep.subr.mxu0 0.0
  %3776 = vmatpush1.msra.mxu0 0.0
  %3777 = vmatprep.subr.mxu0 0.0
  %3778 = vmatpush1.msra.mxu0 0.0
  %3779 = vmatprep.subr.mxu0 0.0
  %3780 = vmatpush1.msra.mxu0 0.0
  %3781 = vmatprep.subr.mxu0 0.0
  %3782 = vmatpush1.msra.mxu0 0.0
  %3783 = vmatprep.subr.mxu0 0.0
  %3784 = vmatpush1.msra.mxu0 0.0
  %3785 = vmatprep.mubr.f32.mxu0 0.0
  %3786 = vmatmul.mubr.f32.gmra.mrb[0].mxu0 %v3661
  %v3787 = vpop.f32.mrb[0].mxu0
  %v3788 = vadd.f32 0.0, %v3787
  %v3789 = vpop.f32.mrb[0].mxu0
  %3790 = vmatprep.mubr.f32.mxu0 0.0
  %3791 = vmatmul.mubr.f32.gmra.mrb[0].mxu0 %v3666
  %v3792 = vpop.f32.mrb[0].mxu0
  %v3793 = vadd.f32 0.0, %v3792
  %v3794 = vpop.f32.mrb[0].mxu0
  %3795 = vmatprep.mubr.f32.mxu0 0.0
  %3796 = vmatmul.mubr.f32.gmra.mrb[0].mxu0 %v3671
  %v3797 = vpop.f32.mrb[0].mxu0
  %v3798 = vadd.f32 0.0, %v3797
  %v3799 = vpop.f32.mrb[0].mxu0
  %3800 = vmatprep.mubr.f32.mxu0 0.0
  %3801 = vmatmul.mubr.f32.gmra.mrb[0].mxu0 %v3676
  %v3802 = vpop.f32.mrb[0].mxu0
  %v3803 = vadd.f32 0.0, %v3802
  %v3804 = vpop.f32.mrb[0].mxu0
  %3805 = vmatprep.mubr.f32.mxu0 0.0
  %3806 = vmatmul.mubr.f32.gmra.mrb[0].mxu0 %v3681
  %v3807 = vpop.f32.mrb[0].mxu0
  %v3808 = vadd.f32 0.0, %v3807
  %v3809 = vpop.f32.mrb[0].mxu0
  %3810 = vmatprep.mubr.f32.mxu0 0.0
  %3811 = vmatmul.mubr.f32.gmra.mrb[0].mxu0 %v3686
  %v3812 = vpop.f32.mrb[0].mxu0
  %v3813 = vadd.f32 0.0, %v3812
  %v3814 = vpop.f32.mrb[0].mxu0
  %3815 = vmatprep.mubr.f32.mxu0 0.0
  %3816 = vmatmul.mubr.f32.gmra.mrb[0].mxu0 %v3691
  %v3817 = vpop.f32.mrb[0].mxu0
  %v3818 = vadd.f32 0.0, %v3817
  %v3819 = vpop.f32.mrb[0].mxu0
  %3820 = vmatprep.mubr.f32.mxu0 0.0
  %3821 = vmatmul.mubr.f32.gmra.mrb[0].mxu0 %v3696
  %v3822 = vpop.f32.mrb[0].mxu0
  %v3823 = vadd.f32 0.0, %v3822
  %v3824 = vpop.f32.mrb[0].mxu0
  %3825 = vmatprep.mubr.f32.mxu0 0.0
  %3826 = vmatmul.mubr.f32.gmra.mrb[0].mxu0 %v3701
  %v3827 = vpop.f32.mrb[0].mxu0
  %v3828 = vadd.f32 0.0, %v3827
  %v3829 = vpop.f32.mrb[0].mxu0
  %3830 = vdwg.mxu0
  %v3831 = vadd.f32 %v3575, %v3788
  %v3832 = vadd.f32 %v3576, %v3793
  %v3833 = vadd.f32 %v3577, %v3798
  %v3834 = vadd.f32 %v3578, %v3803
  %v3835 = vadd.f32 %v3579, %v3808
  %v3836 = vadd.f32 %v3580, %v3813
  %v3837 = vadd.f32 %v3581, %v3818
  %v3838 = vadd.f32 %v3582, %v3823
  %v3839 = vadd.f32 %v3583, %v3828
  %s3840 = scalar_lea.vmem %s3, 1008
  %v3841 = vld [vmem:[%s3840] sm:$0xff]
  %v3842 = vld [vmem:[%s3840 + $0x8] sm:$0xff]
  %v3843 = vld [vmem:[%s3840 + $0x10] sm:$0xff]
  %v3844 = vld [vmem:[%s3840 + $0x18] sm:$0xff]
  %v3845 = vld [vmem:[%s3840 + $0x20] sm:$0xff]
  %v3846 = vld [vmem:[%s3840 + $0x28] sm:$0xff]
  %v3847 = vld [vmem:[%s3840 + $0x30] sm:$0xff]
  %v3848 = vld [vmem:[%s3840 + $0x38] sm:$0xff]
  %v3849 = vld [vmem:[%s3840 + $0x40] sm:$0xff]
  %3850 = vmatprep.subr.mxu0 0.0
  %3851 = vmatpush1.msra.mxu0 %v260
  %3852 = vmatprep.subr.mxu0 0.0
  %3853 = vmatpush1.msra.mxu0 %v261
  %3854 = vmatprep.subr.mxu0 0.0
  %3855 = vmatpush1.msra.mxu0 %v262
  %3856 = vmatprep.subr.mxu0 0.0
  %3857 = vmatpush1.msra.mxu0 %v263
  %3858 = vmatprep.subr.mxu0 0.0
  %3859 = vmatpush1.msra.mxu0 %v264
  %3860 = vmatprep.subr.mxu0 0.0
  %3861 = vmatpush1.msra.mxu0 %v265
  %3862 = vmatprep.subr.mxu0 0.0
  %3863 = vmatpush1.msra.mxu0 %v266
  %3864 = vmatprep.subr.mxu0 0.0
  %3865 = vmatpush1.msra.mxu0 %v267
  %3866 = vmatprep.subr.mxu0 0.0
  %3867 = vmatpush1.msra.mxu0 %v268
  %3868 = vmatprep.subr.mxu0 0.0
  %3869 = vmatpush1.msra.mxu0 %v269
  %3870 = vmatprep.subr.mxu0 0.0
  %3871 = vmatpush1.msra.mxu0 %v270
  %3872 = vmatprep.subr.mxu0 0.0
  %3873 = vmatpush1.msra.mxu0 %v271
  %3874 = vmatprep.subr.mxu0 0.0
  %3875 = vmatpush1.msra.mxu0 %v272
  %3876 = vmatprep.subr.mxu0 0.0
  %3877 = vmatpush1.msra.mxu0 %v273
  %3878 = vmatprep.subr.mxu0 0.0
  %3879 = vmatpush1.msra.mxu0 %v274
  %3880 = vmatprep.subr.mxu0 0.0
  %3881 = vmatpush1.msra.mxu0 %v275
  %3882 = vmatprep.subr.mxu0 0.0
  %3883 = vmatpush1.msra.mxu0 0.0
  %3884 = vmatprep.subr.mxu0 0.0
  %3885 = vmatpush1.msra.mxu0 0.0
  %3886 = vmatprep.subr.mxu0 0.0
  %3887 = vmatpush1.msra.mxu0 0.0
  %3888 = vmatprep.subr.mxu0 0.0
  %3889 = vmatpush1.msra.mxu0 0.0
  %3890 = vmatprep.subr.mxu0 0.0
  %3891 = vmatpush1.msra.mxu0 0.0
  %3892 = vmatprep.subr.mxu0 0.0
  %3893 = vmatpush1.msra.mxu0 0.0
  %3894 = vmatprep.subr.mxu0 0.0
  %3895 = vmatpush1.msra.mxu0 0.0
  %3896 = vmatprep.subr.mxu0 0.0
  %3897 = vmatpush1.msra.mxu0 0.0
  %3898 = vmatprep.subr.mxu0 0.0
  %3899 = vmatpush1.msra.mxu0 0.0
  %3900 = vmatprep.subr.mxu0 0.0
  %3901 = vmatpush1.msra.mxu0 0.0
  %3902 = vmatprep.subr.mxu0 0.0
  %3903 = vmatpush1.msra.mxu0 0.0
  %3904 = vmatprep.subr.mxu0 0.0
  %3905 = vmatpush1.msra.mxu0 0.0
  %3906 = vmatprep.subr.mxu0 0.0
  %3907 = vmatpush1.msra.mxu0 0.0
  %3908 = vmatprep.subr.mxu0 0.0
  %3909 = vmatpush1.msra.mxu0 0.0
  %3910 = vmatprep.subr.mxu0 0.0
  %3911 = vmatpush1.msra.mxu0 0.0
  %3912 = vmatprep.subr.mxu0 0.0
  %3913 = vmatpush1.msra.mxu0 0.0
  %3914 = vmatprep.mubr.f32.mxu0 0.0
  %3915 = vmatmul.mubr.f32.gmra.mrb[0].mxu0 %v3841
  %v3916 = vpop.f32.mrb[0].mxu0
  %v3917 = vadd.f32 0.0, %v3916
  %v3918 = vpop.f32.mrb[0].mxu0
  %3919 = vmatprep.mubr.f32.mxu0 0.0
  %3920 = vmatmul.mubr.f32.gmra.mrb[0].mxu0 %v3842
  %v3921 = vpop.f32.mrb[0].mxu0
  %v3922 = vadd.f32 0.0, %v3921
  %v3923 = vpop.f32.mrb[0].mxu0
  %3924 = vmatprep.mubr.f32.mxu0 0.0
  %3925 = vmatmul.mubr.f32.gmra.mrb[0].mxu0 %v3843
  %v3926 = vpop.f32.mrb[0].mxu0
  %v3927 = vadd.f32 0.0, %v3926
  %v3928 = vpop.f32.mrb[0].mxu0
  %3929 = vmatprep.mubr.f32.mxu0 0.0
  %3930 = vmatmul.mubr.f32.gmra.mrb[0].mxu0 %v3844
  %v3931 = vpop.f32.mrb[0].mxu0
  %v3932 = vadd.f32 0.0, %v3931
  %v3933 = vpop.f32.mrb[0].mxu0
  %3934 = vmatprep.mubr.f32.mxu0 0.0
  %3935 = vmatmul.mubr.f32.gmra.mrb[0].mxu0 %v3845
  %v3936 = vpop.f32.mrb[0].mxu0
  %v3937 = vadd.f32 0.0, %v3936
  %v3938 = vpop.f32.mrb[0].mxu0
  %3939 = vmatprep.mubr.f32.mxu0 0.0
  %3940 = vmatmul.mubr.f32.gmra.mrb[0].mxu0 %v3846
  %v3941 = vpop.f32.mrb[0].mxu0
  %v3942 = vadd.f32 0.0, %v3941
  %v3943 = vpop.f32.mrb[0].mxu0
  %3944 = vmatprep.mubr.f32.mxu0 0.0
  %3945 = vmatmul.mubr.f32.gmra.mrb[0].mxu0 %v3847
  %v3946 = vpop.f32.mrb[0].mxu0
  %v3947 = vadd.f32 0.0, %v3946
  %v3948 = vpop.f32.mrb[0].mxu0
  %3949 = vmatprep.mubr.f32.mxu0 0.0
  %3950 = vmatmul.mubr.f32.gmra.mrb[0].mxu0 %v3848
  %v3951 = vpop.f32.mrb[0].mxu0
  %v3952 = vadd.f32 0.0, %v3951
  %v3953 = vpop.f32.mrb[0].mxu0
  %3954 = vmatprep.mubr.f32.mxu0 0.0
  %3955 = vmatmul.mubr.f32.gmra.mrb[0].mxu0 %v3849
  %v3956 = vpop.f32.mrb[0].mxu0
  %v3957 = vadd.f32 0.0, %v3956
  %v3958 = vpop.f32.mrb[0].mxu0
  %3959 = vdwg.mxu0
  %s3960 = scalar_lea.vmem %s4, 1792
  %v3961 = vld [vmem:[%s3960] sm:$0xff]
  %v3962 = vld [vmem:[%s3960 + $0x8] sm:$0xff]
  %v3963 = vld [vmem:[%s3960 + $0x10] sm:$0xff]
  %v3964 = vld [vmem:[%s3960 + $0x18] sm:$0xff]
  %v3965 = vld [vmem:[%s3960 + $0x20] sm:$0xff]
  %v3966 = vld [vmem:[%s3960 + $0x28] sm:$0xff]
  %v3967 = vld [vmem:[%s3960 + $0x30] sm:$0xff]
  %v3968 = vld [vmem:[%s3960 + $0x38] sm:$0xff]
  %v3969 = vld [vmem:[%s3960 + $0x40] sm:$0xff]
  %v3970 = vld [vmem:[%s3960 + $0x48] sm:$0xff]
  %v3971 = vld [vmem:[%s3960 + $0x50] sm:$0xff]
  %v3972 = vld [vmem:[%s3960 + $0x58] sm:$0xff]
  %v3973 = vld [vmem:[%s3960 + $0x60] sm:$0xff]
  %v3974 = vld [vmem:[%s3960 + $0x68] sm:$0xff]
  %v3975 = vld [vmem:[%s3960 + $0x70] sm:$0xff]
  %v3976 = vld [vmem:[%s3960 + $0x78] sm:$0xff]
  %3977 = vmatprep.subr.mxu0 0.0
  %3978 = vmatpush1.msra.mxu0 %v3961
  %3979 = vmatprep.subr.mxu0 0.0
  %3980 = vmatpush1.msra.mxu0 %v3962
  %3981 = vmatprep.subr.mxu0 0.0
  %3982 = vmatpush1.msra.mxu0 %v3963
  %3983 = vmatprep.subr.mxu0 0.0
  %3984 = vmatpush1.msra.mxu0 %v3964
  %3985 = vmatprep.subr.mxu0 0.0
  %3986 = vmatpush1.msra.mxu0 %v3965
  %3987 = vmatprep.subr.mxu0 0.0
  %3988 = vmatpush1.msra.mxu0 %v3966
  %3989 = vmatprep.subr.mxu0 0.0
  %3990 = vmatpush1.msra.mxu0 %v3967
  %3991 = vmatprep.subr.mxu0 0.0
  %3992 = vmatpush1.msra.mxu0 %v3968
  %3993 = vmatprep.subr.mxu0 0.0
  %3994 = vmatpush1.msra.mxu0 %v3969
  %3995 = vmatprep.subr.mxu0 0.0
  %3996 = vmatpush1.msra.mxu0 %v3970
  %3997 = vmatprep.subr.mxu0 0.0
  %3998 = vmatpush1.msra.mxu0 %v3971
  %3999 = vmatprep.subr.mxu0 0.0
  %4000 = vmatpush1.msra.mxu0 %v3972
  %4001 = vmatprep.subr.mxu0 0.0
  %4002 = vmatpush1.msra.mxu0 %v3973
  %4003 = vmatprep.subr.mxu0 0.0
  %4004 = vmatpush1.msra.mxu0 %v3974
  %4005 = vmatprep.subr.mxu0 0.0
  %4006 = vmatpush1.msra.mxu0 %v3975
  %4007 = vmatprep.subr.mxu0 0.0
  %4008 = vmatpush1.msra.mxu0 %v3976
  %4009 = vmatprep.subr.mxu0 0.0
  %4010 = vmatpush1.msra.mxu0 0.0
  %4011 = vmatprep.subr.mxu0 0.0
  %4012 = vmatpush1.msra.mxu0 0.0
  %4013 = vmatprep.subr.mxu0 0.0
  %4014 = vmatpush1.msra.mxu0 0.0
  %4015 = vmatprep.subr.mxu0 0.0
  %4016 = vmatpush1.msra.mxu0 0.0
  %4017 = vmatprep.subr.mxu0 0.0
  %4018 = vmatpush1.msra.mxu0 0.0
  %4019 = vmatprep.subr.mxu0 0.0
  %4020 = vmatpush1.msra.mxu0 0.0
  %4021 = vmatprep.subr.mxu0 0.0
  %4022 = vmatpush1.msra.mxu0 0.0
  %4023 = vmatprep.subr.mxu0 0.0
  %4024 = vmatpush1.msra.mxu0 0.0
  %4025 = vmatprep.subr.mxu0 0.0
  %4026 = vmatpush1.msra.mxu0 0.0
  %4027 = vmatprep.subr.mxu0 0.0
  %4028 = vmatpush1.msra.mxu0 0.0
  %4029 = vmatprep.subr.mxu0 0.0
  %4030 = vmatpush1.msra.mxu0 0.0
  %4031 = vmatprep.subr.mxu0 0.0
  %4032 = vmatpush1.msra.mxu0 0.0
  %4033 = vmatprep.subr.mxu0 0.0
  %4034 = vmatpush1.msra.mxu0 0.0
  %4035 = vmatprep.subr.mxu0 0.0
  %4036 = vmatpush1.msra.mxu0 0.0
  %4037 = vmatprep.subr.mxu0 0.0
  %4038 = vmatpush1.msra.mxu0 0.0
  %4039 = vmatprep.subr.mxu0 0.0
  %4040 = vmatpush1.msra.mxu0 0.0
  %4041 = vmatprep.mubr.f32.mxu0 0.0
  %4042 = vmatmul.mubr.f32.gmra.mrb[0].mxu0 %v3917
  %v4043 = vpop.f32.mrb[0].mxu0
  %v4044 = vadd.f32 0.0, %v4043
  %v4045 = vpop.f32.mrb[0].mxu0
  %4046 = vmatprep.mubr.f32.mxu0 0.0
  %4047 = vmatmul.mubr.f32.gmra.mrb[0].mxu0 %v3922
  %v4048 = vpop.f32.mrb[0].mxu0
  %v4049 = vadd.f32 0.0, %v4048
  %v4050 = vpop.f32.mrb[0].mxu0
  %4051 = vmatprep.mubr.f32.mxu0 0.0
  %4052 = vmatmul.mubr.f32.gmra.mrb[0].mxu0 %v3927
  %v4053 = vpop.f32.mrb[0].mxu0
  %v4054 = vadd.f32 0.0, %v4053
  %v4055 = vpop.f32.mrb[0].mxu0
  %4056 = vmatprep.mubr.f32.mxu0 0.0
  %4057 = vmatmul.mubr.f32.gmra.mrb[0].mxu0 %v3932
  %v4058 = vpop.f32.mrb[0].mxu0
  %v4059 = vadd.f32 0.0, %v4058
  %v4060 = vpop.f32.mrb[0].mxu0
  %4061 = vmatprep.mubr.f32.mxu0 0.0
  %4062 = vmatmul.mubr.f32.gmra.mrb[0].mxu0 %v3937
  %v4063 = vpop.f32.mrb[0].mxu0
  %v4064 = vadd.f32 0.0, %v4063
  %v4065 = vpop.f32.mrb[0].mxu0
  %4066 = vmatprep.mubr.f32.mxu0 0.0
  %4067 = vmatmul.mubr.f32.gmra.mrb[0].mxu0 %v3942
  %v4068 = vpop.f32.mrb[0].mxu0
  %v4069 = vadd.f32 0.0, %v4068
  %v4070 = vpop.f32.mrb[0].mxu0
  %4071 = vmatprep.mubr.f32.mxu0 0.0
  %4072 = vmatmul.mubr.f32.gmra.mrb[0].mxu0 %v3947
  %v4073 = vpop.f32.mrb[0].mxu0
  %v4074 = vadd.f32 0.0, %v4073
  %v4075 = vpop.f32.mrb[0].mxu0
  %4076 = vmatprep.mubr.f32.mxu0 0.0
  %4077 = vmatmul.mubr.f32.gmra.mrb[0].mxu0 %v3952
  %v4078 = vpop.f32.mrb[0].mxu0
  %v4079 = vadd.f32 0.0, %v4078
  %v4080 = vpop.f32.mrb[0].mxu0
  %4081 = vmatprep.mubr.f32.mxu0 0.0
  %4082 = vmatmul.mubr.f32.gmra.mrb[0].mxu0 %v3957
  %v4083 = vpop.f32.mrb[0].mxu0
  %v4084 = vadd.f32 0.0, %v4083
  %v4085 = vpop.f32.mrb[0].mxu0
  %4086 = vdwg.mxu0
  %v4087 = vadd.f32 %v3831, %v4044
  %v4088 = vadd.f32 %v3832, %v4049
  %v4089 = vadd.f32 %v3833, %v4054
  %v4090 = vadd.f32 %v3834, %v4059
  %v4091 = vadd.f32 %v3835, %v4064
  %v4092 = vadd.f32 %v3836, %v4069
  %v4093 = vadd.f32 %v3837, %v4074
  %v4094 = vadd.f32 %v3838, %v4079
  %v4095 = vadd.f32 %v3839, %v4084
  %s4096 = scalar_lea.vmem %s3, 1080
  %v4097 = vld [vmem:[%s4096] sm:$0xff]
  %v4098 = vld [vmem:[%s4096 + $0x8] sm:$0xff]
  %v4099 = vld [vmem:[%s4096 + $0x10] sm:$0xff]
  %v4100 = vld [vmem:[%s4096 + $0x18] sm:$0xff]
  %v4101 = vld [vmem:[%s4096 + $0x20] sm:$0xff]
  %v4102 = vld [vmem:[%s4096 + $0x28] sm:$0xff]
  %v4103 = vld [vmem:[%s4096 + $0x30] sm:$0xff]
  %v4104 = vld [vmem:[%s4096 + $0x38] sm:$0xff]
  %v4105 = vld [vmem:[%s4096 + $0x40] sm:$0xff]
  %4106 = vmatprep.subr.mxu0 0.0
  %4107 = vmatpush1.msra.mxu0 %v260
  %4108 = vmatprep.subr.mxu0 0.0
  %4109 = vmatpush1.msra.mxu0 %v261
  %4110 = vmatprep.subr.mxu0 0.0
  %4111 = vmatpush1.msra.mxu0 %v262
  %4112 = vmatprep.subr.mxu0 0.0
  %4113 = vmatpush1.msra.mxu0 %v263
  %4114 = vmatprep.subr.mxu0 0.0
  %4115 = vmatpush1.msra.mxu0 %v264
  %4116 = vmatprep.subr.mxu0 0.0
  %4117 = vmatpush1.msra.mxu0 %v265
  %4118 = vmatprep.subr.mxu0 0.0
  %4119 = vmatpush1.msra.mxu0 %v266
  %4120 = vmatprep.subr.mxu0 0.0
  %4121 = vmatpush1.msra.mxu0 %v267
  %4122 = vmatprep.subr.mxu0 0.0
  %4123 = vmatpush1.msra.mxu0 %v268
  %4124 = vmatprep.subr.mxu0 0.0
  %4125 = vmatpush1.msra.mxu0 %v269
  %4126 = vmatprep.subr.mxu0 0.0
  %4127 = vmatpush1.msra.mxu0 %v270
  %4128 = vmatprep.subr.mxu0 0.0
  %4129 = vmatpush1.msra.mxu0 %v271
  %4130 = vmatprep.subr.mxu0 0.0
  %4131 = vmatpush1.msra.mxu0 %v272
  %4132 = vmatprep.subr.mxu0 0.0
  %4133 = vmatpush1.msra.mxu0 %v273
  %4134 = vmatprep.subr.mxu0 0.0
  %4135 = vmatpush1.msra.mxu0 %v274
  %4136 = vmatprep.subr.mxu0 0.0
  %4137 = vmatpush1.msra.mxu0 %v275
  %4138 = vmatprep.subr.mxu0 0.0
  %4139 = vmatpush1.msra.mxu0 0.0
  %4140 = vmatprep.subr.mxu0 0.0
  %4141 = vmatpush1.msra.mxu0 0.0
  %4142 = vmatprep.subr.mxu0 0.0
  %4143 = vmatpush1.msra.mxu0 0.0
  %4144 = vmatprep.subr.mxu0 0.0
  %4145 = vmatpush1.msra.mxu0 0.0
  %4146 = vmatprep.subr.mxu0 0.0
  %4147 = vmatpush1.msra.mxu0 0.0
  %4148 = vmatprep.subr.mxu0 0.0
  %4149 = vmatpush1.msra.mxu0 0.0
  %4150 = vmatprep.subr.mxu0 0.0
  %4151 = vmatpush1.msra.mxu0 0.0
  %4152 = vmatprep.subr.mxu0 0.0
  %4153 = vmatpush1.msra.mxu0 0.0
  %4154 = vmatprep.subr.mxu0 0.0
  %4155 = vmatpush1.msra.mxu0 0.0
  %4156 = vmatprep.subr.mxu0 0.0
  %4157 = vmatpush1.msra.mxu0 0.0
  %4158 = vmatprep.subr.mxu0 0.0
  %4159 = vmatpush1.msra.mxu0 0.0
  %4160 = vmatprep.subr.mxu0 0.0
  %4161 = vmatpush1.msra.mxu0 0.0
  %4162 = vmatprep.subr.mxu0 0.0
  %4163 = vmatpush1.msra.mxu0 0.0
  %4164 = vmatprep.subr.mxu0 0.0
  %4165 = vmatpush1.msra.mxu0 0.0
  %4166 = vmatprep.subr.mxu0 0.0
  %4167 = vmatpush1.msra.mxu0 0.0
  %4168 = vmatprep.subr.mxu0 0.0
  %4169 = vmatpush1.msra.mxu0 0.0
  %4170 = vmatprep.mubr.f32.mxu0 0.0
  %4171 = vmatmul.mubr.f32.gmra.mrb[0].mxu0 %v4097
  %v4172 = vpop.f32.mrb[0].mxu0
  %v4173 = vadd.f32 0.0, %v4172
  %v4174 = vpop.f32.mrb[0].mxu0
  %4175 = vmatprep.mubr.f32.mxu0 0.0
  %4176 = vmatmul.mubr.f32.gmra.mrb[0].mxu0 %v4098
  %v4177 = vpop.f32.mrb[0].mxu0
  %v4178 = vadd.f32 0.0, %v4177
  %v4179 = vpop.f32.mrb[0].mxu0
  %4180 = vmatprep.mubr.f32.mxu0 0.0
  %4181 = vmatmul.mubr.f32.gmra.mrb[0].mxu0 %v4099
  %v4182 = vpop.f32.mrb[0].mxu0
  %v4183 = vadd.f32 0.0, %v4182
  %v4184 = vpop.f32.mrb[0].mxu0
  %4185 = vmatprep.mubr.f32.mxu0 0.0
  %4186 = vmatmul.mubr.f32.gmra.mrb[0].mxu0 %v4100
  %v4187 = vpop.f32.mrb[0].mxu0
  %v4188 = vadd.f32 0.0, %v4187
  %v4189 = vpop.f32.mrb[0].mxu0
  %4190 = vmatprep.mubr.f32.mxu0 0.0
  %4191 = vmatmul.mubr.f32.gmra.mrb[0].mxu0 %v4101
  %v4192 = vpop.f32.mrb[0].mxu0
  %v4193 = vadd.f32 0.0, %v4192
  %v4194 = vpop.f32.mrb[0].mxu0
  %4195 = vmatprep.mubr.f32.mxu0 0.0
  %4196 = vmatmul.mubr.f32.gmra.mrb[0].mxu0 %v4102
  %v4197 = vpop.f32.mrb[0].mxu0
  %v4198 = vadd.f32 0.0, %v4197
  %v4199 = vpop.f32.mrb[0].mxu0
  %4200 = vmatprep.mubr.f32.mxu0 0.0
  %4201 = vmatmul.mubr.f32.gmra.mrb[0].mxu0 %v4103
  %v4202 = vpop.f32.mrb[0].mxu0
  %v4203 = vadd.f32 0.0, %v4202
  %v4204 = vpop.f32.mrb[0].mxu0
  %4205 = vmatprep.mubr.f32.mxu0 0.0
  %4206 = vmatmul.mubr.f32.gmra.mrb[0].mxu0 %v4104
  %v4207 = vpop.f32.mrb[0].mxu0
  %v4208 = vadd.f32 0.0, %v4207
  %v4209 = vpop.f32.mrb[0].mxu0
  %4210 = vmatprep.mubr.f32.mxu0 0.0
  %4211 = vmatmul.mubr.f32.gmra.mrb[0].mxu0 %v4105
  %v4212 = vpop.f32.mrb[0].mxu0
  %v4213 = vadd.f32 0.0, %v4212
  %v4214 = vpop.f32.mrb[0].mxu0
  %4215 = vdwg.mxu0
  %s4216 = scalar_lea.vmem %s4, 1920
  %v4217 = vld [vmem:[%s4216] sm:$0xff]
  %v4218 = vld [vmem:[%s4216 + $0x8] sm:$0xff]
  %v4219 = vld [vmem:[%s4216 + $0x10] sm:$0xff]
  %v4220 = vld [vmem:[%s4216 + $0x18] sm:$0xff]
  %v4221 = vld [vmem:[%s4216 + $0x20] sm:$0xff]
  %v4222 = vld [vmem:[%s4216 + $0x28] sm:$0xff]
  %v4223 = vld [vmem:[%s4216 + $0x30] sm:$0xff]
  %v4224 = vld [vmem:[%s4216 + $0x38] sm:$0xff]
  %v4225 = vld [vmem:[%s4216 + $0x40] sm:$0xff]
  %v4226 = vld [vmem:[%s4216 + $0x48] sm:$0xff]
  %v4227 = vld [vmem:[%s4216 + $0x50] sm:$0xff]
  %v4228 = vld [vmem:[%s4216 + $0x58] sm:$0xff]
  %v4229 = vld [vmem:[%s4216 + $0x60] sm:$0xff]
  %v4230 = vld [vmem:[%s4216 + $0x68] sm:$0xff]
  %v4231 = vld [vmem:[%s4216 + $0x70] sm:$0xff]
  %v4232 = vld [vmem:[%s4216 + $0x78] sm:$0xff]
  %4233 = vmatprep.subr.mxu0 0.0
  %4234 = vmatpush1.msra.mxu0 %v4217
  %4235 = vmatprep.subr.mxu0 0.0
  %4236 = vmatpush1.msra.mxu0 %v4218
  %4237 = vmatprep.subr.mxu0 0.0
  %4238 = vmatpush1.msra.mxu0 %v4219
  %4239 = vmatprep.subr.mxu0 0.0
  %4240 = vmatpush1.msra.mxu0 %v4220
  %4241 = vmatprep.subr.mxu0 0.0
  %4242 = vmatpush1.msra.mxu0 %v4221
  %4243 = vmatprep.subr.mxu0 0.0
  %4244 = vmatpush1.msra.mxu0 %v4222
  %4245 = vmatprep.subr.mxu0 0.0
  %4246 = vmatpush1.msra.mxu0 %v4223
  %4247 = vmatprep.subr.mxu0 0.0
  %4248 = vmatpush1.msra.mxu0 %v4224
  %4249 = vmatprep.subr.mxu0 0.0
  %4250 = vmatpush1.msra.mxu0 %v4225
  %4251 = vmatprep.subr.mxu0 0.0
  %4252 = vmatpush1.msra.mxu0 %v4226
  %4253 = vmatprep.subr.mxu0 0.0
  %4254 = vmatpush1.msra.mxu0 %v4227
  %4255 = vmatprep.subr.mxu0 0.0
  %4256 = vmatpush1.msra.mxu0 %v4228
  %4257 = vmatprep.subr.mxu0 0.0
  %4258 = vmatpush1.msra.mxu0 %v4229
  %4259 = vmatprep.subr.mxu0 0.0
  %4260 = vmatpush1.msra.mxu0 %v4230
  %4261 = vmatprep.subr.mxu0 0.0
  %4262 = vmatpush1.msra.mxu0 %v4231
  %4263 = vmatprep.subr.mxu0 0.0
  %4264 = vmatpush1.msra.mxu0 %v4232
  %4265 = vmatprep.subr.mxu0 0.0
  %4266 = vmatpush1.msra.mxu0 0.0
  %4267 = vmatprep.subr.mxu0 0.0
  %4268 = vmatpush1.msra.mxu0 0.0
  %4269 = vmatprep.subr.mxu0 0.0
  %4270 = vmatpush1.msra.mxu0 0.0
  %4271 = vmatprep.subr.mxu0 0.0
  %4272 = vmatpush1.msra.mxu0 0.0
  %4273 = vmatprep.subr.mxu0 0.0
  %4274 = vmatpush1.msra.mxu0 0.0
  %4275 = vmatprep.subr.mxu0 0.0
  %4276 = vmatpush1.msra.mxu0 0.0
  %4277 = vmatprep.subr.mxu0 0.0
  %4278 = vmatpush1.msra.mxu0 0.0
  %4279 = vmatprep.subr.mxu0 0.0
  %4280 = vmatpush1.msra.mxu0 0.0
  %4281 = vmatprep.subr.mxu0 0.0
  %4282 = vmatpush1.msra.mxu0 0.0
  %4283 = vmatprep.subr.mxu0 0.0
  %4284 = vmatpush1.msra.mxu0 0.0
  %4285 = vmatprep.subr.mxu0 0.0
  %4286 = vmatpush1.msra.mxu0 0.0
  %4287 = vmatprep.subr.mxu0 0.0
  %4288 = vmatpush1.msra.mxu0 0.0
  %4289 = vmatprep.subr.mxu0 0.0
  %4290 = vmatpush1.msra.mxu0 0.0
  %4291 = vmatprep.subr.mxu0 0.0
  %4292 = vmatpush1.msra.mxu0 0.0
  %4293 = vmatprep.subr.mxu0 0.0
  %4294 = vmatpush1.msra.mxu0 0.0
  %4295 = vmatprep.subr.mxu0 0.0
  %4296 = vmatpush1.msra.mxu0 0.0
  %4297 = vmatprep.mubr.f32.mxu0 0.0
  %4298 = vmatmul.mubr.f32.gmra.mrb[0].mxu0 %v4173
  %v4299 = vpop.f32.mrb[0].mxu0
  %v4300 = vadd.f32 0.0, %v4299
  %v4301 = vpop.f32.mrb[0].mxu0
  %4302 = vmatprep.mubr.f32.mxu0 0.0
  %4303 = vmatmul.mubr.f32.gmra.mrb[0].mxu0 %v4178
  %v4304 = vpop.f32.mrb[0].mxu0
  %v4305 = vadd.f32 0.0, %v4304
  %v4306 = vpop.f32.mrb[0].mxu0
  %4307 = vmatprep.mubr.f32.mxu0 0.0
  %4308 = vmatmul.mubr.f32.gmra.mrb[0].mxu0 %v4183
  %v4309 = vpop.f32.mrb[0].mxu0
  %v4310 = vadd.f32 0.0, %v4309
  %v4311 = vpop.f32.mrb[0].mxu0
  %4312 = vmatprep.mubr.f32.mxu0 0.0
  %4313 = vmatmul.mubr.f32.gmra.mrb[0].mxu0 %v4188
  %v4314 = vpop.f32.mrb[0].mxu0
  %v4315 = vadd.f32 0.0, %v4314
  %v4316 = vpop.f32.mrb[0].mxu0
  %4317 = vmatprep.mubr.f32.mxu0 0.0
  %4318 = vmatmul.mubr.f32.gmra.mrb[0].mxu0 %v4193
  %v4319 = vpop.f32.mrb[0].mxu0
  %v4320 = vadd.f32 0.0, %v4319
  %v4321 = vpop.f32.mrb[0].mxu0
  %4322 = vmatprep.mubr.f32.mxu0 0.0
  %4323 = vmatmul.mubr.f32.gmra.mrb[0].mxu0 %v4198
  %v4324 = vpop.f32.mrb[0].mxu0
  %v4325 = vadd.f32 0.0, %v4324
  %v4326 = vpop.f32.mrb[0].mxu0
  %4327 = vmatprep.mubr.f32.mxu0 0.0
  %4328 = vmatmul.mubr.f32.gmra.mrb[0].mxu0 %v4203
  %v4329 = vpop.f32.mrb[0].mxu0
  %v4330 = vadd.f32 0.0, %v4329
  %v4331 = vpop.f32.mrb[0].mxu0
  %4332 = vmatprep.mubr.f32.mxu0 0.0
  %4333 = vmatmul.mubr.f32.gmra.mrb[0].mxu0 %v4208
  %v4334 = vpop.f32.mrb[0].mxu0
  %v4335 = vadd.f32 0.0, %v4334
  %v4336 = vpop.f32.mrb[0].mxu0
  %4337 = vmatprep.mubr.f32.mxu0 0.0
  %4338 = vmatmul.mubr.f32.gmra.mrb[0].mxu0 %v4213
  %v4339 = vpop.f32.mrb[0].mxu0
  %v4340 = vadd.f32 0.0, %v4339
  %v4341 = vpop.f32.mrb[0].mxu0
  %4342 = vdwg.mxu0
  %v4343 = vadd.f32 %v4087, %v4300
  %v4344 = vadd.f32 %v4088, %v4305
  %v4345 = vadd.f32 %v4089, %v4310
  %v4346 = vadd.f32 %v4090, %v4315
  %v4347 = vadd.f32 %v4091, %v4320
  %v4348 = vadd.f32 %v4092, %v4325
  %v4349 = vadd.f32 %v4093, %v4330
  %v4350 = vadd.f32 %v4094, %v4335
  %v4351 = vadd.f32 %v4095, %v4340
  %v4352 = vld [vmem:[%s5] sm:$0x1]
  %v4354 = vlaneseq
  %v4355 = vshrl.u32 %v4354, 7
  %v4356 = vsub.s32 0, %v4355
  %v4357 = vrot.slane %v4352, %v4356
  %v4359 = vadd.f32 %v4343, %v4357
  %v4360 = vadd.f32 %v4344, %v4357
  %v4361 = vadd.f32 %v4345, %v4357
  %v4362 = vadd.f32 %v4346, %v4357
  %v4363 = vadd.f32 %v4347, %v4357
  %v4364 = vadd.f32 %v4348, %v4357
  %v4365 = vadd.f32 %v4349, %v4357
  %v4366 = vadd.f32 %v4350, %v4357
  %v4367 = vadd.f32 %v4351, %v4357
  %v4368 = vmax.f32 %v4359, 0.0
  %v4369 = vmax.f32 %v4360, 0.0
  %v4370 = vmax.f32 %v4361, 0.0
  %v4371 = vmax.f32 %v4362, 0.0
  %v4372 = vmax.f32 %v4363, 0.0
  %v4373 = vmax.f32 %v4364, 0.0
  %v4374 = vmax.f32 %v4365, 0.0
  %v4375 = vmax.f32 %v4366, 0.0
  %v4376 = vmax.f32 %v4367, 0.0
  %v4377 = vld [vmem:[%s6] sm:$0xff]
  %v4378 = vld [vmem:[%s6 + $0x8] sm:$0xff]
  %v4379 = vld [vmem:[%s6 + $0x10] sm:$0xff]
  %v4380 = vld [vmem:[%s6 + $0x18] sm:$0xff]
  %v4381 = vld [vmem:[%s6 + $0x20] sm:$0xff]
  %v4382 = vld [vmem:[%s6 + $0x28] sm:$0xff]
  %v4383 = vld [vmem:[%s6 + $0x30] sm:$0xff]
  %v4384 = vld [vmem:[%s6 + $0x38] sm:$0xff]
  %v4385 = vld [vmem:[%s6 + $0x40] sm:$0xff]
  %v4386 = vld [vmem:[%s6 + $0x48] sm:$0xff]
  %v4387 = vld [vmem:[%s6 + $0x50] sm:$0xff]
  %v4388 = vld [vmem:[%s6 + $0x58] sm:$0xff]
  %v4389 = vld [vmem:[%s6 + $0x60] sm:$0xff]
  %v4390 = vld [vmem:[%s6 + $0x68] sm:$0xff]
  %v4391 = vld [vmem:[%s6 + $0x70] sm:$0xff]
  %v4392 = vld [vmem:[%s6 + $0x78] sm:$0xff]
  %s4393 = scalar_lea.vmem %s6, 128
  %v4394 = vld [vmem:[%s4393] sm:$0xff]
  %v4395 = vld [vmem:[%s4393 + $0x8] sm:$0xff]
  %v4396 = vld [vmem:[%s4393 + $0x10] sm:$0xff]
  %v4397 = vld [vmem:[%s4393 + $0x18] sm:$0xff]
  %v4398 = vld [vmem:[%s4393 + $0x20] sm:$0xff]
  %v4399 = vld [vmem:[%s4393 + $0x28] sm:$0xff]
  %v4400 = vld [vmem:[%s4393 + $0x30] sm:$0xff]
  %v4401 = vld [vmem:[%s4393 + $0x38] sm:$0xff]
  %v4402 = vld [vmem:[%s4393 + $0x40] sm:$0xff]
  %v4403 = vld [vmem:[%s4393 + $0x48] sm:$0xff]
  %v4404 = vld [vmem:[%s4393 + $0x50] sm:$0xff]
  %v4405 = vld [vmem:[%s4393 + $0x58] sm:$0xff]
  %v4406 = vld [vmem:[%s4393 + $0x60] sm:$0xff]
  %v4407 = vld [vmem:[%s4393 + $0x68] sm:$0xff]
  %v4408 = vld [vmem:[%s4393 + $0x70] sm:$0xff]
  %v4409 = vld [vmem:[%s4393 + $0x78] sm:$0xff]
  %4410 = vmatprep.subr.mxu0 0.0
  %4411 = vmatpush1.msra.mxu0 %v4394
  %4412 = vmatprep.subr.mxu0 0.0
  %4413 = vmatpush1.msra.mxu0 %v4395
  %4414 = vmatprep.subr.mxu0 0.0
  %4415 = vmatpush1.msra.mxu0 %v4396
  %4416 = vmatprep.subr.mxu0 0.0
  %4417 = vmatpush1.msra.mxu0 %v4397
  %4418 = vmatprep.subr.mxu0 0.0
  %4419 = vmatpush1.msra.mxu0 %v4398
  %4420 = vmatprep.subr.mxu0 0.0
  %4421 = vmatpush1.msra.mxu0 %v4399
  %4422 = vmatprep.subr.mxu0 0.0
  %4423 = vmatpush1.msra.mxu0 %v4400
  %4424 = vmatprep.subr.mxu0 0.0
  %4425 = vmatpush1.msra.mxu0 %v4401
  %4426 = vmatprep.subr.mxu0 0.0
  %4427 = vmatpush1.msra.mxu0 %v4402
  %4428 = vmatprep.subr.mxu0 0.0
  %4429 = vmatpush1.msra.mxu0 %v4403
  %4430 = vmatprep.subr.mxu0 0.0
  %4431 = vmatpush1.msra.mxu0 %v4404
  %4432 = vmatprep.subr.mxu0 0.0
  %4433 = vmatpush1.msra.mxu0 %v4405
  %4434 = vmatprep.subr.mxu0 0.0
  %4435 = vmatpush1.msra.mxu0 %v4406
  %4436 = vmatprep.subr.mxu0 0.0
  %4437 = vmatpush1.msra.mxu0 %v4407
  %4438 = vmatprep.subr.mxu0 0.0
  %4439 = vmatpush1.msra.mxu0 %v4408
  %4440 = vmatprep.subr.mxu0 0.0
  %4441 = vmatpush1.msra.mxu0 %v4409
  %4442 = vmatprep.subr.mxu0 0.0
  %4443 = vmatpush1.msra.mxu0 0.0
  %4444 = vmatprep.subr.mxu0 0.0
  %4445 = vmatpush1.msra.mxu0 0.0
  %4446 = vmatprep.subr.mxu0 0.0
  %4447 = vmatpush1.msra.mxu0 0.0
  %4448 = vmatprep.subr.mxu0 0.0
  %4449 = vmatpush1.msra.mxu0 0.0
  %4450 = vmatprep.subr.mxu0 0.0
  %4451 = vmatpush1.msra.mxu0 0.0
  %4452 = vmatprep.subr.mxu0 0.0
  %4453 = vmatpush1.msra.mxu0 0.0
  %4454 = vmatprep.subr.mxu0 0.0
  %4455 = vmatpush1.msra.mxu0 0.0
  %4456 = vmatprep.subr.mxu0 0.0
  %4457 = vmatpush1.msra.mxu0 0.0
  %4458 = vmatprep.subr.mxu0 0.0
  %4459 = vmatpush1.msra.mxu0 0.0
  %4460 = vmatprep.subr.mxu0 0.0
  %4461 = vmatpush1.msra.mxu0 0.0
  %4462 = vmatprep.subr.mxu0 0.0
  %4463 = vmatpush1.msra.mxu0 0.0
  %4464 = vmatprep.subr.mxu0 0.0
  %4465 = vmatpush1.msra.mxu0 0.0
  %4466 = vmatprep.subr.mxu0 0.0
  %4467 = vmatpush1.msra.mxu0 0.0
  %4468 = vmatprep.subr.mxu0 0.0
  %4469 = vmatpush1.msra.mxu0 0.0
  %4470 = vmatprep.subr.mxu0 0.0
  %4471 = vmatpush1.msra.mxu0 0.0
  %4472 = vmatprep.subr.mxu0 0.0
  %4473 = vmatpush1.msra.mxu0 0.0
  %4474 = vmatprep.mubr.f32.mxu0 0.0
  %4475 = vmatmul.mubr.f32.gmra.mrb[0].mxu0 %v4369
  %v4476 = vpop.f32.mrb[0].mxu0
  %v4477 = vadd.f32 0.0, %v4476
  %v4478 = vpop.f32.mrb[0].mxu0
  %4479 = vdwg.mxu0
  %4480 = vmatprep.subr.mxu0 0.0
  %4481 = vmatpush1.msra.mxu0 %v4377
  %4482 = vmatprep.subr.mxu0 0.0
  %4483 = vmatpush1.msra.mxu0 %v4378
  %4484 = vmatprep.subr.mxu0 0.0
  %4485 = vmatpush1.msra.mxu0 %v4379
  %4486 = vmatprep.subr.mxu0 0.0
  %4487 = vmatpush1.msra.mxu0 %v4380
  %4488 = vmatprep.subr.mxu0 0.0
  %4489 = vmatpush1.msra.mxu0 %v4381
  %4490 = vmatprep.subr.mxu0 0.0
  %4491 = vmatpush1.msra.mxu0 %v4382
  %4492 = vmatprep.subr.mxu0 0.0
  %4493 = vmatpush1.msra.mxu0 %v4383
  %4494 = vmatprep.subr.mxu0 0.0
  %4495 = vmatpush1.msra.mxu0 %v4384
  %4496 = vmatprep.subr.mxu0 0.0
  %4497 = vmatpush1.msra.mxu0 %v4385
  %4498 = vmatprep.subr.mxu0 0.0
  %4499 = vmatpush1.msra.mxu0 %v4386
  %4500 = vmatprep.subr.mxu0 0.0
  %4501 = vmatpush1.msra.mxu0 %v4387
  %4502 = vmatprep.subr.mxu0 0.0
  %4503 = vmatpush1.msra.mxu0 %v4388
  %4504 = vmatprep.subr.mxu0 0.0
  %4505 = vmatpush1.msra.mxu0 %v4389
  %4506 = vmatprep.subr.mxu0 0.0
  %4507 = vmatpush1.msra.mxu0 %v4390
  %4508 = vmatprep.subr.mxu0 0.0
  %4509 = vmatpush1.msra.mxu0 %v4391
  %4510 = vmatprep.subr.mxu0 0.0
  %4511 = vmatpush1.msra.mxu0 %v4392
  %4512 = vmatprep.subr.mxu0 0.0
  %4513 = vmatpush1.msra.mxu0 0.0
  %4514 = vmatprep.subr.mxu0 0.0
  %4515 = vmatpush1.msra.mxu0 0.0
  %4516 = vmatprep.subr.mxu0 0.0
  %4517 = vmatpush1.msra.mxu0 0.0
  %4518 = vmatprep.subr.mxu0 0.0
  %4519 = vmatpush1.msra.mxu0 0.0
  %4520 = vmatprep.subr.mxu0 0.0
  %4521 = vmatpush1.msra.mxu0 0.0
  %4522 = vmatprep.subr.mxu0 0.0
  %4523 = vmatpush1.msra.mxu0 0.0
  %4524 = vmatprep.subr.mxu0 0.0
  %4525 = vmatpush1.msra.mxu0 0.0
  %4526 = vmatprep.subr.mxu0 0.0
  %4527 = vmatpush1.msra.mxu0 0.0
  %4528 = vmatprep.subr.mxu0 0.0
  %4529 = vmatpush1.msra.mxu0 0.0
  %4530 = vmatprep.subr.mxu0 0.0
  %4531 = vmatpush1.msra.mxu0 0.0
  %4532 = vmatprep.subr.mxu0 0.0
  %4533 = vmatpush1.msra.mxu0 0.0
  %4534 = vmatprep.subr.mxu0 0.0
  %4535 = vmatpush1.msra.mxu0 0.0
  %4536 = vmatprep.subr.mxu0 0.0
  %4537 = vmatpush1.msra.mxu0 0.0
  %4538 = vmatprep.subr.mxu0 0.0
  %4539 = vmatpush1.msra.mxu0 0.0
  %4540 = vmatprep.subr.mxu0 0.0
  %4541 = vmatpush1.msra.mxu0 0.0
  %4542 = vmatprep.subr.mxu0 0.0
  %4543 = vmatpush1.msra.mxu0 0.0
  %4544 = vmatprep.mubr.f32.mxu0 0.0
  %4545 = vmatmul.mubr.f32.gmra.mrb[0].mxu0 %v4368
  %v4546 = vpop.f32.mrb[0].mxu0
  %v4547 = vadd.f32 %v4477, %v4546
  %v4548 = vpop.f32.mrb[0].mxu0
  %4549 = vdwg.mxu0
  %s4550 = scalar_lea.vmem %s6, 256
  %v4551 = vld [vmem:[%s4550] sm:$0xff]
  %v4552 = vld [vmem:[%s4550 + $0x8] sm:$0xff]
  %v4553 = vld [vmem:[%s4550 + $0x10] sm:$0xff]
  %v4554 = vld [vmem:[%s4550 + $0x18] sm:$0xff]
  %v4555 = vld [vmem:[%s4550 + $0x20] sm:$0xff]
  %v4556 = vld [vmem:[%s4550 + $0x28] sm:$0xff]
  %v4557 = vld [vmem:[%s4550 + $0x30] sm:$0xff]
  %v4558 = vld [vmem:[%s4550 + $0x38] sm:$0xff]
  %v4559 = vld [vmem:[%s4550 + $0x40] sm:$0xff]
  %v4560 = vld [vmem:[%s4550 + $0x48] sm:$0xff]
  %v4561 = vld [vmem:[%s4550 + $0x50] sm:$0xff]
  %v4562 = vld [vmem:[%s4550 + $0x58] sm:$0xff]
  %v4563 = vld [vmem:[%s4550 + $0x60] sm:$0xff]
  %v4564 = vld [vmem:[%s4550 + $0x68] sm:$0xff]
  %v4565 = vld [vmem:[%s4550 + $0x70] sm:$0xff]
  %v4566 = vld [vmem:[%s4550 + $0x78] sm:$0xff]
  %4567 = vmatprep.subr.mxu0 0.0
  %4568 = vmatpush1.msra.mxu0 %v4551
  %4569 = vmatprep.subr.mxu0 0.0
  %4570 = vmatpush1.msra.mxu0 %v4552
  %4571 = vmatprep.subr.mxu0 0.0
  %4572 = vmatpush1.msra.mxu0 %v4553
  %4573 = vmatprep.subr.mxu0 0.0
  %4574 = vmatpush1.msra.mxu0 %v4554
  %4575 = vmatprep.subr.mxu0 0.0
  %4576 = vmatpush1.msra.mxu0 %v4555
  %4577 = vmatprep.subr.mxu0 0.0
  %4578 = vmatpush1.msra.mxu0 %v4556
  %4579 = vmatprep.subr.mxu0 0.0
  %4580 = vmatpush1.msra.mxu0 %v4557
  %4581 = vmatprep.subr.mxu0 0.0
  %4582 = vmatpush1.msra.mxu0 %v4558
  %4583 = vmatprep.subr.mxu0 0.0
  %4584 = vmatpush1.msra.mxu0 %v4559
  %4585 = vmatprep.subr.mxu0 0.0
  %4586 = vmatpush1.msra.mxu0 %v4560
  %4587 = vmatprep.subr.mxu0 0.0
  %4588 = vmatpush1.msra.mxu0 %v4561
  %4589 = vmatprep.subr.mxu0 0.0
  %4590 = vmatpush1.msra.mxu0 %v4562
  %4591 = vmatprep.subr.mxu0 0.0
  %4592 = vmatpush1.msra.mxu0 %v4563
  %4593 = vmatprep.subr.mxu0 0.0
  %4594 = vmatpush1.msra.mxu0 %v4564
  %4595 = vmatprep.subr.mxu0 0.0
  %4596 = vmatpush1.msra.mxu0 %v4565
  %4597 = vmatprep.subr.mxu0 0.0
  %4598 = vmatpush1.msra.mxu0 %v4566
  %4599 = vmatprep.subr.mxu0 0.0
  %4600 = vmatpush1.msra.mxu0 0.0
  %4601 = vmatprep.subr.mxu0 0.0
  %4602 = vmatpush1.msra.mxu0 0.0
  %4603 = vmatprep.subr.mxu0 0.0
  %4604 = vmatpush1.msra.mxu0 0.0
  %4605 = vmatprep.subr.mxu0 0.0
  %4606 = vmatpush1.msra.mxu0 0.0
  %4607 = vmatprep.subr.mxu0 0.0
  %4608 = vmatpush1.msra.mxu0 0.0
  %4609 = vmatprep.subr.mxu0 0.0
  %4610 = vmatpush1.msra.mxu0 0.0
  %4611 = vmatprep.subr.mxu0 0.0
  %4612 = vmatpush1.msra.mxu0 0.0
  %4613 = vmatprep.subr.mxu0 0.0
  %4614 = vmatpush1.msra.mxu0 0.0
  %4615 = vmatprep.subr.mxu0 0.0
  %4616 = vmatpush1.msra.mxu0 0.0
  %4617 = vmatprep.subr.mxu0 0.0
  %4618 = vmatpush1.msra.mxu0 0.0
  %4619 = vmatprep.subr.mxu0 0.0
  %4620 = vmatpush1.msra.mxu0 0.0
  %4621 = vmatprep.subr.mxu0 0.0
  %4622 = vmatpush1.msra.mxu0 0.0
  %4623 = vmatprep.subr.mxu0 0.0
  %4624 = vmatpush1.msra.mxu0 0.0
  %4625 = vmatprep.subr.mxu0 0.0
  %4626 = vmatpush1.msra.mxu0 0.0
  %4627 = vmatprep.subr.mxu0 0.0
  %4628 = vmatpush1.msra.mxu0 0.0
  %4629 = vmatprep.subr.mxu0 0.0
  %4630 = vmatpush1.msra.mxu0 0.0
  %4631 = vmatprep.mubr.f32.mxu0 0.0
  %4632 = vmatmul.mubr.f32.gmra.mrb[0].mxu0 %v4370
  %v4633 = vpop.f32.mrb[0].mxu0
  %v4634 = vadd.f32 0.0, %v4633
  %v4635 = vpop.f32.mrb[0].mxu0
  %4636 = vdwg.mxu0
  %v4637 = vadd.f32 %v4547, %v4634
  %s4638 = scalar_lea.vmem %s6, 384
  %v4639 = vld [vmem:[%s4638] sm:$0xff]
  %v4640 = vld [vmem:[%s4638 + $0x8] sm:$0xff]
  %v4641 = vld [vmem:[%s4638 + $0x10] sm:$0xff]
  %v4642 = vld [vmem:[%s4638 + $0x18] sm:$0xff]
  %v4643 = vld [vmem:[%s4638 + $0x20] sm:$0xff]
  %v4644 = vld [vmem:[%s4638 + $0x28] sm:$0xff]
  %v4645 = vld [vmem:[%s4638 + $0x30] sm:$0xff]
  %v4646 = vld [vmem:[%s4638 + $0x38] sm:$0xff]
  %v4647 = vld [vmem:[%s4638 + $0x40] sm:$0xff]
  %v4648 = vld [vmem:[%s4638 + $0x48] sm:$0xff]
  %v4649 = vld [vmem:[%s4638 + $0x50] sm:$0xff]
  %v4650 = vld [vmem:[%s4638 + $0x58] sm:$0xff]
  %v4651 = vld [vmem:[%s4638 + $0x60] sm:$0xff]
  %v4652 = vld [vmem:[%s4638 + $0x68] sm:$0xff]
  %v4653 = vld [vmem:[%s4638 + $0x70] sm:$0xff]
  %v4654 = vld [vmem:[%s4638 + $0x78] sm:$0xff]
  %4655 = vmatprep.subr.mxu0 0.0
  %4656 = vmatpush1.msra.mxu0 %v4639
  %4657 = vmatprep.subr.mxu0 0.0
  %4658 = vmatpush1.msra.mxu0 %v4640
  %4659 = vmatprep.subr.mxu0 0.0
  %4660 = vmatpush1.msra.mxu0 %v4641
  %4661 = vmatprep.subr.mxu0 0.0
  %4662 = vmatpush1.msra.mxu0 %v4642
  %4663 = vmatprep.subr.mxu0 0.0
  %4664 = vmatpush1.msra.mxu0 %v4643
  %4665 = vmatprep.subr.mxu0 0.0
  %4666 = vmatpush1.msra.mxu0 %v4644
  %4667 = vmatprep.subr.mxu0 0.0
  %4668 = vmatpush1.msra.mxu0 %v4645
  %4669 = vmatprep.subr.mxu0 0.0
  %4670 = vmatpush1.msra.mxu0 %v4646
  %4671 = vmatprep.subr.mxu0 0.0
  %4672 = vmatpush1.msra.mxu0 %v4647
  %4673 = vmatprep.subr.mxu0 0.0
  %4674 = vmatpush1.msra.mxu0 %v4648
  %4675 = vmatprep.subr.mxu0 0.0
  %4676 = vmatpush1.msra.mxu0 %v4649
  %4677 = vmatprep.subr.mxu0 0.0
  %4678 = vmatpush1.msra.mxu0 %v4650
  %4679 = vmatprep.subr.mxu0 0.0
  %4680 = vmatpush1.msra.mxu0 %v4651
  %4681 = vmatprep.subr.mxu0 0.0
  %4682 = vmatpush1.msra.mxu0 %v4652
  %4683 = vmatprep.subr.mxu0 0.0
  %4684 = vmatpush1.msra.mxu0 %v4653
  %4685 = vmatprep.subr.mxu0 0.0
  %4686 = vmatpush1.msra.mxu0 %v4654
  %4687 = vmatprep.subr.mxu0 0.0
  %4688 = vmatpush1.msra.mxu0 0.0
  %4689 = vmatprep.subr.mxu0 0.0
  %4690 = vmatpush1.msra.mxu0 0.0
  %4691 = vmatprep.subr.mxu0 0.0
  %4692 = vmatpush1.msra.mxu0 0.0
  %4693 = vmatprep.subr.mxu0 0.0
  %4694 = vmatpush1.msra.mxu0 0.0
  %4695 = vmatprep.subr.mxu0 0.0
  %4696 = vmatpush1.msra.mxu0 0.0
  %4697 = vmatprep.subr.mxu0 0.0
  %4698 = vmatpush1.msra.mxu0 0.0
  %4699 = vmatprep.subr.mxu0 0.0
  %4700 = vmatpush1.msra.mxu0 0.0
  %4701 = vmatprep.subr.mxu0 0.0
  %4702 = vmatpush1.msra.mxu0 0.0
  %4703 = vmatprep.subr.mxu0 0.0
  %4704 = vmatpush1.msra.mxu0 0.0
  %4705 = vmatprep.subr.mxu0 0.0
  %4706 = vmatpush1.msra.mxu0 0.0
  %4707 = vmatprep.subr.mxu0 0.0
  %4708 = vmatpush1.msra.mxu0 0.0
  %4709 = vmatprep.subr.mxu0 0.0
  %4710 = vmatpush1.msra.mxu0 0.0
  %4711 = vmatprep.subr.mxu0 0.0
  %4712 = vmatpush1.msra.mxu0 0.0
  %4713 = vmatprep.subr.mxu0 0.0
  %4714 = vmatpush1.msra.mxu0 0.0
  %4715 = vmatprep.subr.mxu0 0.0
  %4716 = vmatpush1.msra.mxu0 0.0
  %4717 = vmatprep.subr.mxu0 0.0
  %4718 = vmatpush1.msra.mxu0 0.0
  %4719 = vmatprep.mubr.f32.mxu0 0.0
  %4720 = vmatmul.mubr.f32.gmra.mrb[0].mxu0 %v4371
  %v4721 = vpop.f32.mrb[0].mxu0
  %v4722 = vadd.f32 0.0, %v4721
  %v4723 = vpop.f32.mrb[0].mxu0
  %4724 = vdwg.mxu0
  %v4725 = vadd.f32 %v4637, %v4722
  %s4726 = scalar_lea.vmem %s6, 512
  %v4727 = vld [vmem:[%s4726] sm:$0xff]
  %v4728 = vld [vmem:[%s4726 + $0x8] sm:$0xff]
  %v4729 = vld [vmem:[%s4726 + $0x10] sm:$0xff]
  %v4730 = vld [vmem:[%s4726 + $0x18] sm:$0xff]
  %v4731 = vld [vmem:[%s4726 + $0x20] sm:$0xff]
  %v4732 = vld [vmem:[%s4726 + $0x28] sm:$0xff]
  %v4733 = vld [vmem:[%s4726 + $0x30] sm:$0xff]
  %v4734 = vld [vmem:[%s4726 + $0x38] sm:$0xff]
  %v4735 = vld [vmem:[%s4726 + $0x40] sm:$0xff]
  %v4736 = vld [vmem:[%s4726 + $0x48] sm:$0xff]
  %v4737 = vld [vmem:[%s4726 + $0x50] sm:$0xff]
  %v4738 = vld [vmem:[%s4726 + $0x58] sm:$0xff]
  %v4739 = vld [vmem:[%s4726 + $0x60] sm:$0xff]
  %v4740 = vld [vmem:[%s4726 + $0x68] sm:$0xff]
  %v4741 = vld [vmem:[%s4726 + $0x70] sm:$0xff]
  %v4742 = vld [vmem:[%s4726 + $0x78] sm:$0xff]
  %4743 = vmatprep.subr.mxu0 0.0
  %4744 = vmatpush1.msra.mxu0 %v4727
  %4745 = vmatprep.subr.mxu0 0.0
  %4746 = vmatpush1.msra.mxu0 %v4728
  %4747 = vmatprep.subr.mxu0 0.0
  %4748 = vmatpush1.msra.mxu0 %v4729
  %4749 = vmatprep.subr.mxu0 0.0
  %4750 = vmatpush1.msra.mxu0 %v4730
  %4751 = vmatprep.subr.mxu0 0.0
  %4752 = vmatpush1.msra.mxu0 %v4731
  %4753 = vmatprep.subr.mxu0 0.0
  %4754 = vmatpush1.msra.mxu0 %v4732
  %4755 = vmatprep.subr.mxu0 0.0
  %4756 = vmatpush1.msra.mxu0 %v4733
  %4757 = vmatprep.subr.mxu0 0.0
  %4758 = vmatpush1.msra.mxu0 %v4734
  %4759 = vmatprep.subr.mxu0 0.0
  %4760 = vmatpush1.msra.mxu0 %v4735
  %4761 = vmatprep.subr.mxu0 0.0
  %4762 = vmatpush1.msra.mxu0 %v4736
  %4763 = vmatprep.subr.mxu0 0.0
  %4764 = vmatpush1.msra.mxu0 %v4737
  %4765 = vmatprep.subr.mxu0 0.0
  %4766 = vmatpush1.msra.mxu0 %v4738
  %4767 = vmatprep.subr.mxu0 0.0
  %4768 = vmatpush1.msra.mxu0 %v4739
  %4769 = vmatprep.subr.mxu0 0.0
  %4770 = vmatpush1.msra.mxu0 %v4740
  %4771 = vmatprep.subr.mxu0 0.0
  %4772 = vmatpush1.msra.mxu0 %v4741
  %4773 = vmatprep.subr.mxu0 0.0
  %4774 = vmatpush1.msra.mxu0 %v4742
  %4775 = vmatprep.subr.mxu0 0.0
  %4776 = vmatpush1.msra.mxu0 0.0
  %4777 = vmatprep.subr.mxu0 0.0
  %4778 = vmatpush1.msra.mxu0 0.0
  %4779 = vmatprep.subr.mxu0 0.0
  %4780 = vmatpush1.msra.mxu0 0.0
  %4781 = vmatprep.subr.mxu0 0.0
  %4782 = vmatpush1.msra.mxu0 0.0
  %4783 = vmatprep.subr.mxu0 0.0
  %4784 = vmatpush1.msra.mxu0 0.0
  %4785 = vmatprep.subr.mxu0 0.0
  %4786 = vmatpush1.msra.mxu0 0.0
  %4787 = vmatprep.subr.mxu0 0.0
  %4788 = vmatpush1.msra.mxu0 0.0
  %4789 = vmatprep.subr.mxu0 0.0
  %4790 = vmatpush1.msra.mxu0 0.0
  %4791 = vmatprep.subr.mxu0 0.0
  %4792 = vmatpush1.msra.mxu0 0.0
  %4793 = vmatprep.subr.mxu0 0.0
  %4794 = vmatpush1.msra.mxu0 0.0
  %4795 = vmatprep.subr.mxu0 0.0
  %4796 = vmatpush1.msra.mxu0 0.0
  %4797 = vmatprep.subr.mxu0 0.0
  %4798 = vmatpush1.msra.mxu0 0.0
  %4799 = vmatprep.subr.mxu0 0.0
  %4800 = vmatpush1.msra.mxu0 0.0
  %4801 = vmatprep.subr.mxu0 0.0
  %4802 = vmatpush1.msra.mxu0 0.0
  %4803 = vmatprep.subr.mxu0 0.0
  %4804 = vmatpush1.msra.mxu0 0.0
  %4805 = vmatprep.subr.mxu0 0.0
  %4806 = vmatpush1.msra.mxu0 0.0
  %4807 = vmatprep.mubr.f32.mxu0 0.0
  %4808 = vmatmul.mubr.f32.gmra.mrb[0].mxu0 %v4372
  %v4809 = vpop.f32.mrb[0].mxu0
  %v4810 = vadd.f32 0.0, %v4809
  %v4811 = vpop.f32.mrb[0].mxu0
  %4812 = vdwg.mxu0
  %v4813 = vadd.f32 %v4725, %v4810
  %s4814 = scalar_lea.vmem %s6, 640
  %v4815 = vld [vmem:[%s4814] sm:$0xff]
  %v4816 = vld [vmem:[%s4814 + $0x8] sm:$0xff]
  %v4817 = vld [vmem:[%s4814 + $0x10] sm:$0xff]
  %v4818 = vld [vmem:[%s4814 + $0x18] sm:$0xff]
  %v4819 = vld [vmem:[%s4814 + $0x20] sm:$0xff]
  %v4820 = vld [vmem:[%s4814 + $0x28] sm:$0xff]
  %v4821 = vld [vmem:[%s4814 + $0x30] sm:$0xff]
  %v4822 = vld [vmem:[%s4814 + $0x38] sm:$0xff]
  %v4823 = vld [vmem:[%s4814 + $0x40] sm:$0xff]
  %v4824 = vld [vmem:[%s4814 + $0x48] sm:$0xff]
  %v4825 = vld [vmem:[%s4814 + $0x50] sm:$0xff]
  %v4826 = vld [vmem:[%s4814 + $0x58] sm:$0xff]
  %v4827 = vld [vmem:[%s4814 + $0x60] sm:$0xff]
  %v4828 = vld [vmem:[%s4814 + $0x68] sm:$0xff]
  %v4829 = vld [vmem:[%s4814 + $0x70] sm:$0xff]
  %v4830 = vld [vmem:[%s4814 + $0x78] sm:$0xff]
  %4831 = vmatprep.subr.mxu0 0.0
  %4832 = vmatpush1.msra.mxu0 %v4815
  %4833 = vmatprep.subr.mxu0 0.0
  %4834 = vmatpush1.msra.mxu0 %v4816
  %4835 = vmatprep.subr.mxu0 0.0
  %4836 = vmatpush1.msra.mxu0 %v4817
  %4837 = vmatprep.subr.mxu0 0.0
  %4838 = vmatpush1.msra.mxu0 %v4818
  %4839 = vmatprep.subr.mxu0 0.0
  %4840 = vmatpush1.msra.mxu0 %v4819
  %4841 = vmatprep.subr.mxu0 0.0
  %4842 = vmatpush1.msra.mxu0 %v4820
  %4843 = vmatprep.subr.mxu0 0.0
  %4844 = vmatpush1.msra.mxu0 %v4821
  %4845 = vmatprep.subr.mxu0 0.0
  %4846 = vmatpush1.msra.mxu0 %v4822
  %4847 = vmatprep.subr.mxu0 0.0
  %4848 = vmatpush1.msra.mxu0 %v4823
  %4849 = vmatprep.subr.mxu0 0.0
  %4850 = vmatpush1.msra.mxu0 %v4824
  %4851 = vmatprep.subr.mxu0 0.0
  %4852 = vmatpush1.msra.mxu0 %v4825
  %4853 = vmatprep.subr.mxu0 0.0
  %4854 = vmatpush1.msra.mxu0 %v4826
  %4855 = vmatprep.subr.mxu0 0.0
  %4856 = vmatpush1.msra.mxu0 %v4827
  %4857 = vmatprep.subr.mxu0 0.0
  %4858 = vmatpush1.msra.mxu0 %v4828
  %4859 = vmatprep.subr.mxu0 0.0
  %4860 = vmatpush1.msra.mxu0 %v4829
  %4861 = vmatprep.subr.mxu0 0.0
  %4862 = vmatpush1.msra.mxu0 %v4830
  %4863 = vmatprep.subr.mxu0 0.0
  %4864 = vmatpush1.msra.mxu0 0.0
  %4865 = vmatprep.subr.mxu0 0.0
  %4866 = vmatpush1.msra.mxu0 0.0
  %4867 = vmatprep.subr.mxu0 0.0
  %4868 = vmatpush1.msra.mxu0 0.0
  %4869 = vmatprep.subr.mxu0 0.0
  %4870 = vmatpush1.msra.mxu0 0.0
  %4871 = vmatprep.subr.mxu0 0.0
  %4872 = vmatpush1.msra.mxu0 0.0
  %4873 = vmatprep.subr.mxu0 0.0
  %4874 = vmatpush1.msra.mxu0 0.0
  %4875 = vmatprep.subr.mxu0 0.0
  %4876 = vmatpush1.msra.mxu0 0.0
  %4877 = vmatprep.subr.mxu0 0.0
  %4878 = vmatpush1.msra.mxu0 0.0
  %4879 = vmatprep.subr.mxu0 0.0
  %4880 = vmatpush1.msra.mxu0 0.0
  %4881 = vmatprep.subr.mxu0 0.0
  %4882 = vmatpush1.msra.mxu0 0.0
  %4883 = vmatprep.subr.mxu0 0.0
  %4884 = vmatpush1.msra.mxu0 0.0
  %4885 = vmatprep.subr.mxu0 0.0
  %4886 = vmatpush1.msra.mxu0 0.0
  %4887 = vmatprep.subr.mxu0 0.0
  %4888 = vmatpush1.msra.mxu0 0.0
  %4889 = vmatprep.subr.mxu0 0.0
  %4890 = vmatpush1.msra.mxu0 0.0
  %4891 = vmatprep.subr.mxu0 0.0
  %4892 = vmatpush1.msra.mxu0 0.0
  %4893 = vmatprep.subr.mxu0 0.0
  %4894 = vmatpush1.msra.mxu0 0.0
  %4895 = vmatprep.mubr.f32.mxu0 0.0
  %4896 = vmatmul.mubr.f32.gmra.mrb[0].mxu0 %v4373
  %v4897 = vpop.f32.mrb[0].mxu0
  %v4898 = vadd.f32 0.0, %v4897
  %v4899 = vpop.f32.mrb[0].mxu0
  %4900 = vdwg.mxu0
  %v4901 = vadd.f32 %v4813, %v4898
  %s4902 = scalar_lea.vmem %s6, 768
  %v4903 = vld [vmem:[%s4902] sm:$0xff]
  %v4904 = vld [vmem:[%s4902 + $0x8] sm:$0xff]
  %v4905 = vld [vmem:[%s4902 + $0x10] sm:$0xff]
  %v4906 = vld [vmem:[%s4902 + $0x18] sm:$0xff]
  %v4907 = vld [vmem:[%s4902 + $0x20] sm:$0xff]
  %v4908 = vld [vmem:[%s4902 + $0x28] sm:$0xff]
  %v4909 = vld [vmem:[%s4902 + $0x30] sm:$0xff]
  %v4910 = vld [vmem:[%s4902 + $0x38] sm:$0xff]
  %v4911 = vld [vmem:[%s4902 + $0x40] sm:$0xff]
  %v4912 = vld [vmem:[%s4902 + $0x48] sm:$0xff]
  %v4913 = vld [vmem:[%s4902 + $0x50] sm:$0xff]
  %v4914 = vld [vmem:[%s4902 + $0x58] sm:$0xff]
  %v4915 = vld [vmem:[%s4902 + $0x60] sm:$0xff]
  %v4916 = vld [vmem:[%s4902 + $0x68] sm:$0xff]
  %v4917 = vld [vmem:[%s4902 + $0x70] sm:$0xff]
  %v4918 = vld [vmem:[%s4902 + $0x78] sm:$0xff]
  %4919 = vmatprep.subr.mxu0 0.0
  %4920 = vmatpush1.msra.mxu0 %v4903
  %4921 = vmatprep.subr.mxu0 0.0
  %4922 = vmatpush1.msra.mxu0 %v4904
  %4923 = vmatprep.subr.mxu0 0.0
  %4924 = vmatpush1.msra.mxu0 %v4905
  %4925 = vmatprep.subr.mxu0 0.0
  %4926 = vmatpush1.msra.mxu0 %v4906
  %4927 = vmatprep.subr.mxu0 0.0
  %4928 = vmatpush1.msra.mxu0 %v4907
  %4929 = vmatprep.subr.mxu0 0.0
  %4930 = vmatpush1.msra.mxu0 %v4908
  %4931 = vmatprep.subr.mxu0 0.0
  %4932 = vmatpush1.msra.mxu0 %v4909
  %4933 = vmatprep.subr.mxu0 0.0
  %4934 = vmatpush1.msra.mxu0 %v4910
  %4935 = vmatprep.subr.mxu0 0.0
  %4936 = vmatpush1.msra.mxu0 %v4911
  %4937 = vmatprep.subr.mxu0 0.0
  %4938 = vmatpush1.msra.mxu0 %v4912
  %4939 = vmatprep.subr.mxu0 0.0
  %4940 = vmatpush1.msra.mxu0 %v4913
  %4941 = vmatprep.subr.mxu0 0.0
  %4942 = vmatpush1.msra.mxu0 %v4914
  %4943 = vmatprep.subr.mxu0 0.0
  %4944 = vmatpush1.msra.mxu0 %v4915
  %4945 = vmatprep.subr.mxu0 0.0
  %4946 = vmatpush1.msra.mxu0 %v4916
  %4947 = vmatprep.subr.mxu0 0.0
  %4948 = vmatpush1.msra.mxu0 %v4917
  %4949 = vmatprep.subr.mxu0 0.0
  %4950 = vmatpush1.msra.mxu0 %v4918
  %4951 = vmatprep.subr.mxu0 0.0
  %4952 = vmatpush1.msra.mxu0 0.0
  %4953 = vmatprep.subr.mxu0 0.0
  %4954 = vmatpush1.msra.mxu0 0.0
  %4955 = vmatprep.subr.mxu0 0.0
  %4956 = vmatpush1.msra.mxu0 0.0
  %4957 = vmatprep.subr.mxu0 0.0
  %4958 = vmatpush1.msra.mxu0 0.0
  %4959 = vmatprep.subr.mxu0 0.0
  %4960 = vmatpush1.msra.mxu0 0.0
  %4961 = vmatprep.subr.mxu0 0.0
  %4962 = vmatpush1.msra.mxu0 0.0
  %4963 = vmatprep.subr.mxu0 0.0
  %4964 = vmatpush1.msra.mxu0 0.0
  %4965 = vmatprep.subr.mxu0 0.0
  %4966 = vmatpush1.msra.mxu0 0.0
  %4967 = vmatprep.subr.mxu0 0.0
  %4968 = vmatpush1.msra.mxu0 0.0
  %4969 = vmatprep.subr.mxu0 0.0
  %4970 = vmatpush1.msra.mxu0 0.0
  %4971 = vmatprep.subr.mxu0 0.0
  %4972 = vmatpush1.msra.mxu0 0.0
  %4973 = vmatprep.subr.mxu0 0.0
  %4974 = vmatpush1.msra.mxu0 0.0
  %4975 = vmatprep.subr.mxu0 0.0
  %4976 = vmatpush1.msra.mxu0 0.0
  %4977 = vmatprep.subr.mxu0 0.0
  %4978 = vmatpush1.msra.mxu0 0.0
  %4979 = vmatprep.subr.mxu0 0.0
  %4980 = vmatpush1.msra.mxu0 0.0
  %4981 = vmatprep.subr.mxu0 0.0
  %4982 = vmatpush1.msra.mxu0 0.0
  %4983 = vmatprep.mubr.f32.mxu0 0.0
  %4984 = vmatmul.mubr.f32.gmra.mrb[0].mxu0 %v4374
  %v4985 = vpop.f32.mrb[0].mxu0
  %v4986 = vadd.f32 0.0, %v4985
  %v4987 = vpop.f32.mrb[0].mxu0
  %4988 = vdwg.mxu0
  %v4989 = vadd.f32 %v4901, %v4986
  %s4990 = scalar_lea.vmem %s6, 896
  %v4991 = vld [vmem:[%s4990] sm:$0xff]
  %v4992 = vld [vmem:[%s4990 + $0x8] sm:$0xff]
  %v4993 = vld [vmem:[%s4990 + $0x10] sm:$0xff]
  %v4994 = vld [vmem:[%s4990 + $0x18] sm:$0xff]
  %v4995 = vld [vmem:[%s4990 + $0x20] sm:$0xff]
  %v4996 = vld [vmem:[%s4990 + $0x28] sm:$0xff]
  %v4997 = vld [vmem:[%s4990 + $0x30] sm:$0xff]
  %v4998 = vld [vmem:[%s4990 + $0x38] sm:$0xff]
  %v4999 = vld [vmem:[%s4990 + $0x40] sm:$0xff]
  %v5000 = vld [vmem:[%s4990 + $0x48] sm:$0xff]
  %v5001 = vld [vmem:[%s4990 + $0x50] sm:$0xff]
  %v5002 = vld [vmem:[%s4990 + $0x58] sm:$0xff]
  %v5003 = vld [vmem:[%s4990 + $0x60] sm:$0xff]
  %v5004 = vld [vmem:[%s4990 + $0x68] sm:$0xff]
  %v5005 = vld [vmem:[%s4990 + $0x70] sm:$0xff]
  %v5006 = vld [vmem:[%s4990 + $0x78] sm:$0xff]
  %5007 = vmatprep.subr.mxu0 0.0
  %5008 = vmatpush1.msra.mxu0 %v4991
  %5009 = vmatprep.subr.mxu0 0.0
  %5010 = vmatpush1.msra.mxu0 %v4992
  %5011 = vmatprep.subr.mxu0 0.0
  %5012 = vmatpush1.msra.mxu0 %v4993
  %5013 = vmatprep.subr.mxu0 0.0
  %5014 = vmatpush1.msra.mxu0 %v4994
  %5015 = vmatprep.subr.mxu0 0.0
  %5016 = vmatpush1.msra.mxu0 %v4995
  %5017 = vmatprep.subr.mxu0 0.0
  %5018 = vmatpush1.msra.mxu0 %v4996
  %5019 = vmatprep.subr.mxu0 0.0
  %5020 = vmatpush1.msra.mxu0 %v4997
  %5021 = vmatprep.subr.mxu0 0.0
  %5022 = vmatpush1.msra.mxu0 %v4998
  %5023 = vmatprep.subr.mxu0 0.0
  %5024 = vmatpush1.msra.mxu0 %v4999
  %5025 = vmatprep.subr.mxu0 0.0
  %5026 = vmatpush1.msra.mxu0 %v5000
  %5027 = vmatprep.subr.mxu0 0.0
  %5028 = vmatpush1.msra.mxu0 %v5001
  %5029 = vmatprep.subr.mxu0 0.0
  %5030 = vmatpush1.msra.mxu0 %v5002
  %5031 = vmatprep.subr.mxu0 0.0
  %5032 = vmatpush1.msra.mxu0 %v5003
  %5033 = vmatprep.subr.mxu0 0.0
  %5034 = vmatpush1.msra.mxu0 %v5004
  %5035 = vmatprep.subr.mxu0 0.0
  %5036 = vmatpush1.msra.mxu0 %v5005
  %5037 = vmatprep.subr.mxu0 0.0
  %5038 = vmatpush1.msra.mxu0 %v5006
  %5039 = vmatprep.subr.mxu0 0.0
  %5040 = vmatpush1.msra.mxu0 0.0
  %5041 = vmatprep.subr.mxu0 0.0
  %5042 = vmatpush1.msra.mxu0 0.0
  %5043 = vmatprep.subr.mxu0 0.0
  %5044 = vmatpush1.msra.mxu0 0.0
  %5045 = vmatprep.subr.mxu0 0.0
  %5046 = vmatpush1.msra.mxu0 0.0
  %5047 = vmatprep.subr.mxu0 0.0
  %5048 = vmatpush1.msra.mxu0 0.0
  %5049 = vmatprep.subr.mxu0 0.0
  %5050 = vmatpush1.msra.mxu0 0.0
  %5051 = vmatprep.subr.mxu0 0.0
  %5052 = vmatpush1.msra.mxu0 0.0
  %5053 = vmatprep.subr.mxu0 0.0
  %5054 = vmatpush1.msra.mxu0 0.0
  %5055 = vmatprep.subr.mxu0 0.0
  %5056 = vmatpush1.msra.mxu0 0.0
  %5057 = vmatprep.subr.mxu0 0.0
  %5058 = vmatpush1.msra.mxu0 0.0
  %5059 = vmatprep.subr.mxu0 0.0
  %5060 = vmatpush1.msra.mxu0 0.0
  %5061 = vmatprep.subr.mxu0 0.0
  %5062 = vmatpush1.msra.mxu0 0.0
  %5063 = vmatprep.subr.mxu0 0.0
  %5064 = vmatpush1.msra.mxu0 0.0
  %5065 = vmatprep.subr.mxu0 0.0
  %5066 = vmatpush1.msra.mxu0 0.0
  %5067 = vmatprep.subr.mxu0 0.0
  %5068 = vmatpush1.msra.mxu0 0.0
  %5069 = vmatprep.subr.mxu0 0.0
  %5070 = vmatpush1.msra.mxu0 0.0
  %5071 = vmatprep.mubr.f32.mxu0 0.0
  %5072 = vmatmul.mubr.f32.gmra.mrb[0].mxu0 %v4375
  %v5073 = vpop.f32.mrb[0].mxu0
  %v5074 = vadd.f32 0.0, %v5073
  %v5075 = vpop.f32.mrb[0].mxu0
  %5076 = vdwg.mxu0
  %v5077 = vadd.f32 %v4989, %v5074
  %s5078 = scalar_lea.vmem %s6, 1024
  %v5079 = vld [vmem:[%s5078] sm:$0xff]
  %v5080 = vld [vmem:[%s5078 + $0x8] sm:$0xff]
  %v5081 = vld [vmem:[%s5078 + $0x10] sm:$0xff]
  %v5082 = vld [vmem:[%s5078 + $0x18] sm:$0xff]
  %v5083 = vld [vmem:[%s5078 + $0x20] sm:$0xff]
  %v5084 = vld [vmem:[%s5078 + $0x28] sm:$0xff]
  %v5085 = vld [vmem:[%s5078 + $0x30] sm:$0xff]
  %v5086 = vld [vmem:[%s5078 + $0x38] sm:$0xff]
  %v5087 = vld [vmem:[%s5078 + $0x40] sm:$0xff]
  %v5088 = vld [vmem:[%s5078 + $0x48] sm:$0xff]
  %v5089 = vld [vmem:[%s5078 + $0x50] sm:$0xff]
  %v5090 = vld [vmem:[%s5078 + $0x58] sm:$0xff]
  %v5091 = vld [vmem:[%s5078 + $0x60] sm:$0xff]
  %v5092 = vld [vmem:[%s5078 + $0x68] sm:$0xff]
  %v5093 = vld [vmem:[%s5078 + $0x70] sm:$0xff]
  %v5094 = vld [vmem:[%s5078 + $0x78] sm:$0xff]
  %5095 = vmatprep.subr.mxu0 0.0
  %5096 = vmatpush1.msra.mxu0 %v5079
  %5097 = vmatprep.subr.mxu0 0.0
  %5098 = vmatpush1.msra.mxu0 %v5080
  %5099 = vmatprep.subr.mxu0 0.0
  %5100 = vmatpush1.msra.mxu0 %v5081
  %5101 = vmatprep.subr.mxu0 0.0
  %5102 = vmatpush1.msra.mxu0 %v5082
  %5103 = vmatprep.subr.mxu0 0.0
  %5104 = vmatpush1.msra.mxu0 %v5083
  %5105 = vmatprep.subr.mxu0 0.0
  %5106 = vmatpush1.msra.mxu0 %v5084
  %5107 = vmatprep.subr.mxu0 0.0
  %5108 = vmatpush1.msra.mxu0 %v5085
  %5109 = vmatprep.subr.mxu0 0.0
  %5110 = vmatpush1.msra.mxu0 %v5086
  %5111 = vmatprep.subr.mxu0 0.0
  %5112 = vmatpush1.msra.mxu0 %v5087
  %5113 = vmatprep.subr.mxu0 0.0
  %5114 = vmatpush1.msra.mxu0 %v5088
  %5115 = vmatprep.subr.mxu0 0.0
  %5116 = vmatpush1.msra.mxu0 %v5089
  %5117 = vmatprep.subr.mxu0 0.0
  %5118 = vmatpush1.msra.mxu0 %v5090
  %5119 = vmatprep.subr.mxu0 0.0
  %5120 = vmatpush1.msra.mxu0 %v5091
  %5121 = vmatprep.subr.mxu0 0.0
  %5122 = vmatpush1.msra.mxu0 %v5092
  %5123 = vmatprep.subr.mxu0 0.0
  %5124 = vmatpush1.msra.mxu0 %v5093
  %5125 = vmatprep.subr.mxu0 0.0
  %5126 = vmatpush1.msra.mxu0 %v5094
  %5127 = vmatprep.subr.mxu0 0.0
  %5128 = vmatpush1.msra.mxu0 0.0
  %5129 = vmatprep.subr.mxu0 0.0
  %5130 = vmatpush1.msra.mxu0 0.0
  %5131 = vmatprep.subr.mxu0 0.0
  %5132 = vmatpush1.msra.mxu0 0.0
  %5133 = vmatprep.subr.mxu0 0.0
  %5134 = vmatpush1.msra.mxu0 0.0
  %5135 = vmatprep.subr.mxu0 0.0
  %5136 = vmatpush1.msra.mxu0 0.0
  %5137 = vmatprep.subr.mxu0 0.0
  %5138 = vmatpush1.msra.mxu0 0.0
  %5139 = vmatprep.subr.mxu0 0.0
  %5140 = vmatpush1.msra.mxu0 0.0
  %5141 = vmatprep.subr.mxu0 0.0
  %5142 = vmatpush1.msra.mxu0 0.0
  %5143 = vmatprep.subr.mxu0 0.0
  %5144 = vmatpush1.msra.mxu0 0.0
  %5145 = vmatprep.subr.mxu0 0.0
  %5146 = vmatpush1.msra.mxu0 0.0
  %5147 = vmatprep.subr.mxu0 0.0
  %5148 = vmatpush1.msra.mxu0 0.0
  %5149 = vmatprep.subr.mxu0 0.0
  %5150 = vmatpush1.msra.mxu0 0.0
  %5151 = vmatprep.subr.mxu0 0.0
  %5152 = vmatpush1.msra.mxu0 0.0
  %5153 = vmatprep.subr.mxu0 0.0
  %5154 = vmatpush1.msra.mxu0 0.0
  %5155 = vmatprep.subr.mxu0 0.0
  %5156 = vmatpush1.msra.mxu0 0.0
  %5157 = vmatprep.subr.mxu0 0.0
  %5158 = vmatpush1.msra.mxu0 0.0
  %5159 = vmatprep.mubr.f32.mxu0 0.0
  %5160 = vmatmul.mubr.f32.gmra.mrb[0].mxu0 %v4376
  %v5161 = vpop.f32.mrb[0].mxu0
  %v5162 = vadd.f32 0.0, %v5161
  %v5163 = vpop.f32.mrb[0].mxu0
  %5164 = vdwg.mxu0
  %v5165 = vadd.f32 %v5077, %v5162
  %v5166 = vld [vmem:[%s7] sm:$0x1]
  %v5168 = vlaneseq
  %v5169 = vshrl.u32 %v5168, 7
  %v5170 = vsub.s32 0, %v5169
  %v5171 = vrot.slane %v5166, %v5170
  %v5173 = vadd.f32 %v5165, %v5171
  %v5174 = vmax.f32 %v5173, 0.0
  %v5175 = vld [vmem:[%s8] sm:$0xff]
  %v5176 = vadd.f32 %v5174, %v5175
  %v5177 = vld [vmem:[%s9] sm:$0xff]
  %v5178 = vld [vmem:[%s9 + $0x8] sm:$0xff]
  %v5179 = vld [vmem:[%s9 + $0x10] sm:$0xff]
  %v5180 = vld [vmem:[%s9 + $0x18] sm:$0xff]
  %v5181 = vld [vmem:[%s9 + $0x20] sm:$0xff]
  %v5182 = vld [vmem:[%s9 + $0x28] sm:$0xff]
  %v5183 = vld [vmem:[%s9 + $0x30] sm:$0xff]
  %v5184 = vld [vmem:[%s9 + $0x38] sm:$0xff]
  %v5185 = vld [vmem:[%s9 + $0x40] sm:$0xff]
  %v5186 = vld [vmem:[%s9 + $0x48] sm:$0xff]
  %v5187 = vld [vmem:[%s9 + $0x50] sm:$0xff]
  %v5188 = vld [vmem:[%s9 + $0x58] sm:$0xff]
  %v5189 = vld [vmem:[%s9 + $0x60] sm:$0xff]
  %v5190 = vld [vmem:[%s9 + $0x68] sm:$0xff]
  %v5191 = vld [vmem:[%s9 + $0x70] sm:$0xff]
  %v5192 = vld [vmem:[%s9 + $0x78] sm:$0xff]
  %v5193 = vld [vmem:[%s9 + $0x80] sm:$0xff]
  %v5194 = vld [vmem:[%s9 + $0x88] sm:$0xff]
  %v5195 = vld [vmem:[%s9 + $0x90] sm:$0xff]
  %v5196 = vld [vmem:[%s9 + $0x98] sm:$0xff]
  %v5197 = vld [vmem:[%s9 + $0xa0] sm:$0xff]
  %v5198 = vld [vmem:[%s9 + $0xa8] sm:$0xff]
  %v5199 = vld [vmem:[%s9 + $0xb0] sm:$0xff]
  %v5200 = vld [vmem:[%s9 + $0xb8] sm:$0xff]
  %v5201 = vld [vmem:[%s9 + $0xc0] sm:$0xff]
  %v5202 = vld [vmem:[%s9 + $0xc8] sm:$0xff]
  %v5203 = vld [vmem:[%s9 + $0xd0] sm:$0xff]
  %v5204 = vld [vmem:[%s9 + $0xd8] sm:$0xff]
  %v5205 = vld [vmem:[%s9 + $0xe0] sm:$0xff]
  %v5206 = vld [vmem:[%s9 + $0xe8] sm:$0xff]
  %v5207 = vld [vmem:[%s9 + $0xf0] sm:$0xff]
  %v5208 = vld [vmem:[%s9 + $0xf8] sm:$0xff]
  %v5209 = vld [vmem:[%s9 + $0x100] sm:$0xff]
  %v5210 = vld [vmem:[%s9 + $0x108] sm:$0xff]
  %v5211 = vld [vmem:[%s9 + $0x110] sm:$0xff]
  %v5212 = vld [vmem:[%s9 + $0x118] sm:$0xff]
  %v5213 = vld [vmem:[%s9 + $0x120] sm:$0xff]
  %v5214 = vld [vmem:[%s9 + $0x128] sm:$0xff]
  %v5215 = vld [vmem:[%s9 + $0x130] sm:$0xff]
  %v5216 = vld [vmem:[%s9 + $0x138] sm:$0xff]
  %v5217 = vld [vmem:[%s9 + $0x140] sm:$0xff]
  %v5218 = vld [vmem:[%s9 + $0x148] sm:$0xff]
  %v5219 = vld [vmem:[%s9 + $0x150] sm:$0xff]
  %v5220 = vld [vmem:[%s9 + $0x158] sm:$0xff]
  %v5221 = vld [vmem:[%s9 + $0x160] sm:$0xff]
  %v5222 = vld [vmem:[%s9 + $0x168] sm:$0xff]
  %v5223 = vld [vmem:[%s9 + $0x170] sm:$0xff]
  %v5224 = vld [vmem:[%s9 + $0x178] sm:$0xff]
  %v5225 = vld [vmem:[%s9 + $0x180] sm:$0xff]
  %v5226 = vld [vmem:[%s9 + $0x188] sm:$0xff]
  %v5227 = vld [vmem:[%s9 + $0x190] sm:$0xff]
  %v5228 = vld [vmem:[%s9 + $0x198] sm:$0xff]
  %v5229 = vld [vmem:[%s9 + $0x1a0] sm:$0xff]
  %v5230 = vld [vmem:[%s9 + $0x1a8] sm:$0xff]
  %v5231 = vld [vmem:[%s9 + $0x1b0] sm:$0xff]
  %v5232 = vld [vmem:[%s9 + $0x1b8] sm:$0xff]
  %v5233 = vld [vmem:[%s9 + $0x1c0] sm:$0xff]
  %v5234 = vld [vmem:[%s9 + $0x1c8] sm:$0xff]
  %v5235 = vld [vmem:[%s9 + $0x1d0] sm:$0xff]
  %v5236 = vld [vmem:[%s9 + $0x1d8] sm:$0xff]
  %v5237 = vld [vmem:[%s9 + $0x1e0] sm:$0xff]
  %v5238 = vld [vmem:[%s9 + $0x1e8] sm:$0xff]
  %v5239 = vld [vmem:[%s9 + $0x1f0] sm:$0xff]
  %v5240 = vld [vmem:[%s9 + $0x1f8] sm:$0xff]
  %v5241 = vld [vmem:[%s9 + $0x200] sm:$0xff]
  %v5242 = vld [vmem:[%s9 + $0x208] sm:$0xff]
  %v5243 = vld [vmem:[%s9 + $0x210] sm:$0xff]
  %v5244 = vld [vmem:[%s9 + $0x218] sm:$0xff]
  %v5245 = vld [vmem:[%s9 + $0x220] sm:$0xff]
  %v5246 = vld [vmem:[%s9 + $0x228] sm:$0xff]
  %v5247 = vld [vmem:[%s9 + $0x230] sm:$0xff]
  %v5248 = vld [vmem:[%s9 + $0x238] sm:$0xff]
  %v5249 = vld [vmem:[%s9 + $0x240] sm:$0xff]
  %v5250 = vld [vmem:[%s9 + $0x248] sm:$0xff]
  %v5251 = vld [vmem:[%s9 + $0x250] sm:$0xff]
  %v5252 = vld [vmem:[%s9 + $0x258] sm:$0xff]
  %v5253 = vld [vmem:[%s9 + $0x260] sm:$0xff]
  %v5254 = vld [vmem:[%s9 + $0x268] sm:$0xff]
  %v5255 = vld [vmem:[%s9 + $0x270] sm:$0xff]
  %v5256 = vld [vmem:[%s9 + $0x278] sm:$0xff]
  %v5257 = vld [vmem:[%s9 + $0x280] sm:$0xff]
  %v5258 = vld [vmem:[%s9 + $0x288] sm:$0xff]
  %v5259 = vld [vmem:[%s9 + $0x290] sm:$0xff]
  %v5260 = vld [vmem:[%s9 + $0x298] sm:$0xff]
  %v5261 = vld [vmem:[%s9 + $0x2a0] sm:$0xff]
  %v5262 = vld [vmem:[%s9 + $0x2a8] sm:$0xff]
  %v5263 = vld [vmem:[%s9 + $0x2b0] sm:$0xff]
  %v5264 = vld [vmem:[%s9 + $0x2b8] sm:$0xff]
  %v5265 = vld [vmem:[%s9 + $0x2c0] sm:$0xff]
  %v5266 = vld [vmem:[%s9 + $0x2c8] sm:$0xff]
  %v5267 = vld [vmem:[%s9 + $0x2d0] sm:$0xff]
  %v5268 = vld [vmem:[%s9 + $0x2d8] sm:$0xff]
  %v5269 = vld [vmem:[%s9 + $0x2e0] sm:$0xff]
  %v5270 = vld [vmem:[%s9 + $0x2e8] sm:$0xff]
  %v5271 = vld [vmem:[%s9 + $0x2f0] sm:$0xff]
  %v5272 = vld [vmem:[%s9 + $0x2f8] sm:$0xff]
  %v5273 = vld [vmem:[%s9 + $0x300] sm:$0xff]
  %v5274 = vld [vmem:[%s9 + $0x308] sm:$0xff]
  %v5275 = vld [vmem:[%s9 + $0x310] sm:$0xff]
  %v5276 = vld [vmem:[%s9 + $0x318] sm:$0xff]
  %v5277 = vld [vmem:[%s9 + $0x320] sm:$0xff]
  %v5278 = vld [vmem:[%s9 + $0x328] sm:$0xff]
  %v5279 = vld [vmem:[%s9 + $0x330] sm:$0xff]
  %v5280 = vld [vmem:[%s9 + $0x338] sm:$0xff]
  %v5281 = vld [vmem:[%s9 + $0x340] sm:$0xff]
  %v5282 = vld [vmem:[%s9 + $0x348] sm:$0xff]
  %v5283 = vld [vmem:[%s9 + $0x350] sm:$0xff]
  %v5284 = vld [vmem:[%s9 + $0x358] sm:$0xff]
  %v5285 = vld [vmem:[%s9 + $0x360] sm:$0xff]
  %v5286 = vld [vmem:[%s9 + $0x368] sm:$0xff]
  %v5287 = vld [vmem:[%s9 + $0x370] sm:$0xff]
  %v5288 = vld [vmem:[%s9 + $0x378] sm:$0xff]
  %v5289 = vld [vmem:[%s9 + $0x380] sm:$0xff]
  %v5290 = vld [vmem:[%s9 + $0x388] sm:$0xff]
  %v5291 = vld [vmem:[%s9 + $0x390] sm:$0xff]
  %v5292 = vld [vmem:[%s9 + $0x398] sm:$0xff]
  %v5293 = vld [vmem:[%s9 + $0x3a0] sm:$0xff]
  %v5294 = vld [vmem:[%s9 + $0x3a8] sm:$0xff]
  %v5295 = vld [vmem:[%s9 + $0x3b0] sm:$0xff]
  %v5296 = vld [vmem:[%s9 + $0x3b8] sm:$0xff]
  %v5297 = vld [vmem:[%s9 + $0x3c0] sm:$0xff]
  %v5298 = vld [vmem:[%s9 + $0x3c8] sm:$0xff]
  %v5299 = vld [vmem:[%s9 + $0x3d0] sm:$0xff]
  %v5300 = vld [vmem:[%s9 + $0x3d8] sm:$0xff]
  %v5301 = vld [vmem:[%s9 + $0x3e0] sm:$0xff]
  %v5302 = vld [vmem:[%s9 + $0x3e8] sm:$0xff]
  %v5303 = vld [vmem:[%s9 + $0x3f0] sm:$0xff]
  %v5304 = vld [vmem:[%s9 + $0x3f8] sm:$0xff]
  %v5305 = vld [vmem:[%s10] sm:$0xff]
  %v5307 = vlaneseq
  %v5308 = vshrl.u32 %v5307, 7
  %v5309 = vsub.s32 0, %v5308
  %v5310 = vrot.slane %v5305, %v5309
  %v5311 = vlaneseq
  %v5312 = vshrl.u32 %v5311, 7
  %v5313 = vsub.s32 1, %v5312
  %v5314 = vrot.slane %v5305, %v5313
  %v5315 = vlaneseq
  %v5316 = vshrl.u32 %v5315, 7
  %v5317 = vsub.s32 2, %v5316
  %v5318 = vrot.slane %v5305, %v5317
  %v5319 = vlaneseq
  %v5320 = vshrl.u32 %v5319, 7
  %v5321 = vsub.s32 3, %v5320
  %v5322 = vrot.slane %v5305, %v5321
  %v5323 = vlaneseq
  %v5324 = vshrl.u32 %v5323, 7
  %v5325 = vsub.s32 4, %v5324
  %v5326 = vrot.slane %v5305, %v5325
  %v5327 = vlaneseq
  %v5328 = vshrl.u32 %v5327, 7
  %v5329 = vsub.s32 5, %v5328
  %v5330 = vrot.slane %v5305, %v5329
  %v5331 = vlaneseq
  %v5332 = vshrl.u32 %v5331, 7
  %v5333 = vsub.s32 6, %v5332
  %v5334 = vrot.slane %v5305, %v5333
  %v5335 = vlaneseq
  %v5336 = vshrl.u32 %v5335, 7
  %v5337 = vsub.s32 7, %v5336
  %v5338 = vrot.slane %v5305, %v5337
  %5347 = vmatprep.subr.mxu0 %v5178
  %5348 = vmatpush1.msra.mxu0 %v5177
  %5349 = vmatprep.subr.mxu0 %v5186
  %5350 = vmatpush1.msra.mxu0 %v5185
  %5351 = vmatprep.subr.mxu0 %v5194
  %5352 = vmatpush1.msra.mxu0 %v5193
  %5353 = vmatprep.subr.mxu0 %v5202
  %5354 = vmatpush1.msra.mxu0 %v5201
  %5355 = vmatprep.subr.mxu0 %v5210
  %5356 = vmatpush1.msra.mxu0 %v5209
  %5357 = vmatprep.subr.mxu0 %v5218
  %5358 = vmatpush1.msra.mxu0 %v5217
  %5359 = vmatprep.subr.mxu0 %v5226
  %5360 = vmatpush1.msra.mxu0 %v5225
  %5361 = vmatprep.subr.mxu0 %v5234
  %5362 = vmatpush1.msra.mxu0 %v5233
  %5363 = vmatprep.subr.mxu0 %v5242
  %5364 = vmatpush1.msra.mxu0 %v5241
  %5365 = vmatprep.subr.mxu0 %v5250
  %5366 = vmatpush1.msra.mxu0 %v5249
  %5367 = vmatprep.subr.mxu0 %v5258
  %5368 = vmatpush1.msra.mxu0 %v5257
  %5369 = vmatprep.subr.mxu0 %v5266
  %5370 = vmatpush1.msra.mxu0 %v5265
  %5371 = vmatprep.subr.mxu0 %v5274
  %5372 = vmatpush1.msra.mxu0 %v5273
  %5373 = vmatprep.subr.mxu0 %v5282
  %5374 = vmatpush1.msra.mxu0 %v5281
  %5375 = vmatprep.subr.mxu0 %v5290
  %5376 = vmatpush1.msra.mxu0 %v5289
  %5377 = vmatprep.subr.mxu0 %v5298
  %5378 = vmatpush1.msra.mxu0 %v5297
  %5379 = vmatprep.subr.mxu0 0.0
  %5380 = vmatpush1.msra.mxu0 0.0
  %5381 = vmatprep.subr.mxu0 0.0
  %5382 = vmatpush1.msra.mxu0 0.0
  %5383 = vmatprep.subr.mxu0 0.0
  %5384 = vmatpush1.msra.mxu0 0.0
  %5385 = vmatprep.subr.mxu0 0.0
  %5386 = vmatpush1.msra.mxu0 0.0
  %5387 = vmatprep.subr.mxu0 0.0
  %5388 = vmatpush1.msra.mxu0 0.0
  %5389 = vmatprep.subr.mxu0 0.0
  %5390 = vmatpush1.msra.mxu0 0.0
  %5391 = vmatprep.subr.mxu0 0.0
  %5392 = vmatpush1.msra.mxu0 0.0
  %5393 = vmatprep.subr.mxu0 0.0
  %5394 = vmatpush1.msra.mxu0 0.0
  %5395 = vmatprep.subr.mxu0 0.0
  %5396 = vmatpush1.msra.mxu0 0.0
  %5397 = vmatprep.subr.mxu0 0.0
  %5398 = vmatpush1.msra.mxu0 0.0
  %5399 = vmatprep.subr.mxu0 0.0
  %5400 = vmatpush1.msra.mxu0 0.0
  %5401 = vmatprep.subr.mxu0 0.0
  %5402 = vmatpush1.msra.mxu0 0.0
  %5403 = vmatprep.subr.mxu0 0.0
  %5404 = vmatpush1.msra.mxu0 0.0
  %5405 = vmatprep.subr.mxu0 0.0
  %5406 = vmatpush1.msra.mxu0 0.0
  %5407 = vmatprep.subr.mxu0 0.0
  %5408 = vmatpush1.msra.mxu0 0.0
  %5409 = vmatprep.subr.mxu0 0.0
  %5410 = vmatpush1.msra.mxu0 0.0
  %5411 = vmatprep.mubr.f32.mxu0 0.0
  %5412 = vmatmul.mubr.f32.gmra.mrb[0].mxu0 %v5176
  %v5413 = vpop.f32.mrb[0].mxu0
  %v5414 = vadd.f32 %v5310, %v5413
  %v5415 = vpop.f32.mrb[0].mxu0
  %v5416 = vadd.f32 %v5314, %v5415
  %5417 = vdwg.mxu0
  %5418 = vmatprep.subr.mxu0 %v5180
  %5419 = vmatpush1.msra.mxu0 %v5179
  %5420 = vmatprep.subr.mxu0 %v5188
  %5421 = vmatpush1.msra.mxu0 %v5187
  %5422 = vmatprep.subr.mxu0 %v5196
  %5423 = vmatpush1.msra.mxu0 %v5195
  %5424 = vmatprep.subr.mxu0 %v5204
  %5425 = vmatpush1.msra.mxu0 %v5203
  %5426 = vmatprep.subr.mxu0 %v5212
  %5427 = vmatpush1.msra.mxu0 %v5211
  %5428 = vmatprep.subr.mxu0 %v5220
  %5429 = vmatpush1.msra.mxu0 %v5219
  %5430 = vmatprep.subr.mxu0 %v5228
  %5431 = vmatpush1.msra.mxu0 %v5227
  %5432 = vmatprep.subr.mxu0 %v5236
  %5433 = vmatpush1.msra.mxu0 %v5235
  %5434 = vmatprep.subr.mxu0 %v5244
  %5435 = vmatpush1.msra.mxu0 %v5243
  %5436 = vmatprep.subr.mxu0 %v5252
  %5437 = vmatpush1.msra.mxu0 %v5251
  %5438 = vmatprep.subr.mxu0 %v5260
  %5439 = vmatpush1.msra.mxu0 %v5259
  %5440 = vmatprep.subr.mxu0 %v5268
  %5441 = vmatpush1.msra.mxu0 %v5267
  %5442 = vmatprep.subr.mxu0 %v5276
  %5443 = vmatpush1.msra.mxu0 %v5275
  %5444 = vmatprep.subr.mxu0 %v5284
  %5445 = vmatpush1.msra.mxu0 %v5283
  %5446 = vmatprep.subr.mxu0 %v5292
  %5447 = vmatpush1.msra.mxu0 %v5291
  %5448 = vmatprep.subr.mxu0 %v5300
  %5449 = vmatpush1.msra.mxu0 %v5299
  %5450 = vmatprep.subr.mxu0 0.0
  %5451 = vmatpush1.msra.mxu0 0.0
  %5452 = vmatprep.subr.mxu0 0.0
  %5453 = vmatpush1.msra.mxu0 0.0
  %5454 = vmatprep.subr.mxu0 0.0
  %5455 = vmatpush1.msra.mxu0 0.0
  %5456 = vmatprep.subr.mxu0 0.0
  %5457 = vmatpush1.msra.mxu0 0.0
  %5458 = vmatprep.subr.mxu0 0.0
  %5459 = vmatpush1.msra.mxu0 0.0
  %5460 = vmatprep.subr.mxu0 0.0
  %5461 = vmatpush1.msra.mxu0 0.0
  %5462 = vmatprep.subr.mxu0 0.0
  %5463 = vmatpush1.msra.mxu0 0.0
  %5464 = vmatprep.subr.mxu0 0.0
  %5465 = vmatpush1.msra.mxu0 0.0
  %5466 = vmatprep.subr.mxu0 0.0
  %5467 = vmatpush1.msra.mxu0 0.0
  %5468 = vmatprep.subr.mxu0 0.0
  %5469 = vmatpush1.msra.mxu0 0.0
  %5470 = vmatprep.subr.mxu0 0.0
  %5471 = vmatpush1.msra.mxu0 0.0
  %5472 = vmatprep.subr.mxu0 0.0
  %5473 = vmatpush1.msra.mxu0 0.0
  %5474 = vmatprep.subr.mxu0 0.0
  %5475 = vmatpush1.msra.mxu0 0.0
  %5476 = vmatprep.subr.mxu0 0.0
  %5477 = vmatpush1.msra.mxu0 0.0
  %5478 = vmatprep.subr.mxu0 0.0
  %5479 = vmatpush1.msra.mxu0 0.0
  %5480 = vmatprep.subr.mxu0 0.0
  %5481 = vmatpush1.msra.mxu0 0.0
  %5482 = vmatprep.mubr.f32.mxu0 0.0
  %5483 = vmatmul.mubr.f32.gmra.mrb[0].mxu0 %v5176
  %v5484 = vpop.f32.mrb[0].mxu0
  %v5485 = vadd.f32 %v5318, %v5484
  %v5486 = vpop.f32.mrb[0].mxu0
  %v5487 = vadd.f32 %v5322, %v5486
  %5488 = vdwg.mxu0
  %5489 = vmatprep.subr.mxu0 %v5182
  %5490 = vmatpush1.msra.mxu0 %v5181
  %5491 = vmatprep.subr.mxu0 %v5190
  %5492 = vmatpush1.msra.mxu0 %v5189
  %5493 = vmatprep.subr.mxu0 %v5198
  %5494 = vmatpush1.msra.mxu0 %v5197
  %5495 = vmatprep.subr.mxu0 %v5206
  %5496 = vmatpush1.msra.mxu0 %v5205
  %5497 = vmatprep.subr.mxu0 %v5214
  %5498 = vmatpush1.msra.mxu0 %v5213
  %5499 = vmatprep.subr.mxu0 %v5222
  %5500 = vmatpush1.msra.mxu0 %v5221
  %5501 = vmatprep.subr.mxu0 %v5230
  %5502 = vmatpush1.msra.mxu0 %v5229
  %5503 = vmatprep.subr.mxu0 %v5238
  %5504 = vmatpush1.msra.mxu0 %v5237
  %5505 = vmatprep.subr.mxu0 %v5246
  %5506 = vmatpush1.msra.mxu0 %v5245
  %5507 = vmatprep.subr.mxu0 %v5254
  %5508 = vmatpush1.msra.mxu0 %v5253
  %5509 = vmatprep.subr.mxu0 %v5262
  %5510 = vmatpush1.msra.mxu0 %v5261
  %5511 = vmatprep.subr.mxu0 %v5270
  %5512 = vmatpush1.msra.mxu0 %v5269
  %5513 = vmatprep.subr.mxu0 %v5278
  %5514 = vmatpush1.msra.mxu0 %v5277
  %5515 = vmatprep.subr.mxu0 %v5286
  %5516 = vmatpush1.msra.mxu0 %v5285
  %5517 = vmatprep.subr.mxu0 %v5294
  %5518 = vmatpush1.msra.mxu0 %v5293
  %5519 = vmatprep.subr.mxu0 %v5302
  %5520 = vmatpush1.msra.mxu0 %v5301
  %5521 = vmatprep.subr.mxu0 0.0
  %5522 = vmatpush1.msra.mxu0 0.0
  %5523 = vmatprep.subr.mxu0 0.0
  %5524 = vmatpush1.msra.mxu0 0.0
  %5525 = vmatprep.subr.mxu0 0.0
  %5526 = vmatpush1.msra.mxu0 0.0
  %5527 = vmatprep.subr.mxu0 0.0
  %5528 = vmatpush1.msra.mxu0 0.0
  %5529 = vmatprep.subr.mxu0 0.0
  %5530 = vmatpush1.msra.mxu0 0.0
  %5531 = vmatprep.subr.mxu0 0.0
  %5532 = vmatpush1.msra.mxu0 0.0
  %5533 = vmatprep.subr.mxu0 0.0
  %5534 = vmatpush1.msra.mxu0 0.0
  %5535 = vmatprep.subr.mxu0 0.0
  %5536 = vmatpush1.msra.mxu0 0.0
  %5537 = vmatprep.subr.mxu0 0.0
  %5538 = vmatpush1.msra.mxu0 0.0
  %5539 = vmatprep.subr.mxu0 0.0
  %5540 = vmatpush1.msra.mxu0 0.0
  %5541 = vmatprep.subr.mxu0 0.0
  %5542 = vmatpush1.msra.mxu0 0.0
  %5543 = vmatprep.subr.mxu0 0.0
  %5544 = vmatpush1.msra.mxu0 0.0
  %5545 = vmatprep.subr.mxu0 0.0
  %5546 = vmatpush1.msra.mxu0 0.0
  %5547 = vmatprep.subr.mxu0 0.0
  %5548 = vmatpush1.msra.mxu0 0.0
  %5549 = vmatprep.subr.mxu0 0.0
  %5550 = vmatpush1.msra.mxu0 0.0
  %5551 = vmatprep.subr.mxu0 0.0
  %5552 = vmatpush1.msra.mxu0 0.0
  %5553 = vmatprep.mubr.f32.mxu0 0.0
  %5554 = vmatmul.mubr.f32.gmra.mrb[0].mxu0 %v5176
  %v5555 = vpop.f32.mrb[0].mxu0
  %v5556 = vadd.f32 %v5326, %v5555
  %v5557 = vpop.f32.mrb[0].mxu0
  %v5558 = vadd.f32 %v5330, %v5557
  %5559 = vdwg.mxu0
  %5560 = vmatprep.subr.mxu0 %v5184
  %5561 = vmatpush1.msra.mxu0 %v5183
  %5562 = vmatprep.subr.mxu0 %v5192
  %5563 = vmatpush1.msra.mxu0 %v5191
  %5564 = vmatprep.subr.mxu0 %v5200
  %5565 = vmatpush1.msra.mxu0 %v5199
  %5566 = vmatprep.subr.mxu0 %v5208
  %5567 = vmatpush1.msra.mxu0 %v5207
  %5568 = vmatprep.subr.mxu0 %v5216
  %5569 = vmatpush1.msra.mxu0 %v5215
  %5570 = vmatprep.subr.mxu0 %v5224
  %5571 = vmatpush1.msra.mxu0 %v5223
  %5572 = vmatprep.subr.mxu0 %v5232
  %5573 = vmatpush1.msra.mxu0 %v5231
  %5574 = vmatprep.subr.mxu0 %v5240
  %5575 = vmatpush1.msra.mxu0 %v5239
  %5576 = vmatprep.subr.mxu0 %v5248
  %5577 = vmatpush1.msra.mxu0 %v5247
  %5578 = vmatprep.subr.mxu0 %v5256
  %5579 = vmatpush1.msra.mxu0 %v5255
  %5580 = vmatprep.subr.mxu0 %v5264
  %5581 = vmatpush1.msra.mxu0 %v5263
  %5582 = vmatprep.subr.mxu0 %v5272
  %5583 = vmatpush1.msra.mxu0 %v5271
  %5584 = vmatprep.subr.mxu0 %v5280
  %5585 = vmatpush1.msra.mxu0 %v5279
  %5586 = vmatprep.subr.mxu0 %v5288
  %5587 = vmatpush1.msra.mxu0 %v5287
  %5588 = vmatprep.subr.mxu0 %v5296
  %5589 = vmatpush1.msra.mxu0 %v5295
  %5590 = vmatprep.subr.mxu0 %v5304
  %5591 = vmatpush1.msra.mxu0 %v5303
  %5592 = vmatprep.subr.mxu0 0.0
  %5593 = vmatpush1.msra.mxu0 0.0
  %5594 = vmatprep.subr.mxu0 0.0
  %5595 = vmatpush1.msra.mxu0 0.0
  %5596 = vmatprep.subr.mxu0 0.0
  %5597 = vmatpush1.msra.mxu0 0.0
  %5598 = vmatprep.subr.mxu0 0.0
  %5599 = vmatpush1.msra.mxu0 0.0
  %5600 = vmatprep.subr.mxu0 0.0
  %5601 = vmatpush1.msra.mxu0 0.0
  %5602 = vmatprep.subr.mxu0 0.0
  %5603 = vmatpush1.msra.mxu0 0.0
  %5604 = vmatprep.subr.mxu0 0.0
  %5605 = vmatpush1.msra.mxu0 0.0
  %5606 = vmatprep.subr.mxu0 0.0
  %5607 = vmatpush1.msra.mxu0 0.0
  %5608 = vmatprep.subr.mxu0 0.0
  %5609 = vmatpush1.msra.mxu0 0.0
  %5610 = vmatprep.subr.mxu0 0.0
  %5611 = vmatpush1.msra.mxu0 0.0
  %5612 = vmatprep.subr.mxu0 0.0
  %5613 = vmatpush1.msra.mxu0 0.0
  %5614 = vmatprep.subr.mxu0 0.0
  %5615 = vmatpush1.msra.mxu0 0.0
  %5616 = vmatprep.subr.mxu0 0.0
  %5617 = vmatpush1.msra.mxu0 0.0
  %5618 = vmatprep.subr.mxu0 0.0
  %5619 = vmatpush1.msra.mxu0 0.0
  %5620 = vmatprep.subr.mxu0 0.0
  %5621 = vmatpush1.msra.mxu0 0.0
  %5622 = vmatprep.subr.mxu0 0.0
  %5623 = vmatpush1.msra.mxu0 0.0
  %5624 = vmatprep.mubr.f32.mxu0 0.0
  %5625 = vmatmul.mubr.f32.gmra.mrb[0].mxu0 %v5176
  %v5626 = vpop.f32.mrb[0].mxu0
  %v5627 = vadd.f32 %v5334, %v5626
  %v5628 = vpop.f32.mrb[0].mxu0
  %v5629 = vadd.f32 %v5338, %v5628
  %5630 = vdwg.mxu0
  %v5631 = vmax.f32 %v5414, 0.0
  %v5632 = vmax.f32 %v5416, 0.0
  %v5633 = vmax.f32 %v5485, 0.0
  %v5634 = vmax.f32 %v5487, 0.0
  %v5635 = vmax.f32 %v5556, 0.0
  %v5636 = vmax.f32 %v5558, 0.0
  %v5637 = vmax.f32 %v5627, 0.0
  %v5638 = vmax.f32 %v5629, 0.0
  %v5639 = vld [vmem:[%s11] sm:$0xff]
  %v5640 = vld [vmem:[%s11 + $0x8] sm:$0xff]
  %v5641 = vld [vmem:[%s11 + $0x10] sm:$0xff]
  %v5642 = vld [vmem:[%s11 + $0x18] sm:$0xff]
  %v5643 = vld [vmem:[%s11 + $0x20] sm:$0xff]
  %v5644 = vld [vmem:[%s11 + $0x28] sm:$0xff]
  %v5645 = vld [vmem:[%s11 + $0x30] sm:$0xff]
  %v5646 = vld [vmem:[%s11 + $0x38] sm:$0xff]
  %v5647 = vld [vmem:[%s11 + $0x40] sm:$0xff]
  %v5648 = vld [vmem:[%s11 + $0x48] sm:$0xff]
  %v5649 = vld [vmem:[%s11 + $0x50] sm:$0xff]
  %v5650 = vld [vmem:[%s11 + $0x58] sm:$0xff]
  %v5651 = vld [vmem:[%s11 + $0x60] sm:$0xff]
  %v5652 = vld [vmem:[%s11 + $0x68] sm:$0xff]
  %v5653 = vld [vmem:[%s11 + $0x70] sm:$0xff]
  %v5654 = vld [vmem:[%s11 + $0x78] sm:$0xff]
  %v5655 = vld [vmem:[%s11 + $0x80] sm:$0xff]
  %v5656 = vld [vmem:[%s11 + $0x88] sm:$0xff]
  %v5657 = vld [vmem:[%s11 + $0x90] sm:$0xff]
  %v5658 = vld [vmem:[%s11 + $0x98] sm:$0xff]
  %v5659 = vld [vmem:[%s11 + $0xa0] sm:$0xff]
  %v5660 = vld [vmem:[%s11 + $0xa8] sm:$0xff]
  %v5661 = vld [vmem:[%s11 + $0xb0] sm:$0xff]
  %v5662 = vld [vmem:[%s11 + $0xb8] sm:$0xff]
  %v5663 = vld [vmem:[%s11 + $0xc0] sm:$0xff]
  %v5664 = vld [vmem:[%s11 + $0xc8] sm:$0xff]
  %v5665 = vld [vmem:[%s11 + $0xd0] sm:$0xff]
  %v5666 = vld [vmem:[%s11 + $0xd8] sm:$0xff]
  %v5667 = vld [vmem:[%s11 + $0xe0] sm:$0xff]
  %v5668 = vld [vmem:[%s11 + $0xe8] sm:$0xff]
  %v5669 = vld [vmem:[%s11 + $0xf0] sm:$0xff]
  %v5670 = vld [vmem:[%s11 + $0xf8] sm:$0xff]
  %v5671 = vld [vmem:[%s11 + $0x100] sm:$0xff]
  %v5672 = vld [vmem:[%s11 + $0x108] sm:$0xff]
  %v5673 = vld [vmem:[%s11 + $0x110] sm:$0xff]
  %v5674 = vld [vmem:[%s11 + $0x118] sm:$0xff]
  %v5675 = vld [vmem:[%s11 + $0x120] sm:$0xff]
  %v5676 = vld [vmem:[%s11 + $0x128] sm:$0xff]
  %v5677 = vld [vmem:[%s11 + $0x130] sm:$0xff]
  %v5678 = vld [vmem:[%s11 + $0x138] sm:$0xff]
  %v5679 = vld [vmem:[%s11 + $0x140] sm:$0xff]
  %v5680 = vld [vmem:[%s11 + $0x148] sm:$0xff]
  %v5681 = vld [vmem:[%s11 + $0x150] sm:$0xff]
  %v5682 = vld [vmem:[%s11 + $0x158] sm:$0xff]
  %v5683 = vld [vmem:[%s11 + $0x160] sm:$0xff]
  %v5684 = vld [vmem:[%s11 + $0x168] sm:$0xff]
  %v5685 = vld [vmem:[%s11 + $0x170] sm:$0xff]
  %v5686 = vld [vmem:[%s11 + $0x178] sm:$0xff]
  %v5687 = vld [vmem:[%s11 + $0x180] sm:$0xff]
  %v5688 = vld [vmem:[%s11 + $0x188] sm:$0xff]
  %v5689 = vld [vmem:[%s11 + $0x190] sm:$0xff]
  %v5690 = vld [vmem:[%s11 + $0x198] sm:$0xff]
  %v5691 = vld [vmem:[%s11 + $0x1a0] sm:$0xff]
  %v5692 = vld [vmem:[%s11 + $0x1a8] sm:$0xff]
  %v5693 = vld [vmem:[%s11 + $0x1b0] sm:$0xff]
  %v5694 = vld [vmem:[%s11 + $0x1b8] sm:$0xff]
  %v5695 = vld [vmem:[%s11 + $0x1c0] sm:$0xff]
  %v5696 = vld [vmem:[%s11 + $0x1c8] sm:$0xff]
  %v5697 = vld [vmem:[%s11 + $0x1d0] sm:$0xff]
  %v5698 = vld [vmem:[%s11 + $0x1d8] sm:$0xff]
  %v5699 = vld [vmem:[%s11 + $0x1e0] sm:$0xff]
  %v5700 = vld [vmem:[%s11 + $0x1e8] sm:$0xff]
  %v5701 = vld [vmem:[%s11 + $0x1f0] sm:$0xff]
  %v5702 = vld [vmem:[%s11 + $0x1f8] sm:$0xff]
  %v5703 = vld [vmem:[%s11 + $0x200] sm:$0xff]
  %v5704 = vld [vmem:[%s11 + $0x208] sm:$0xff]
  %v5705 = vld [vmem:[%s11 + $0x210] sm:$0xff]
  %v5706 = vld [vmem:[%s11 + $0x218] sm:$0xff]
  %v5707 = vld [vmem:[%s11 + $0x220] sm:$0xff]
  %v5708 = vld [vmem:[%s11 + $0x228] sm:$0xff]
  %v5709 = vld [vmem:[%s11 + $0x230] sm:$0xff]
  %v5710 = vld [vmem:[%s11 + $0x238] sm:$0xff]
  %v5711 = vld [vmem:[%s11 + $0x240] sm:$0xff]
  %v5712 = vld [vmem:[%s11 + $0x248] sm:$0xff]
  %v5713 = vld [vmem:[%s11 + $0x250] sm:$0xff]
  %v5714 = vld [vmem:[%s11 + $0x258] sm:$0xff]
  %v5715 = vld [vmem:[%s11 + $0x260] sm:$0xff]
  %v5716 = vld [vmem:[%s11 + $0x268] sm:$0xff]
  %v5717 = vld [vmem:[%s11 + $0x270] sm:$0xff]
  %v5718 = vld [vmem:[%s11 + $0x278] sm:$0xff]
  %v5719 = vld [vmem:[%s11 + $0x280] sm:$0xff]
  %v5720 = vld [vmem:[%s11 + $0x288] sm:$0xff]
  %v5721 = vld [vmem:[%s11 + $0x290] sm:$0xff]
  %v5722 = vld [vmem:[%s11 + $0x298] sm:$0xff]
  %v5723 = vld [vmem:[%s11 + $0x2a0] sm:$0xff]
  %v5724 = vld [vmem:[%s11 + $0x2a8] sm:$0xff]
  %v5725 = vld [vmem:[%s11 + $0x2b0] sm:$0xff]
  %v5726 = vld [vmem:[%s11 + $0x2b8] sm:$0xff]
  %v5727 = vld [vmem:[%s11 + $0x2c0] sm:$0xff]
  %v5728 = vld [vmem:[%s11 + $0x2c8] sm:$0xff]
  %v5729 = vld [vmem:[%s11 + $0x2d0] sm:$0xff]
  %v5730 = vld [vmem:[%s11 + $0x2d8] sm:$0xff]
  %v5731 = vld [vmem:[%s11 + $0x2e0] sm:$0xff]
  %v5732 = vld [vmem:[%s11 + $0x2e8] sm:$0xff]
  %v5733 = vld [vmem:[%s11 + $0x2f0] sm:$0xff]
  %v5734 = vld [vmem:[%s11 + $0x2f8] sm:$0xff]
  %v5735 = vld [vmem:[%s11 + $0x300] sm:$0xff]
  %v5736 = vld [vmem:[%s11 + $0x308] sm:$0xff]
  %v5737 = vld [vmem:[%s11 + $0x310] sm:$0xff]
  %v5738 = vld [vmem:[%s11 + $0x318] sm:$0xff]
  %v5739 = vld [vmem:[%s11 + $0x320] sm:$0xff]
  %v5740 = vld [vmem:[%s11 + $0x328] sm:$0xff]
  %v5741 = vld [vmem:[%s11 + $0x330] sm:$0xff]
  %v5742 = vld [vmem:[%s11 + $0x338] sm:$0xff]
  %v5743 = vld [vmem:[%s11 + $0x340] sm:$0xff]
  %v5744 = vld [vmem:[%s11 + $0x348] sm:$0xff]
  %v5745 = vld [vmem:[%s11 + $0x350] sm:$0xff]
  %v5746 = vld [vmem:[%s11 + $0x358] sm:$0xff]
  %v5747 = vld [vmem:[%s11 + $0x360] sm:$0xff]
  %v5748 = vld [vmem:[%s11 + $0x368] sm:$0xff]
  %v5749 = vld [vmem:[%s11 + $0x370] sm:$0xff]
  %v5750 = vld [vmem:[%s11 + $0x378] sm:$0xff]
  %v5751 = vld [vmem:[%s11 + $0x380] sm:$0xff]
  %v5752 = vld [vmem:[%s11 + $0x388] sm:$0xff]
  %v5753 = vld [vmem:[%s11 + $0x390] sm:$0xff]
  %v5754 = vld [vmem:[%s11 + $0x398] sm:$0xff]
  %v5755 = vld [vmem:[%s11 + $0x3a0] sm:$0xff]
  %v5756 = vld [vmem:[%s11 + $0x3a8] sm:$0xff]
  %v5757 = vld [vmem:[%s11 + $0x3b0] sm:$0xff]
  %v5758 = vld [vmem:[%s11 + $0x3b8] sm:$0xff]
  %v5759 = vld [vmem:[%s11 + $0x3c0] sm:$0xff]
  %v5760 = vld [vmem:[%s11 + $0x3c8] sm:$0xff]
  %v5761 = vld [vmem:[%s11 + $0x3d0] sm:$0xff]
  %v5762 = vld [vmem:[%s11 + $0x3d8] sm:$0xff]
  %v5763 = vld [vmem:[%s11 + $0x3e0] sm:$0xff]
  %v5764 = vld [vmem:[%s11 + $0x3e8] sm:$0xff]
  %v5765 = vld [vmem:[%s11 + $0x3f0] sm:$0xff]
  %v5766 = vld [vmem:[%s11 + $0x3f8] sm:$0xff]
  %v5767 = vld [vmem:[%s12] sm:$0x1]
  %v5769 = vlaneseq
  %v5770 = vshrl.u32 %v5769, 7
  %v5771 = vsub.s32 0, %v5770
  %v5772 = vrot.slane %v5767, %v5771
  %5774 = vmatprep.subr.mxu0 0.0
  %5775 = vmatpush1.msra.mxu0 %v5639
  %5776 = vmatprep.subr.mxu0 0.0
  %5777 = vmatpush1.msra.mxu0 %v5640
  %5778 = vmatprep.subr.mxu0 0.0
  %5779 = vmatpush1.msra.mxu0 %v5641
  %5780 = vmatprep.subr.mxu0 0.0
  %5781 = vmatpush1.msra.mxu0 %v5642
  %5782 = vmatprep.subr.mxu0 0.0
  %5783 = vmatpush1.msra.mxu0 %v5643
  %5784 = vmatprep.subr.mxu0 0.0
  %5785 = vmatpush1.msra.mxu0 %v5644
  %5786 = vmatprep.subr.mxu0 0.0
  %5787 = vmatpush1.msra.mxu0 %v5645
  %5788 = vmatprep.subr.mxu0 0.0
  %5789 = vmatpush1.msra.mxu0 %v5646
  %5790 = vmatprep.subr.mxu0 0.0
  %5791 = vmatpush1.msra.mxu0 %v5647
  %5792 = vmatprep.subr.mxu0 0.0
  %5793 = vmatpush1.msra.mxu0 %v5648
  %5794 = vmatprep.subr.mxu0 0.0
  %5795 = vmatpush1.msra.mxu0 %v5649
  %5796 = vmatprep.subr.mxu0 0.0
  %5797 = vmatpush1.msra.mxu0 %v5650
  %5798 = vmatprep.subr.mxu0 0.0
  %5799 = vmatpush1.msra.mxu0 %v5651
  %5800 = vmatprep.subr.mxu0 0.0
  %5801 = vmatpush1.msra.mxu0 %v5652
  %5802 = vmatprep.subr.mxu0 0.0
  %5803 = vmatpush1.msra.mxu0 %v5653
  %5804 = vmatprep.subr.mxu0 0.0
  %5805 = vmatpush1.msra.mxu0 %v5654
  %5806 = vmatprep.subr.mxu0 0.0
  %5807 = vmatpush1.msra.mxu0 %v5655
  %5808 = vmatprep.subr.mxu0 0.0
  %5809 = vmatpush1.msra.mxu0 %v5656
  %5810 = vmatprep.subr.mxu0 0.0
  %5811 = vmatpush1.msra.mxu0 %v5657
  %5812 = vmatprep.subr.mxu0 0.0
  %5813 = vmatpush1.msra.mxu0 %v5658
  %5814 = vmatprep.subr.mxu0 0.0
  %5815 = vmatpush1.msra.mxu0 %v5659
  %5816 = vmatprep.subr.mxu0 0.0
  %5817 = vmatpush1.msra.mxu0 %v5660
  %5818 = vmatprep.subr.mxu0 0.0
  %5819 = vmatpush1.msra.mxu0 %v5661
  %5820 = vmatprep.subr.mxu0 0.0
  %5821 = vmatpush1.msra.mxu0 %v5662
  %5822 = vmatprep.subr.mxu0 0.0
  %5823 = vmatpush1.msra.mxu0 %v5663
  %5824 = vmatprep.subr.mxu0 0.0
  %5825 = vmatpush1.msra.mxu0 %v5664
  %5826 = vmatprep.subr.mxu0 0.0
  %5827 = vmatpush1.msra.mxu0 %v5665
  %5828 = vmatprep.subr.mxu0 0.0
  %5829 = vmatpush1.msra.mxu0 %v5666
  %5830 = vmatprep.subr.mxu0 0.0
  %5831 = vmatpush1.msra.mxu0 %v5667
  %5832 = vmatprep.subr.mxu0 0.0
  %5833 = vmatpush1.msra.mxu0 %v5668
  %5834 = vmatprep.subr.mxu0 0.0
  %5835 = vmatpush1.msra.mxu0 %v5669
  %5836 = vmatprep.subr.mxu0 0.0
  %5837 = vmatpush1.msra.mxu0 %v5670
  %5838 = vmatprep.mubr.f32.mxu0 %v5632
  %5839 = vmatmul.mubr.f32.gmra.mrb[0].mxu0 %v5631
  %v5840 = vpop.f32.mrb[0].mxu0
  %v5841 = vadd.f32 %v5772, %v5840
  %v5842 = vpop.f32.mrb[0].mxu0
  %5843 = vdwg.mxu0
  %5844 = vmatprep.subr.mxu0 0.0
  %5845 = vmatpush1.msra.mxu0 %v5671
  %5846 = vmatprep.subr.mxu0 0.0
  %5847 = vmatpush1.msra.mxu0 %v5672
  %5848 = vmatprep.subr.mxu0 0.0
  %5849 = vmatpush1.msra.mxu0 %v5673
  %5850 = vmatprep.subr.mxu0 0.0
  %5851 = vmatpush1.msra.mxu0 %v5674
  %5852 = vmatprep.subr.mxu0 0.0
  %5853 = vmatpush1.msra.mxu0 %v5675
  %5854 = vmatprep.subr.mxu0 0.0
  %5855 = vmatpush1.msra.mxu0 %v5676
  %5856 = vmatprep.subr.mxu0 0.0
  %5857 = vmatpush1.msra.mxu0 %v5677
  %5858 = vmatprep.subr.mxu0 0.0
  %5859 = vmatpush1.msra.mxu0 %v5678
  %5860 = vmatprep.subr.mxu0 0.0
  %5861 = vmatpush1.msra.mxu0 %v5679
  %5862 = vmatprep.subr.mxu0 0.0
  %5863 = vmatpush1.msra.mxu0 %v5680
  %5864 = vmatprep.subr.mxu0 0.0
  %5865 = vmatpush1.msra.mxu0 %v5681
  %5866 = vmatprep.subr.mxu0 0.0
  %5867 = vmatpush1.msra.mxu0 %v5682
  %5868 = vmatprep.subr.mxu0 0.0
  %5869 = vmatpush1.msra.mxu0 %v5683
  %5870 = vmatprep.subr.mxu0 0.0
  %5871 = vmatpush1.msra.mxu0 %v5684
  %5872 = vmatprep.subr.mxu0 0.0
  %5873 = vmatpush1.msra.mxu0 %v5685
  %5874 = vmatprep.subr.mxu0 0.0
  %5875 = vmatpush1.msra.mxu0 %v5686
  %5876 = vmatprep.subr.mxu0 0.0
  %5877 = vmatpush1.msra.mxu0 %v5687
  %5878 = vmatprep.subr.mxu0 0.0
  %5879 = vmatpush1.msra.mxu0 %v5688
  %5880 = vmatprep.subr.mxu0 0.0
  %5881 = vmatpush1.msra.mxu0 %v5689
  %5882 = vmatprep.subr.mxu0 0.0
  %5883 = vmatpush1.msra.mxu0 %v5690
  %5884 = vmatprep.subr.mxu0 0.0
  %5885 = vmatpush1.msra.mxu0 %v5691
  %5886 = vmatprep.subr.mxu0 0.0
  %5887 = vmatpush1.msra.mxu0 %v5692
  %5888 = vmatprep.subr.mxu0 0.0
  %5889 = vmatpush1.msra.mxu0 %v5693
  %5890 = vmatprep.subr.mxu0 0.0
  %5891 = vmatpush1.msra.mxu0 %v5694
  %5892 = vmatprep.subr.mxu0 0.0
  %5893 = vmatpush1.msra.mxu0 %v5695
  %5894 = vmatprep.subr.mxu0 0.0
  %5895 = vmatpush1.msra.mxu0 %v5696
  %5896 = vmatprep.subr.mxu0 0.0
  %5897 = vmatpush1.msra.mxu0 %v5697
  %5898 = vmatprep.subr.mxu0 0.0
  %5899 = vmatpush1.msra.mxu0 %v5698
  %5900 = vmatprep.subr.mxu0 0.0
  %5901 = vmatpush1.msra.mxu0 %v5699
  %5902 = vmatprep.subr.mxu0 0.0
  %5903 = vmatpush1.msra.mxu0 %v5700
  %5904 = vmatprep.subr.mxu0 0.0
  %5905 = vmatpush1.msra.mxu0 %v5701
  %5906 = vmatprep.subr.mxu0 0.0
  %5907 = vmatpush1.msra.mxu0 %v5702
  %5908 = vmatprep.mubr.f32.mxu0 %v5634
  %5909 = vmatmul.mubr.f32.gmra.mrb[0].mxu0 %v5633
  %v5910 = vpop.f32.mrb[0].mxu0
  %v5911 = vadd.f32 %v5841, %v5910
  %v5912 = vpop.f32.mrb[0].mxu0
  %5913 = vdwg.mxu0
  %5914 = vmatprep.subr.mxu0 0.0
  %5915 = vmatpush1.msra.mxu0 %v5703
  %5916 = vmatprep.subr.mxu0 0.0
  %5917 = vmatpush1.msra.mxu0 %v5704
  %5918 = vmatprep.subr.mxu0 0.0
  %5919 = vmatpush1.msra.mxu0 %v5705
  %5920 = vmatprep.subr.mxu0 0.0
  %5921 = vmatpush1.msra.mxu0 %v5706
  %5922 = vmatprep.subr.mxu0 0.0
  %5923 = vmatpush1.msra.mxu0 %v5707
  %5924 = vmatprep.subr.mxu0 0.0
  %5925 = vmatpush1.msra.mxu0 %v5708
  %5926 = vmatprep.subr.mxu0 0.0
  %5927 = vmatpush1.msra.mxu0 %v5709
  %5928 = vmatprep.subr.mxu0 0.0
  %5929 = vmatpush1.msra.mxu0 %v5710
  %5930 = vmatprep.subr.mxu0 0.0
  %5931 = vmatpush1.msra.mxu0 %v5711
  %5932 = vmatprep.subr.mxu0 0.0
  %5933 = vmatpush1.msra.mxu0 %v5712
  %5934 = vmatprep.subr.mxu0 0.0
  %5935 = vmatpush1.msra.mxu0 %v5713
  %5936 = vmatprep.subr.mxu0 0.0
  %5937 = vmatpush1.msra.mxu0 %v5714
  %5938 = vmatprep.subr.mxu0 0.0
  %5939 = vmatpush1.msra.mxu0 %v5715
  %5940 = vmatprep.subr.mxu0 0.0
  %5941 = vmatpush1.msra.mxu0 %v5716
  %5942 = vmatprep.subr.mxu0 0.0
  %5943 = vmatpush1.msra.mxu0 %v5717
  %5944 = vmatprep.subr.mxu0 0.0
  %5945 = vmatpush1.msra.mxu0 %v5718
  %5946 = vmatprep.subr.mxu0 0.0
  %5947 = vmatpush1.msra.mxu0 %v5719
  %5948 = vmatprep.subr.mxu0 0.0
  %5949 = vmatpush1.msra.mxu0 %v5720
  %5950 = vmatprep.subr.mxu0 0.0
  %5951 = vmatpush1.msra.mxu0 %v5721
  %5952 = vmatprep.subr.mxu0 0.0
  %5953 = vmatpush1.msra.mxu0 %v5722
  %5954 = vmatprep.subr.mxu0 0.0
  %5955 = vmatpush1.msra.mxu0 %v5723
  %5956 = vmatprep.subr.mxu0 0.0
  %5957 = vmatpush1.msra.mxu0 %v5724
  %5958 = vmatprep.subr.mxu0 0.0
  %5959 = vmatpush1.msra.mxu0 %v5725
  %5960 = vmatprep.subr.mxu0 0.0
  %5961 = vmatpush1.msra.mxu0 %v5726
  %5962 = vmatprep.subr.mxu0 0.0
  %5963 = vmatpush1.msra.mxu0 %v5727
  %5964 = vmatprep.subr.mxu0 0.0
  %5965 = vmatpush1.msra.mxu0 %v5728
  %5966 = vmatprep.subr.mxu0 0.0
  %5967 = vmatpush1.msra.mxu0 %v5729
  %5968 = vmatprep.subr.mxu0 0.0
  %5969 = vmatpush1.msra.mxu0 %v5730
  %5970 = vmatprep.subr.mxu0 0.0
  %5971 = vmatpush1.msra.mxu0 %v5731
  %5972 = vmatprep.subr.mxu0 0.0
  %5973 = vmatpush1.msra.mxu0 %v5732
  %5974 = vmatprep.subr.mxu0 0.0
  %5975 = vmatpush1.msra.mxu0 %v5733
  %5976 = vmatprep.subr.mxu0 0.0
  %5977 = vmatpush1.msra.mxu0 %v5734
  %5978 = vmatprep.mubr.f32.mxu0 %v5636
  %5979 = vmatmul.mubr.f32.gmra.mrb[0].mxu0 %v5635
  %v5980 = vpop.f32.mrb[0].mxu0
  %v5981 = vadd.f32 %v5911, %v5980
  %v5982 = vpop.f32.mrb[0].mxu0
  %5983 = vdwg.mxu0
  %5984 = vmatprep.subr.mxu0 0.0
  %5985 = vmatpush1.msra.mxu0 %v5735
  %5986 = vmatprep.subr.mxu0 0.0
  %5987 = vmatpush1.msra.mxu0 %v5736
  %5988 = vmatprep.subr.mxu0 0.0
  %5989 = vmatpush1.msra.mxu0 %v5737
  %5990 = vmatprep.subr.mxu0 0.0
  %5991 = vmatpush1.msra.mxu0 %v5738
  %5992 = vmatprep.subr.mxu0 0.0
  %5993 = vmatpush1.msra.mxu0 %v5739
  %5994 = vmatprep.subr.mxu0 0.0
  %5995 = vmatpush1.msra.mxu0 %v5740
  %5996 = vmatprep.subr.mxu0 0.0
  %5997 = vmatpush1.msra.mxu0 %v5741
  %5998 = vmatprep.subr.mxu0 0.0
  %5999 = vmatpush1.msra.mxu0 %v5742
  %6000 = vmatprep.subr.mxu0 0.0
  %6001 = vmatpush1.msra.mxu0 %v5743
  %6002 = vmatprep.subr.mxu0 0.0
  %6003 = vmatpush1.msra.mxu0 %v5744
  %6004 = vmatprep.subr.mxu0 0.0
  %6005 = vmatpush1.msra.mxu0 %v5745
  %6006 = vmatprep.subr.mxu0 0.0
  %6007 = vmatpush1.msra.mxu0 %v5746
  %6008 = vmatprep.subr.mxu0 0.0
  %6009 = vmatpush1.msra.mxu0 %v5747
  %6010 = vmatprep.subr.mxu0 0.0
  %6011 = vmatpush1.msra.mxu0 %v5748
  %6012 = vmatprep.subr.mxu0 0.0
  %6013 = vmatpush1.msra.mxu0 %v5749
  %6014 = vmatprep.subr.mxu0 0.0
  %6015 = vmatpush1.msra.mxu0 %v5750
  %6016 = vmatprep.subr.mxu0 0.0
  %6017 = vmatpush1.msra.mxu0 %v5751
  %6018 = vmatprep.subr.mxu0 0.0
  %6019 = vmatpush1.msra.mxu0 %v5752
  %6020 = vmatprep.subr.mxu0 0.0
  %6021 = vmatpush1.msra.mxu0 %v5753
  %6022 = vmatprep.subr.mxu0 0.0
  %6023 = vmatpush1.msra.mxu0 %v5754
  %6024 = vmatprep.subr.mxu0 0.0
  %6025 = vmatpush1.msra.mxu0 %v5755
  %6026 = vmatprep.subr.mxu0 0.0
  %6027 = vmatpush1.msra.mxu0 %v5756
  %6028 = vmatprep.subr.mxu0 0.0
  %6029 = vmatpush1.msra.mxu0 %v5757
  %6030 = vmatprep.subr.mxu0 0.0
  %6031 = vmatpush1.msra.mxu0 %v5758
  %6032 = vmatprep.subr.mxu0 0.0
  %6033 = vmatpush1.msra.mxu0 %v5759
  %6034 = vmatprep.subr.mxu0 0.0
  %6035 = vmatpush1.msra.mxu0 %v5760
  %6036 = vmatprep.subr.mxu0 0.0
  %6037 = vmatpush1.msra.mxu0 %v5761
  %6038 = vmatprep.subr.mxu0 0.0
  %6039 = vmatpush1.msra.mxu0 %v5762
  %6040 = vmatprep.subr.mxu0 0.0
  %6041 = vmatpush1.msra.mxu0 %v5763
  %6042 = vmatprep.subr.mxu0 0.0
  %6043 = vmatpush1.msra.mxu0 %v5764
  %6044 = vmatprep.subr.mxu0 0.0
  %6045 = vmatpush1.msra.mxu0 %v5765
  %6046 = vmatprep.subr.mxu0 0.0
  %6047 = vmatpush1.msra.mxu0 %v5766
  %6048 = vmatprep.mubr.f32.mxu0 %v5638
  %6049 = vmatmul.mubr.f32.gmra.mrb[0].mxu0 %v5637
  %v6050 = vpop.f32.mrb[0].mxu0
  %v6051 = vadd.f32 %v5981, %v6050
  %v6052 = vpop.f32.mrb[0].mxu0
  %6053 = vdwg.mxu0
  %v6054 = vlaneseq
  %v6055 = vand.u32 %v6054, 127
  %v6056 = vsub.f32 0.0, %v6051
  %v6057 = vmul.f32 %v6056, 1.442695
  %v6058 = vpow.pop %v6057
  %v6059 = vadd.f32 %v6058, 1.0
  %v6060 = vrcp.pop %v6059
  %v6061 = vmul.f32 360.0, %v6060
  %vm6062 = vcmp.ge.s32.totalorder %v6055, 1
  %vm6063 = vcmp.lt.s32.totalorder %v6055, 15
  %vm6064 = vmand %vm6062, %vm6063
  %v6065 = vsel %vm6064, %v6051, -1e+30
  %6066 = vmax.xlane.f32.xlu0 %v6065
  %v6067 = vpop.xlane.xlu0 %6066
  %v6068 = vsub.f32 %v6065, %v6067
  %v6069 = vmul.f32 %v6068, 1.442695
  %v6070 = vpow.pop %v6069
  %6071 = vadd.xlane.f32.xlu0 %v6070
  %v6072 = vpop.xlane.xlu0 %6071
  %v6073 = vrcp.pop %v6072
  %v6074 = vmul.f32 %v6070, %v6073
  %vm6075 = vcmp.eq.s32.totalorder %v6055, 0
  %v6076 = vsel %vm6075, %v6061, %v6074
  %6077 = vst [vmem:[%s13] sm:$0xff] %v6076
  // Predicated region
  $region54: #{actor_cnn_forward.1} parent=0 // pred_check
    _
  $region55: #{actor_cnn_forward.1} parent=0 // pred_check_branch
    %6079 = sbr.rel (0) target = $region57
  $region56: #{actor_cnn_forward.1} parent=0 // pred_region
    _
  $region57: #{actor_cnn_forward.1} parent=0 // pred_fallthru
    _
  // Predicated region
  $region58: #{actor_cnn_forward.1} parent=0 // pred_check
    _
  $region59: #{actor_cnn_forward.1} parent=0 // pred_check_branch
    %6081 = sbr.rel (0) target = $region61
  $region60: #{actor_cnn_forward.1} parent=0 // pred_region
    _
  $region61: #{actor_cnn_forward.1} parent=0 // pred_fallthru
    _

</llo_original>
